<compile_context>
chip_gen: v7x
topology: tpu7x:2x2x1
jax: 0.10.0
libtpu: 0.0.40
codegen_flags: <defaults>
</compile_context>

<pallas_src>
import functools

import jax
import jax.numpy as jnp
from jax.experimental import pallas as pl
from jax.experimental.pallas import tpu as pltpu

_LN_EPS = 1e-5
_NEG_INF = -1e30  # large finite negative: avoids inf-inf NaN hazards


def _layer_norm(v, gamma, beta):
    mu = jnp.mean(v, axis=-1, keepdims=True)
    var = jnp.mean((v - mu) ** 2, axis=-1, keepdims=True)  # biased var (matches LayerNorm)
    return (v - mu) * jax.lax.rsqrt(var + _LN_EPS) * gamma + beta


def transformer_block_kernel(
        # inputs
        x_ref,                            # (1, TQ, D) f32  current query tile
        ln1_g_ref, ln1_b_ref,             # (1, D) f32
        wq_ref, wk_ref, wv_ref,           # (D, D) bf16
        wo_ref, bo_ref,                   # (D, D) bf16, (1, D) f32
        ln2_g_ref, ln2_b_ref,             # (1, D) f32
        w1_ref, b1_ref,                   # (D, 4D) bf16, (1, 4D) f32
        w2_ref, b2_ref,                   # (4D, D) bf16, (1, D) f32
        # output
        out_ref,                          # (1, TQ, D)
        # scratch (persist across grid steps)
        k_sc, v_sc,                       # (H, T, hd) bf16  per-row K/V cache
        m_sc, l_sc, acc_sc,               # flash accumulators (f32)
        *, num_heads, block_q):
    qi = pl.program_id(1)
    D = x_ref.shape[2]
    hd = D // num_heads
    scale = 1.0 / (hd ** 0.5)
    q_start = pl.multiple_of(qi * block_q, block_q)

    # ---- LN1 on this tile only (computed once, reused for Q, K and V) ----
    x_q = x_ref[0]                                                  # (TQ, D) f32
    xn = _layer_norm(x_q, ln1_g_ref[0], ln1_b_ref[0])
    xn_b = xn.astype(jnp.bfloat16)

    # ---- lazy K/V projection: append this tile into the per-row cache ----
    k2d = jnp.dot(xn_b, wk_ref[...], preferred_element_type=jnp.float32)
    v2d = jnp.dot(xn_b, wv_ref[...], preferred_element_type=jnp.float32)
    for h in range(num_heads):                     # static; lane-aligned slices
        k_sc[h, pl.ds(q_start, block_q), :] = (
            k2d[:, h * hd:(h + 1) * hd].astype(jnp.bfloat16))
        v_sc[h, pl.ds(q_start, block_q), :] = (
            v2d[:, h * hd:(h + 1) * hd].astype(jnp.bfloat16))

    # ---- Q projection (pre-scaled), heads stacked in registers ----
    q2d = jnp.dot(xn_b, wq_ref[...], preferred_element_type=jnp.float32) * scale
    qh = jnp.stack([q2d[:, h * hd:(h + 1) * hd] for h in range(num_heads)],
                   axis=0).astype(jnp.bfloat16)                     # (H, TQ, hd)

    # ---- flash-style causal attention over cached key tiles ----
    m_sc[...] = jnp.full_like(m_sc, _NEG_INF)
    l_sc[...] = jnp.zeros_like(l_sc)
    acc_sc[...] = jnp.zeros_like(acc_sc)

    def attend(k_start, mask):
        k_blk = k_sc[:, pl.ds(k_start, block_q), :]                 # (H, TK, hd)
        v_blk = v_sc[:, pl.ds(k_start, block_q), :]
        s = jnp.einsum('hqd,hkd->hqk', qh, k_blk,
                       preferred_element_type=jnp.float32)           # (H, TQ, TK)
        if mask is not None:
            s = jnp.where(mask, _NEG_INF, s)
        m_prev = m_sc[...]
        m_new = jnp.maximum(m_prev, jnp.max(s, axis=-1, keepdims=True))
        alpha = jnp.exp(m_prev - m_new)
        p = jnp.exp(s - m_new)
        l_sc[...] = alpha * l_sc[...] + jnp.sum(p, axis=-1, keepdims=True)
        acc_sc[...] = alpha * acc_sc[...] + jnp.einsum(
            'hqk,hkd->hqd', p.astype(jnp.bfloat16), v_blk,
            preferred_element_type=jnp.float32)
        m_sc[...] = m_new

    # Off-diagonal key tiles are fully visible: no mask, no compare/select.
    @pl.loop(0, qi)
    def _(kt):
        attend(pl.multiple_of(kt * block_q, block_q), None)

    # Diagonal tile: purely local upper-triangular mask (static iotas).
    row = jax.lax.broadcasted_iota(jnp.int32, (1, block_q, block_q), 1)
    col = jax.lax.broadcasted_iota(jnp.int32, (1, block_q, block_q), 2)
    attend(q_start, col > row)

    # ---- output projection: single (TQ, D) x (D, D) MXU matmul ----
    inv_l = pl.reciprocal(l_sc[...], approx=True)                   # (H, TQ, 1)
    ctx = jnp.concatenate(
        [(acc_sc[h] * inv_l[h]).astype(jnp.bfloat16) for h in range(num_heads)],
        axis=-1)                                                    # (TQ, D) bf16
    attn = jnp.dot(ctx, wo_ref[...],
                   preferred_element_type=jnp.float32) + bo_ref[0]

    # dropout_shortcut with p=0.0 -> identity
    x1 = x_q + attn                                                 # residual 1

    # ---- feed-forward sub-block ----
    xn2 = _layer_norm(x1, ln2_g_ref[0], ln2_b_ref[0])
    h1 = jnp.dot(xn2.astype(jnp.bfloat16), w1_ref[...],
                 preferred_element_type=jnp.float32) + b1_ref[0]
    # exact (erf) GELU — matches nn.GELU() default
    g = 0.5 * h1 * (1.0 + jax.lax.erf(h1 * 0.7071067811865476))
    ff = jnp.dot(g.astype(jnp.bfloat16), w2_ref[...],
                 preferred_element_type=jnp.float32) + b2_ref[0]

    out_ref[0] = (x1 + ff).astype(out_ref.dtype)                    # residual 2


def _vmem_limit_bytes(T, D, block_q, num_heads):
    """Explicit scoped-VMEM budget: resident weights + caches + tiles + headroom."""
    weights = 12 * D * D * 2                     # Wq,Wk,Wv,Wo,W1,W2 in bf16
    kv_cache = 2 * T * D * 2                     # K/V bf16 scratch
    tiles = 2 * 2 * block_q * D * 4              # x / out tiles, double-buffered f32
    flash = block_q * D * 4 + 4 * num_heads * block_q * 4
    temps = (2 * num_heads * block_q * block_q * 4     # score tiles (f32)
             + 3 * block_q * 4 * D * 4)                # FF intermediates (f32)
    est = weights + kv_cache + tiles + flash + temps + (8 << 20)
    cap = 100 << 20
    try:
        cap = min(cap, int(pltpu.get_tpu_info().vmem_capacity_bytes))
    except Exception:
        pass
    return int(max(min(est, cap), 32 << 20))


def transformer_block(x, params, *, num_heads, block_q=256):
    B, T, D = x.shape
    assert D % num_heads == 0, "embed_dim must be divisible by num_heads"
    hd = D // num_heads
    # TODO(synk): add a head-folded fallback layout when head_dim < 128.
    assert hd % 128 == 0, "head_dim must be a multiple of 128 (TPU lane width)"
    H4 = 4 * D
    block_q = min(block_q, T)
    assert T % block_q == 0, "context_length must be divisible by block_q"
    n_q = T // block_q

    (ln1_g, ln1_b, wq, wk, wv, wo, bo, ln2_g, ln2_b, w1, b1, w2, b2) = params
    # Weight matrices feed the MXU: store/stream them as bf16 (f32 accumulate).
    # Biases / LN params stay f32 (elementwise math kept in f32).
    wq, wk, wv, wo, w1, w2 = (w.astype(jnp.bfloat16)
                              for w in (wq, wk, wv, wo, w1, w2))

    # Whole-array, single-buffered, VMEM-resident operands (no double-buffer).
    # TODO(synk): for very large D (>~1536) stream W1/W2 via memory_space=ANY +
    # emit_pipeline instead of keeping them resident (v7x 64 MiB VMEM).
    resident = lambda: pl.BlockSpec(memory_space=pltpu.MemorySpace.VMEM)

    in_specs = [
        pl.BlockSpec((1, block_q, D), lambda b, qi: (b, qi, 0)),   # x (query tile)
        resident(), resident(),                                    # ln1 scale / shift
        resident(), resident(), resident(),                        # Wq, Wk, Wv
        resident(), resident(),                                    # Wo, bo
        resident(), resident(),                                    # ln2 scale / shift
        resident(), resident(),                                    # W1, b1
        resident(), resident(),                                    # W2, b2
    ]
    scratch_shapes = [
        pltpu.VMEM((num_heads, T, hd), jnp.bfloat16),              # K cache (head-major)
        pltpu.VMEM((num_heads, T, hd), jnp.bfloat16),              # V cache (head-major)
        pltpu.VMEM((num_heads, block_q, 1), jnp.float32),          # m (running max)
        pltpu.VMEM((num_heads, block_q, 1), jnp.float32),          # l (running sum)
        pltpu.VMEM((num_heads, block_q, hd), jnp.float32),         # acc
    ]

    kernel = functools.partial(transformer_block_kernel,
                               num_heads=num_heads, block_q=block_q)
    # NOTE: the lazy K/V cache requires the qi axis to be executed in order
    # 0..n_q-1 within each batch row -> it MUST stay "arbitrary" (sequential);
    # only the batch axis may be "parallel" (megacore-sharded).
    return pl.pallas_call(
        kernel,
        out_shape=jax.ShapeDtypeStruct((B, T, D), x.dtype),
        grid_spec=pltpu.PrefetchScalarGridSpec(
            num_scalar_prefetch=0,
            grid=(B, n_q),
            in_specs=in_specs,
            out_specs=pl.BlockSpec((1, block_q, D), lambda b, qi: (b, qi, 0)),
            scratch_shapes=scratch_shapes),
        compiler_params=pltpu.CompilerParams(
            dimension_semantics=("parallel", "arbitrary"),
            vmem_limit_bytes=_vmem_limit_bytes(T, D, block_q, num_heads)),
    )(x, ln1_g, ln1_b, wq, wk, wv, wo, bo, ln2_g, ln2_b, w1, b1, w2, b2)


def reference_block(x, params, *, num_heads):
    """Pure-JAX f32 reference with identical math (sanity check)."""
    (ln1_g, ln1_b, wq, wk, wv, wo, bo, ln2_g, ln2_b, w1, b1, w2, b2) = params
    B, T, D = x.shape
    hd = D // num_heads

    def ln(v, g, b):
        mu = jnp.mean(v, axis=-1, keepdims=True)
        var = jnp.mean((v - mu) ** 2, axis=-1, keepdims=True)
        return (v - mu) / jnp.sqrt(var + _LN_EPS) * g[0] + b[0]

    xn = ln(x, ln1_g, ln1_b)
    q = (xn @ wq).reshape(B, T, num_heads, hd)
    k = (xn @ wk).reshape(B, T, num_heads, hd)
    v = (xn @ wv).reshape(B, T, num_heads, hd)
    s = jnp.einsum("bqhd,bkhd->bhqk", q, k) / (hd ** 0.5)
    mask = jnp.triu(jnp.ones((T, T), bool), k=1)
    s = jnp.where(mask, -jnp.inf, s)
    p = jax.nn.softmax(s, axis=-1)
    ctx = jnp.einsum("bhqk,bkhd->bqhd", p, v).reshape(B, T, D)
    x1 = x + ctx @ wo + bo[0]
    xn2 = ln(x1, ln2_g, ln2_b)
    h = xn2 @ w1 + b1[0]
    g = jax.nn.gelu(h, approximate=False)
    return x1 + g @ w2 + b2[0]


if __name__ == "__main__":
    # TPU-friendly small config: head_dim = 128, T a multiple of block_q so the
    # causal flash loop exercises both the cached off-diagonal key tile and the
    # masked diagonal tile (grid = (B, 2)).
    cfg = dict(embed_dim=256, context_length=256, num_heads=2,
               dropout=0.0, qkv_bias=False)
    B = 2
    T, D, H = cfg["context_length"], cfg["embed_dim"], cfg["num_heads"]
    H4 = 4 * D

    key = jax.random.PRNGKey(0)
    keys = jax.random.split(key, 14)
    x = jax.random.normal(keys[0], (B, T, D), jnp.float32)

    init = lambda k, shape, s=0.02: s * jax.random.normal(k, shape, jnp.float32)
    params = (
        1.0 + init(keys[1], (1, D), 0.1),   # ln1 scale
        init(keys[2], (1, D), 0.1),         # ln1 shift
        init(keys[3], (D, D)),              # Wq
        init(keys[4], (D, D)),              # Wk
        init(keys[5], (D, D)),              # Wv
        init(keys[6], (D, D)),              # Wo (out_proj weight)
        init(keys[7], (1, D), 0.1),         # bo (out_proj bias)
        1.0 + init(keys[8], (1, D), 0.1),   # ln2 scale
        init(keys[9], (1, D), 0.1),         # ln2 shift
        init(keys[10], (D, H4)),            # ff W1
        init(keys[11], (1, H4), 0.1),       # ff b1
        init(keys[12], (H4, D)),            # ff W2
        init(keys[13], (1, D), 0.1),        # ff b2
    )

    out = jax.block_until_ready(
        transformer_block(x, params, num_heads=H, block_q=128))
    ref = reference_block(x, params, num_heads=H)

    assert out.shape == (B, T, D)
    max_err = float(jnp.max(jnp.abs(out - ref)))
    # bf16 MXU inputs with f32 accumulation vs f32 reference -> loosened tolerance.
    assert jnp.allclose(out, ref, atol=2e-2, rtol=2e-2), \
        f"mismatch vs reference (max abs err {max_err})"
    print("KERNEL_OK")
</pallas_src>

<mosaic_0001>
module attributes {stable_mosaic.version = 11 : i64} {
  func.func @transformer_block_kernel(%arg0: i32, %arg1: i32, %arg2: memref<1x128x256xf32, #tpu.memory_space<vmem>>, %arg3: memref<1x256xf32, #tpu.memory_space<vmem>>, %arg4: memref<1x256xf32, #tpu.memory_space<vmem>>, %arg5: memref<256x256xbf16, #tpu.memory_space<vmem>>, %arg6: memref<256x256xbf16, #tpu.memory_space<vmem>>, %arg7: memref<256x256xbf16, #tpu.memory_space<vmem>>, %arg8: memref<256x256xbf16, #tpu.memory_space<vmem>>, %arg9: memref<1x256xf32, #tpu.memory_space<vmem>>, %arg10: memref<1x256xf32, #tpu.memory_space<vmem>>, %arg11: memref<1x256xf32, #tpu.memory_space<vmem>>, %arg12: memref<256x1024xbf16, #tpu.memory_space<vmem>>, %arg13: memref<1x1024xf32, #tpu.memory_space<vmem>>, %arg14: memref<1024x256xbf16, #tpu.memory_space<vmem>>, %arg15: memref<1x256xf32, #tpu.memory_space<vmem>>, %arg16: memref<1x128x256xf32, #tpu.memory_space<vmem>>, %arg17: memref<2x256x128xbf16, #tpu.memory_space<vmem>>, %arg18: memref<2x256x128xbf16, #tpu.memory_space<vmem>>, %arg19: memref<2x128x1xf32, #tpu.memory_space<vmem>>, %arg20: memref<2x128x1xf32, #tpu.memory_space<vmem>>, %arg21: memref<2x128x128xf32, #tpu.memory_space<vmem>>) attributes {dimension_semantics = [#tpu.dimension_semantics<parallel>, #tpu.dimension_semantics<arbitrary>], iteration_bounds = array<i64: 2, 2>, scalar_prefetch = 0 : i64, scratch_operands = 5 : i64, tpu.core_type = #tpu.core_type<tc>, window_params = [{transform_indices = @transform_0, window_bounds = array<i64: 1, 128, 256>}, {pipeline_mode = #tpu.pipeline_mode<synchronous>, transform_indices = @transform_1, window_bounds = array<i64: 1, 256>}, {pipeline_mode = #tpu.pipeline_mode<synchronous>, transform_indices = @transform_2, window_bounds = array<i64: 1, 256>}, {pipeline_mode = #tpu.pipeline_mode<synchronous>, transform_indices = @transform_3, window_bounds = array<i64: 256, 256>}, {pipeline_mode = #tpu.pipeline_mode<synchronous>, transform_indices = @transform_4, window_bounds = array<i64: 256, 256>}, {pipeline_mode = #tpu.pipeline_mode<synchronous>, transform_indices = @transform_5, window_bounds = array<i64: 256, 256>}, {pipeline_mode = #tpu.pipeline_mode<synchronous>, transform_indices = @transform_6, window_bounds = array<i64: 256, 256>}, {pipeline_mode = #tpu.pipeline_mode<synchronous>, transform_indices = @transform_7, window_bounds = array<i64: 1, 256>}, {pipeline_mode = #tpu.pipeline_mode<synchronous>, transform_indices = @transform_8, window_bounds = array<i64: 1, 256>}, {pipeline_mode = #tpu.pipeline_mode<synchronous>, transform_indices = @transform_9, window_bounds = array<i64: 1, 256>}, {pipeline_mode = #tpu.pipeline_mode<synchronous>, transform_indices = @transform_10, window_bounds = array<i64: 256, 1024>}, {pipeline_mode = #tpu.pipeline_mode<synchronous>, transform_indices = @transform_11, window_bounds = array<i64: 1, 1024>}, {pipeline_mode = #tpu.pipeline_mode<synchronous>, transform_indices = @transform_12, window_bounds = array<i64: 1024, 256>}, {pipeline_mode = #tpu.pipeline_mode<synchronous>, transform_indices = @transform_13, window_bounds = array<i64: 1, 256>}, {transform_indices = @transform_14, window_bounds = array<i64: 1, 128, 256>}]} {
    %c128_i32 = arith.constant 128 : i32
    %0 = arith.muli %arg1, %c128_i32 : i32
    %1 = tpu.assume_multiple %0, 128 : i32
    %c0 = arith.constant 0 : index
    %c0_0 = arith.constant 0 : index
    %c0_1 = arith.constant 0 : index
    %2 = vector.load %arg2[%c0, %c0_0, %c0_1] : memref<1x128x256xf32, #tpu.memory_space<vmem>>, vector<1x128x256xf32>
    %3 = vector.shape_cast %2 : vector<1x128x256xf32> to vector<128x256xf32>
    %c0_2 = arith.constant 0 : index
    %c0_3 = arith.constant 0 : index
    %4 = vector.load %arg3[%c0_2, %c0_3] : memref<1x256xf32, #tpu.memory_space<vmem>>, vector<1x256xf32>
    %5 = vector.shape_cast %4 : vector<1x256xf32> to vector<256xf32>
    %c0_4 = arith.constant 0 : index
    %c0_5 = arith.constant 0 : index
    %6 = vector.load %arg4[%c0_4, %c0_5] : memref<1x256xf32, #tpu.memory_space<vmem>>, vector<1x256xf32>
    %7 = vector.shape_cast %6 : vector<1x256xf32> to vector<256xf32>
    %cst = arith.constant dense<0.000000e+00> : vector<128xf32>
    %8 = vector.multi_reduction <add>, %3, %cst [1] : vector<128x256xf32> to vector<128xf32>
    %9 = vector.shape_cast %8 : vector<128xf32> to vector<128x1xf32>
    %cst_6 = arith.constant 2.560000e+02 : f32
    %10 = vector.broadcast %cst_6 : f32 to vector<128x1xf32>
    %11 = arith.divf %9, %10 : vector<128x1xf32>
    %12 = vector.broadcast %11 : vector<128x1xf32> to vector<128x256xf32>
    %13 = arith.subf %3, %12 : vector<128x256xf32>
    %14 = arith.mulf %13, %13 : vector<128x256xf32>
    %cst_7 = arith.constant dense<0.000000e+00> : vector<128xf32>
    %15 = vector.multi_reduction <add>, %14, %cst_7 [1] : vector<128x256xf32> to vector<128xf32>
    %16 = vector.shape_cast %15 : vector<128xf32> to vector<128x1xf32>
    %cst_8 = arith.constant 2.560000e+02 : f32
    %17 = vector.broadcast %cst_8 : f32 to vector<128x1xf32>
    %18 = arith.divf %16, %17 : vector<128x1xf32>
    %19 = vector.broadcast %11 : vector<128x1xf32> to vector<128x256xf32>
    %20 = arith.subf %3, %19 : vector<128x256xf32>
    %cst_9 = arith.constant 9.99999974E-6 : f32
    %21 = vector.broadcast %cst_9 : f32 to vector<128x1xf32>
    %22 = arith.addf %18, %21 : vector<128x1xf32>
    %23 = math.rsqrt %22 : vector<128x1xf32>
    %24 = vector.broadcast %23 : vector<128x1xf32> to vector<128x256xf32>
    %25 = arith.mulf %20, %24 : vector<128x256xf32>
    %26 = vector.shape_cast %5 : vector<256xf32> to vector<1x256xf32>
    %27 = vector.broadcast %26 : vector<1x256xf32> to vector<128x256xf32>
    %28 = arith.mulf %25, %27 : vector<128x256xf32>
    %29 = vector.shape_cast %7 : vector<256xf32> to vector<1x256xf32>
    %30 = vector.broadcast %29 : vector<1x256xf32> to vector<128x256xf32>
    %31 = arith.addf %28, %30 : vector<128x256xf32>
    %32 = arith.truncf %31 : vector<128x256xf32> to vector<128x256xbf16>
    %c0_10 = arith.constant 0 : index
    %c0_11 = arith.constant 0 : index
    %33 = vector.load %arg6[%c0_10, %c0_11] : memref<256x256xbf16, #tpu.memory_space<vmem>>, vector<256x256xbf16>
    %cst_12 = arith.constant dense<0.000000e+00> : vector<128x256xf32>
    %34 = tpu.matmul %32, %33, %cst_12 {dimension_numbers = #tpu.dot_dimension_numbers<[1], [0], [0], [1], [0, 0, 1, 1], [], []>} : vector<128x256xbf16>, vector<256x256xbf16>, vector<128x256xf32> -> vector<128x256xf32>
    %c0_13 = arith.constant 0 : index
    %c0_14 = arith.constant 0 : index
    %35 = vector.load %arg7[%c0_13, %c0_14] : memref<256x256xbf16, #tpu.memory_space<vmem>>, vector<256x256xbf16>
    %cst_15 = arith.constant dense<0.000000e+00> : vector<128x256xf32>
    %36 = tpu.matmul %32, %35, %cst_15 {dimension_numbers = #tpu.dot_dimension_numbers<[1], [0], [0], [1], [0, 0, 1, 1], [], []>} : vector<128x256xbf16>, vector<256x256xbf16>, vector<128x256xf32> -> vector<128x256xf32>
    %37 = vector.extract_strided_slice %34 {offsets = [0, 0], sizes = [128, 128], strides = [1, 1]} : vector<128x256xf32> to vector<128x128xf32>
    %38 = arith.truncf %37 : vector<128x128xf32> to vector<128x128xbf16>
    %c0_16 = arith.constant 0 : index
    %39 = arith.index_cast %1 : i32 to index
    %c0_17 = arith.constant 0 : index
    %40 = vector.load %arg17[%c0_16, %39, %c0_17] : memref<2x256x128xbf16, #tpu.memory_space<vmem>>, vector<1x128x128xbf16>
    %41 = vector.shape_cast %40 : vector<1x128x128xbf16> to vector<128x128xbf16>
    %42 = vector.shape_cast %38 : vector<128x128xbf16> to vector<1x128x128xbf16>
    tpu.vector_store %arg17[%c0_16, %39, %c0_17], %42 {strides = array<i32>} : memref<2x256x128xbf16, #tpu.memory_space<vmem>>, vector<1x128x128xbf16>,
    %43 = vector.extract_strided_slice %36 {offsets = [0, 0], sizes = [128, 128], strides = [1, 1]} : vector<128x256xf32> to vector<128x128xf32>
    %44 = arith.truncf %43 : vector<128x128xf32> to vector<128x128xbf16>
    %c0_18 = arith.constant 0 : index
    %45 = arith.index_cast %1 : i32 to index
    %c0_19 = arith.constant 0 : index
    %46 = vector.load %arg18[%c0_18, %45, %c0_19] : memref<2x256x128xbf16, #tpu.memory_space<vmem>>, vector<1x128x128xbf16>
    %47 = vector.shape_cast %46 : vector<1x128x128xbf16> to vector<128x128xbf16>
    %48 = vector.shape_cast %44 : vector<128x128xbf16> to vector<1x128x128xbf16>
    tpu.vector_store %arg18[%c0_18, %45, %c0_19], %48 {strides = array<i32>} : memref<2x256x128xbf16, #tpu.memory_space<vmem>>, vector<1x128x128xbf16>,
    %49 = vector.extract_strided_slice %34 {offsets = [0, 128], sizes = [128, 128], strides = [1, 1]} : vector<128x256xf32> to vector<128x128xf32>
    %50 = arith.truncf %49 : vector<128x128xf32> to vector<128x128xbf16>
    %c1 = arith.constant 1 : index
    %51 = arith.index_cast %1 : i32 to index
    %c0_20 = arith.constant 0 : index
    %52 = vector.load %arg17[%c1, %51, %c0_20] : memref<2x256x128xbf16, #tpu.memory_space<vmem>>, vector<1x128x128xbf16>
    %53 = vector.shape_cast %52 : vector<1x128x128xbf16> to vector<128x128xbf16>
    %54 = vector.shape_cast %50 : vector<128x128xbf16> to vector<1x128x128xbf16>
    tpu.vector_store %arg17[%c1, %51, %c0_20], %54 {strides = array<i32>} : memref<2x256x128xbf16, #tpu.memory_space<vmem>>, vector<1x128x128xbf16>,
    %55 = vector.extract_strided_slice %36 {offsets = [0, 128], sizes = [128, 128], strides = [1, 1]} : vector<128x256xf32> to vector<128x128xf32>
    %56 = arith.truncf %55 : vector<128x128xf32> to vector<128x128xbf16>
    %c1_21 = arith.constant 1 : index
    %57 = arith.index_cast %1 : i32 to index
    %c0_22 = arith.constant 0 : index
    %58 = vector.load %arg18[%c1_21, %57, %c0_22] : memref<2x256x128xbf16, #tpu.memory_space<vmem>>, vector<1x128x128xbf16>
    %59 = vector.shape_cast %58 : vector<1x128x128xbf16> to vector<128x128xbf16>
    %60 = vector.shape_cast %56 : vector<128x128xbf16> to vector<1x128x128xbf16>
    tpu.vector_store %arg18[%c1_21, %57, %c0_22], %60 {strides = array<i32>} : memref<2x256x128xbf16, #tpu.memory_space<vmem>>, vector<1x128x128xbf16>,
    %c0_23 = arith.constant 0 : index
    %c0_24 = arith.constant 0 : index
    %61 = vector.load %arg5[%c0_23, %c0_24] : memref<256x256xbf16, #tpu.memory_space<vmem>>, vector<256x256xbf16>
    %cst_25 = arith.constant dense<0.000000e+00> : vector<128x256xf32>
    %62 = tpu.matmul %32, %61, %cst_25 {dimension_numbers = #tpu.dot_dimension_numbers<[1], [0], [0], [1], [0, 0, 1, 1], [], []>} : vector<128x256xbf16>, vector<256x256xbf16>, vector<128x256xf32> -> vector<128x256xf32>
    %cst_26 = arith.constant 0.0883883461 : f32
    %63 = vector.broadcast %cst_26 : f32 to vector<128x256xf32>
    %64 = arith.mulf %62, %63 : vector<128x256xf32>
    %65 = vector.extract_strided_slice %64 {offsets = [0, 0], sizes = [128, 128], strides = [1, 1]} : vector<128x256xf32> to vector<128x128xf32>
    %66 = vector.extract_strided_slice %64 {offsets = [0, 128], sizes = [128, 128], strides = [1, 1]} : vector<128x256xf32> to vector<128x128xf32>
    %67 = vector.shape_cast %65 : vector<128x128xf32> to vector<1x128x128xf32>
    %68 = vector.shape_cast %66 : vector<128x128xf32> to vector<1x128x128xf32>
    %69 = tpu.concatenate %67, %68 in 0 : vector<1x128x128xf32>, vector<1x128x128xf32> -> vector<2x128x128xf32>
    %70 = arith.truncf %69 : vector<2x128x128xf32> to vector<2x128x128xbf16>
    %cst_27 = arith.constant -1.000000e+30 : f32
    %71 = vector.broadcast %cst_27 : f32 to vector<2x128x1xf32>
    %c0_28 = arith.constant 0 : index
    %c0_29 = arith.constant 0 : index
    %c0_30 = arith.constant 0 : index
    %72 = vector.load %arg19[%c0_28, %c0_29, %c0_30] : memref<2x128x1xf32, #tpu.memory_space<vmem>>, vector<2x128x1xf32>
    tpu.vector_store %arg19[%c0_28, %c0_29, %c0_30], %71 {strides = array<i32>} : memref<2x128x1xf32, #tpu.memory_space<vmem>>, vector<2x128x1xf32>,
    %cst_31 = arith.constant 0.000000e+00 : f32
    %73 = vector.broadcast %cst_31 : f32 to vector<2x128x1xf32>
    %c0_32 = arith.constant 0 : index
    %c0_33 = arith.constant 0 : index
    %c0_34 = arith.constant 0 : index
    %74 = vector.load %arg20[%c0_32, %c0_33, %c0_34] : memref<2x128x1xf32, #tpu.memory_space<vmem>>, vector<2x128x1xf32>
    tpu.vector_store %arg20[%c0_32, %c0_33, %c0_34], %73 {strides = array<i32>} : memref<2x128x1xf32, #tpu.memory_space<vmem>>, vector<2x128x1xf32>,
    %cst_35 = arith.constant 0.000000e+00 : f32
    %75 = vector.broadcast %cst_35 : f32 to vector<2x128x128xf32>
    %c0_36 = arith.constant 0 : index
    %c0_37 = arith.constant 0 : index
    %c0_38 = arith.constant 0 : index
    %76 = vector.load %arg21[%c0_36, %c0_37, %c0_38] : memref<2x128x128xf32, #tpu.memory_space<vmem>>, vector<2x128x128xf32>
    tpu.vector_store %arg21[%c0_36, %c0_37, %c0_38], %75 {strides = array<i32>} : memref<2x128x128xf32, #tpu.memory_space<vmem>>, vector<2x128x128xf32>,
    %c0_i32 = arith.constant 0 : i32
    %77 = arith.subi %arg1, %c0_i32 : i32
    %c1_i32 = arith.constant 1 : i32
    %c1_i32_39 = arith.constant 1 : i32
    %78 = arith.subi %c1_i32, %c1_i32_39 : i32
    %79 = arith.addi %77, %78 : i32
    %c1_i32_40 = arith.constant 1 : i32
    %80 = arith.divsi %79, %c1_i32_40 : i32
    %c1_i32_41 = arith.constant 1 : i32
    %c0_i32_42 = arith.constant 0 : i32
    %c0_i32_43 = arith.constant 0 : i32
    %81 = arith.subi %80, %c0_i32_43 : i32
    %82 = arith.addi %c0_i32_43, %81 : i32
    %c1_i32_44 = arith.constant 1 : i32
    scf.for %arg22 = %c0_i32_43 to %82 step %c1_i32_44  : i32 {
      %199 = arith.muli %arg22, %c1_i32_41 : i32
      %200 = arith.addi %c0_i32_42, %199 : i32
      %c128_i32_111 = arith.constant 128 : i32
      %201 = arith.muli %200, %c128_i32_111 : i32
      %202 = tpu.assume_multiple %201, 128 : i32
      %c0_112 = arith.constant 0 : index
      %203 = arith.index_cast %202 : i32 to index
      %c0_113 = arith.constant 0 : index
      %204 = vector.load %arg17[%c0_112, %203, %c0_113] : memref<2x256x128xbf16, #tpu.memory_space<vmem>>, vector<2x128x128xbf16>
      %c0_114 = arith.constant 0 : index
      %205 = arith.index_cast %202 : i32 to index
      %c0_115 = arith.constant 0 : index
      %206 = vector.load %arg18[%c0_114, %205, %c0_115] : memref<2x256x128xbf16, #tpu.memory_space<vmem>>, vector<2x128x128xbf16>
      "tpu.trace_start"() <{level = 10 : i32, message = "hqd,hkd->hqk"}> : () -> ()
      %cst_116 = arith.constant dense<0.000000e+00> : vector<2x128x128xf32>
      %207 = tpu.matmul %70, %204, %cst_116 {dimension_numbers = #tpu.dot_dimension_numbers<[2], [2], [1], [1], [0, 0, 0, 1, 1, 1], [0], [0]>} : vector<2x128x128xbf16>, vector<2x128x128xbf16>, vector<2x128x128xf32> -> vector<2x128x128xf32>
      "tpu.trace_stop"() : () -> ()
      %c0_117 = arith.constant 0 : index
      %c0_118 = arith.constant 0 : index
      %c0_119 = arith.constant 0 : index
      %208 = vector.load %arg19[%c0_117, %c0_118, %c0_119] : memref<2x128x1xf32, #tpu.memory_space<vmem>>, vector<2x128x1xf32>
      %cst_120 = arith.constant dense<0xFF800000> : vector<2x128xf32>
      %209 = vector.multi_reduction <maximumf>, %207, %cst_120 [2] : vector<2x128x128xf32> to vector<2x128xf32>
      %210 = vector.shape_cast %209 : vector<2x128xf32> to vector<2x128x1xf32>
      %211 = arith.maximumf %208, %210 : vector<2x128x1xf32>
      %212 = arith.subf %208, %211 : vector<2x128x1xf32>
      %213 = math.exp %212 : vector<2x128x1xf32>
      %214 = vector.broadcast %211 : vector<2x128x1xf32> to vector<2x128x128xf32>
      %215 = arith.subf %207, %214 : vector<2x128x128xf32>
      %216 = math.exp %215 : vector<2x128x128xf32>
      %c0_121 = arith.constant 0 : index
      %c0_122 = arith.constant 0 : index
      %c0_123 = arith.constant 0 : index
      %217 = vector.load %arg20[%c0_121, %c0_122, %c0_123] : memref<2x128x1xf32, #tpu.memory_space<vmem>>, vector<2x128x1xf32>
      %218 = arith.mulf %213, %217 : vector<2x128x1xf32>
      %cst_124 = arith.constant dense<0.000000e+00> : vector<2x128xf32>
      %219 = vector.multi_reduction <add>, %216, %cst_124 [2] : vector<2x128x128xf32> to vector<2x128xf32>
      %220 = vector.shape_cast %219 : vector<2x128xf32> to vector<2x128x1xf32>
      %221 = arith.addf %218, %220 : vector<2x128x1xf32>
      %c0_125 = arith.constant 0 : index
      %c0_126 = arith.constant 0 : index
      %c0_127 = arith.constant 0 : index
      %222 = vector.load %arg20[%c0_125, %c0_126, %c0_127] : memref<2x128x1xf32, #tpu.memory_space<vmem>>, vector<2x128x1xf32>
      tpu.vector_store %arg20[%c0_125, %c0_126, %c0_127], %221 {strides = array<i32>} : memref<2x128x1xf32, #tpu.memory_space<vmem>>, vector<2x128x1xf32>,
      %c0_128 = arith.constant 0 : index
      %c0_129 = arith.constant 0 : index
      %c0_130 = arith.constant 0 : index
      %223 = vector.load %arg21[%c0_128, %c0_129, %c0_130] : memref<2x128x128xf32, #tpu.memory_space<vmem>>, vector<2x128x128xf32>
      %224 = vector.broadcast %213 : vector<2x128x1xf32> to vector<2x128x128xf32>
      %225 = arith.mulf %224, %223 : vector<2x128x128xf32>
      %226 = arith.truncf %216 : vector<2x128x128xf32> to vector<2x128x128xbf16>
      "tpu.trace_start"() <{level = 10 : i32, message = "hqk,hkd->hqd"}> : () -> ()
      %cst_131 = arith.constant dense<0.000000e+00> : vector<2x128x128xf32>
      %227 = tpu.matmul %226, %206, %cst_131 {dimension_numbers = #tpu.dot_dimension_numbers<[2], [1], [1], [2], [0, 0, 0, 1, 1, 2], [0], [0]>} : vector<2x128x128xbf16>, vector<2x128x128xbf16>, vector<2x128x128xf32> -> vector<2x128x128xf32>
      "tpu.trace_stop"() : () -> ()
      %228 = arith.addf %225, %227 : vector<2x128x128xf32>
      %c0_132 = arith.constant 0 : index
      %c0_133 = arith.constant 0 : index
      %c0_134 = arith.constant 0 : index
      %229 = vector.load %arg21[%c0_132, %c0_133, %c0_134] : memref<2x128x128xf32, #tpu.memory_space<vmem>>, vector<2x128x128xf32>
      tpu.vector_store %arg21[%c0_132, %c0_133, %c0_134], %228 {strides = array<i32>} : memref<2x128x128xf32, #tpu.memory_space<vmem>>, vector<2x128x128xf32>,
      %c0_135 = arith.constant 0 : index
      %c0_136 = arith.constant 0 : index
      %c0_137 = arith.constant 0 : index
      %230 = vector.load %arg19[%c0_135, %c0_136, %c0_137] : memref<2x128x1xf32, #tpu.memory_space<vmem>>, vector<2x128x1xf32>
      tpu.vector_store %arg19[%c0_135, %c0_136, %c0_137], %211 {strides = array<i32>} : memref<2x128x1xf32, #tpu.memory_space<vmem>>, vector<2x128x1xf32>,
    }
    %83 = tpu.iota {dimensions = array<i32: 1>} : vector<1x128x128xi32>
    %84 = tpu.iota {dimensions = array<i32: 2>} : vector<1x128x128xi32>
    %85 = arith.cmpi sgt, %84, %83 : vector<1x128x128xi32>
    %c0_45 = arith.constant 0 : index
    %86 = arith.index_cast %1 : i32 to index
    %c0_46 = arith.constant 0 : index
    %87 = vector.load %arg17[%c0_45, %86, %c0_46] : memref<2x256x128xbf16, #tpu.memory_space<vmem>>, vector<2x128x128xbf16>
    %c0_47 = arith.constant 0 : index
    %88 = arith.index_cast %1 : i32 to index
    %c0_48 = arith.constant 0 : index
    %89 = vector.load %arg18[%c0_47, %88, %c0_48] : memref<2x256x128xbf16, #tpu.memory_space<vmem>>, vector<2x128x128xbf16>
    "tpu.trace_start"() <{level = 10 : i32, message = "hqd,hkd->hqk"}> : () -> ()
    %cst_49 = arith.constant dense<0.000000e+00> : vector<2x128x128xf32>
    %90 = tpu.matmul %70, %87, %cst_49 {dimension_numbers = #tpu.dot_dimension_numbers<[2], [2], [1], [1], [0, 0, 0, 1, 1, 1], [0], [0]>} : vector<2x128x128xbf16>, vector<2x128x128xbf16>, vector<2x128x128xf32> -> vector<2x128x128xf32>
    %cst_50 = arith.constant -1.000000e+30 : f32
    "tpu.trace_stop"() : () -> ()
    %91 = vector.shape_cast %85 : vector<1x128x128xi1> to vector<1x128x128xi1>
    %92 = vector.broadcast %91 : vector<1x128x128xi1> to vector<2x128x128xi1>
    %93 = vector.broadcast %cst_50 : f32 to vector<2x128x128xf32>
    %94 = arith.select %92, %93, %90 : vector<2x128x128xi1>, vector<2x128x128xf32>
    %c0_51 = arith.constant 0 : index
    %c0_52 = arith.constant 0 : index
    %c0_53 = arith.constant 0 : index
    %95 = vector.load %arg19[%c0_51, %c0_52, %c0_53] : memref<2x128x1xf32, #tpu.memory_space<vmem>>, vector<2x128x1xf32>
    %cst_54 = arith.constant dense<0xFF800000> : vector<2x128xf32>
    %96 = vector.multi_reduction <maximumf>, %94, %cst_54 [2] : vector<2x128x128xf32> to vector<2x128xf32>
    %97 = vector.shape_cast %96 : vector<2x128xf32> to vector<2x128x1xf32>
    %98 = arith.maximumf %95, %97 : vector<2x128x1xf32>
    %99 = arith.subf %95, %98 : vector<2x128x1xf32>
    %100 = math.exp %99 : vector<2x128x1xf32>
    %101 = vector.broadcast %98 : vector<2x128x1xf32> to vector<2x128x128xf32>
    %102 = arith.subf %94, %101 : vector<2x128x128xf32>
    %103 = math.exp %102 : vector<2x128x128xf32>
    %c0_55 = arith.constant 0 : index
    %c0_56 = arith.constant 0 : index
    %c0_57 = arith.constant 0 : index
    %104 = vector.load %arg20[%c0_55, %c0_56, %c0_57] : memref<2x128x1xf32, #tpu.memory_space<vmem>>, vector<2x128x1xf32>
    %105 = arith.mulf %100, %104 : vector<2x128x1xf32>
    %cst_58 = arith.constant dense<0.000000e+00> : vector<2x128xf32>
    %106 = vector.multi_reduction <add>, %103, %cst_58 [2] : vector<2x128x128xf32> to vector<2x128xf32>
    %107 = vector.shape_cast %106 : vector<2x128xf32> to vector<2x128x1xf32>
    %108 = arith.addf %105, %107 : vector<2x128x1xf32>
    %c0_59 = arith.constant 0 : index
    %c0_60 = arith.constant 0 : index
    %c0_61 = arith.constant 0 : index
    %109 = vector.load %arg20[%c0_59, %c0_60, %c0_61] : memref<2x128x1xf32, #tpu.memory_space<vmem>>, vector<2x128x1xf32>
    tpu.vector_store %arg20[%c0_59, %c0_60, %c0_61], %108 {strides = array<i32>} : memref<2x128x1xf32, #tpu.memory_space<vmem>>, vector<2x128x1xf32>,
    %c0_62 = arith.constant 0 : index
    %c0_63 = arith.constant 0 : index
    %c0_64 = arith.constant 0 : index
    %110 = vector.load %arg21[%c0_62, %c0_63, %c0_64] : memref<2x128x128xf32, #tpu.memory_space<vmem>>, vector<2x128x128xf32>
    %111 = vector.broadcast %100 : vector<2x128x1xf32> to vector<2x128x128xf32>
    %112 = arith.mulf %111, %110 : vector<2x128x128xf32>
    %113 = arith.truncf %103 : vector<2x128x128xf32> to vector<2x128x128xbf16>
    "tpu.trace_start"() <{level = 10 : i32, message = "hqk,hkd->hqd"}> : () -> ()
    %cst_65 = arith.constant dense<0.000000e+00> : vector<2x128x128xf32>
    %114 = tpu.matmul %113, %89, %cst_65 {dimension_numbers = #tpu.dot_dimension_numbers<[2], [1], [1], [2], [0, 0, 0, 1, 1, 2], [0], [0]>} : vector<2x128x128xbf16>, vector<2x128x128xbf16>, vector<2x128x128xf32> -> vector<2x128x128xf32>
    "tpu.trace_stop"() : () -> ()
    %115 = arith.addf %112, %114 : vector<2x128x128xf32>
    %c0_66 = arith.constant 0 : index
    %c0_67 = arith.constant 0 : index
    %c0_68 = arith.constant 0 : index
    %116 = vector.load %arg21[%c0_66, %c0_67, %c0_68] : memref<2x128x128xf32, #tpu.memory_space<vmem>>, vector<2x128x128xf32>
    tpu.vector_store %arg21[%c0_66, %c0_67, %c0_68], %115 {strides = array<i32>} : memref<2x128x128xf32, #tpu.memory_space<vmem>>, vector<2x128x128xf32>,
    %c0_69 = arith.constant 0 : index
    %c0_70 = arith.constant 0 : index
    %c0_71 = arith.constant 0 : index
    %117 = vector.load %arg19[%c0_69, %c0_70, %c0_71] : memref<2x128x1xf32, #tpu.memory_space<vmem>>, vector<2x128x1xf32>
    tpu.vector_store %arg19[%c0_69, %c0_70, %c0_71], %98 {strides = array<i32>} : memref<2x128x1xf32, #tpu.memory_space<vmem>>, vector<2x128x1xf32>,
    %c0_72 = arith.constant 0 : index
    %c0_73 = arith.constant 0 : index
    %c0_74 = arith.constant 0 : index
    %118 = vector.load %arg20[%c0_72, %c0_73, %c0_74] : memref<2x128x1xf32, #tpu.memory_space<vmem>>, vector<2x128x1xf32>
    %119 = tpu.reciprocal %118 {approx = true} : vector<2x128x1xf32> -> vector<2x128x1xf32>
    %c0_75 = arith.constant 0 : index
    %c0_76 = arith.constant 0 : index
    %c0_77 = arith.constant 0 : index
    %120 = vector.load %arg21[%c0_75, %c0_76, %c0_77] : memref<2x128x128xf32, #tpu.memory_space<vmem>>, vector<1x128x128xf32>
    %121 = vector.shape_cast %120 : vector<1x128x128xf32> to vector<128x128xf32>
    %122 = vector.extract_strided_slice %119 {offsets = [0, 0, 0], sizes = [1, 128, 1], strides = [1, 1, 1]} : vector<2x128x1xf32> to vector<1x128x1xf32>
    %123 = vector.shape_cast %122 : vector<1x128x1xf32> to vector<128x1xf32>
    %124 = vector.broadcast %123 : vector<128x1xf32> to vector<128x128xf32>
    %125 = arith.mulf %121, %124 : vector<128x128xf32>
    %126 = arith.truncf %125 : vector<128x128xf32> to vector<128x128xbf16>
    %c1_78 = arith.constant 1 : index
    %c0_79 = arith.constant 0 : index
    %c0_80 = arith.constant 0 : index
    %127 = vector.load %arg21[%c1_78, %c0_79, %c0_80] : memref<2x128x128xf32, #tpu.memory_space<vmem>>, vector<1x128x128xf32>
    %128 = vector.shape_cast %127 : vector<1x128x128xf32> to vector<128x128xf32>
    %129 = vector.extract_strided_slice %119 {offsets = [1, 0, 0], sizes = [1, 128, 1], strides = [1, 1, 1]} : vector<2x128x1xf32> to vector<1x128x1xf32>
    %130 = vector.shape_cast %129 : vector<1x128x1xf32> to vector<128x1xf32>
    %131 = vector.broadcast %130 : vector<128x1xf32> to vector<128x128xf32>
    %132 = arith.mulf %128, %131 : vector<128x128xf32>
    %133 = arith.truncf %132 : vector<128x128xf32> to vector<128x128xbf16>
    %134 = tpu.concatenate %126, %133 in 1 : vector<128x128xbf16>, vector<128x128xbf16> -> vector<128x256xbf16>
    %c0_81 = arith.constant 0 : index
    %c0_82 = arith.constant 0 : index
    %135 = vector.load %arg8[%c0_81, %c0_82] : memref<256x256xbf16, #tpu.memory_space<vmem>>, vector<256x256xbf16>
    %cst_83 = arith.constant dense<0.000000e+00> : vector<128x256xf32>
    %136 = tpu.matmul %134, %135, %cst_83 {dimension_numbers = #tpu.dot_dimension_numbers<[1], [0], [0], [1], [0, 0, 1, 1], [], []>} : vector<128x256xbf16>, vector<256x256xbf16>, vector<128x256xf32> -> vector<128x256xf32>
    %c0_84 = arith.constant 0 : index
    %c0_85 = arith.constant 0 : index
    %137 = vector.load %arg9[%c0_84, %c0_85] : memref<1x256xf32, #tpu.memory_space<vmem>>, vector<1x256xf32>
    %138 = vector.shape_cast %137 : vector<1x256xf32> to vector<256xf32>
    %139 = vector.shape_cast %138 : vector<256xf32> to vector<1x256xf32>
    %140 = vector.broadcast %139 : vector<1x256xf32> to vector<128x256xf32>
    %141 = arith.addf %136, %140 : vector<128x256xf32>
    %142 = arith.addf %3, %141 : vector<128x256xf32>
    %c0_86 = arith.constant 0 : index
    %c0_87 = arith.constant 0 : index
    %143 = vector.load %arg10[%c0_86, %c0_87] : memref<1x256xf32, #tpu.memory_space<vmem>>, vector<1x256xf32>
    %144 = vector.shape_cast %143 : vector<1x256xf32> to vector<256xf32>
    %c0_88 = arith.constant 0 : index
    %c0_89 = arith.constant 0 : index
    %145 = vector.load %arg11[%c0_88, %c0_89] : memref<1x256xf32, #tpu.memory_space<vmem>>, vector<1x256xf32>
    %146 = vector.shape_cast %145 : vector<1x256xf32> to vector<256xf32>
    %cst_90 = arith.constant dense<0.000000e+00> : vector<128xf32>
    %147 = vector.multi_reduction <add>, %142, %cst_90 [1] : vector<128x256xf32> to vector<128xf32>
    %148 = vector.shape_cast %147 : vector<128xf32> to vector<128x1xf32>
    %cst_91 = arith.constant 2.560000e+02 : f32
    %149 = vector.broadcast %cst_91 : f32 to vector<128x1xf32>
    %150 = arith.divf %148, %149 : vector<128x1xf32>
    %151 = vector.broadcast %150 : vector<128x1xf32> to vector<128x256xf32>
    %152 = arith.subf %142, %151 : vector<128x256xf32>
    %153 = arith.mulf %152, %152 : vector<128x256xf32>
    %cst_92 = arith.constant dense<0.000000e+00> : vector<128xf32>
    %154 = vector.multi_reduction <add>, %153, %cst_92 [1] : vector<128x256xf32> to vector<128xf32>
    %155 = vector.shape_cast %154 : vector<128xf32> to vector<128x1xf32>
    %cst_93 = arith.constant 2.560000e+02 : f32
    %156 = vector.broadcast %cst_93 : f32 to vector<128x1xf32>
    %157 = arith.divf %155, %156 : vector<128x1xf32>
    %158 = vector.broadcast %150 : vector<128x1xf32> to vector<128x256xf32>
    %159 = arith.subf %142, %158 : vector<128x256xf32>
    %cst_94 = arith.constant 9.99999974E-6 : f32
    %160 = vector.broadcast %cst_94 : f32 to vector<128x1xf32>
    %161 = arith.addf %157, %160 : vector<128x1xf32>
    %162 = math.rsqrt %161 : vector<128x1xf32>
    %163 = vector.broadcast %162 : vector<128x1xf32> to vector<128x256xf32>
    %164 = arith.mulf %159, %163 : vector<128x256xf32>
    %165 = vector.shape_cast %144 : vector<256xf32> to vector<1x256xf32>
    %166 = vector.broadcast %165 : vector<1x256xf32> to vector<128x256xf32>
    %167 = arith.mulf %164, %166 : vector<128x256xf32>
    %168 = vector.shape_cast %146 : vector<256xf32> to vector<1x256xf32>
    %169 = vector.broadcast %168 : vector<1x256xf32> to vector<128x256xf32>
    %170 = arith.addf %167, %169 : vector<128x256xf32>
    %171 = arith.truncf %170 : vector<128x256xf32> to vector<128x256xbf16>
    %c0_95 = arith.constant 0 : index
    %c0_96 = arith.constant 0 : index
    %172 = vector.load %arg12[%c0_95, %c0_96] : memref<256x1024xbf16, #tpu.memory_space<vmem>>, vector<256x1024xbf16>
    %cst_97 = arith.constant dense<0.000000e+00> : vector<128x1024xf32>
    %173 = tpu.matmul %171, %172, %cst_97 {dimension_numbers = #tpu.dot_dimension_numbers<[1], [0], [0], [1], [0, 0, 1, 1], [], []>} : vector<128x256xbf16>, vector<256x1024xbf16>, vector<128x1024xf32> -> vector<128x1024xf32>
    %c0_98 = arith.constant 0 : index
    %c0_99 = arith.constant 0 : index
    %174 = vector.load %arg13[%c0_98, %c0_99] : memref<1x1024xf32, #tpu.memory_space<vmem>>, vector<1x1024xf32>
    %175 = vector.shape_cast %174 : vector<1x1024xf32> to vector<1024xf32>
    %176 = vector.shape_cast %175 : vector<1024xf32> to vector<1x1024xf32>
    %177 = vector.broadcast %176 : vector<1x1024xf32> to vector<128x1024xf32>
    %178 = arith.addf %173, %177 : vector<128x1024xf32>
    %cst_100 = arith.constant 5.000000e-01 : f32
    %179 = vector.broadcast %cst_100 : f32 to vector<128x1024xf32>
    %180 = arith.mulf %179, %178 : vector<128x1024xf32>
    %cst_101 = arith.constant 0.707106769 : f32
    %181 = vector.broadcast %cst_101 : f32 to vector<128x1024xf32>
    %182 = arith.mulf %178, %181 : vector<128x1024xf32>
    %183 = math.erf %182 : vector<128x1024xf32>
    %cst_102 = arith.constant 1.000000e+00 : f32
    %184 = vector.broadcast %cst_102 : f32 to vector<128x1024xf32>
    %185 = arith.addf %184, %183 : vector<128x1024xf32>
    %186 = arith.mulf %180, %185 : vector<128x1024xf32>
    %187 = arith.truncf %186 : vector<128x1024xf32> to vector<128x1024xbf16>
    %c0_103 = arith.constant 0 : index
    %c0_104 = arith.constant 0 : index
    %188 = vector.load %arg14[%c0_103, %c0_104] : memref<1024x256xbf16, #tpu.memory_space<vmem>>, vector<1024x256xbf16>
    %cst_105 = arith.constant dense<0.000000e+00> : vector<128x256xf32>
    %189 = tpu.matmul %187, %188, %cst_105 {dimension_numbers = #tpu.dot_dimension_numbers<[1], [0], [0], [1], [0, 0, 1, 1], [], []>} : vector<128x1024xbf16>, vector<1024x256xbf16>, vector<128x256xf32> -> vector<128x256xf32>
    %c0_106 = arith.constant 0 : index
    %c0_107 = arith.constant 0 : index
    %190 = vector.load %arg15[%c0_106, %c0_107] : memref<1x256xf32, #tpu.memory_space<vmem>>, vector<1x256xf32>
    %191 = vector.shape_cast %190 : vector<1x256xf32> to vector<256xf32>
    %192 = vector.shape_cast %191 : vector<256xf32> to vector<1x256xf32>
    %193 = vector.broadcast %192 : vector<1x256xf32> to vector<128x256xf32>
    %194 = arith.addf %189, %193 : vector<128x256xf32>
    %195 = arith.addf %142, %194 : vector<128x256xf32>
    %c0_108 = arith.constant 0 : index
    %c0_109 = arith.constant 0 : index
    %c0_110 = arith.constant 0 : index
    %196 = vector.load %arg16[%c0_108, %c0_109, %c0_110] : memref<1x128x256xf32, #tpu.memory_space<vmem>>, vector<1x128x256xf32>
    %197 = vector.shape_cast %196 : vector<1x128x256xf32> to vector<128x256xf32>
    %198 = vector.shape_cast %195 : vector<128x256xf32> to vector<1x128x256xf32>
    tpu.vector_store %arg16[%c0_108, %c0_109, %c0_110], %198 {strides = array<i32>} : memref<1x128x256xf32, #tpu.memory_space<vmem>>, vector<1x128x256xf32>,
    return
  }
  func.func @transform_0(%arg0: i32, %arg1: i32) -> (i32, i32, i32) {
    %c0_i32 = arith.constant 0 : i32
    %c0_i32_0 = arith.constant 0 : i32
    return %arg0, %arg1, %c0_i32 : i32, i32, i32
  }
  func.func @transform_1(%arg0: i32, %arg1: i32) -> (i32, i32) {
    %c0_i32 = arith.constant 0 : i32
    %c0_i32_0 = arith.constant 0 : i32
    %c0_i32_1 = arith.constant 0 : i32
    return %c0_i32, %c0_i32_0 : i32, i32
  }
  func.func @transform_2(%arg0: i32, %arg1: i32) -> (i32, i32) {
    %c0_i32 = arith.constant 0 : i32
    %c0_i32_0 = arith.constant 0 : i32
    %c0_i32_1 = arith.constant 0 : i32
    return %c0_i32, %c0_i32_0 : i32, i32
  }
  func.func @transform_3(%arg0: i32, %arg1: i32) -> (i32, i32) {
    %c0_i32 = arith.constant 0 : i32
    %c0_i32_0 = arith.constant 0 : i32
    %c0_i32_1 = arith.constant 0 : i32
    return %c0_i32, %c0_i32_0 : i32, i32
  }
  func.func @transform_4(%arg0: i32, %arg1: i32) -> (i32, i32) {
    %c0_i32 = arith.constant 0 : i32
    %c0_i32_0 = arith.constant 0 : i32
    %c0_i32_1 = arith.constant 0 : i32
    return %c0_i32, %c0_i32_0 : i32, i32
  }
  func.func @transform_5(%arg0: i32, %arg1: i32) -> (i32, i32) {
    %c0_i32 = arith.constant 0 : i32
    %c0_i32_0 = arith.constant 0 : i32
    %c0_i32_1 = arith.constant 0 : i32
    return %c0_i32, %c0_i32_0 : i32, i32
  }
  func.func @transform_6(%arg0: i32, %arg1: i32) -> (i32, i32) {
    %c0_i32 = arith.constant 0 : i32
    %c0_i32_0 = arith.constant 0 : i32
    %c0_i32_1 = arith.constant 0 : i32
    return %c0_i32, %c0_i32_0 : i32, i32
  }
  func.func @transform_7(%arg0: i32, %arg1: i32) -> (i32, i32) {
    %c0_i32 = arith.constant 0 : i32
    %c0_i32_0 = arith.constant 0 : i32
    %c0_i32_1 = arith.constant 0 : i32
    return %c0_i32, %c0_i32_0 : i32, i32
  }
  func.func @transform_8(%arg0: i32, %arg1: i32) -> (i32, i32) {
    %c0_i32 = arith.constant 0 : i32
    %c0_i32_0 = arith.constant 0 : i32
    %c0_i32_1 = arith.constant 0 : i32
    return %c0_i32, %c0_i32_0 : i32, i32
  }
  func.func @transform_9(%arg0: i32, %arg1: i32) -> (i32, i32) {
    %c0_i32 = arith.constant 0 : i32
    %c0_i32_0 = arith.constant 0 : i32
    %c0_i32_1 = arith.constant 0 : i32
    return %c0_i32, %c0_i32_0 : i32, i32
  }
  func.func @transform_10(%arg0: i32, %arg1: i32) -> (i32, i32) {
    %c0_i32 = arith.constant 0 : i32
    %c0_i32_0 = arith.constant 0 : i32
    %c0_i32_1 = arith.constant 0 : i32
    return %c0_i32, %c0_i32_0 : i32, i32
  }
  func.func @transform_11(%arg0: i32, %arg1: i32) -> (i32, i32) {
    %c0_i32 = arith.constant 0 : i32
    %c0_i32_0 = arith.constant 0 : i32
    %c0_i32_1 = arith.constant 0 : i32
    return %c0_i32, %c0_i32_0 : i32, i32
  }
  func.func @transform_12(%arg0: i32, %arg1: i32) -> (i32, i32) {
    %c0_i32 = arith.constant 0 : i32
    %c0_i32_0 = arith.constant 0 : i32
    %c0_i32_1 = arith.constant 0 : i32
    return %c0_i32, %c0_i32_0 : i32, i32
  }
  func.func @transform_13(%arg0: i32, %arg1: i32) -> (i32, i32) {
    %c0_i32 = arith.constant 0 : i32
    %c0_i32_0 = arith.constant 0 : i32
    %c0_i32_1 = arith.constant 0 : i32
    return %c0_i32, %c0_i32_0 : i32, i32
  }
  func.func @transform_14(%arg0: i32, %arg1: i32) -> (i32, i32, i32) {
    %c0_i32 = arith.constant 0 : i32
    %c0_i32_0 = arith.constant 0 : i32
    return %arg0, %arg1, %c0_i32 : i32, i32, i32
  }
}

</mosaic_0001>

<llo_original>
// kernel: tpu_custom_call.1
$region0: #{tpu_custom_call.1}
  #allocation0 [shape = 'u32[]', space=smem, size = 0x4, offset = 0x4, fixed_abs, tag = 'smem constant byte address 0x4 - core index']
  #allocation1 [shape = 'u32[144,128]{1,0:T(1,128)}', space=vmem, size = 0x12000, scoped, tag = 'internal scratch']
  #allocation2 [shape = 'bf16[2,256,128]{2,1,0:T(16,128)(2,1)}', space=vmem, size = 0x20000, scoped, tag = 'scratch operand']
  #allocation3 [shape = 'bf16[2,256,128]{2,1,0:T(16,128)(2,1)}', space=vmem, size = 0x20000, scoped, tag = 'scratch operand']
  #allocation4 [shape = 'f32[2,128,1]{2,1,0:T(8,128)}', space=vmem, size = 0x20000, scoped, tag = 'scratch operand']
  #allocation5 [shape = 'f32[2,128,1]{2,1,0:T(8,128)}', space=vmem, size = 0x20000, scoped, tag = 'scratch operand']
  #allocation6 [shape = 'f32[2,128,128]{2,1,0:T(8,128)}', space=vmem, size = 0x20000, scoped, tag = 'scratch operand']
  %s0 = inlined_call_operand.hbm [shape: f32[2,256,256], index: 0, kind: input, shape index: {}]
  %s1 = inlined_call_operand.vmem [shape: f32[1,256], index: 1, kind: input, shape index: {}]
  %s2 = inlined_call_operand.vmem [shape: f32[1,256], index: 2, kind: input, shape index: {}]
  %s3 = inlined_call_operand.hbm [shape: bf16[256,256], index: 3, kind: input, shape index: {}]
  %s4 = inlined_call_operand.hbm [shape: bf16[256,256], index: 4, kind: input, shape index: {}]
  %s5 = inlined_call_operand.hbm [shape: bf16[256,256], index: 5, kind: input, shape index: {}]
  %s6 = inlined_call_operand.hbm [shape: bf16[256,256], index: 6, kind: input, shape index: {}]
  %s7 = inlined_call_operand.vmem [shape: f32[1,256], index: 7, kind: input, shape index: {}]
  %s8 = inlined_call_operand.vmem [shape: f32[1,256], index: 8, kind: input, shape index: {}]
  %s9 = inlined_call_operand.vmem [shape: f32[1,256], index: 9, kind: input, shape index: {}]
  %s10 = inlined_call_operand.hbm [shape: bf16[256,1024], index: 10, kind: input, shape index: {}]
  %s11 = inlined_call_operand.vmem [shape: f32[1,1024], index: 11, kind: input, shape index: {}]
  %s12 = inlined_call_operand.hbm [shape: bf16[1024,256], index: 12, kind: input, shape index: {}]
  %s13 = inlined_call_operand.vmem [shape: f32[1,256], index: 13, kind: input, shape index: {}]
  %s14 = inlined_call_operand.hbm [shape: f32[2,256,256], index: 14, kind: output, shape index: {}]
  %s15 = sld [smem:[#allocation0]]
  $region124: #{tpu_custom_call.1} parent=0
    _
  %s17 = ssub.s32 1, %s15
  %s18 = scalar_select 0, %s17, %s15
  $region1: #{tpu_custom_call.1} parent=0
    #allocation7 [shape = 'u8[262144]{0}', space=vmem, size = 0x40000, scoped, tag = 'input window, operand 0']
    #allocation8 [shape = 's32[2]{0}', space=sflag, size = 0x8, scoped, tag = 'scoped memory for tpu_custom_call.1']
    #allocation9 [shape = 's32[2]{0}', space=sflag, size = 0x8, scoped, tag = 'scoped memory for tpu_custom_call.1']
    #allocation10 [shape = 'u8[131072]{0}', space=vmem, size = 0x20000, scoped, tag = 'input window, operand 3, single buffered']
    #allocation11 [shape = 's32[1]{0}', space=sflag, size = 0x4, scoped, tag = 'scoped memory for tpu_custom_call.1']
    #allocation12 [shape = 'u8[131072]{0}', space=vmem, size = 0x20000, scoped, tag = 'input window, operand 4, single buffered']
    #allocation13 [shape = 'u8[131072]{0}', space=vmem, size = 0x20000, scoped, tag = 'input window, operand 5, single buffered']
    #allocation14 [shape = 's32[1]{0}', space=sflag, size = 0x4, scoped, tag = 'scoped memory for tpu_custom_call.1']
    #allocation15 [shape = 'u8[131072]{0}', space=vmem, size = 0x20000, scoped, tag = 'input window, operand 6, single buffered']
    #allocation16 [shape = 'u8[524288]{0}', space=vmem, size = 0x80000, scoped, tag = 'input window, operand 10, single buffered']
    #allocation17 [shape = 's32[1]{0}', space=sflag, size = 0x4, scoped, tag = 'scoped memory for tpu_custom_call.1']
    #allocation18 [shape = 'u8[524288]{0}', space=vmem, size = 0x80000, scoped, tag = 'input window, operand 12, single buffered']
    #allocation19 [shape = 'u8[262144]{0}', space=vmem, size = 0x40000, scoped, tag = 'output window, operand 0']
    %19 = vsyncpa [#allocation8], 0
    %s20 = scalar_lea.sflag [#allocation8], 1
    %21 = vsyncpa %s20, 0
    %22 = vsyncpa [#allocation11], 0
    %23 = vsyncpa [#allocation14], 0
    %24 = vsyncpa [#allocation17], 0
    %25 = vsyncpa [#allocation9], 0
    %s26 = scalar_lea.sflag [#allocation9], 1
    %27 = vsyncpa %s26, 0
    loop: start=0, step=1, limit=6
    $region2: #{tpu_custom_call.1} parent=1 // loop_pre_header
      _
    $region3: #{tpu_custom_call.1} parent=1 // loop_header
      %s29 = sphi 0, %s33
      %p30 = scmp.ge.s32.totalorder %s29, 6
      %s36 = sphi 0, %s48
      %s37 = sphi 0, %s44
      %s38 = sphi 0, %s36
      %s39 = sphi 0, %s37
      %s40 = sphi 0, %s38
      %s41 = sphi 0, %s39
      %s53 = sphi 0, %s55
      %s56 = sphi 0, %s53
      %s57 = sphi 0, %s56
      %s73 = sphi 0, %s57
      %s77 = sphi 0, %s77
      %s79 = sphi 0, %s77
      %s80 = sphi 0, %s79
      %s94 = sphi 0, %s80
      %s98 = sphi 0, %s98
      %s100 = sphi 0, %s98
      %s101 = sphi 0, %s100
      %s115 = sphi 0, %s101
      %s119 = sphi 0, %s119
      %s121 = sphi 0, %s119
      %s122 = sphi 0, %s121
      %s136 = sphi 0, %s122
      %s140 = sphi 0, %s140
      %s142 = sphi 0, %s140
      %s143 = sphi 0, %s142
      %s157 = sphi 0, %s143
      %s161 = sphi 0, %s161
      %s163 = sphi 0, %s161
      %s164 = sphi 0, %s163
      %s178 = sphi 0, %s164
      %s182 = sphi 0, %s182
      %s184 = sphi 0, %s182
      %s185 = sphi 0, %s184
      %s199 = sphi 0, %s185
      %s203 = sphi 0, %s203
      %s205 = sphi 0, %s203
      %s206 = sphi 0, %s205
      %s220 = sphi 0, %s206
      %s224 = sphi 0, %s224
      %s226 = sphi 0, %s224
      %s227 = sphi 0, %s226
      %s241 = sphi 0, %s227
      %s245 = sphi 0, %s245
      %s247 = sphi 0, %s245
      %s248 = sphi 0, %s247
      %s262 = sphi 0, %s248
      %s266 = sphi 0, %s266
      %s268 = sphi 0, %s266
      %s269 = sphi 0, %s268
      %s283 = sphi 0, %s269
      %s287 = sphi 0, %s287
      %s289 = sphi 0, %s287
      %s290 = sphi 0, %s289
      %s304 = sphi 0, %s290
      %s308 = sphi 0, %s308
      %s310 = sphi 0, %s308
      %s311 = sphi 0, %s310
      %s325 = sphi 0, %s311
      %s329 = sphi 0, %s329
      %s331 = sphi 0, %s329
      %s332 = sphi 0, %s331
      %s346 = sphi 0, %s332
      %s354 = sphi 0, %s356
      %s357 = sphi 0, %s354
      %s358 = sphi 0, %s357
      %s374 = sphi 0, %s358
    $region4: #{tpu_custom_call.1} parent=1 // loop_header_branch
      %32 = sbr.rel (%p30) target = $region8
    $region5: #{tpu_custom_call.1} parent=1 // loop_body
      %s34 = ssub.s32 %s29, 1
      %s35 = ssub.s32 %s29, 2
      %s42 = sadd.s32 1, %s37
      %p43 = scmp.ge.s32.totalorder %s42, 2
      %s44 = scalar_select %p43, 0, %s42
      %s45 = sadd.s32 1, %s36
      %s46 = scalar_select %p43, %s45, %s36
      %p47 = scmp.ge.s32.totalorder %s46, 2
      %s48 = scalar_select %p47, 0, %s46
      %s49 = ssub.s32 %s36, %s48
      %s50 = ssub.s32 %s37, %s44
      %s51 = sor.u32 %s49, %s50
      %p52 = scmp.eq.s32.totalorder %s51, 0
      %s54 = sadd.s32 %s53, 1
      %s55 = scalar_select %p52, %s53, %s54
      %p58 = pneg %p52
      %p59 = scmp.eq.s32.totalorder %s29, 3
      %p60 = por %p58, %p59
      %p61 = scmp.ne.s32.totalorder %s53, %s56
      %p62 = scmp.eq.s32.totalorder %s29, 0
      %p63 = por %p61, %p62
      %p64 = scmp.ne.s32.totalorder %s53, %s56
      %p65 = scmp.eq.s32.totalorder %s34, 3
      %p66 = por %p64, %p65
      %p67 = scmp.ne.s32.totalorder %s56, %s57
      %p68 = scmp.eq.s32.totalorder %s34, 0
      %p69 = por %p67, %p68
      %p70 = scmp.ne.s32.totalorder %s56, %s57
      %p71 = scmp.eq.s32.totalorder %s35, 3
      %p72 = por %p70, %p71
      %p74 = scmp.ne.s32.totalorder %s57, %s73
      %p75 = scmp.eq.s32.totalorder %s35, 0
      %p76 = por %p74, %p75
      %s78 = sadd.s32 %s77, 1
      %p81 = scmp.eq.s32.totalorder %s29, 3
      %p82 = scmp.ne.s32.totalorder %s77, %s79
      %p83 = scmp.eq.s32.totalorder %s29, 0
      %p84 = por %p82, %p83
      %p85 = scmp.ne.s32.totalorder %s77, %s79
      %p86 = scmp.eq.s32.totalorder %s34, 3
      %p87 = por %p85, %p86
      %p88 = scmp.ne.s32.totalorder %s79, %s80
      %p89 = scmp.eq.s32.totalorder %s34, 0
      %p90 = por %p88, %p89
      %p91 = scmp.ne.s32.totalorder %s79, %s80
      %p92 = scmp.eq.s32.totalorder %s35, 3
      %p93 = por %p91, %p92
      %p95 = scmp.ne.s32.totalorder %s80, %s94
      %p96 = scmp.eq.s32.totalorder %s35, 0
      %p97 = por %p95, %p96
      %s99 = sadd.s32 %s98, 1
      %p102 = scmp.eq.s32.totalorder %s29, 3
      %p103 = scmp.ne.s32.totalorder %s98, %s100
      %p104 = scmp.eq.s32.totalorder %s29, 0
      %p105 = por %p103, %p104
      %p106 = scmp.ne.s32.totalorder %s98, %s100
      %p107 = scmp.eq.s32.totalorder %s34, 3
      %p108 = por %p106, %p107
      %p109 = scmp.ne.s32.totalorder %s100, %s101
      %p110 = scmp.eq.s32.totalorder %s34, 0
      %p111 = por %p109, %p110
      %p112 = scmp.ne.s32.totalorder %s100, %s101
      %p113 = scmp.eq.s32.totalorder %s35, 3
      %p114 = por %p112, %p113
      %p116 = scmp.ne.s32.totalorder %s101, %s115
      %p117 = scmp.eq.s32.totalorder %s35, 0
      %p118 = por %p116, %p117
      %s120 = sadd.s32 %s119, 1
      %p123 = scmp.eq.s32.totalorder %s29, 3
      %p124 = scmp.ne.s32.totalorder %s119, %s121
      %p125 = scmp.eq.s32.totalorder %s29, 0
      %p126 = por %p124, %p125
      %p127 = scmp.ne.s32.totalorder %s119, %s121
      %p128 = scmp.eq.s32.totalorder %s34, 3
      %p129 = por %p127, %p128
      %p130 = scmp.ne.s32.totalorder %s121, %s122
      %p131 = scmp.eq.s32.totalorder %s34, 0
      %p132 = por %p130, %p131
      %p133 = scmp.ne.s32.totalorder %s121, %s122
      %p134 = scmp.eq.s32.totalorder %s35, 3
      %p135 = por %p133, %p134
      %p137 = scmp.ne.s32.totalorder %s122, %s136
      %p138 = scmp.eq.s32.totalorder %s35, 0
      %p139 = por %p137, %p138
      %s141 = sadd.s32 %s140, 1
      %p144 = scmp.eq.s32.totalorder %s29, 3
      %p145 = scmp.ne.s32.totalorder %s140, %s142
      %p146 = scmp.eq.s32.totalorder %s29, 0
      %p147 = por %p145, %p146
      %p148 = scmp.ne.s32.totalorder %s140, %s142
      %p149 = scmp.eq.s32.totalorder %s34, 3
      %p150 = por %p148, %p149
      %p151 = scmp.ne.s32.totalorder %s142, %s143
      %p152 = scmp.eq.s32.totalorder %s34, 0
      %p153 = por %p151, %p152
      %p154 = scmp.ne.s32.totalorder %s142, %s143
      %p155 = scmp.eq.s32.totalorder %s35, 3
      %p156 = por %p154, %p155
      %p158 = scmp.ne.s32.totalorder %s143, %s157
      %p159 = scmp.eq.s32.totalorder %s35, 0
      %p160 = por %p158, %p159
      %s162 = sadd.s32 %s161, 1
      %p165 = scmp.eq.s32.totalorder %s29, 3
      %p166 = scmp.ne.s32.totalorder %s161, %s163
      %p167 = scmp.eq.s32.totalorder %s29, 0
      %p168 = por %p166, %p167
      %p169 = scmp.ne.s32.totalorder %s161, %s163
      %p170 = scmp.eq.s32.totalorder %s34, 3
      %p171 = por %p169, %p170
      %p172 = scmp.ne.s32.totalorder %s163, %s164
      %p173 = scmp.eq.s32.totalorder %s34, 0
      %p174 = por %p172, %p173
      %p175 = scmp.ne.s32.totalorder %s163, %s164
      %p176 = scmp.eq.s32.totalorder %s35, 3
      %p177 = por %p175, %p176
      %p179 = scmp.ne.s32.totalorder %s164, %s178
      %p180 = scmp.eq.s32.totalorder %s35, 0
      %p181 = por %p179, %p180
      %s183 = sadd.s32 %s182, 1
      %p186 = scmp.eq.s32.totalorder %s29, 3
      %p187 = scmp.ne.s32.totalorder %s182, %s184
      %p188 = scmp.eq.s32.totalorder %s29, 0
      %p189 = por %p187, %p188
      %p190 = scmp.ne.s32.totalorder %s182, %s184
      %p191 = scmp.eq.s32.totalorder %s34, 3
      %p192 = por %p190, %p191
      %p193 = scmp.ne.s32.totalorder %s184, %s185
      %p194 = scmp.eq.s32.totalorder %s34, 0
      %p195 = por %p193, %p194
      %p196 = scmp.ne.s32.totalorder %s184, %s185
      %p197 = scmp.eq.s32.totalorder %s35, 3
      %p198 = por %p196, %p197
      %p200 = scmp.ne.s32.totalorder %s185, %s199
      %p201 = scmp.eq.s32.totalorder %s35, 0
      %p202 = por %p200, %p201
      %s204 = sadd.s32 %s203, 1
      %p207 = scmp.eq.s32.totalorder %s29, 3
      %p208 = scmp.ne.s32.totalorder %s203, %s205
      %p209 = scmp.eq.s32.totalorder %s29, 0
      %p210 = por %p208, %p209
      %p211 = scmp.ne.s32.totalorder %s203, %s205
      %p212 = scmp.eq.s32.totalorder %s34, 3
      %p213 = por %p211, %p212
      %p214 = scmp.ne.s32.totalorder %s205, %s206
      %p215 = scmp.eq.s32.totalorder %s34, 0
      %p216 = por %p214, %p215
      %p217 = scmp.ne.s32.totalorder %s205, %s206
      %p218 = scmp.eq.s32.totalorder %s35, 3
      %p219 = por %p217, %p218
      %p221 = scmp.ne.s32.totalorder %s206, %s220
      %p222 = scmp.eq.s32.totalorder %s35, 0
      %p223 = por %p221, %p222
      %s225 = sadd.s32 %s224, 1
      %p228 = scmp.eq.s32.totalorder %s29, 3
      %p229 = scmp.ne.s32.totalorder %s224, %s226
      %p230 = scmp.eq.s32.totalorder %s29, 0
      %p231 = por %p229, %p230
      %p232 = scmp.ne.s32.totalorder %s224, %s226
      %p233 = scmp.eq.s32.totalorder %s34, 3
      %p234 = por %p232, %p233
      %p235 = scmp.ne.s32.totalorder %s226, %s227
      %p236 = scmp.eq.s32.totalorder %s34, 0
      %p237 = por %p235, %p236
      %p238 = scmp.ne.s32.totalorder %s226, %s227
      %p239 = scmp.eq.s32.totalorder %s35, 3
      %p240 = por %p238, %p239
      %p242 = scmp.ne.s32.totalorder %s227, %s241
      %p243 = scmp.eq.s32.totalorder %s35, 0
      %p244 = por %p242, %p243
      %s246 = sadd.s32 %s245, 1
      %p249 = scmp.eq.s32.totalorder %s29, 3
      %p250 = scmp.ne.s32.totalorder %s245, %s247
      %p251 = scmp.eq.s32.totalorder %s29, 0
      %p252 = por %p250, %p251
      %p253 = scmp.ne.s32.totalorder %s245, %s247
      %p254 = scmp.eq.s32.totalorder %s34, 3
      %p255 = por %p253, %p254
      %p256 = scmp.ne.s32.totalorder %s247, %s248
      %p257 = scmp.eq.s32.totalorder %s34, 0
      %p258 = por %p256, %p257
      %p259 = scmp.ne.s32.totalorder %s247, %s248
      %p260 = scmp.eq.s32.totalorder %s35, 3
      %p261 = por %p259, %p260
      %p263 = scmp.ne.s32.totalorder %s248, %s262
      %p264 = scmp.eq.s32.totalorder %s35, 0
      %p265 = por %p263, %p264
      %s267 = sadd.s32 %s266, 1
      %p270 = scmp.eq.s32.totalorder %s29, 3
      %p271 = scmp.ne.s32.totalorder %s266, %s268
      %p272 = scmp.eq.s32.totalorder %s29, 0
      %p273 = por %p271, %p272
      %p274 = scmp.ne.s32.totalorder %s266, %s268
      %p275 = scmp.eq.s32.totalorder %s34, 3
      %p276 = por %p274, %p275
      %p277 = scmp.ne.s32.totalorder %s268, %s269
      %p278 = scmp.eq.s32.totalorder %s34, 0
      %p279 = por %p277, %p278
      %p280 = scmp.ne.s32.totalorder %s268, %s269
      %p281 = scmp.eq.s32.totalorder %s35, 3
      %p282 = por %p280, %p281
      %p284 = scmp.ne.s32.totalorder %s269, %s283
      %p285 = scmp.eq.s32.totalorder %s35, 0
      %p286 = por %p284, %p285
      %s288 = sadd.s32 %s287, 1
      %p291 = scmp.eq.s32.totalorder %s29, 3
      %p292 = scmp.ne.s32.totalorder %s287, %s289
      %p293 = scmp.eq.s32.totalorder %s29, 0
      %p294 = por %p292, %p293
      %p295 = scmp.ne.s32.totalorder %s287, %s289
      %p296 = scmp.eq.s32.totalorder %s34, 3
      %p297 = por %p295, %p296
      %p298 = scmp.ne.s32.totalorder %s289, %s290
      %p299 = scmp.eq.s32.totalorder %s34, 0
      %p300 = por %p298, %p299
      %p301 = scmp.ne.s32.totalorder %s289, %s290
      %p302 = scmp.eq.s32.totalorder %s35, 3
      %p303 = por %p301, %p302
      %p305 = scmp.ne.s32.totalorder %s290, %s304
      %p306 = scmp.eq.s32.totalorder %s35, 0
      %p307 = por %p305, %p306
      %s309 = sadd.s32 %s308, 1
      %p312 = scmp.eq.s32.totalorder %s29, 3
      %p313 = scmp.ne.s32.totalorder %s308, %s310
      %p314 = scmp.eq.s32.totalorder %s29, 0
      %p315 = por %p313, %p314
      %p316 = scmp.ne.s32.totalorder %s308, %s310
      %p317 = scmp.eq.s32.totalorder %s34, 3
      %p318 = por %p316, %p317
      %p319 = scmp.ne.s32.totalorder %s310, %s311
      %p320 = scmp.eq.s32.totalorder %s34, 0
      %p321 = por %p319, %p320
      %p322 = scmp.ne.s32.totalorder %s310, %s311
      %p323 = scmp.eq.s32.totalorder %s35, 3
      %p324 = por %p322, %p323
      %p326 = scmp.ne.s32.totalorder %s311, %s325
      %p327 = scmp.eq.s32.totalorder %s35, 0
      %p328 = por %p326, %p327
      %s330 = sadd.s32 %s329, 1
      %p333 = scmp.eq.s32.totalorder %s29, 3
      %p334 = scmp.ne.s32.totalorder %s329, %s331
      %p335 = scmp.eq.s32.totalorder %s29, 0
      %p336 = por %p334, %p335
      %p337 = scmp.ne.s32.totalorder %s329, %s331
      %p338 = scmp.eq.s32.totalorder %s34, 3
      %p339 = por %p337, %p338
      %p340 = scmp.ne.s32.totalorder %s331, %s332
      %p341 = scmp.eq.s32.totalorder %s34, 0
      %p342 = por %p340, %p341
      %p343 = scmp.ne.s32.totalorder %s331, %s332
      %p344 = scmp.eq.s32.totalorder %s35, 3
      %p345 = por %p343, %p344
      %p347 = scmp.ne.s32.totalorder %s332, %s346
      %p348 = scmp.eq.s32.totalorder %s35, 0
      %p349 = por %p347, %p348
      %s350 = ssub.s32 %s36, %s48
      %s351 = ssub.s32 %s37, %s44
      %s352 = sor.u32 %s350, %s351
      %p353 = scmp.eq.s32.totalorder %s352, 0
      %s355 = sadd.s32 %s354, 1
      %s356 = scalar_select %p353, %s354, %s355
      %p359 = pneg %p353
      %p360 = scmp.eq.s32.totalorder %s29, 3
      %p361 = por %p359, %p360
      %p362 = scmp.ne.s32.totalorder %s354, %s357
      %p363 = scmp.eq.s32.totalorder %s29, 0
      %p364 = por %p362, %p363
      %p365 = scmp.ne.s32.totalorder %s354, %s357
      %p366 = scmp.eq.s32.totalorder %s34, 3
      %p367 = por %p365, %p366
      %p368 = scmp.ne.s32.totalorder %s357, %s358
      %p369 = scmp.eq.s32.totalorder %s34, 0
      %p370 = por %p368, %p369
      %p371 = scmp.ne.s32.totalorder %s357, %s358
      %p372 = scmp.eq.s32.totalorder %s35, 3
      %p373 = por %p371, %p372
      %p375 = scmp.ne.s32.totalorder %s358, %s374
      %p376 = scmp.eq.s32.totalorder %s35, 0
      %p377 = por %p375, %p376
      %p378 = scmp.le.s32.totalorder 1, %s29
      %p379 = scmp.lt.s32.totalorder %s29, 5
      %p380 = pnand %p378, %p379
      %p381 = pneg %p380
      // Predicated region
      $region9: #{tpu_custom_call.1} parent=5 // pred_check
        _
      $region10: #{tpu_custom_call.1} parent=5 // pred_check_branch
        %383 = sbr.rel (%p380) target = $region12
      $region11: #{tpu_custom_call.1} parent=5 // pred_region
        %s384 = ssub.s32 %s29, 1
        // Predicated region
        $region13: #{tpu_custom_call.1} parent=11 // pred_check
          %p385 = pneg %p90
        $region14: #{tpu_custom_call.1} parent=11 // pred_check_branch
          %387 = sbr.rel (%p385) target = $region16
        $region15: #{tpu_custom_call.1} parent=11 // pred_region
          _
        $region16: #{tpu_custom_call.1} parent=11 // pred_fallthru
          _
        // Predicated region
        $region17: #{tpu_custom_call.1} parent=11 // pred_check
          %p388 = pneg %p111
        $region18: #{tpu_custom_call.1} parent=11 // pred_check_branch
          %390 = sbr.rel (%p388) target = $region20
        $region19: #{tpu_custom_call.1} parent=11 // pred_region
          _
        $region20: #{tpu_custom_call.1} parent=11 // pred_fallthru
          _
        // Predicated region
        $region21: #{tpu_custom_call.1} parent=11 // pred_check
          %p391 = pneg %p132
        $region22: #{tpu_custom_call.1} parent=11 // pred_check_branch
          %393 = sbr.rel (%p391) target = $region24
        $region23: #{tpu_custom_call.1} parent=11 // pred_region
          %s395 = ssub.s32 4096, 4096
          %396 = vsyncadd [#allocation11], %s395
          %s397 = sshll.u32 [#allocation10], 4
          %s398 = int_to_ptr.vmem [resolvable:$true] %s397
          %403 = dma.hbm_to_vmem [thread:$0]  %s3, 4096, %s398, [#allocation11], 128, 128, 8
        $region24: #{tpu_custom_call.1} parent=11 // pred_fallthru
          _
        // Predicated region
        $region25: #{tpu_custom_call.1} parent=11 // pred_check
          %p404 = pneg %p153
        $region26: #{tpu_custom_call.1} parent=11 // pred_check_branch
          %406 = sbr.rel (%p404) target = $region28
        $region27: #{tpu_custom_call.1} parent=11 // pred_region
          %s408 = ssub.s32 4096, 4096
          %409 = vsyncadd [#allocation11], %s408
          %s410 = sshll.u32 [#allocation12], 4
          %s411 = int_to_ptr.vmem [resolvable:$true] %s410
          %416 = dma.hbm_to_vmem [thread:$0]  %s4, 4096, %s411, [#allocation11], 128, 128, 8
        $region28: #{tpu_custom_call.1} parent=11 // pred_fallthru
          _
        // Predicated region
        $region29: #{tpu_custom_call.1} parent=11 // pred_check
          %p417 = pneg %p174
        $region30: #{tpu_custom_call.1} parent=11 // pred_check_branch
          %419 = sbr.rel (%p417) target = $region32
        $region31: #{tpu_custom_call.1} parent=11 // pred_region
          %s421 = ssub.s32 4096, 4096
          %422 = vsyncadd [#allocation14], %s421
          %s423 = sshll.u32 [#allocation13], 4
          %s424 = int_to_ptr.vmem [resolvable:$true] %s423
          %429 = dma.hbm_to_vmem [thread:$0]  %s5, 4096, %s424, [#allocation14], 128, 128, 8
        $region32: #{tpu_custom_call.1} parent=11 // pred_fallthru
          _
        // Predicated region
        $region33: #{tpu_custom_call.1} parent=11 // pred_check
          %p430 = pneg %p195
        $region34: #{tpu_custom_call.1} parent=11 // pred_check_branch
          %432 = sbr.rel (%p430) target = $region36
        $region35: #{tpu_custom_call.1} parent=11 // pred_region
          %s434 = ssub.s32 4096, 4096
          %435 = vsyncadd [#allocation14], %s434
          %s436 = sshll.u32 [#allocation15], 4
          %s437 = int_to_ptr.vmem [resolvable:$true] %s436
          %442 = dma.hbm_to_vmem [thread:$0]  %s6, 4096, %s437, [#allocation14], 128, 128, 8
        $region36: #{tpu_custom_call.1} parent=11 // pred_fallthru
          _
        // Predicated region
        $region37: #{tpu_custom_call.1} parent=11 // pred_check
          %p443 = pneg %p216
        $region38: #{tpu_custom_call.1} parent=11 // pred_check_branch
          %445 = sbr.rel (%p443) target = $region40
        $region39: #{tpu_custom_call.1} parent=11 // pred_region
          _
        $region40: #{tpu_custom_call.1} parent=11 // pred_fallthru
          _
        // Predicated region
        $region41: #{tpu_custom_call.1} parent=11 // pred_check
          %p446 = pneg %p237
        $region42: #{tpu_custom_call.1} parent=11 // pred_check_branch
          %448 = sbr.rel (%p446) target = $region44
        $region43: #{tpu_custom_call.1} parent=11 // pred_region
          _
        $region44: #{tpu_custom_call.1} parent=11 // pred_fallthru
          _
        // Predicated region
        $region45: #{tpu_custom_call.1} parent=11 // pred_check
          %p449 = pneg %p258
        $region46: #{tpu_custom_call.1} parent=11 // pred_check_branch
          %451 = sbr.rel (%p449) target = $region48
        $region47: #{tpu_custom_call.1} parent=11 // pred_region
          _
        $region48: #{tpu_custom_call.1} parent=11 // pred_fallthru
          _
        // Predicated region
        $region49: #{tpu_custom_call.1} parent=11 // pred_check
          %p452 = pneg %p279
        $region50: #{tpu_custom_call.1} parent=11 // pred_check_branch
          %454 = sbr.rel (%p452) target = $region52
        $region51: #{tpu_custom_call.1} parent=11 // pred_region
          %s456 = ssub.s32 16384, 16384
          %457 = vsyncadd [#allocation17], %s456
          %s458 = sshll.u32 [#allocation16], 4
          %s459 = int_to_ptr.vmem [resolvable:$true] %s458
          %464 = dma.hbm_to_vmem [thread:$0]  %s10, 16384, %s459, [#allocation17], 512, 512, 32
        $region52: #{tpu_custom_call.1} parent=11 // pred_fallthru
          _
        // Predicated region
        $region53: #{tpu_custom_call.1} parent=11 // pred_check
          %p465 = pneg %p300
        $region54: #{tpu_custom_call.1} parent=11 // pred_check_branch
          %467 = sbr.rel (%p465) target = $region56
        $region55: #{tpu_custom_call.1} parent=11 // pred_region
          _
        $region56: #{tpu_custom_call.1} parent=11 // pred_fallthru
          _
        // Predicated region
        $region57: #{tpu_custom_call.1} parent=11 // pred_check
          %p468 = pneg %p321
        $region58: #{tpu_custom_call.1} parent=11 // pred_check_branch
          %470 = sbr.rel (%p468) target = $region60
        $region59: #{tpu_custom_call.1} parent=11 // pred_region
          %s472 = ssub.s32 16384, 16384
          %473 = vsyncadd [#allocation17], %s472
          %s474 = sshll.u32 [#allocation18], 4
          %s475 = int_to_ptr.vmem [resolvable:$true] %s474
          %480 = dma.hbm_to_vmem [thread:$0]  %s12, 16384, %s475, [#allocation17], 128, 128, 8
        $region60: #{tpu_custom_call.1} parent=11 // pred_fallthru
          _
        // Predicated region
        $region61: #{tpu_custom_call.1} parent=11 // pred_check
          %p481 = pneg %p342
        $region62: #{tpu_custom_call.1} parent=11 // pred_check_branch
          %483 = sbr.rel (%p481) target = $region64
        $region63: #{tpu_custom_call.1} parent=11 // pred_region
          _
        $region64: #{tpu_custom_call.1} parent=11 // pred_fallthru
          _
      $region12: #{tpu_custom_call.1} parent=5 // pred_fallthru
        _
      %p484 = scmp.lt.s32.totalorder %s29, 4
      // Predicated region
      $region65: #{tpu_custom_call.1} parent=5 // pred_check
        %p485 = pneg %p484
      $region66: #{tpu_custom_call.1} parent=5 // pred_check_branch
        %487 = sbr.rel (%p485) target = $region68
      $region67: #{tpu_custom_call.1} parent=5 // pred_region
        // Predicated region
        $region69: #{tpu_custom_call.1} parent=67 // pred_check
          %p488 = pneg %p63
        $region70: #{tpu_custom_call.1} parent=67 // pred_check_branch
          %490 = sbr.rel (%p488) target = $region72
        $region71: #{tpu_custom_call.1} parent=67 // pred_region
          %s491 = sand.u32 %s53, 1
          %s492 = scalar_lea.sflag [#allocation8], %s491
          %s493 = sand.u32 %s53, 1
          %s494 = smul.addr %s493, 256
          %s495 = scalar_lea.vmem [#allocation7], %s494
          %s496 = smul.u32 16, %s37
          %s498 = ssub.s32 4096, 4096
          %499 = vsyncadd %s492, %s498
          %s500 = smul.addr %s496, 2
          %s501 = smul.addr %s36, 64
          %s502 = sadd.s32 %s500, %s501
          %s503 = smul.addr %s502, 128
          %s504 = scalar_lea.hbm %s0, %s503
          %s505 = sshll.u32 %s495, 4
          %s506 = int_to_ptr.vmem [resolvable:$true] %s505
          %511 = dma.hbm_to_vmem [thread:$0]  %s504, 4096, %s506, %s492, 256, 256, 16
        $region72: #{tpu_custom_call.1} parent=67 // pred_fallthru
          _
      $region68: #{tpu_custom_call.1} parent=5 // pred_fallthru
        _
      %p512 = scmp.le.s32.totalorder 1, %s29
      %p513 = scmp.lt.s32.totalorder %s29, 5
      %p514 = pnand %p512, %p513
      %p515 = pneg %p514
      // Predicated region
      $region73: #{tpu_custom_call.1} parent=5 // pred_check
        _
      $region74: #{tpu_custom_call.1} parent=5 // pred_check_branch
        %517 = sbr.rel (%p514) target = $region76
      $region75: #{tpu_custom_call.1} parent=5 // pred_region
        %s518 = ssub.s32 %s29, 1
        %s519 = sand.u32 %s56, 1
        %s520 = scalar_lea.sflag [#allocation8], %s519
        %s521 = sand.u32 %s56, 1
        %s522 = smul.addr %s521, 256
        %s523 = scalar_lea.vmem [#allocation7], %s522
        // Predicated region
        $region77: #{tpu_custom_call.1} parent=75 // pred_check
          %p524 = pneg %p69
        $region78: #{tpu_custom_call.1} parent=75 // pred_check_branch
          %526 = sbr.rel (%p524) target = $region80
        $region79: #{tpu_custom_call.1} parent=75 // pred_region
          %527 = dma.done %s520, 4096
        $region80: #{tpu_custom_call.1} parent=75 // pred_fallthru
          _
        // Predicated region
        $region81: #{tpu_custom_call.1} parent=75 // pred_check
          %p528 = pneg %p132
        $region82: #{tpu_custom_call.1} parent=75 // pred_check_branch
          %530 = sbr.rel (%p528) target = $region84
        $region83: #{tpu_custom_call.1} parent=75 // pred_region
          %531 = dma.done [#allocation11], 4096
        $region84: #{tpu_custom_call.1} parent=75 // pred_fallthru
          _
        // Predicated region
        $region85: #{tpu_custom_call.1} parent=75 // pred_check
          %p532 = pneg %p153
        $region86: #{tpu_custom_call.1} parent=75 // pred_check_branch
          %534 = sbr.rel (%p532) target = $region88
        $region87: #{tpu_custom_call.1} parent=75 // pred_region
          %535 = dma.done [#allocation11], 4096
        $region88: #{tpu_custom_call.1} parent=75 // pred_fallthru
          _
        // Predicated region
        $region89: #{tpu_custom_call.1} parent=75 // pred_check
          %p536 = pneg %p174
        $region90: #{tpu_custom_call.1} parent=75 // pred_check_branch
          %538 = sbr.rel (%p536) target = $region92
        $region91: #{tpu_custom_call.1} parent=75 // pred_region
          %539 = dma.done [#allocation14], 4096
        $region92: #{tpu_custom_call.1} parent=75 // pred_fallthru
          _
        // Predicated region
        $region93: #{tpu_custom_call.1} parent=75 // pred_check
          %p540 = pneg %p195
        $region94: #{tpu_custom_call.1} parent=75 // pred_check_branch
          %542 = sbr.rel (%p540) target = $region96
        $region95: #{tpu_custom_call.1} parent=75 // pred_region
          %543 = dma.done [#allocation14], 4096
        $region96: #{tpu_custom_call.1} parent=75 // pred_fallthru
          _
        // Predicated region
        $region97: #{tpu_custom_call.1} parent=75 // pred_check
          %p544 = pneg %p279
        $region98: #{tpu_custom_call.1} parent=75 // pred_check_branch
          %546 = sbr.rel (%p544) target = $region100
        $region99: #{tpu_custom_call.1} parent=75 // pred_region
          %547 = dma.done [#allocation17], 16384
        $region100: #{tpu_custom_call.1} parent=75 // pred_fallthru
          _
        // Predicated region
        $region101: #{tpu_custom_call.1} parent=75 // pred_check
          %p548 = pneg %p321
        $region102: #{tpu_custom_call.1} parent=75 // pred_check_branch
          %550 = sbr.rel (%p548) target = $region104
        $region103: #{tpu_custom_call.1} parent=75 // pred_region
          %551 = dma.done [#allocation17], 16384
        $region104: #{tpu_custom_call.1} parent=75 // pred_fallthru
          _
        %s552 = sand.u32 %s56, 1
        %s553 = scalar_lea.sflag [#allocation8], %s552
        %s554 = sand.u32 %s56, 1
        %s555 = smul.addr %s554, 256
        %s556 = scalar_lea.vmem [#allocation7], %s555
        %p557 = pneg %p69
        %p558 = pneg %p66
        %p559 = pneg %p90
        %p560 = pneg %p87
        %p561 = pneg %p111
        %p562 = pneg %p108
        %p563 = pneg %p132
        %p564 = pneg %p129
        %p565 = pneg %p153
        %p566 = pneg %p150
        %p567 = pneg %p174
        %p568 = pneg %p171
        %p569 = pneg %p195
        %p570 = pneg %p192
        %p571 = pneg %p216
        %p572 = pneg %p213
        %p573 = pneg %p237
        %p574 = pneg %p234
        %p575 = pneg %p258
        %p576 = pneg %p255
        %p577 = pneg %p279
        %p578 = pneg %p276
        %p579 = pneg %p300
        %p580 = pneg %p297
        %p581 = pneg %p321
        %p582 = pneg %p318
        %p583 = pneg %p342
        %p584 = pneg %p339
        %p585 = pneg %p370
        %p586 = pneg %p367
        %s587 = sand.u32 %s357, 1
        %s588 = scalar_lea.sflag [#allocation9], %s587
        %s589 = sand.u32 %s357, 1
        %s590 = smul.addr %s589, 256
        %s591 = scalar_lea.vmem [#allocation19], %s590
        %s592 = smul.u32 16, %s39
        %s593 = smul.u32 16, %s39
        %s595 = smul.u32 %s39, 128
        %v596 = vld [vmem:[%s523] sm:$0xff]
        %v597 = vld [vmem:[%s523 + $0x8] sm:$0xff]
        %v598 = vld [vmem:[%s523 + $0x10] sm:$0xff]
        %v599 = vld [vmem:[%s523 + $0x18] sm:$0xff]
        %v600 = vld [vmem:[%s523 + $0x20] sm:$0xff]
        %v601 = vld [vmem:[%s523 + $0x28] sm:$0xff]
        %v602 = vld [vmem:[%s523 + $0x30] sm:$0xff]
        %v603 = vld [vmem:[%s523 + $0x38] sm:$0xff]
        %v604 = vld [vmem:[%s523 + $0x40] sm:$0xff]
        %v605 = vld [vmem:[%s523 + $0x48] sm:$0xff]
        %v606 = vld [vmem:[%s523 + $0x50] sm:$0xff]
        %v607 = vld [vmem:[%s523 + $0x58] sm:$0xff]
        %v608 = vld [vmem:[%s523 + $0x60] sm:$0xff]
        %v609 = vld [vmem:[%s523 + $0x68] sm:$0xff]
        %v610 = vld [vmem:[%s523 + $0x70] sm:$0xff]
        %v611 = vld [vmem:[%s523 + $0x78] sm:$0xff]
        %v612 = vld [vmem:[%s523 + $0x80] sm:$0xff]
        %v613 = vld [vmem:[%s523 + $0x88] sm:$0xff]
        %v614 = vld [vmem:[%s523 + $0x90] sm:$0xff]
        %v615 = vld [vmem:[%s523 + $0x98] sm:$0xff]
        %v616 = vld [vmem:[%s523 + $0xa0] sm:$0xff]
        %v617 = vld [vmem:[%s523 + $0xa8] sm:$0xff]
        %v618 = vld [vmem:[%s523 + $0xb0] sm:$0xff]
        %v619 = vld [vmem:[%s523 + $0xb8] sm:$0xff]
        %v620 = vld [vmem:[%s523 + $0xc0] sm:$0xff]
        %v621 = vld [vmem:[%s523 + $0xc8] sm:$0xff]
        %v622 = vld [vmem:[%s523 + $0xd0] sm:$0xff]
        %v623 = vld [vmem:[%s523 + $0xd8] sm:$0xff]
        %v624 = vld [vmem:[%s523 + $0xe0] sm:$0xff]
        %v625 = vld [vmem:[%s523 + $0xe8] sm:$0xff]
        %v626 = vld [vmem:[%s523 + $0xf0] sm:$0xff]
        %v627 = vld [vmem:[%s523 + $0xf8] sm:$0xff]
        %v628 = vld [vmem:[%s1] sm:$0x3]
        %v629 = vld [vmem:[%s2] sm:$0x3]
        %v630 = vadd.f32 %v596, %v597
        %631 = vadd.xlane.f32.xlu0 %v630
        %v632 = vpop.xlane.xlu0 %631
        %v633 = vadd.f32 %v598, %v599
        %634 = vadd.xlane.f32.xlu0 %v633
        %v635 = vpop.xlane.xlu0 %634
        %v636 = vadd.f32 %v600, %v601
        %637 = vadd.xlane.f32.xlu0 %v636
        %v638 = vpop.xlane.xlu0 %637
        %v639 = vadd.f32 %v602, %v603
        %640 = vadd.xlane.f32.xlu0 %v639
        %v641 = vpop.xlane.xlu0 %640
        %v642 = vadd.f32 %v604, %v605
        %643 = vadd.xlane.f32.xlu0 %v642
        %v644 = vpop.xlane.xlu0 %643
        %v645 = vadd.f32 %v606, %v607
        %646 = vadd.xlane.f32.xlu0 %v645
        %v647 = vpop.xlane.xlu0 %646
        %v648 = vadd.f32 %v608, %v609
        %649 = vadd.xlane.f32.xlu0 %v648
        %v650 = vpop.xlane.xlu0 %649
        %v651 = vadd.f32 %v610, %v611
        %652 = vadd.xlane.f32.xlu0 %v651
        %v653 = vpop.xlane.xlu0 %652
        %v654 = vadd.f32 %v612, %v613
        %655 = vadd.xlane.f32.xlu0 %v654
        %v656 = vpop.xlane.xlu0 %655
        %v657 = vadd.f32 %v614, %v615
        %658 = vadd.xlane.f32.xlu0 %v657
        %v659 = vpop.xlane.xlu0 %658
        %v660 = vadd.f32 %v616, %v617
        %661 = vadd.xlane.f32.xlu0 %v660
        %v662 = vpop.xlane.xlu0 %661
        %v663 = vadd.f32 %v618, %v619
        %664 = vadd.xlane.f32.xlu0 %v663
        %v665 = vpop.xlane.xlu0 %664
        %v666 = vadd.f32 %v620, %v621
        %667 = vadd.xlane.f32.xlu0 %v666
        %v668 = vpop.xlane.xlu0 %667
        %v669 = vadd.f32 %v622, %v623
        %670 = vadd.xlane.f32.xlu0 %v669
        %v671 = vpop.xlane.xlu0 %670
        %v672 = vadd.f32 %v624, %v625
        %673 = vadd.xlane.f32.xlu0 %v672
        %v674 = vpop.xlane.xlu0 %673
        %v675 = vadd.f32 %v626, %v627
        %676 = vadd.xlane.f32.xlu0 %v675
        %v677 = vpop.xlane.xlu0 %676
        %v678 = vrcp.pop 256.0
        %v679 = vmul.f32 %v632, %v678
        %v680 = vmul.f32 %v635, %v678
        %v681 = vmul.f32 %v638, %v678
        %v682 = vmul.f32 %v641, %v678
        %v683 = vmul.f32 %v644, %v678
        %v684 = vmul.f32 %v647, %v678
        %v685 = vmul.f32 %v650, %v678
        %v686 = vmul.f32 %v653, %v678
        %v687 = vmul.f32 %v656, %v678
        %v688 = vmul.f32 %v659, %v678
        %v689 = vmul.f32 %v662, %v678
        %v690 = vmul.f32 %v665, %v678
        %v691 = vmul.f32 %v668, %v678
        %v692 = vmul.f32 %v671, %v678
        %v693 = vmul.f32 %v674, %v678
        %v694 = vmul.f32 %v677, %v678
        %v695 = vsub.f32 %v596, %v679
        %v696 = vsub.f32 %v597, %v679
        %v697 = vsub.f32 %v598, %v680
        %v698 = vsub.f32 %v599, %v680
        %v699 = vsub.f32 %v600, %v681
        %v700 = vsub.f32 %v601, %v681
        %v701 = vsub.f32 %v602, %v682
        %v702 = vsub.f32 %v603, %v682
        %v703 = vsub.f32 %v604, %v683
        %v704 = vsub.f32 %v605, %v683
        %v705 = vsub.f32 %v606, %v684
        %v706 = vsub.f32 %v607, %v684
        %v707 = vsub.f32 %v608, %v685
        %v708 = vsub.f32 %v609, %v685
        %v709 = vsub.f32 %v610, %v686
        %v710 = vsub.f32 %v611, %v686
        %v711 = vsub.f32 %v612, %v687
        %v712 = vsub.f32 %v613, %v687
        %v713 = vsub.f32 %v614, %v688
        %v714 = vsub.f32 %v615, %v688
        %v715 = vsub.f32 %v616, %v689
        %v716 = vsub.f32 %v617, %v689
        %v717 = vsub.f32 %v618, %v690
        %v718 = vsub.f32 %v619, %v690
        %v719 = vsub.f32 %v620, %v691
        %v720 = vsub.f32 %v621, %v691
        %v721 = vsub.f32 %v622, %v692
        %v722 = vsub.f32 %v623, %v692
        %v723 = vsub.f32 %v624, %v693
        %v724 = vsub.f32 %v625, %v693
        %v725 = vsub.f32 %v626, %v694
        %v726 = vsub.f32 %v627, %v694
        %v727 = vmul.f32 %v695, %v695
        %v728 = vmul.f32 %v696, %v696
        %v729 = vmul.f32 %v697, %v697
        %v730 = vmul.f32 %v698, %v698
        %v731 = vmul.f32 %v699, %v699
        %v732 = vmul.f32 %v700, %v700
        %v733 = vmul.f32 %v701, %v701
        %v734 = vmul.f32 %v702, %v702
        %v735 = vmul.f32 %v703, %v703
        %v736 = vmul.f32 %v704, %v704
        %v737 = vmul.f32 %v705, %v705
        %v738 = vmul.f32 %v706, %v706
        %v739 = vmul.f32 %v707, %v707
        %v740 = vmul.f32 %v708, %v708
        %v741 = vmul.f32 %v709, %v709
        %v742 = vmul.f32 %v710, %v710
        %v743 = vmul.f32 %v711, %v711
        %v744 = vmul.f32 %v712, %v712
        %v745 = vmul.f32 %v713, %v713
        %v746 = vmul.f32 %v714, %v714
        %v747 = vmul.f32 %v715, %v715
        %v748 = vmul.f32 %v716, %v716
        %v749 = vmul.f32 %v717, %v717
        %v750 = vmul.f32 %v718, %v718
        %v751 = vmul.f32 %v719, %v719
        %v752 = vmul.f32 %v720, %v720
        %v753 = vmul.f32 %v721, %v721
        %v754 = vmul.f32 %v722, %v722
        %v755 = vmul.f32 %v723, %v723
        %v756 = vmul.f32 %v724, %v724
        %v757 = vmul.f32 %v725, %v725
        %v758 = vmul.f32 %v726, %v726
        %v759 = vadd.f32 %v727, %v728
        %760 = vadd.xlane.f32.xlu0 %v759
        %v761 = vpop.xlane.xlu0 %760
        %v762 = vadd.f32 %v729, %v730
        %763 = vadd.xlane.f32.xlu0 %v762
        %v764 = vpop.xlane.xlu0 %763
        %v765 = vadd.f32 %v731, %v732
        %766 = vadd.xlane.f32.xlu0 %v765
        %v767 = vpop.xlane.xlu0 %766
        %v768 = vadd.f32 %v733, %v734
        %769 = vadd.xlane.f32.xlu0 %v768
        %v770 = vpop.xlane.xlu0 %769
        %v771 = vadd.f32 %v735, %v736
        %772 = vadd.xlane.f32.xlu0 %v771
        %v773 = vpop.xlane.xlu0 %772
        %v774 = vadd.f32 %v737, %v738
        %775 = vadd.xlane.f32.xlu0 %v774
        %v776 = vpop.xlane.xlu0 %775
        %v777 = vadd.f32 %v739, %v740
        %778 = vadd.xlane.f32.xlu0 %v777
        %v779 = vpop.xlane.xlu0 %778
        %v780 = vadd.f32 %v741, %v742
        %781 = vadd.xlane.f32.xlu0 %v780
        %v782 = vpop.xlane.xlu0 %781
        %v783 = vadd.f32 %v743, %v744
        %784 = vadd.xlane.f32.xlu0 %v783
        %v785 = vpop.xlane.xlu0 %784
        %v786 = vadd.f32 %v745, %v746
        %787 = vadd.xlane.f32.xlu0 %v786
        %v788 = vpop.xlane.xlu0 %787
        %v789 = vadd.f32 %v747, %v748
        %790 = vadd.xlane.f32.xlu0 %v789
        %v791 = vpop.xlane.xlu0 %790
        %v792 = vadd.f32 %v749, %v750
        %793 = vadd.xlane.f32.xlu0 %v792
        %v794 = vpop.xlane.xlu0 %793
        %v795 = vadd.f32 %v751, %v752
        %796 = vadd.xlane.f32.xlu0 %v795
        %v797 = vpop.xlane.xlu0 %796
        %v798 = vadd.f32 %v753, %v754
        %799 = vadd.xlane.f32.xlu0 %v798
        %v800 = vpop.xlane.xlu0 %799
        %v801 = vadd.f32 %v755, %v756
        %802 = vadd.xlane.f32.xlu0 %v801
        %v803 = vpop.xlane.xlu0 %802
        %v804 = vadd.f32 %v757, %v758
        %805 = vadd.xlane.f32.xlu0 %v804
        %v806 = vpop.xlane.xlu0 %805
        %v807 = vmul.f32 %v761, %v678
        %v808 = vmul.f32 %v764, %v678
        %v809 = vmul.f32 %v767, %v678
        %v810 = vmul.f32 %v770, %v678
        %v811 = vmul.f32 %v773, %v678
        %v812 = vmul.f32 %v776, %v678
        %v813 = vmul.f32 %v779, %v678
        %v814 = vmul.f32 %v782, %v678
        %v815 = vmul.f32 %v785, %v678
        %v816 = vmul.f32 %v788, %v678
        %v817 = vmul.f32 %v791, %v678
        %v818 = vmul.f32 %v794, %v678
        %v819 = vmul.f32 %v797, %v678
        %v820 = vmul.f32 %v800, %v678
        %v821 = vmul.f32 %v803, %v678
        %v822 = vmul.f32 %v806, %v678
        %v823 = vadd.f32 %v807, 1e-05
        %v824 = vadd.f32 %v808, 1e-05
        %v825 = vadd.f32 %v809, 1e-05
        %v826 = vadd.f32 %v810, 1e-05
        %v827 = vadd.f32 %v811, 1e-05
        %v828 = vadd.f32 %v812, 1e-05
        %v829 = vadd.f32 %v813, 1e-05
        %v830 = vadd.f32 %v814, 1e-05
        %v831 = vadd.f32 %v815, 1e-05
        %v832 = vadd.f32 %v816, 1e-05
        %v833 = vadd.f32 %v817, 1e-05
        %v834 = vadd.f32 %v818, 1e-05
        %v835 = vadd.f32 %v819, 1e-05
        %v836 = vadd.f32 %v820, 1e-05
        %v837 = vadd.f32 %v821, 1e-05
        %v838 = vadd.f32 %v822, 1e-05
        %v839 = vrsqrt.pop %v823
        %v840 = vrsqrt.pop %v824
        %v841 = vrsqrt.pop %v825
        %v842 = vrsqrt.pop %v826
        %v843 = vrsqrt.pop %v827
        %v844 = vrsqrt.pop %v828
        %v845 = vrsqrt.pop %v829
        %v846 = vrsqrt.pop %v830
        %v847 = vrsqrt.pop %v831
        %v848 = vrsqrt.pop %v832
        %v849 = vrsqrt.pop %v833
        %v850 = vrsqrt.pop %v834
        %v851 = vrsqrt.pop %v835
        %v852 = vrsqrt.pop %v836
        %v853 = vrsqrt.pop %v837
        %v854 = vrsqrt.pop %v838
        %v855 = vmul.f32 %v695, %v839
        %v856 = vmul.f32 %v696, %v839
        %v857 = vmul.f32 %v697, %v840
        %v858 = vmul.f32 %v698, %v840
        %v859 = vmul.f32 %v699, %v841
        %v860 = vmul.f32 %v700, %v841
        %v861 = vmul.f32 %v701, %v842
        %v862 = vmul.f32 %v702, %v842
        %v863 = vmul.f32 %v703, %v843
        %v864 = vmul.f32 %v704, %v843
        %v865 = vmul.f32 %v705, %v844
        %v866 = vmul.f32 %v706, %v844
        %v867 = vmul.f32 %v707, %v845
        %v868 = vmul.f32 %v708, %v845
        %v869 = vmul.f32 %v709, %v846
        %v870 = vmul.f32 %v710, %v846
        %v871 = vmul.f32 %v711, %v847
        %v872 = vmul.f32 %v712, %v847
        %v873 = vmul.f32 %v713, %v848
        %v874 = vmul.f32 %v714, %v848
        %v875 = vmul.f32 %v715, %v849
        %v876 = vmul.f32 %v716, %v849
        %v877 = vmul.f32 %v717, %v850
        %v878 = vmul.f32 %v718, %v850
        %v879 = vmul.f32 %v719, %v851
        %v880 = vmul.f32 %v720, %v851
        %v881 = vmul.f32 %v721, %v852
        %v882 = vmul.f32 %v722, %v852
        %v883 = vmul.f32 %v723, %v853
        %v884 = vmul.f32 %v724, %v853
        %v885 = vmul.f32 %v725, %v854
        %v886 = vmul.f32 %v726, %v854
        %v888 = vlaneseq
        %v889 = vshrl.u32 %v888, 7
        %v890 = vsub.s32 0, %v889
        %v891 = vrot.slane %v628, %v890
        %v892 = vlaneseq
        %v893 = vshrl.u32 %v892, 7
        %v894 = vsub.s32 1, %v893
        %v895 = vrot.slane %v628, %v894
        %v898 = vmul.f32 %v855, %v891
        %v899 = vmul.f32 %v856, %v895
        %v900 = vmul.f32 %v857, %v891
        %v901 = vmul.f32 %v858, %v895
        %v902 = vmul.f32 %v859, %v891
        %v903 = vmul.f32 %v860, %v895
        %v904 = vmul.f32 %v861, %v891
        %v905 = vmul.f32 %v862, %v895
        %v906 = vmul.f32 %v863, %v891
        %v907 = vmul.f32 %v864, %v895
        %v908 = vmul.f32 %v865, %v891
        %v909 = vmul.f32 %v866, %v895
        %v910 = vmul.f32 %v867, %v891
        %v911 = vmul.f32 %v868, %v895
        %v912 = vmul.f32 %v869, %v891
        %v913 = vmul.f32 %v870, %v895
        %v914 = vmul.f32 %v871, %v891
        %v915 = vmul.f32 %v872, %v895
        %v916 = vmul.f32 %v873, %v891
        %v917 = vmul.f32 %v874, %v895
        %v918 = vmul.f32 %v875, %v891
        %v919 = vmul.f32 %v876, %v895
        %v920 = vmul.f32 %v877, %v891
        %v921 = vmul.f32 %v878, %v895
        %v922 = vmul.f32 %v879, %v891
        %v923 = vmul.f32 %v880, %v895
        %v924 = vmul.f32 %v881, %v891
        %v925 = vmul.f32 %v882, %v895
        %v926 = vmul.f32 %v883, %v891
        %v927 = vmul.f32 %v884, %v895
        %v928 = vmul.f32 %v885, %v891
        %v929 = vmul.f32 %v886, %v895
        %v931 = vlaneseq
        %v932 = vshrl.u32 %v931, 7
        %v933 = vsub.s32 0, %v932
        %v934 = vrot.slane %v629, %v933
        %v935 = vlaneseq
        %v936 = vshrl.u32 %v935, 7
        %v937 = vsub.s32 1, %v936
        %v938 = vrot.slane %v629, %v937
        %v941 = vadd.f32 %v898, %v934
        %v942 = vadd.f32 %v899, %v938
        %v943 = vadd.f32 %v900, %v934
        %v944 = vadd.f32 %v901, %v938
        %v945 = vadd.f32 %v902, %v934
        %v946 = vadd.f32 %v903, %v938
        %v947 = vadd.f32 %v904, %v934
        %v948 = vadd.f32 %v905, %v938
        %v949 = vadd.f32 %v906, %v934
        %v950 = vadd.f32 %v907, %v938
        %v951 = vadd.f32 %v908, %v934
        %v952 = vadd.f32 %v909, %v938
        %v953 = vadd.f32 %v910, %v934
        %v954 = vadd.f32 %v911, %v938
        %v955 = vadd.f32 %v912, %v934
        %v956 = vadd.f32 %v913, %v938
        %v957 = vadd.f32 %v914, %v934
        %v958 = vadd.f32 %v915, %v938
        %v959 = vadd.f32 %v916, %v934
        %v960 = vadd.f32 %v917, %v938
        %v961 = vadd.f32 %v918, %v934
        %v962 = vadd.f32 %v919, %v938
        %v963 = vadd.f32 %v920, %v934
        %v964 = vadd.f32 %v921, %v938
        %v965 = vadd.f32 %v922, %v934
        %v966 = vadd.f32 %v923, %v938
        %v967 = vadd.f32 %v924, %v934
        %v968 = vadd.f32 %v925, %v938
        %v969 = vadd.f32 %v926, %v934
        %v970 = vadd.f32 %v927, %v938
        %v971 = vadd.f32 %v928, %v934
        %v972 = vadd.f32 %v929, %v938
        %v973 = vpack.c.bf16 %v943, %v941
        %v974 = vpack.c.bf16 %v944, %v942
        %v975 = vpack.c.bf16 %v947, %v945
        %v976 = vpack.c.bf16 %v948, %v946
        %v977 = vpack.c.bf16 %v951, %v949
        %v978 = vpack.c.bf16 %v952, %v950
        %v979 = vpack.c.bf16 %v955, %v953
        %v980 = vpack.c.bf16 %v956, %v954
        %v981 = vpack.c.bf16 %v959, %v957
        %v982 = vpack.c.bf16 %v960, %v958
        %v983 = vpack.c.bf16 %v963, %v961
        %v984 = vpack.c.bf16 %v964, %v962
        %v985 = vpack.c.bf16 %v967, %v965
        %v986 = vpack.c.bf16 %v968, %v966
        %v987 = vpack.c.bf16 %v971, %v969
        %v988 = vpack.c.bf16 %v972, %v970
        %v989 = vld [vmem:[#allocation12] sm:$0xff]
        %v990 = vld [vmem:[#allocation12 + $0x8] sm:$0xff]
        %v991 = vld [vmem:[#allocation12 + $0x10] sm:$0xff]
        %v992 = vld [vmem:[#allocation12 + $0x18] sm:$0xff]
        %v993 = vld [vmem:[#allocation12 + $0x20] sm:$0xff]
        %v994 = vld [vmem:[#allocation12 + $0x28] sm:$0xff]
        %v995 = vld [vmem:[#allocation12 + $0x30] sm:$0xff]
        %v996 = vld [vmem:[#allocation12 + $0x38] sm:$0xff]
        %v997 = vld [vmem:[#allocation12 + $0x40] sm:$0xff]
        %v998 = vld [vmem:[#allocation12 + $0x48] sm:$0xff]
        %v999 = vld [vmem:[#allocation12 + $0x50] sm:$0xff]
        %v1000 = vld [vmem:[#allocation12 + $0x58] sm:$0xff]
        %v1001 = vld [vmem:[#allocation12 + $0x60] sm:$0xff]
        %v1002 = vld [vmem:[#allocation12 + $0x68] sm:$0xff]
        %v1003 = vld [vmem:[#allocation12 + $0x70] sm:$0xff]
        %v1004 = vld [vmem:[#allocation12 + $0x78] sm:$0xff]
        %v1005 = vld [vmem:[#allocation12 + $0x80] sm:$0xff]
        %v1006 = vld [vmem:[#allocation12 + $0x88] sm:$0xff]
        %v1007 = vld [vmem:[#allocation12 + $0x90] sm:$0xff]
        %v1008 = vld [vmem:[#allocation12 + $0x98] sm:$0xff]
        %v1009 = vld [vmem:[#allocation12 + $0xa0] sm:$0xff]
        %v1010 = vld [vmem:[#allocation12 + $0xa8] sm:$0xff]
        %v1011 = vld [vmem:[#allocation12 + $0xb0] sm:$0xff]
        %v1012 = vld [vmem:[#allocation12 + $0xb8] sm:$0xff]
        %v1013 = vld [vmem:[#allocation12 + $0xc0] sm:$0xff]
        %v1014 = vld [vmem:[#allocation12 + $0xc8] sm:$0xff]
        %v1015 = vld [vmem:[#allocation12 + $0xd0] sm:$0xff]
        %v1016 = vld [vmem:[#allocation12 + $0xd8] sm:$0xff]
        %v1017 = vld [vmem:[#allocation12 + $0xe0] sm:$0xff]
        %v1018 = vld [vmem:[#allocation12 + $0xe8] sm:$0xff]
        %v1019 = vld [vmem:[#allocation12 + $0xf0] sm:$0xff]
        %v1020 = vld [vmem:[#allocation12 + $0xf8] sm:$0xff]
        %v1053 = vunpack.c.l.b16 %v989
        %v1054 = vunpack.c.h.b16 %v989
        %v1055 = vunpack.c.l.b16 %v990
        %v1056 = vunpack.c.h.b16 %v990
        %v1057 = vunpack.c.l.b16 %v991
        %v1058 = vunpack.c.h.b16 %v991
        %v1059 = vunpack.c.l.b16 %v992
        %v1060 = vunpack.c.h.b16 %v992
        %v1061 = vunpack.c.l.b16 %v993
        %v1062 = vunpack.c.h.b16 %v993
        %v1063 = vunpack.c.l.b16 %v994
        %v1064 = vunpack.c.h.b16 %v994
        %v1065 = vunpack.c.l.b16 %v995
        %v1066 = vunpack.c.h.b16 %v995
        %v1067 = vunpack.c.l.b16 %v996
        %v1068 = vunpack.c.h.b16 %v996
        %v1069 = vunpack.c.l.b16 %v997
        %v1070 = vunpack.c.h.b16 %v997
        %v1071 = vunpack.c.l.b16 %v998
        %v1072 = vunpack.c.h.b16 %v998
        %v1073 = vunpack.c.l.b16 %v999
        %v1074 = vunpack.c.h.b16 %v999
        %v1075 = vunpack.c.l.b16 %v1000
        %v1076 = vunpack.c.h.b16 %v1000
        %v1077 = vunpack.c.l.b16 %v1001
        %v1078 = vunpack.c.h.b16 %v1001
        %v1079 = vunpack.c.l.b16 %v1002
        %v1080 = vunpack.c.h.b16 %v1002
        %v1081 = vunpack.c.l.b16 %v1003
        %v1082 = vunpack.c.h.b16 %v1003
        %v1083 = vunpack.c.l.b16 %v1004
        %v1084 = vunpack.c.h.b16 %v1004
        %v1085 = vunpack.c.l.b16 %v1005
        %v1086 = vunpack.c.h.b16 %v1005
        %v1087 = vunpack.c.l.b16 %v1006
        %v1088 = vunpack.c.h.b16 %v1006
        %v1089 = vunpack.c.l.b16 %v1007
        %v1090 = vunpack.c.h.b16 %v1007
        %v1091 = vunpack.c.l.b16 %v1008
        %v1092 = vunpack.c.h.b16 %v1008
        %v1093 = vunpack.c.l.b16 %v1009
        %v1094 = vunpack.c.h.b16 %v1009
        %v1095 = vunpack.c.l.b16 %v1010
        %v1096 = vunpack.c.h.b16 %v1010
        %v1097 = vunpack.c.l.b16 %v1011
        %v1098 = vunpack.c.h.b16 %v1011
        %v1099 = vunpack.c.l.b16 %v1012
        %v1100 = vunpack.c.h.b16 %v1012
        %v1101 = vunpack.c.l.b16 %v1013
        %v1102 = vunpack.c.h.b16 %v1013
        %v1103 = vunpack.c.l.b16 %v1014
        %v1104 = vunpack.c.h.b16 %v1014
        %v1105 = vunpack.c.l.b16 %v1015
        %v1106 = vunpack.c.h.b16 %v1015
        %v1107 = vunpack.c.l.b16 %v1016
        %v1108 = vunpack.c.h.b16 %v1016
        %v1109 = vunpack.c.l.b16 %v1017
        %v1110 = vunpack.c.h.b16 %v1017
        %v1111 = vunpack.c.l.b16 %v1018
        %v1112 = vunpack.c.h.b16 %v1018
        %v1113 = vunpack.c.l.b16 %v1019
        %v1114 = vunpack.c.h.b16 %v1019
        %v1115 = vunpack.c.l.b16 %v1020
        %v1116 = vunpack.c.h.b16 %v1020
        %v1117 = vpack.c.b16 %v1055, %v1053
        %v1118 = vpack.c.b16 %v1056, %v1054
        %v1119 = vpack.c.b16 %v1059, %v1057
        %v1120 = vpack.c.b16 %v1060, %v1058
        %v1121 = vpack.c.b16 %v1063, %v1061
        %v1122 = vpack.c.b16 %v1064, %v1062
        %v1123 = vpack.c.b16 %v1067, %v1065
        %v1124 = vpack.c.b16 %v1068, %v1066
        %v1125 = vpack.c.b16 %v1071, %v1069
        %v1126 = vpack.c.b16 %v1072, %v1070
        %v1127 = vpack.c.b16 %v1075, %v1073
        %v1128 = vpack.c.b16 %v1076, %v1074
        %v1129 = vpack.c.b16 %v1079, %v1077
        %v1130 = vpack.c.b16 %v1080, %v1078
        %v1131 = vpack.c.b16 %v1083, %v1081
        %v1132 = vpack.c.b16 %v1084, %v1082
        %v1133 = vpack.c.b16 %v1087, %v1085
        %v1134 = vpack.c.b16 %v1088, %v1086
        %v1135 = vpack.c.b16 %v1091, %v1089
        %v1136 = vpack.c.b16 %v1092, %v1090
        %v1137 = vpack.c.b16 %v1095, %v1093
        %v1138 = vpack.c.b16 %v1096, %v1094
        %v1139 = vpack.c.b16 %v1099, %v1097
        %v1140 = vpack.c.b16 %v1100, %v1098
        %v1141 = vpack.c.b16 %v1103, %v1101
        %v1142 = vpack.c.b16 %v1104, %v1102
        %v1143 = vpack.c.b16 %v1107, %v1105
        %v1144 = vpack.c.b16 %v1108, %v1106
        %v1145 = vpack.c.b16 %v1111, %v1109
        %v1146 = vpack.c.b16 %v1112, %v1110
        %v1147 = vpack.c.b16 %v1115, %v1113
        %v1148 = vpack.c.b16 %v1116, %v1114
        %1181 = vmatprep.subr.bf16.mxu0 %v1118
        %1182 = vmatpush1.bf16.msra.mxu0 %v1117
        %1183 = vmatprep.subr.bf16.mxu0 %v1120
        %1184 = vmatpush1.bf16.msra.mxu0 %v1119
        %1185 = vmatprep.subr.bf16.mxu0 %v1122
        %1186 = vmatpush1.bf16.msra.mxu0 %v1121
        %1187 = vmatprep.subr.bf16.mxu0 %v1124
        %1188 = vmatpush1.bf16.msra.mxu0 %v1123
        %1189 = vmatprep.subr.bf16.mxu0 %v1126
        %1190 = vmatpush1.bf16.msra.mxu0 %v1125
        %1191 = vmatprep.subr.bf16.mxu0 %v1128
        %1192 = vmatpush1.bf16.msra.mxu0 %v1127
        %1193 = vmatprep.subr.bf16.mxu0 %v1130
        %1194 = vmatpush1.bf16.msra.mxu0 %v1129
        %1195 = vmatprep.subr.bf16.mxu0 %v1132
        %1196 = vmatpush1.bf16.msra.mxu0 %v1131
        %1197 = vmatprep.subr.bf16.mxu0 %v1134
        %1198 = vmatpush1.bf16.msra.mxu0 %v1133
        %1199 = vmatprep.subr.bf16.mxu0 %v1136
        %1200 = vmatpush1.bf16.msra.mxu0 %v1135
        %1201 = vmatprep.subr.bf16.mxu0 %v1138
        %1202 = vmatpush1.bf16.msra.mxu0 %v1137
        %1203 = vmatprep.subr.bf16.mxu0 %v1140
        %1204 = vmatpush1.bf16.msra.mxu0 %v1139
        %1205 = vmatprep.subr.bf16.mxu0 %v1142
        %1206 = vmatpush1.bf16.msra.mxu0 %v1141
        %1207 = vmatprep.subr.bf16.mxu0 %v1144
        %1208 = vmatpush1.bf16.msra.mxu0 %v1143
        %1209 = vmatprep.subr.bf16.mxu0 %v1146
        %1210 = vmatpush1.bf16.msra.mxu0 %v1145
        %1211 = vmatprep.subr.bf16.mxu0 %v1148
        %1212 = vmatpush1.bf16.msra.mxu0 %v1147
        %1213 = vmatprep.mubr.bf16.mxu0 %v974
        %1214 = vmatmul.mubr.bf16.gmra.mrb[0].mxu0 %v973
        %v1215 = vpop.f32.mrb[0].mxu0
        %v1216 = vadd.f32 0.0, %v1215
        %v1217 = vpop.f32.mrb[0].mxu0
        %v1218 = vadd.f32 0.0, %v1217
        %v1219 = vpop.f32.mrb[0].mxu0
        %v1220 = vadd.f32 0.0, %v1219
        %v1221 = vpop.f32.mrb[0].mxu0
        %v1222 = vadd.f32 0.0, %v1221
        %1223 = vmatprep.mubr.bf16.mxu0 %v976
        %1224 = vmatmul.mubr.bf16.gmra.mrb[0].mxu0 %v975
        %v1225 = vpop.f32.mrb[0].mxu0
        %v1226 = vadd.f32 0.0, %v1225
        %v1227 = vpop.f32.mrb[0].mxu0
        %v1228 = vadd.f32 0.0, %v1227
        %v1229 = vpop.f32.mrb[0].mxu0
        %v1230 = vadd.f32 0.0, %v1229
        %v1231 = vpop.f32.mrb[0].mxu0
        %v1232 = vadd.f32 0.0, %v1231
        %1233 = vmatprep.mubr.bf16.mxu0 %v978
        %1234 = vmatmul.mubr.bf16.gmra.mrb[0].mxu0 %v977
        %v1235 = vpop.f32.mrb[0].mxu0
        %v1236 = vadd.f32 0.0, %v1235
        %v1237 = vpop.f32.mrb[0].mxu0
        %v1238 = vadd.f32 0.0, %v1237
        %v1239 = vpop.f32.mrb[0].mxu0
        %v1240 = vadd.f32 0.0, %v1239
        %v1241 = vpop.f32.mrb[0].mxu0
        %v1242 = vadd.f32 0.0, %v1241
        %1243 = vmatprep.mubr.bf16.mxu0 %v980
        %1244 = vmatmul.mubr.bf16.gmra.mrb[0].mxu0 %v979
        %v1245 = vpop.f32.mrb[0].mxu0
        %v1246 = vadd.f32 0.0, %v1245
        %v1247 = vpop.f32.mrb[0].mxu0
        %v1248 = vadd.f32 0.0, %v1247
        %v1249 = vpop.f32.mrb[0].mxu0
        %v1250 = vadd.f32 0.0, %v1249
        %v1251 = vpop.f32.mrb[0].mxu0
        %v1252 = vadd.f32 0.0, %v1251
        %1253 = vmatprep.mubr.bf16.mxu0 %v982
        %1254 = vmatmul.mubr.bf16.gmra.mrb[0].mxu0 %v981
        %v1255 = vpop.f32.mrb[0].mxu0
        %v1256 = vadd.f32 0.0, %v1255
        %v1257 = vpop.f32.mrb[0].mxu0
        %v1258 = vadd.f32 0.0, %v1257
        %v1259 = vpop.f32.mrb[0].mxu0
        %v1260 = vadd.f32 0.0, %v1259
        %v1261 = vpop.f32.mrb[0].mxu0
        %v1262 = vadd.f32 0.0, %v1261
        %1263 = vmatprep.mubr.bf16.mxu0 %v984
        %1264 = vmatmul.mubr.bf16.gmra.mrb[0].mxu0 %v983
        %v1265 = vpop.f32.mrb[0].mxu0
        %v1266 = vadd.f32 0.0, %v1265
        %v1267 = vpop.f32.mrb[0].mxu0
        %v1268 = vadd.f32 0.0, %v1267
        %v1269 = vpop.f32.mrb[0].mxu0
        %v1270 = vadd.f32 0.0, %v1269
        %v1271 = vpop.f32.mrb[0].mxu0
        %v1272 = vadd.f32 0.0, %v1271
        %1273 = vmatprep.mubr.bf16.mxu0 %v986
        %1274 = vmatmul.mubr.bf16.gmra.mrb[0].mxu0 %v985
        %v1275 = vpop.f32.mrb[0].mxu0
        %v1276 = vadd.f32 0.0, %v1275
        %v1277 = vpop.f32.mrb[0].mxu0
        %v1278 = vadd.f32 0.0, %v1277
        %v1279 = vpop.f32.mrb[0].mxu0
        %v1280 = vadd.f32 0.0, %v1279
        %v1281 = vpop.f32.mrb[0].mxu0
        %v1282 = vadd.f32 0.0, %v1281
        %1283 = vmatprep.mubr.bf16.mxu0 %v988
        %1284 = vmatmul.mubr.bf16.gmra.mrb[0].mxu0 %v987
        %v1285 = vpop.f32.mrb[0].mxu0
        %v1286 = vadd.f32 0.0, %v1285
        %v1287 = vpop.f32.mrb[0].mxu0
        %v1288 = vadd.f32 0.0, %v1287
        %v1289 = vpop.f32.mrb[0].mxu0
        %v1290 = vadd.f32 0.0, %v1289
        %v1291 = vpop.f32.mrb[0].mxu0
        %v1292 = vadd.f32 0.0, %v1291
        %1293 = vdwg.mxu0
        %v1294 = vld [vmem:[#allocation13] sm:$0xff]
        %v1295 = vld [vmem:[#allocation13 + $0x8] sm:$0xff]
        %v1296 = vld [vmem:[#allocation13 + $0x10] sm:$0xff]
        %v1297 = vld [vmem:[#allocation13 + $0x18] sm:$0xff]
        %v1298 = vld [vmem:[#allocation13 + $0x20] sm:$0xff]
        %v1299 = vld [vmem:[#allocation13 + $0x28] sm:$0xff]
        %v1300 = vld [vmem:[#allocation13 + $0x30] sm:$0xff]
        %v1301 = vld [vmem:[#allocation13 + $0x38] sm:$0xff]
        %v1302 = vld [vmem:[#allocation13 + $0x40] sm:$0xff]
        %v1303 = vld [vmem:[#allocation13 + $0x48] sm:$0xff]
        %v1304 = vld [vmem:[#allocation13 + $0x50] sm:$0xff]
        %v1305 = vld [vmem:[#allocation13 + $0x58] sm:$0xff]
        %v1306 = vld [vmem:[#allocation13 + $0x60] sm:$0xff]
        %v1307 = vld [vmem:[#allocation13 + $0x68] sm:$0xff]
        %v1308 = vld [vmem:[#allocation13 + $0x70] sm:$0xff]
        %v1309 = vld [vmem:[#allocation13 + $0x78] sm:$0xff]
        %v1310 = vld [vmem:[#allocation13 + $0x80] sm:$0xff]
        %v1311 = vld [vmem:[#allocation13 + $0x88] sm:$0xff]
        %v1312 = vld [vmem:[#allocation13 + $0x90] sm:$0xff]
        %v1313 = vld [vmem:[#allocation13 + $0x98] sm:$0xff]
        %v1314 = vld [vmem:[#allocation13 + $0xa0] sm:$0xff]
        %v1315 = vld [vmem:[#allocation13 + $0xa8] sm:$0xff]
        %v1316 = vld [vmem:[#allocation13 + $0xb0] sm:$0xff]
        %v1317 = vld [vmem:[#allocation13 + $0xb8] sm:$0xff]
        %v1318 = vld [vmem:[#allocation13 + $0xc0] sm:$0xff]
        %v1319 = vld [vmem:[#allocation13 + $0xc8] sm:$0xff]
        %v1320 = vld [vmem:[#allocation13 + $0xd0] sm:$0xff]
        %v1321 = vld [vmem:[#allocation13 + $0xd8] sm:$0xff]
        %v1322 = vld [vmem:[#allocation13 + $0xe0] sm:$0xff]
        %v1323 = vld [vmem:[#allocation13 + $0xe8] sm:$0xff]
        %v1324 = vld [vmem:[#allocation13 + $0xf0] sm:$0xff]
        %v1325 = vld [vmem:[#allocation13 + $0xf8] sm:$0xff]
        %v1358 = vunpack.c.l.b16 %v1294
        %v1359 = vunpack.c.h.b16 %v1294
        %v1360 = vunpack.c.l.b16 %v1295
        %v1361 = vunpack.c.h.b16 %v1295
        %v1362 = vunpack.c.l.b16 %v1296
        %v1363 = vunpack.c.h.b16 %v1296
        %v1364 = vunpack.c.l.b16 %v1297
        %v1365 = vunpack.c.h.b16 %v1297
        %v1366 = vunpack.c.l.b16 %v1298
        %v1367 = vunpack.c.h.b16 %v1298
        %v1368 = vunpack.c.l.b16 %v1299
        %v1369 = vunpack.c.h.b16 %v1299
        %v1370 = vunpack.c.l.b16 %v1300
        %v1371 = vunpack.c.h.b16 %v1300
        %v1372 = vunpack.c.l.b16 %v1301
        %v1373 = vunpack.c.h.b16 %v1301
        %v1374 = vunpack.c.l.b16 %v1302
        %v1375 = vunpack.c.h.b16 %v1302
        %v1376 = vunpack.c.l.b16 %v1303
        %v1377 = vunpack.c.h.b16 %v1303
        %v1378 = vunpack.c.l.b16 %v1304
        %v1379 = vunpack.c.h.b16 %v1304
        %v1380 = vunpack.c.l.b16 %v1305
        %v1381 = vunpack.c.h.b16 %v1305
        %v1382 = vunpack.c.l.b16 %v1306
        %v1383 = vunpack.c.h.b16 %v1306
        %v1384 = vunpack.c.l.b16 %v1307
        %v1385 = vunpack.c.h.b16 %v1307
        %v1386 = vunpack.c.l.b16 %v1308
        %v1387 = vunpack.c.h.b16 %v1308
        %v1388 = vunpack.c.l.b16 %v1309
        %v1389 = vunpack.c.h.b16 %v1309
        %v1390 = vunpack.c.l.b16 %v1310
        %v1391 = vunpack.c.h.b16 %v1310
        %v1392 = vunpack.c.l.b16 %v1311
        %v1393 = vunpack.c.h.b16 %v1311
        %v1394 = vunpack.c.l.b16 %v1312
        %v1395 = vunpack.c.h.b16 %v1312
        %v1396 = vunpack.c.l.b16 %v1313
        %v1397 = vunpack.c.h.b16 %v1313
        %v1398 = vunpack.c.l.b16 %v1314
        %v1399 = vunpack.c.h.b16 %v1314
        %v1400 = vunpack.c.l.b16 %v1315
        %v1401 = vunpack.c.h.b16 %v1315
        %v1402 = vunpack.c.l.b16 %v1316
        %v1403 = vunpack.c.h.b16 %v1316
        %v1404 = vunpack.c.l.b16 %v1317
        %v1405 = vunpack.c.h.b16 %v1317
        %v1406 = vunpack.c.l.b16 %v1318
        %v1407 = vunpack.c.h.b16 %v1318
        %v1408 = vunpack.c.l.b16 %v1319
        %v1409 = vunpack.c.h.b16 %v1319
        %v1410 = vunpack.c.l.b16 %v1320
        %v1411 = vunpack.c.h.b16 %v1320
        %v1412 = vunpack.c.l.b16 %v1321
        %v1413 = vunpack.c.h.b16 %v1321
        %v1414 = vunpack.c.l.b16 %v1322
        %v1415 = vunpack.c.h.b16 %v1322
        %v1416 = vunpack.c.l.b16 %v1323
        %v1417 = vunpack.c.h.b16 %v1323
        %v1418 = vunpack.c.l.b16 %v1324
        %v1419 = vunpack.c.h.b16 %v1324
        %v1420 = vunpack.c.l.b16 %v1325
        %v1421 = vunpack.c.h.b16 %v1325
        %v1422 = vpack.c.b16 %v1360, %v1358
        %v1423 = vpack.c.b16 %v1361, %v1359
        %v1424 = vpack.c.b16 %v1364, %v1362
        %v1425 = vpack.c.b16 %v1365, %v1363
        %v1426 = vpack.c.b16 %v1368, %v1366
        %v1427 = vpack.c.b16 %v1369, %v1367
        %v1428 = vpack.c.b16 %v1372, %v1370
        %v1429 = vpack.c.b16 %v1373, %v1371
        %v1430 = vpack.c.b16 %v1376, %v1374
        %v1431 = vpack.c.b16 %v1377, %v1375
        %v1432 = vpack.c.b16 %v1380, %v1378
        %v1433 = vpack.c.b16 %v1381, %v1379
        %v1434 = vpack.c.b16 %v1384, %v1382
        %v1435 = vpack.c.b16 %v1385, %v1383
        %v1436 = vpack.c.b16 %v1388, %v1386
        %v1437 = vpack.c.b16 %v1389, %v1387
        %v1438 = vpack.c.b16 %v1392, %v1390
        %v1439 = vpack.c.b16 %v1393, %v1391
        %v1440 = vpack.c.b16 %v1396, %v1394
        %v1441 = vpack.c.b16 %v1397, %v1395
        %v1442 = vpack.c.b16 %v1400, %v1398
        %v1443 = vpack.c.b16 %v1401, %v1399
        %v1444 = vpack.c.b16 %v1404, %v1402
        %v1445 = vpack.c.b16 %v1405, %v1403
        %v1446 = vpack.c.b16 %v1408, %v1406
        %v1447 = vpack.c.b16 %v1409, %v1407
        %v1448 = vpack.c.b16 %v1412, %v1410
        %v1449 = vpack.c.b16 %v1413, %v1411
        %v1450 = vpack.c.b16 %v1416, %v1414
        %v1451 = vpack.c.b16 %v1417, %v1415
        %v1452 = vpack.c.b16 %v1420, %v1418
        %v1453 = vpack.c.b16 %v1421, %v1419
        %1486 = vmatprep.subr.bf16.mxu0 %v1423
        %1487 = vmatpush1.bf16.msra.mxu0 %v1422
        %1488 = vmatprep.subr.bf16.mxu0 %v1425
        %1489 = vmatpush1.bf16.msra.mxu0 %v1424
        %1490 = vmatprep.subr.bf16.mxu0 %v1427
        %1491 = vmatpush1.bf16.msra.mxu0 %v1426
        %1492 = vmatprep.subr.bf16.mxu0 %v1429
        %1493 = vmatpush1.bf16.msra.mxu0 %v1428
        %1494 = vmatprep.subr.bf16.mxu0 %v1431
        %1495 = vmatpush1.bf16.msra.mxu0 %v1430
        %1496 = vmatprep.subr.bf16.mxu0 %v1433
        %1497 = vmatpush1.bf16.msra.mxu0 %v1432
        %1498 = vmatprep.subr.bf16.mxu0 %v1435
        %1499 = vmatpush1.bf16.msra.mxu0 %v1434
        %1500 = vmatprep.subr.bf16.mxu0 %v1437
        %1501 = vmatpush1.bf16.msra.mxu0 %v1436
        %1502 = vmatprep.subr.bf16.mxu0 %v1439
        %1503 = vmatpush1.bf16.msra.mxu0 %v1438
        %1504 = vmatprep.subr.bf16.mxu0 %v1441
        %1505 = vmatpush1.bf16.msra.mxu0 %v1440
        %1506 = vmatprep.subr.bf16.mxu0 %v1443
        %1507 = vmatpush1.bf16.msra.mxu0 %v1442
        %1508 = vmatprep.subr.bf16.mxu0 %v1445
        %1509 = vmatpush1.bf16.msra.mxu0 %v1444
        %1510 = vmatprep.subr.bf16.mxu0 %v1447
        %1511 = vmatpush1.bf16.msra.mxu0 %v1446
        %1512 = vmatprep.subr.bf16.mxu0 %v1449
        %1513 = vmatpush1.bf16.msra.mxu0 %v1448
        %1514 = vmatprep.subr.bf16.mxu0 %v1451
        %1515 = vmatpush1.bf16.msra.mxu0 %v1450
        %1516 = vmatprep.subr.bf16.mxu0 %v1453
        %1517 = vmatpush1.bf16.msra.mxu0 %v1452
        %1518 = vmatprep.mubr.bf16.mxu0 %v974
        %1519 = vmatmul.mubr.bf16.gmra.mrb[0].mxu0 %v973
        %v1520 = vpop.f32.mrb[0].mxu0
        %v1521 = vadd.f32 0.0, %v1520
        %v1522 = vpop.f32.mrb[0].mxu0
        %v1523 = vadd.f32 0.0, %v1522
        %v1524 = vpop.f32.mrb[0].mxu0
        %v1525 = vadd.f32 0.0, %v1524
        %v1526 = vpop.f32.mrb[0].mxu0
        %v1527 = vadd.f32 0.0, %v1526
        %1528 = vmatprep.mubr.bf16.mxu0 %v976
        %1529 = vmatmul.mubr.bf16.gmra.mrb[0].mxu0 %v975
        %v1530 = vpop.f32.mrb[0].mxu0
        %v1531 = vadd.f32 0.0, %v1530
        %v1532 = vpop.f32.mrb[0].mxu0
        %v1533 = vadd.f32 0.0, %v1532
        %v1534 = vpop.f32.mrb[0].mxu0
        %v1535 = vadd.f32 0.0, %v1534
        %v1536 = vpop.f32.mrb[0].mxu0
        %v1537 = vadd.f32 0.0, %v1536
        %1538 = vmatprep.mubr.bf16.mxu0 %v978
        %1539 = vmatmul.mubr.bf16.gmra.mrb[0].mxu0 %v977
        %v1540 = vpop.f32.mrb[0].mxu0
        %v1541 = vadd.f32 0.0, %v1540
        %v1542 = vpop.f32.mrb[0].mxu0
        %v1543 = vadd.f32 0.0, %v1542
        %v1544 = vpop.f32.mrb[0].mxu0
        %v1545 = vadd.f32 0.0, %v1544
        %v1546 = vpop.f32.mrb[0].mxu0
        %v1547 = vadd.f32 0.0, %v1546
        %1548 = vmatprep.mubr.bf16.mxu0 %v980
        %1549 = vmatmul.mubr.bf16.gmra.mrb[0].mxu0 %v979
        %v1550 = vpop.f32.mrb[0].mxu0
        %v1551 = vadd.f32 0.0, %v1550
        %v1552 = vpop.f32.mrb[0].mxu0
        %v1553 = vadd.f32 0.0, %v1552
        %v1554 = vpop.f32.mrb[0].mxu0
        %v1555 = vadd.f32 0.0, %v1554
        %v1556 = vpop.f32.mrb[0].mxu0
        %v1557 = vadd.f32 0.0, %v1556
        %1558 = vmatprep.mubr.bf16.mxu0 %v982
        %1559 = vmatmul.mubr.bf16.gmra.mrb[0].mxu0 %v981
        %v1560 = vpop.f32.mrb[0].mxu0
        %v1561 = vadd.f32 0.0, %v1560
        %v1562 = vpop.f32.mrb[0].mxu0
        %v1563 = vadd.f32 0.0, %v1562
        %v1564 = vpop.f32.mrb[0].mxu0
        %v1565 = vadd.f32 0.0, %v1564
        %v1566 = vpop.f32.mrb[0].mxu0
        %v1567 = vadd.f32 0.0, %v1566
        %1568 = vmatprep.mubr.bf16.mxu0 %v984
        %1569 = vmatmul.mubr.bf16.gmra.mrb[0].mxu0 %v983
        %v1570 = vpop.f32.mrb[0].mxu0
        %v1571 = vadd.f32 0.0, %v1570
        %v1572 = vpop.f32.mrb[0].mxu0
        %v1573 = vadd.f32 0.0, %v1572
        %v1574 = vpop.f32.mrb[0].mxu0
        %v1575 = vadd.f32 0.0, %v1574
        %v1576 = vpop.f32.mrb[0].mxu0
        %v1577 = vadd.f32 0.0, %v1576
        %1578 = vmatprep.mubr.bf16.mxu0 %v986
        %1579 = vmatmul.mubr.bf16.gmra.mrb[0].mxu0 %v985
        %v1580 = vpop.f32.mrb[0].mxu0
        %v1581 = vadd.f32 0.0, %v1580
        %v1582 = vpop.f32.mrb[0].mxu0
        %v1583 = vadd.f32 0.0, %v1582
        %v1584 = vpop.f32.mrb[0].mxu0
        %v1585 = vadd.f32 0.0, %v1584
        %v1586 = vpop.f32.mrb[0].mxu0
        %v1587 = vadd.f32 0.0, %v1586
        %1588 = vmatprep.mubr.bf16.mxu0 %v988
        %1589 = vmatmul.mubr.bf16.gmra.mrb[0].mxu0 %v987
        %v1590 = vpop.f32.mrb[0].mxu0
        %v1591 = vadd.f32 0.0, %v1590
        %v1592 = vpop.f32.mrb[0].mxu0
        %v1593 = vadd.f32 0.0, %v1592
        %v1594 = vpop.f32.mrb[0].mxu0
        %v1595 = vadd.f32 0.0, %v1594
        %v1596 = vpop.f32.mrb[0].mxu0
        %v1597 = vadd.f32 0.0, %v1596
        %1598 = vdwg.mxu0
        %v1599 = vpack.c.bf16 %v1220, %v1216
        %v1600 = vpack.c.bf16 %v1230, %v1226
        %v1601 = vpack.c.bf16 %v1240, %v1236
        %v1602 = vpack.c.bf16 %v1250, %v1246
        %v1603 = vpack.c.bf16 %v1260, %v1256
        %v1604 = vpack.c.bf16 %v1270, %v1266
        %v1605 = vpack.c.bf16 %v1280, %v1276
        %v1606 = vpack.c.bf16 %v1290, %v1286
        %s1607 = sshra.s32 %s595, 4
        %s1608 = sand.u32 %s595, 15
        %s1609 = smul.addr %s1607, 8
        %s1610 = scalar_lea.vmem [#allocation2], %s1609
        %1611 = vst [vmem:[%s1610] sm:$0xff] %v1599
        %1612 = vst [vmem:[%s1610 + $0x8] sm:$0xff] %v1600
        %1613 = vst [vmem:[%s1610 + $0x10] sm:$0xff] %v1601
        %1614 = vst [vmem:[%s1610 + $0x18] sm:$0xff] %v1602
        %1615 = vst [vmem:[%s1610 + $0x20] sm:$0xff] %v1603
        %1616 = vst [vmem:[%s1610 + $0x28] sm:$0xff] %v1604
        %1617 = vst [vmem:[%s1610 + $0x30] sm:$0xff] %v1605
        %1618 = vst [vmem:[%s1610 + $0x38] sm:$0xff] %v1606
        %v1619 = vpack.c.bf16 %v1525, %v1521
        %v1620 = vpack.c.bf16 %v1535, %v1531
        %v1621 = vpack.c.bf16 %v1545, %v1541
        %v1622 = vpack.c.bf16 %v1555, %v1551
        %v1623 = vpack.c.bf16 %v1565, %v1561
        %v1624 = vpack.c.bf16 %v1575, %v1571
        %v1625 = vpack.c.bf16 %v1585, %v1581
        %v1626 = vpack.c.bf16 %v1595, %v1591
        %s1627 = smul.addr %s1607, 8
        %s1628 = scalar_lea.vmem [#allocation3], %s1627
        %1629 = vst [vmem:[%s1628] sm:$0xff] %v1619
        %1630 = vst [vmem:[%s1628 + $0x8] sm:$0xff] %v1620
        %1631 = vst [vmem:[%s1628 + $0x10] sm:$0xff] %v1621
        %1632 = vst [vmem:[%s1628 + $0x18] sm:$0xff] %v1622
        %1633 = vst [vmem:[%s1628 + $0x20] sm:$0xff] %v1623
        %1634 = vst [vmem:[%s1628 + $0x28] sm:$0xff] %v1624
        %1635 = vst [vmem:[%s1628 + $0x30] sm:$0xff] %v1625
        %1636 = vst [vmem:[%s1628 + $0x38] sm:$0xff] %v1626
        %v1637 = vpack.c.bf16 %v1222, %v1218
        %v1638 = vpack.c.bf16 %v1232, %v1228
        %v1639 = vpack.c.bf16 %v1242, %v1238
        %v1640 = vpack.c.bf16 %v1252, %v1248
        %v1641 = vpack.c.bf16 %v1262, %v1258
        %v1642 = vpack.c.bf16 %v1272, %v1268
        %v1643 = vpack.c.bf16 %v1282, %v1278
        %v1644 = vpack.c.bf16 %v1292, %v1288
        %s1645 = sadd.s32 %s1607, 16
        %s1646 = smul.addr %s1645, 8
        %s1647 = scalar_lea.vmem [#allocation2], %s1646
        %1648 = vst [vmem:[%s1647] sm:$0xff] %v1637
        %1649 = vst [vmem:[%s1647 + $0x8] sm:$0xff] %v1638
        %1650 = vst [vmem:[%s1647 + $0x10] sm:$0xff] %v1639
        %1651 = vst [vmem:[%s1647 + $0x18] sm:$0xff] %v1640
        %1652 = vst [vmem:[%s1647 + $0x20] sm:$0xff] %v1641
        %1653 = vst [vmem:[%s1647 + $0x28] sm:$0xff] %v1642
        %1654 = vst [vmem:[%s1647 + $0x30] sm:$0xff] %v1643
        %1655 = vst [vmem:[%s1647 + $0x38] sm:$0xff] %v1644
        %v1656 = vpack.c.bf16 %v1527, %v1523
        %v1657 = vpack.c.bf16 %v1537, %v1533
        %v1658 = vpack.c.bf16 %v1547, %v1543
        %v1659 = vpack.c.bf16 %v1557, %v1553
        %v1660 = vpack.c.bf16 %v1567, %v1563
        %v1661 = vpack.c.bf16 %v1577, %v1573
        %v1662 = vpack.c.bf16 %v1587, %v1583
        %v1663 = vpack.c.bf16 %v1597, %v1593
        %s1664 = smul.addr %s1645, 8
        %s1665 = scalar_lea.vmem [#allocation3], %s1664
        %1666 = vst [vmem:[%s1665] sm:$0xff] %v1656
        %1667 = vst [vmem:[%s1665 + $0x8] sm:$0xff] %v1657
        %1668 = vst [vmem:[%s1665 + $0x10] sm:$0xff] %v1658
        %1669 = vst [vmem:[%s1665 + $0x18] sm:$0xff] %v1659
        %1670 = vst [vmem:[%s1665 + $0x20] sm:$0xff] %v1660
        %1671 = vst [vmem:[%s1665 + $0x28] sm:$0xff] %v1661
        %1672 = vst [vmem:[%s1665 + $0x30] sm:$0xff] %v1662
        %1673 = vst [vmem:[%s1665 + $0x38] sm:$0xff] %v1663
        %v1674 = vld [vmem:[#allocation10] sm:$0xff]
        %v1675 = vld [vmem:[#allocation10 + $0x8] sm:$0xff]
        %v1676 = vld [vmem:[#allocation10 + $0x10] sm:$0xff]
        %v1677 = vld [vmem:[#allocation10 + $0x18] sm:$0xff]
        %v1678 = vld [vmem:[#allocation10 + $0x20] sm:$0xff]
        %v1679 = vld [vmem:[#allocation10 + $0x28] sm:$0xff]
        %v1680 = vld [vmem:[#allocation10 + $0x30] sm:$0xff]
        %v1681 = vld [vmem:[#allocation10 + $0x38] sm:$0xff]
        %v1682 = vld [vmem:[#allocation10 + $0x40] sm:$0xff]
        %v1683 = vld [vmem:[#allocation10 + $0x48] sm:$0xff]
        %v1684 = vld [vmem:[#allocation10 + $0x50] sm:$0xff]
        %v1685 = vld [vmem:[#allocation10 + $0x58] sm:$0xff]
        %v1686 = vld [vmem:[#allocation10 + $0x60] sm:$0xff]
        %v1687 = vld [vmem:[#allocation10 + $0x68] sm:$0xff]
        %v1688 = vld [vmem:[#allocation10 + $0x70] sm:$0xff]
        %v1689 = vld [vmem:[#allocation10 + $0x78] sm:$0xff]
        %v1690 = vld [vmem:[#allocation10 + $0x80] sm:$0xff]
        %v1691 = vld [vmem:[#allocation10 + $0x88] sm:$0xff]
        %v1692 = vld [vmem:[#allocation10 + $0x90] sm:$0xff]
        %v1693 = vld [vmem:[#allocation10 + $0x98] sm:$0xff]
        %v1694 = vld [vmem:[#allocation10 + $0xa0] sm:$0xff]
        %v1695 = vld [vmem:[#allocation10 + $0xa8] sm:$0xff]
        %v1696 = vld [vmem:[#allocation10 + $0xb0] sm:$0xff]
        %v1697 = vld [vmem:[#allocation10 + $0xb8] sm:$0xff]
        %v1698 = vld [vmem:[#allocation10 + $0xc0] sm:$0xff]
        %v1699 = vld [vmem:[#allocation10 + $0xc8] sm:$0xff]
        %v1700 = vld [vmem:[#allocation10 + $0xd0] sm:$0xff]
        %v1701 = vld [vmem:[#allocation10 + $0xd8] sm:$0xff]
        %v1702 = vld [vmem:[#allocation10 + $0xe0] sm:$0xff]
        %v1703 = vld [vmem:[#allocation10 + $0xe8] sm:$0xff]
        %v1704 = vld [vmem:[#allocation10 + $0xf0] sm:$0xff]
        %v1705 = vld [vmem:[#allocation10 + $0xf8] sm:$0xff]
        %v1738 = vunpack.c.l.b16 %v1674
        %v1739 = vunpack.c.h.b16 %v1674
        %v1740 = vunpack.c.l.b16 %v1675
        %v1741 = vunpack.c.h.b16 %v1675
        %v1742 = vunpack.c.l.b16 %v1676
        %v1743 = vunpack.c.h.b16 %v1676
        %v1744 = vunpack.c.l.b16 %v1677
        %v1745 = vunpack.c.h.b16 %v1677
        %v1746 = vunpack.c.l.b16 %v1678
        %v1747 = vunpack.c.h.b16 %v1678
        %v1748 = vunpack.c.l.b16 %v1679
        %v1749 = vunpack.c.h.b16 %v1679
        %v1750 = vunpack.c.l.b16 %v1680
        %v1751 = vunpack.c.h.b16 %v1680
        %v1752 = vunpack.c.l.b16 %v1681
        %v1753 = vunpack.c.h.b16 %v1681
        %v1754 = vunpack.c.l.b16 %v1682
        %v1755 = vunpack.c.h.b16 %v1682
        %v1756 = vunpack.c.l.b16 %v1683
        %v1757 = vunpack.c.h.b16 %v1683
        %v1758 = vunpack.c.l.b16 %v1684
        %v1759 = vunpack.c.h.b16 %v1684
        %v1760 = vunpack.c.l.b16 %v1685
        %v1761 = vunpack.c.h.b16 %v1685
        %v1762 = vunpack.c.l.b16 %v1686
        %v1763 = vunpack.c.h.b16 %v1686
        %v1764 = vunpack.c.l.b16 %v1687
        %v1765 = vunpack.c.h.b16 %v1687
        %v1766 = vunpack.c.l.b16 %v1688
        %v1767 = vunpack.c.h.b16 %v1688
        %v1768 = vunpack.c.l.b16 %v1689
        %v1769 = vunpack.c.h.b16 %v1689
        %v1770 = vunpack.c.l.b16 %v1690
        %v1771 = vunpack.c.h.b16 %v1690
        %v1772 = vunpack.c.l.b16 %v1691
        %v1773 = vunpack.c.h.b16 %v1691
        %v1774 = vunpack.c.l.b16 %v1692
        %v1775 = vunpack.c.h.b16 %v1692
        %v1776 = vunpack.c.l.b16 %v1693
        %v1777 = vunpack.c.h.b16 %v1693
        %v1778 = vunpack.c.l.b16 %v1694
        %v1779 = vunpack.c.h.b16 %v1694
        %v1780 = vunpack.c.l.b16 %v1695
        %v1781 = vunpack.c.h.b16 %v1695
        %v1782 = vunpack.c.l.b16 %v1696
        %v1783 = vunpack.c.h.b16 %v1696
        %v1784 = vunpack.c.l.b16 %v1697
        %v1785 = vunpack.c.h.b16 %v1697
        %v1786 = vunpack.c.l.b16 %v1698
        %v1787 = vunpack.c.h.b16 %v1698
        %v1788 = vunpack.c.l.b16 %v1699
        %v1789 = vunpack.c.h.b16 %v1699
        %v1790 = vunpack.c.l.b16 %v1700
        %v1791 = vunpack.c.h.b16 %v1700
        %v1792 = vunpack.c.l.b16 %v1701
        %v1793 = vunpack.c.h.b16 %v1701
        %v1794 = vunpack.c.l.b16 %v1702
        %v1795 = vunpack.c.h.b16 %v1702
        %v1796 = vunpack.c.l.b16 %v1703
        %v1797 = vunpack.c.h.b16 %v1703
        %v1798 = vunpack.c.l.b16 %v1704
        %v1799 = vunpack.c.h.b16 %v1704
        %v1800 = vunpack.c.l.b16 %v1705
        %v1801 = vunpack.c.h.b16 %v1705
        %v1802 = vpack.c.b16 %v1740, %v1738
        %v1803 = vpack.c.b16 %v1741, %v1739
        %v1804 = vpack.c.b16 %v1744, %v1742
        %v1805 = vpack.c.b16 %v1745, %v1743
        %v1806 = vpack.c.b16 %v1748, %v1746
        %v1807 = vpack.c.b16 %v1749, %v1747
        %v1808 = vpack.c.b16 %v1752, %v1750
        %v1809 = vpack.c.b16 %v1753, %v1751
        %v1810 = vpack.c.b16 %v1756, %v1754
        %v1811 = vpack.c.b16 %v1757, %v1755
        %v1812 = vpack.c.b16 %v1760, %v1758
        %v1813 = vpack.c.b16 %v1761, %v1759
        %v1814 = vpack.c.b16 %v1764, %v1762
        %v1815 = vpack.c.b16 %v1765, %v1763
        %v1816 = vpack.c.b16 %v1768, %v1766
        %v1817 = vpack.c.b16 %v1769, %v1767
        %v1818 = vpack.c.b16 %v1772, %v1770
        %v1819 = vpack.c.b16 %v1773, %v1771
        %v1820 = vpack.c.b16 %v1776, %v1774
        %v1821 = vpack.c.b16 %v1777, %v1775
        %v1822 = vpack.c.b16 %v1780, %v1778
        %v1823 = vpack.c.b16 %v1781, %v1779
        %v1824 = vpack.c.b16 %v1784, %v1782
        %v1825 = vpack.c.b16 %v1785, %v1783
        %v1826 = vpack.c.b16 %v1788, %v1786
        %v1827 = vpack.c.b16 %v1789, %v1787
        %v1828 = vpack.c.b16 %v1792, %v1790
        %v1829 = vpack.c.b16 %v1793, %v1791
        %v1830 = vpack.c.b16 %v1796, %v1794
        %v1831 = vpack.c.b16 %v1797, %v1795
        %v1832 = vpack.c.b16 %v1800, %v1798
        %v1833 = vpack.c.b16 %v1801, %v1799
        %1866 = vmatprep.subr.bf16.mxu0 %v1803
        %1867 = vmatpush1.bf16.msra.mxu0 %v1802
        %1868 = vmatprep.subr.bf16.mxu0 %v1805
        %1869 = vmatpush1.bf16.msra.mxu0 %v1804
        %1870 = vmatprep.subr.bf16.mxu0 %v1807
        %1871 = vmatpush1.bf16.msra.mxu0 %v1806
        %1872 = vmatprep.subr.bf16.mxu0 %v1809
        %1873 = vmatpush1.bf16.msra.mxu0 %v1808
        %1874 = vmatprep.subr.bf16.mxu0 %v1811
        %1875 = vmatpush1.bf16.msra.mxu0 %v1810
        %1876 = vmatprep.subr.bf16.mxu0 %v1813
        %1877 = vmatpush1.bf16.msra.mxu0 %v1812
        %1878 = vmatprep.subr.bf16.mxu0 %v1815
        %1879 = vmatpush1.bf16.msra.mxu0 %v1814
        %1880 = vmatprep.subr.bf16.mxu0 %v1817
        %1881 = vmatpush1.bf16.msra.mxu0 %v1816
        %1882 = vmatprep.subr.bf16.mxu0 %v1819
        %1883 = vmatpush1.bf16.msra.mxu0 %v1818
        %1884 = vmatprep.subr.bf16.mxu0 %v1821
        %1885 = vmatpush1.bf16.msra.mxu0 %v1820
        %1886 = vmatprep.subr.bf16.mxu0 %v1823
        %1887 = vmatpush1.bf16.msra.mxu0 %v1822
        %1888 = vmatprep.subr.bf16.mxu0 %v1825
        %1889 = vmatpush1.bf16.msra.mxu0 %v1824
        %1890 = vmatprep.subr.bf16.mxu0 %v1827
        %1891 = vmatpush1.bf16.msra.mxu0 %v1826
        %1892 = vmatprep.subr.bf16.mxu0 %v1829
        %1893 = vmatpush1.bf16.msra.mxu0 %v1828
        %1894 = vmatprep.subr.bf16.mxu0 %v1831
        %1895 = vmatpush1.bf16.msra.mxu0 %v1830
        %1896 = vmatprep.subr.bf16.mxu0 %v1833
        %1897 = vmatpush1.bf16.msra.mxu0 %v1832
        %1898 = vmatprep.mubr.bf16.mxu0 %v974
        %1899 = vmatmul.mubr.bf16.gmra.mrb[0].mxu0 %v973
        %v1900 = vpop.f32.mrb[0].mxu0
        %v1901 = vadd.f32 0.0, %v1900
        %v1902 = vpop.f32.mrb[0].mxu0
        %v1903 = vadd.f32 0.0, %v1902
        %v1904 = vpop.f32.mrb[0].mxu0
        %v1905 = vadd.f32 0.0, %v1904
        %v1906 = vpop.f32.mrb[0].mxu0
        %v1907 = vadd.f32 0.0, %v1906
        %1908 = vmatprep.mubr.bf16.mxu0 %v976
        %1909 = vmatmul.mubr.bf16.gmra.mrb[0].mxu0 %v975
        %v1910 = vpop.f32.mrb[0].mxu0
        %v1911 = vadd.f32 0.0, %v1910
        %v1912 = vpop.f32.mrb[0].mxu0
        %v1913 = vadd.f32 0.0, %v1912
        %v1914 = vpop.f32.mrb[0].mxu0
        %v1915 = vadd.f32 0.0, %v1914
        %v1916 = vpop.f32.mrb[0].mxu0
        %v1917 = vadd.f32 0.0, %v1916
        %1918 = vmatprep.mubr.bf16.mxu0 %v978
        %1919 = vmatmul.mubr.bf16.gmra.mrb[0].mxu0 %v977
        %v1920 = vpop.f32.mrb[0].mxu0
        %v1921 = vadd.f32 0.0, %v1920
        %v1922 = vpop.f32.mrb[0].mxu0
        %v1923 = vadd.f32 0.0, %v1922
        %v1924 = vpop.f32.mrb[0].mxu0
        %v1925 = vadd.f32 0.0, %v1924
        %v1926 = vpop.f32.mrb[0].mxu0
        %v1927 = vadd.f32 0.0, %v1926
        %1928 = vmatprep.mubr.bf16.mxu0 %v980
        %1929 = vmatmul.mubr.bf16.gmra.mrb[0].mxu0 %v979
        %v1930 = vpop.f32.mrb[0].mxu0
        %v1931 = vadd.f32 0.0, %v1930
        %v1932 = vpop.f32.mrb[0].mxu0
        %v1933 = vadd.f32 0.0, %v1932
        %v1934 = vpop.f32.mrb[0].mxu0
        %v1935 = vadd.f32 0.0, %v1934
        %v1936 = vpop.f32.mrb[0].mxu0
        %v1937 = vadd.f32 0.0, %v1936
        %1938 = vmatprep.mubr.bf16.mxu0 %v982
        %1939 = vmatmul.mubr.bf16.gmra.mrb[0].mxu0 %v981
        %v1940 = vpop.f32.mrb[0].mxu0
        %v1941 = vadd.f32 0.0, %v1940
        %v1942 = vpop.f32.mrb[0].mxu0
        %v1943 = vadd.f32 0.0, %v1942
        %v1944 = vpop.f32.mrb[0].mxu0
        %v1945 = vadd.f32 0.0, %v1944
        %v1946 = vpop.f32.mrb[0].mxu0
        %v1947 = vadd.f32 0.0, %v1946
        %1948 = vmatprep.mubr.bf16.mxu0 %v984
        %1949 = vmatmul.mubr.bf16.gmra.mrb[0].mxu0 %v983
        %v1950 = vpop.f32.mrb[0].mxu0
        %v1951 = vadd.f32 0.0, %v1950
        %v1952 = vpop.f32.mrb[0].mxu0
        %v1953 = vadd.f32 0.0, %v1952
        %v1954 = vpop.f32.mrb[0].mxu0
        %v1955 = vadd.f32 0.0, %v1954
        %v1956 = vpop.f32.mrb[0].mxu0
        %v1957 = vadd.f32 0.0, %v1956
        %1958 = vmatprep.mubr.bf16.mxu0 %v986
        %1959 = vmatmul.mubr.bf16.gmra.mrb[0].mxu0 %v985
        %v1960 = vpop.f32.mrb[0].mxu0
        %v1961 = vadd.f32 0.0, %v1960
        %v1962 = vpop.f32.mrb[0].mxu0
        %v1963 = vadd.f32 0.0, %v1962
        %v1964 = vpop.f32.mrb[0].mxu0
        %v1965 = vadd.f32 0.0, %v1964
        %v1966 = vpop.f32.mrb[0].mxu0
        %v1967 = vadd.f32 0.0, %v1966
        %1968 = vmatprep.mubr.bf16.mxu0 %v988
        %1969 = vmatmul.mubr.bf16.gmra.mrb[0].mxu0 %v987
        %v1970 = vpop.f32.mrb[0].mxu0
        %v1971 = vadd.f32 0.0, %v1970
        %v1972 = vpop.f32.mrb[0].mxu0
        %v1973 = vadd.f32 0.0, %v1972
        %v1974 = vpop.f32.mrb[0].mxu0
        %v1975 = vadd.f32 0.0, %v1974
        %v1976 = vpop.f32.mrb[0].mxu0
        %v1977 = vadd.f32 0.0, %v1976
        %1978 = vdwg.mxu0
        %v1979 = vmul.f32 %v1901, 0.088388346
        %v1980 = vmul.f32 %v1903, 0.088388346
        %v1981 = vmul.f32 %v1905, 0.088388346
        %v1982 = vmul.f32 %v1907, 0.088388346
        %v1983 = vmul.f32 %v1911, 0.088388346
        %v1984 = vmul.f32 %v1913, 0.088388346
        %v1985 = vmul.f32 %v1915, 0.088388346
        %v1986 = vmul.f32 %v1917, 0.088388346
        %v1987 = vmul.f32 %v1921, 0.088388346
        %v1988 = vmul.f32 %v1923, 0.088388346
        %v1989 = vmul.f32 %v1925, 0.088388346
        %v1990 = vmul.f32 %v1927, 0.088388346
        %v1991 = vmul.f32 %v1931, 0.088388346
        %v1992 = vmul.f32 %v1933, 0.088388346
        %v1993 = vmul.f32 %v1935, 0.088388346
        %v1994 = vmul.f32 %v1937, 0.088388346
        %v1995 = vmul.f32 %v1941, 0.088388346
        %v1996 = vmul.f32 %v1943, 0.088388346
        %v1997 = vmul.f32 %v1945, 0.088388346
        %v1998 = vmul.f32 %v1947, 0.088388346
        %v1999 = vmul.f32 %v1951, 0.088388346
        %v2000 = vmul.f32 %v1953, 0.088388346
        %v2001 = vmul.f32 %v1955, 0.088388346
        %v2002 = vmul.f32 %v1957, 0.088388346
        %v2003 = vmul.f32 %v1961, 0.088388346
        %v2004 = vmul.f32 %v1963, 0.088388346
        %v2005 = vmul.f32 %v1965, 0.088388346
        %v2006 = vmul.f32 %v1967, 0.088388346
        %v2007 = vmul.f32 %v1971, 0.088388346
        %v2008 = vmul.f32 %v1973, 0.088388346
        %v2009 = vmul.f32 %v1975, 0.088388346
        %v2010 = vmul.f32 %v1977, 0.088388346
        %v2011 = vpack.c.bf16 %v1981, %v1979
        %v2012 = vpack.c.bf16 %v1985, %v1983
        %v2013 = vpack.c.bf16 %v1989, %v1987
        %v2014 = vpack.c.bf16 %v1993, %v1991
        %v2015 = vpack.c.bf16 %v1997, %v1995
        %v2016 = vpack.c.bf16 %v2001, %v1999
        %v2017 = vpack.c.bf16 %v2005, %v2003
        %v2018 = vpack.c.bf16 %v2009, %v2007
        %v2019 = vpack.c.bf16 %v1982, %v1980
        %v2020 = vpack.c.bf16 %v1986, %v1984
        %v2021 = vpack.c.bf16 %v1990, %v1988
        %v2022 = vpack.c.bf16 %v1994, %v1992
        %v2023 = vpack.c.bf16 %v1998, %v1996
        %v2024 = vpack.c.bf16 %v2002, %v2000
        %v2025 = vpack.c.bf16 %v2006, %v2004
        %v2026 = vpack.c.bf16 %v2010, %v2008
        %vm2027 = vcmask 7168
        %2028 = vst.msk [vmem:[#allocation4] sm:$0xff] %vm2027, -1e+30
        %2029 = vst.msk [vmem:[#allocation4 + $0x8] sm:$0xff] %vm2027, -1e+30
        %2030 = vst.msk [vmem:[#allocation4 + $0x10] sm:$0xff] %vm2027, -1e+30
        %2031 = vst.msk [vmem:[#allocation4 + $0x18] sm:$0xff] %vm2027, -1e+30
        %2032 = vst.msk [vmem:[#allocation4 + $0x20] sm:$0xff] %vm2027, -1e+30
        %2033 = vst.msk [vmem:[#allocation4 + $0x28] sm:$0xff] %vm2027, -1e+30
        %2034 = vst.msk [vmem:[#allocation4 + $0x30] sm:$0xff] %vm2027, -1e+30
        %2035 = vst.msk [vmem:[#allocation4 + $0x38] sm:$0xff] %vm2027, -1e+30
        %2036 = vst.msk [vmem:[#allocation4 + $0x40] sm:$0xff] %vm2027, -1e+30
        %2037 = vst.msk [vmem:[#allocation4 + $0x48] sm:$0xff] %vm2027, -1e+30
        %2038 = vst.msk [vmem:[#allocation4 + $0x50] sm:$0xff] %vm2027, -1e+30
        %2039 = vst.msk [vmem:[#allocation4 + $0x58] sm:$0xff] %vm2027, -1e+30
        %2040 = vst.msk [vmem:[#allocation4 + $0x60] sm:$0xff] %vm2027, -1e+30
        %2041 = vst.msk [vmem:[#allocation4 + $0x68] sm:$0xff] %vm2027, -1e+30
        %2042 = vst.msk [vmem:[#allocation4 + $0x70] sm:$0xff] %vm2027, -1e+30
        %2043 = vst.msk [vmem:[#allocation4 + $0x78] sm:$0xff] %vm2027, -1e+30
        %2044 = vst.msk [vmem:[#allocation4 + $0x80] sm:$0xff] %vm2027, -1e+30
        %2045 = vst.msk [vmem:[#allocation4 + $0x88] sm:$0xff] %vm2027, -1e+30
        %2046 = vst.msk [vmem:[#allocation4 + $0x90] sm:$0xff] %vm2027, -1e+30
        %2047 = vst.msk [vmem:[#allocation4 + $0x98] sm:$0xff] %vm2027, -1e+30
        %2048 = vst.msk [vmem:[#allocation4 + $0xa0] sm:$0xff] %vm2027, -1e+30
        %2049 = vst.msk [vmem:[#allocation4 + $0xa8] sm:$0xff] %vm2027, -1e+30
        %2050 = vst.msk [vmem:[#allocation4 + $0xb0] sm:$0xff] %vm2027, -1e+30
        %2051 = vst.msk [vmem:[#allocation4 + $0xb8] sm:$0xff] %vm2027, -1e+30
        %2052 = vst.msk [vmem:[#allocation4 + $0xc0] sm:$0xff] %vm2027, -1e+30
        %2053 = vst.msk [vmem:[#allocation4 + $0xc8] sm:$0xff] %vm2027, -1e+30
        %2054 = vst.msk [vmem:[#allocation4 + $0xd0] sm:$0xff] %vm2027, -1e+30
        %2055 = vst.msk [vmem:[#allocation4 + $0xd8] sm:$0xff] %vm2027, -1e+30
        %2056 = vst.msk [vmem:[#allocation4 + $0xe0] sm:$0xff] %vm2027, -1e+30
        %2057 = vst.msk [vmem:[#allocation4 + $0xe8] sm:$0xff] %vm2027, -1e+30
        %2058 = vst.msk [vmem:[#allocation4 + $0xf0] sm:$0xff] %vm2027, -1e+30
        %2059 = vst.msk [vmem:[#allocation4 + $0xf8] sm:$0xff] %vm2027, -1e+30
        %2060 = vst.msk [vmem:[#allocation5] sm:$0xff] %vm2027, 0.0
        %2061 = vst.msk [vmem:[#allocation5 + $0x8] sm:$0xff] %vm2027, 0.0
        %2062 = vst.msk [vmem:[#allocation5 + $0x10] sm:$0xff] %vm2027, 0.0
        %2063 = vst.msk [vmem:[#allocation5 + $0x18] sm:$0xff] %vm2027, 0.0
        %2064 = vst.msk [vmem:[#allocation5 + $0x20] sm:$0xff] %vm2027, 0.0
        %2065 = vst.msk [vmem:[#allocation5 + $0x28] sm:$0xff] %vm2027, 0.0
        %2066 = vst.msk [vmem:[#allocation5 + $0x30] sm:$0xff] %vm2027, 0.0
        %2067 = vst.msk [vmem:[#allocation5 + $0x38] sm:$0xff] %vm2027, 0.0
        %2068 = vst.msk [vmem:[#allocation5 + $0x40] sm:$0xff] %vm2027, 0.0
        %2069 = vst.msk [vmem:[#allocation5 + $0x48] sm:$0xff] %vm2027, 0.0
        %2070 = vst.msk [vmem:[#allocation5 + $0x50] sm:$0xff] %vm2027, 0.0
        %2071 = vst.msk [vmem:[#allocation5 + $0x58] sm:$0xff] %vm2027, 0.0
        %2072 = vst.msk [vmem:[#allocation5 + $0x60] sm:$0xff] %vm2027, 0.0
        %2073 = vst.msk [vmem:[#allocation5 + $0x68] sm:$0xff] %vm2027, 0.0
        %2074 = vst.msk [vmem:[#allocation5 + $0x70] sm:$0xff] %vm2027, 0.0
        %2075 = vst.msk [vmem:[#allocation5 + $0x78] sm:$0xff] %vm2027, 0.0
        %2076 = vst.msk [vmem:[#allocation5 + $0x80] sm:$0xff] %vm2027, 0.0
        %2077 = vst.msk [vmem:[#allocation5 + $0x88] sm:$0xff] %vm2027, 0.0
        %2078 = vst.msk [vmem:[#allocation5 + $0x90] sm:$0xff] %vm2027, 0.0
        %2079 = vst.msk [vmem:[#allocation5 + $0x98] sm:$0xff] %vm2027, 0.0
        %2080 = vst.msk [vmem:[#allocation5 + $0xa0] sm:$0xff] %vm2027, 0.0
        %2081 = vst.msk [vmem:[#allocation5 + $0xa8] sm:$0xff] %vm2027, 0.0
        %2082 = vst.msk [vmem:[#allocation5 + $0xb0] sm:$0xff] %vm2027, 0.0
        %2083 = vst.msk [vmem:[#allocation5 + $0xb8] sm:$0xff] %vm2027, 0.0
        %2084 = vst.msk [vmem:[#allocation5 + $0xc0] sm:$0xff] %vm2027, 0.0
        %2085 = vst.msk [vmem:[#allocation5 + $0xc8] sm:$0xff] %vm2027, 0.0
        %2086 = vst.msk [vmem:[#allocation5 + $0xd0] sm:$0xff] %vm2027, 0.0
        %2087 = vst.msk [vmem:[#allocation5 + $0xd8] sm:$0xff] %vm2027, 0.0
        %2088 = vst.msk [vmem:[#allocation5 + $0xe0] sm:$0xff] %vm2027, 0.0
        %2089 = vst.msk [vmem:[#allocation5 + $0xe8] sm:$0xff] %vm2027, 0.0
        %2090 = vst.msk [vmem:[#allocation5 + $0xf0] sm:$0xff] %vm2027, 0.0
        %2091 = vst.msk [vmem:[#allocation5 + $0xf8] sm:$0xff] %vm2027, 0.0
        %2092 = vst [vmem:[#allocation6] sm:$0xff] 0.0
        %2093 = vst [vmem:[#allocation6 + $0x8] sm:$0xff] 0.0
        %2094 = vst [vmem:[#allocation6 + $0x10] sm:$0xff] 0.0
        %2095 = vst [vmem:[#allocation6 + $0x18] sm:$0xff] 0.0
        %2096 = vst [vmem:[#allocation6 + $0x20] sm:$0xff] 0.0
        %2097 = vst [vmem:[#allocation6 + $0x28] sm:$0xff] 0.0
        %2098 = vst [vmem:[#allocation6 + $0x30] sm:$0xff] 0.0
        %2099 = vst [vmem:[#allocation6 + $0x38] sm:$0xff] 0.0
        %2100 = vst [vmem:[#allocation6 + $0x40] sm:$0xff] 0.0
        %2101 = vst [vmem:[#allocation6 + $0x48] sm:$0xff] 0.0
        %2102 = vst [vmem:[#allocation6 + $0x50] sm:$0xff] 0.0
        %2103 = vst [vmem:[#allocation6 + $0x58] sm:$0xff] 0.0
        %2104 = vst [vmem:[#allocation6 + $0x60] sm:$0xff] 0.0
        %2105 = vst [vmem:[#allocation6 + $0x68] sm:$0xff] 0.0
        %2106 = vst [vmem:[#allocation6 + $0x70] sm:$0xff] 0.0
        %2107 = vst [vmem:[#allocation6 + $0x78] sm:$0xff] 0.0
        %2108 = vst [vmem:[#allocation6 + $0x80] sm:$0xff] 0.0
        %2109 = vst [vmem:[#allocation6 + $0x88] sm:$0xff] 0.0
        %2110 = vst [vmem:[#allocation6 + $0x90] sm:$0xff] 0.0
        %2111 = vst [vmem:[#allocation6 + $0x98] sm:$0xff] 0.0
        %2112 = vst [vmem:[#allocation6 + $0xa0] sm:$0xff] 0.0
        %2113 = vst [vmem:[#allocation6 + $0xa8] sm:$0xff] 0.0
        %2114 = vst [vmem:[#allocation6 + $0xb0] sm:$0xff] 0.0
        %2115 = vst [vmem:[#allocation6 + $0xb8] sm:$0xff] 0.0
        %2116 = vst [vmem:[#allocation6 + $0xc0] sm:$0xff] 0.0
        %2117 = vst [vmem:[#allocation6 + $0xc8] sm:$0xff] 0.0
        %2118 = vst [vmem:[#allocation6 + $0xd0] sm:$0xff] 0.0
        %2119 = vst [vmem:[#allocation6 + $0xd8] sm:$0xff] 0.0
        %2120 = vst [vmem:[#allocation6 + $0xe0] sm:$0xff] 0.0
        %2121 = vst [vmem:[#allocation6 + $0xe8] sm:$0xff] 0.0
        %2122 = vst [vmem:[#allocation6 + $0xf0] sm:$0xff] 0.0
        %2123 = vst [vmem:[#allocation6 + $0xf8] sm:$0xff] 0.0
        // While loop
        $region105: #{tpu_custom_call.1} parent=75 // loop_pre_header
          _
        $region106: #{tpu_custom_call.1} parent=75 // loop_header
          %s2125 = sphi 0, %s2127
          %p2126 = scmp.ge.s32.totalorder %s2125, %s39
        $region107: #{tpu_custom_call.1} parent=75 // loop_header_branch
          %2129 = sbr.rel (%p2126) target = $region111
        $region108: #{tpu_custom_call.1} parent=75 // loop_body
          %s2130 = smul.u32 %s2125, 128
          %s2131 = sshra.s32 %s2130, 4
          %s2132 = sand.u32 %s2130, 15
          %s2133 = smul.addr %s2131, 8
          %s2134 = scalar_lea.vmem [#allocation2], %s2133
          %v2135 = vld [vmem:[%s2134] sm:$0xff]
          %v2136 = vld [vmem:[%s2134 + $0x8] sm:$0xff]
          %v2137 = vld [vmem:[%s2134 + $0x10] sm:$0xff]
          %v2138 = vld [vmem:[%s2134 + $0x18] sm:$0xff]
          %v2139 = vld [vmem:[%s2134 + $0x20] sm:$0xff]
          %v2140 = vld [vmem:[%s2134 + $0x28] sm:$0xff]
          %v2141 = vld [vmem:[%s2134 + $0x30] sm:$0xff]
          %v2142 = vld [vmem:[%s2134 + $0x38] sm:$0xff]
          %v2143 = vld [vmem:[%s2134 + $0x80] sm:$0xff]
          %v2144 = vld [vmem:[%s2134 + $0x88] sm:$0xff]
          %v2145 = vld [vmem:[%s2134 + $0x90] sm:$0xff]
          %v2146 = vld [vmem:[%s2134 + $0x98] sm:$0xff]
          %v2147 = vld [vmem:[%s2134 + $0xa0] sm:$0xff]
          %v2148 = vld [vmem:[%s2134 + $0xa8] sm:$0xff]
          %v2149 = vld [vmem:[%s2134 + $0xb0] sm:$0xff]
          %v2150 = vld [vmem:[%s2134 + $0xb8] sm:$0xff]
          %s2151 = smul.addr %s2131, 8
          %s2152 = scalar_lea.vmem [#allocation3], %s2151
          %v2153 = vld [vmem:[%s2152] sm:$0xff]
          %v2154 = vld [vmem:[%s2152 + $0x8] sm:$0xff]
          %v2155 = vld [vmem:[%s2152 + $0x10] sm:$0xff]
          %v2156 = vld [vmem:[%s2152 + $0x18] sm:$0xff]
          %v2157 = vld [vmem:[%s2152 + $0x20] sm:$0xff]
          %v2158 = vld [vmem:[%s2152 + $0x28] sm:$0xff]
          %v2159 = vld [vmem:[%s2152 + $0x30] sm:$0xff]
          %v2160 = vld [vmem:[%s2152 + $0x38] sm:$0xff]
          %v2161 = vld [vmem:[%s2152 + $0x80] sm:$0xff]
          %v2162 = vld [vmem:[%s2152 + $0x88] sm:$0xff]
          %v2163 = vld [vmem:[%s2152 + $0x90] sm:$0xff]
          %v2164 = vld [vmem:[%s2152 + $0x98] sm:$0xff]
          %v2165 = vld [vmem:[%s2152 + $0xa0] sm:$0xff]
          %v2166 = vld [vmem:[%s2152 + $0xa8] sm:$0xff]
          %v2167 = vld [vmem:[%s2152 + $0xb0] sm:$0xff]
          %v2168 = vld [vmem:[%s2152 + $0xb8] sm:$0xff]
          %2169 = vmatprep.subr.bf16.mxu0 0
          %2170 = vmatpush1.bf16.xpose.msra.mxu0 %v2135
          %2171 = vmatprep.subr.bf16.mxu0 0
          %2172 = vmatpush1.bf16.xpose.msra.mxu0 %v2136
          %2173 = vmatprep.subr.bf16.mxu0 0
          %2174 = vmatpush1.bf16.xpose.msra.mxu0 %v2137
          %2175 = vmatprep.subr.bf16.mxu0 0
          %2176 = vmatpush1.bf16.xpose.msra.mxu0 %v2138
          %2177 = vmatprep.subr.bf16.mxu0 0
          %2178 = vmatpush1.bf16.xpose.msra.mxu0 %v2139
          %2179 = vmatprep.subr.bf16.mxu0 0
          %2180 = vmatpush1.bf16.xpose.msra.mxu0 %v2140
          %2181 = vmatprep.subr.bf16.mxu0 0
          %2182 = vmatpush1.bf16.xpose.msra.mxu0 %v2141
          %2183 = vmatprep.subr.bf16.mxu0 0
          %2184 = vmatpush1.bf16.xpose.msra.mxu0 %v2142
          %2185 = vmatprep.subr.bf16.mxu0 0
          %2186 = vmatpush1.bf16.xpose.msra.mxu0 0
          %2187 = vmatprep.subr.bf16.mxu0 0
          %2188 = vmatpush1.bf16.xpose.msra.mxu0 0
          %2189 = vmatprep.subr.bf16.mxu0 0
          %2190 = vmatpush1.bf16.xpose.msra.mxu0 0
          %2191 = vmatprep.subr.bf16.mxu0 0
          %2192 = vmatpush1.bf16.xpose.msra.mxu0 0
          %2193 = vmatprep.subr.bf16.mxu0 0
          %2194 = vmatpush1.bf16.xpose.msra.mxu0 0
          %2195 = vmatprep.subr.bf16.mxu0 0
          %2196 = vmatpush1.bf16.xpose.msra.mxu0 0
          %2197 = vmatprep.subr.bf16.mxu0 0
          %2198 = vmatpush1.bf16.xpose.msra.mxu0 0
          %2199 = vmatprep.subr.bf16.mxu0 0
          %2200 = vmatpush1.bf16.xpose.msra.mxu0 0
          %2201 = vmatprep.mubr.bf16.mxu0 0
          %2202 = vmatmul.mubr.bf16.gmra.mrb[0].mxu0 %v2011
          %v2203 = vpop.f32.mrb[0].mxu0
          %v2204 = vadd.f32 0.0, %v2203
          %v2205 = vpop.f32.mrb[0].mxu0
          %v2206 = vpop.f32.mrb[0].mxu0
          %v2207 = vadd.f32 0.0, %v2206
          %v2208 = vpop.f32.mrb[0].mxu0
          %2209 = vmatprep.mubr.bf16.mxu0 0
          %2210 = vmatmul.mubr.bf16.gmra.mrb[0].mxu0 %v2012
          %v2211 = vpop.f32.mrb[0].mxu0
          %v2212 = vadd.f32 0.0, %v2211
          %v2213 = vpop.f32.mrb[0].mxu0
          %v2214 = vpop.f32.mrb[0].mxu0
          %v2215 = vadd.f32 0.0, %v2214
          %v2216 = vpop.f32.mrb[0].mxu0
          %2217 = vmatprep.mubr.bf16.mxu0 0
          %2218 = vmatmul.mubr.bf16.gmra.mrb[0].mxu0 %v2013
          %v2219 = vpop.f32.mrb[0].mxu0
          %v2220 = vadd.f32 0.0, %v2219
          %v2221 = vpop.f32.mrb[0].mxu0
          %v2222 = vpop.f32.mrb[0].mxu0
          %v2223 = vadd.f32 0.0, %v2222
          %v2224 = vpop.f32.mrb[0].mxu0
          %2225 = vmatprep.mubr.bf16.mxu0 0
          %2226 = vmatmul.mubr.bf16.gmra.mrb[0].mxu0 %v2014
          %v2227 = vpop.f32.mrb[0].mxu0
          %v2228 = vadd.f32 0.0, %v2227
          %v2229 = vpop.f32.mrb[0].mxu0
          %v2230 = vpop.f32.mrb[0].mxu0
          %v2231 = vadd.f32 0.0, %v2230
          %v2232 = vpop.f32.mrb[0].mxu0
          %2233 = vmatprep.mubr.bf16.mxu0 0
          %2234 = vmatmul.mubr.bf16.gmra.mrb[0].mxu0 %v2015
          %v2235 = vpop.f32.mrb[0].mxu0
          %v2236 = vadd.f32 0.0, %v2235
          %v2237 = vpop.f32.mrb[0].mxu0
          %v2238 = vpop.f32.mrb[0].mxu0
          %v2239 = vadd.f32 0.0, %v2238
          %v2240 = vpop.f32.mrb[0].mxu0
          %2241 = vmatprep.mubr.bf16.mxu0 0
          %2242 = vmatmul.mubr.bf16.gmra.mrb[0].mxu0 %v2016
          %v2243 = vpop.f32.mrb[0].mxu0
          %v2244 = vadd.f32 0.0, %v2243
          %v2245 = vpop.f32.mrb[0].mxu0
          %v2246 = vpop.f32.mrb[0].mxu0
          %v2247 = vadd.f32 0.0, %v2246
          %v2248 = vpop.f32.mrb[0].mxu0
          %2249 = vmatprep.mubr.bf16.mxu0 0
          %2250 = vmatmul.mubr.bf16.gmra.mrb[0].mxu0 %v2017
          %v2251 = vpop.f32.mrb[0].mxu0
          %v2252 = vadd.f32 0.0, %v2251
          %v2253 = vpop.f32.mrb[0].mxu0
          %v2254 = vpop.f32.mrb[0].mxu0
          %v2255 = vadd.f32 0.0, %v2254
          %v2256 = vpop.f32.mrb[0].mxu0
          %2257 = vmatprep.mubr.bf16.mxu0 0
          %2258 = vmatmul.mubr.bf16.gmra.mrb[0].mxu0 %v2018
          %v2259 = vpop.f32.mrb[0].mxu0
          %v2260 = vadd.f32 0.0, %v2259
          %v2261 = vpop.f32.mrb[0].mxu0
          %v2262 = vpop.f32.mrb[0].mxu0
          %v2263 = vadd.f32 0.0, %v2262
          %v2264 = vpop.f32.mrb[0].mxu0
          %2265 = vdwg.mxu0
          %2266 = vmatprep.subr.bf16.mxu0 0
          %2267 = vmatpush1.bf16.xpose.msra.mxu0 %v2143
          %2268 = vmatprep.subr.bf16.mxu0 0
          %2269 = vmatpush1.bf16.xpose.msra.mxu0 %v2144
          %2270 = vmatprep.subr.bf16.mxu0 0
          %2271 = vmatpush1.bf16.xpose.msra.mxu0 %v2145
          %2272 = vmatprep.subr.bf16.mxu0 0
          %2273 = vmatpush1.bf16.xpose.msra.mxu0 %v2146
          %2274 = vmatprep.subr.bf16.mxu0 0
          %2275 = vmatpush1.bf16.xpose.msra.mxu0 %v2147
          %2276 = vmatprep.subr.bf16.mxu0 0
          %2277 = vmatpush1.bf16.xpose.msra.mxu0 %v2148
          %2278 = vmatprep.subr.bf16.mxu0 0
          %2279 = vmatpush1.bf16.xpose.msra.mxu0 %v2149
          %2280 = vmatprep.subr.bf16.mxu0 0
          %2281 = vmatpush1.bf16.xpose.msra.mxu0 %v2150
          %2282 = vmatprep.subr.bf16.mxu0 0
          %2283 = vmatpush1.bf16.xpose.msra.mxu0 0
          %2284 = vmatprep.subr.bf16.mxu0 0
          %2285 = vmatpush1.bf16.xpose.msra.mxu0 0
          %2286 = vmatprep.subr.bf16.mxu0 0
          %2287 = vmatpush1.bf16.xpose.msra.mxu0 0
          %2288 = vmatprep.subr.bf16.mxu0 0
          %2289 = vmatpush1.bf16.xpose.msra.mxu0 0
          %2290 = vmatprep.subr.bf16.mxu0 0
          %2291 = vmatpush1.bf16.xpose.msra.mxu0 0
          %2292 = vmatprep.subr.bf16.mxu0 0
          %2293 = vmatpush1.bf16.xpose.msra.mxu0 0
          %2294 = vmatprep.subr.bf16.mxu0 0
          %2295 = vmatpush1.bf16.xpose.msra.mxu0 0
          %2296 = vmatprep.subr.bf16.mxu0 0
          %2297 = vmatpush1.bf16.xpose.msra.mxu0 0
          %2298 = vmatprep.mubr.bf16.mxu0 0
          %2299 = vmatmul.mubr.bf16.gmra.mrb[0].mxu0 %v2019
          %v2300 = vpop.f32.mrb[0].mxu0
          %v2301 = vadd.f32 0.0, %v2300
          %v2302 = vpop.f32.mrb[0].mxu0
          %v2303 = vpop.f32.mrb[0].mxu0
          %v2304 = vadd.f32 0.0, %v2303
          %v2305 = vpop.f32.mrb[0].mxu0
          %2306 = vmatprep.mubr.bf16.mxu0 0
          %2307 = vmatmul.mubr.bf16.gmra.mrb[0].mxu0 %v2020
          %v2308 = vpop.f32.mrb[0].mxu0
          %v2309 = vadd.f32 0.0, %v2308
          %v2310 = vpop.f32.mrb[0].mxu0
          %v2311 = vpop.f32.mrb[0].mxu0
          %v2312 = vadd.f32 0.0, %v2311
          %v2313 = vpop.f32.mrb[0].mxu0
          %2314 = vmatprep.mubr.bf16.mxu0 0
          %2315 = vmatmul.mubr.bf16.gmra.mrb[0].mxu0 %v2021
          %v2316 = vpop.f32.mrb[0].mxu0
          %v2317 = vadd.f32 0.0, %v2316
          %v2318 = vpop.f32.mrb[0].mxu0
          %v2319 = vpop.f32.mrb[0].mxu0
          %v2320 = vadd.f32 0.0, %v2319
          %v2321 = vpop.f32.mrb[0].mxu0
          %2322 = vmatprep.mubr.bf16.mxu0 0
          %2323 = vmatmul.mubr.bf16.gmra.mrb[0].mxu0 %v2022
          %v2324 = vpop.f32.mrb[0].mxu0
          %v2325 = vadd.f32 0.0, %v2324
          %v2326 = vpop.f32.mrb[0].mxu0
          %v2327 = vpop.f32.mrb[0].mxu0
          %v2328 = vadd.f32 0.0, %v2327
          %v2329 = vpop.f32.mrb[0].mxu0
          %2330 = vmatprep.mubr.bf16.mxu0 0
          %2331 = vmatmul.mubr.bf16.gmra.mrb[0].mxu0 %v2023
          %v2332 = vpop.f32.mrb[0].mxu0
          %v2333 = vadd.f32 0.0, %v2332
          %v2334 = vpop.f32.mrb[0].mxu0
          %v2335 = vpop.f32.mrb[0].mxu0
          %v2336 = vadd.f32 0.0, %v2335
          %v2337 = vpop.f32.mrb[0].mxu0
          %2338 = vmatprep.mubr.bf16.mxu0 0
          %2339 = vmatmul.mubr.bf16.gmra.mrb[0].mxu0 %v2024
          %v2340 = vpop.f32.mrb[0].mxu0
          %v2341 = vadd.f32 0.0, %v2340
          %v2342 = vpop.f32.mrb[0].mxu0
          %v2343 = vpop.f32.mrb[0].mxu0
          %v2344 = vadd.f32 0.0, %v2343
          %v2345 = vpop.f32.mrb[0].mxu0
          %2346 = vmatprep.mubr.bf16.mxu0 0
          %2347 = vmatmul.mubr.bf16.gmra.mrb[0].mxu0 %v2025
          %v2348 = vpop.f32.mrb[0].mxu0
          %v2349 = vadd.f32 0.0, %v2348
          %v2350 = vpop.f32.mrb[0].mxu0
          %v2351 = vpop.f32.mrb[0].mxu0
          %v2352 = vadd.f32 0.0, %v2351
          %v2353 = vpop.f32.mrb[0].mxu0
          %2354 = vmatprep.mubr.bf16.mxu0 0
          %2355 = vmatmul.mubr.bf16.gmra.mrb[0].mxu0 %v2026
          %v2356 = vpop.f32.mrb[0].mxu0
          %v2357 = vadd.f32 0.0, %v2356
          %v2358 = vpop.f32.mrb[0].mxu0
          %v2359 = vpop.f32.mrb[0].mxu0
          %v2360 = vadd.f32 0.0, %v2359
          %v2361 = vpop.f32.mrb[0].mxu0
          %2362 = vdwg.mxu0
          %v2363 = vld [vmem:[#allocation4] sm:$0xff]
          %v2364 = vld [vmem:[#allocation4 + $0x8] sm:$0xff]
          %v2365 = vld [vmem:[#allocation4 + $0x10] sm:$0xff]
          %v2366 = vld [vmem:[#allocation4 + $0x18] sm:$0xff]
          %v2367 = vld [vmem:[#allocation4 + $0x20] sm:$0xff]
          %v2368 = vld [vmem:[#allocation4 + $0x28] sm:$0xff]
          %v2369 = vld [vmem:[#allocation4 + $0x30] sm:$0xff]
          %v2370 = vld [vmem:[#allocation4 + $0x38] sm:$0xff]
          %v2371 = vld [vmem:[#allocation4 + $0x40] sm:$0xff]
          %v2372 = vld [vmem:[#allocation4 + $0x48] sm:$0xff]
          %v2373 = vld [vmem:[#allocation4 + $0x50] sm:$0xff]
          %v2374 = vld [vmem:[#allocation4 + $0x58] sm:$0xff]
          %v2375 = vld [vmem:[#allocation4 + $0x60] sm:$0xff]
          %v2376 = vld [vmem:[#allocation4 + $0x68] sm:$0xff]
          %v2377 = vld [vmem:[#allocation4 + $0x70] sm:$0xff]
          %v2378 = vld [vmem:[#allocation4 + $0x78] sm:$0xff]
          %v2379 = vld [vmem:[#allocation4 + $0x80] sm:$0xff]
          %v2380 = vld [vmem:[#allocation4 + $0x88] sm:$0xff]
          %v2381 = vld [vmem:[#allocation4 + $0x90] sm:$0xff]
          %v2382 = vld [vmem:[#allocation4 + $0x98] sm:$0xff]
          %v2383 = vld [vmem:[#allocation4 + $0xa0] sm:$0xff]
          %v2384 = vld [vmem:[#allocation4 + $0xa8] sm:$0xff]
          %v2385 = vld [vmem:[#allocation4 + $0xb0] sm:$0xff]
          %v2386 = vld [vmem:[#allocation4 + $0xb8] sm:$0xff]
          %v2387 = vld [vmem:[#allocation4 + $0xc0] sm:$0xff]
          %v2388 = vld [vmem:[#allocation4 + $0xc8] sm:$0xff]
          %v2389 = vld [vmem:[#allocation4 + $0xd0] sm:$0xff]
          %v2390 = vld [vmem:[#allocation4 + $0xd8] sm:$0xff]
          %v2391 = vld [vmem:[#allocation4 + $0xe0] sm:$0xff]
          %v2392 = vld [vmem:[#allocation4 + $0xe8] sm:$0xff]
          %v2393 = vld [vmem:[#allocation4 + $0xf0] sm:$0xff]
          %v2394 = vld [vmem:[#allocation4 + $0xf8] sm:$0xff]
          %2395 = vmax.xlane.f32.xlu0 %v2204
          %v2396 = vpop.xlane.xlu0 %2395
          %2397 = vmax.xlane.f32.xlu0 %v2207
          %v2398 = vpop.xlane.xlu0 %2397
          %2399 = vmax.xlane.f32.xlu0 %v2212
          %v2400 = vpop.xlane.xlu0 %2399
          %2401 = vmax.xlane.f32.xlu0 %v2215
          %v2402 = vpop.xlane.xlu0 %2401
          %2403 = vmax.xlane.f32.xlu0 %v2220
          %v2404 = vpop.xlane.xlu0 %2403
          %2405 = vmax.xlane.f32.xlu0 %v2223
          %v2406 = vpop.xlane.xlu0 %2405
          %2407 = vmax.xlane.f32.xlu0 %v2228
          %v2408 = vpop.xlane.xlu0 %2407
          %2409 = vmax.xlane.f32.xlu0 %v2231
          %v2410 = vpop.xlane.xlu0 %2409
          %2411 = vmax.xlane.f32.xlu0 %v2236
          %v2412 = vpop.xlane.xlu0 %2411
          %2413 = vmax.xlane.f32.xlu0 %v2239
          %v2414 = vpop.xlane.xlu0 %2413
          %2415 = vmax.xlane.f32.xlu0 %v2244
          %v2416 = vpop.xlane.xlu0 %2415
          %2417 = vmax.xlane.f32.xlu0 %v2247
          %v2418 = vpop.xlane.xlu0 %2417
          %2419 = vmax.xlane.f32.xlu0 %v2252
          %v2420 = vpop.xlane.xlu0 %2419
          %2421 = vmax.xlane.f32.xlu0 %v2255
          %v2422 = vpop.xlane.xlu0 %2421
          %2423 = vmax.xlane.f32.xlu0 %v2260
          %v2424 = vpop.xlane.xlu0 %2423
          %2425 = vmax.xlane.f32.xlu0 %v2263
          %v2426 = vpop.xlane.xlu0 %2425
          %2427 = vmax.xlane.f32.xlu0 %v2301
          %v2428 = vpop.xlane.xlu0 %2427
          %2429 = vmax.xlane.f32.xlu0 %v2304
          %v2430 = vpop.xlane.xlu0 %2429
          %2431 = vmax.xlane.f32.xlu0 %v2309
          %v2432 = vpop.xlane.xlu0 %2431
          %2433 = vmax.xlane.f32.xlu0 %v2312
          %v2434 = vpop.xlane.xlu0 %2433
          %2435 = vmax.xlane.f32.xlu0 %v2317
          %v2436 = vpop.xlane.xlu0 %2435
          %2437 = vmax.xlane.f32.xlu0 %v2320
          %v2438 = vpop.xlane.xlu0 %2437
          %2439 = vmax.xlane.f32.xlu0 %v2325
          %v2440 = vpop.xlane.xlu0 %2439
          %2441 = vmax.xlane.f32.xlu0 %v2328
          %v2442 = vpop.xlane.xlu0 %2441
          %2443 = vmax.xlane.f32.xlu0 %v2333
          %v2444 = vpop.xlane.xlu0 %2443
          %2445 = vmax.xlane.f32.xlu0 %v2336
          %v2446 = vpop.xlane.xlu0 %2445
          %2447 = vmax.xlane.f32.xlu0 %v2341
          %v2448 = vpop.xlane.xlu0 %2447
          %2449 = vmax.xlane.f32.xlu0 %v2344
          %v2450 = vpop.xlane.xlu0 %2449
          %2451 = vmax.xlane.f32.xlu0 %v2349
          %v2452 = vpop.xlane.xlu0 %2451
          %2453 = vmax.xlane.f32.xlu0 %v2352
          %v2454 = vpop.xlane.xlu0 %2453
          %2455 = vmax.xlane.f32.xlu0 %v2357
          %v2456 = vpop.xlane.xlu0 %2455
          %2457 = vmax.xlane.f32.xlu0 %v2360
          %v2458 = vpop.xlane.xlu0 %2457
          %v2459 = vmax.f32 %v2363, %v2396
          %v2460 = vmax.f32 %v2364, %v2398
          %v2461 = vmax.f32 %v2365, %v2400
          %v2462 = vmax.f32 %v2366, %v2402
          %v2463 = vmax.f32 %v2367, %v2404
          %v2464 = vmax.f32 %v2368, %v2406
          %v2465 = vmax.f32 %v2369, %v2408
          %v2466 = vmax.f32 %v2370, %v2410
          %v2467 = vmax.f32 %v2371, %v2412
          %v2468 = vmax.f32 %v2372, %v2414
          %v2469 = vmax.f32 %v2373, %v2416
          %v2470 = vmax.f32 %v2374, %v2418
          %v2471 = vmax.f32 %v2375, %v2420
          %v2472 = vmax.f32 %v2376, %v2422
          %v2473 = vmax.f32 %v2377, %v2424
          %v2474 = vmax.f32 %v2378, %v2426
          %v2475 = vmax.f32 %v2379, %v2428
          %v2476 = vmax.f32 %v2380, %v2430
          %v2477 = vmax.f32 %v2381, %v2432
          %v2478 = vmax.f32 %v2382, %v2434
          %v2479 = vmax.f32 %v2383, %v2436
          %v2480 = vmax.f32 %v2384, %v2438
          %v2481 = vmax.f32 %v2385, %v2440
          %v2482 = vmax.f32 %v2386, %v2442
          %v2483 = vmax.f32 %v2387, %v2444
          %v2484 = vmax.f32 %v2388, %v2446
          %v2485 = vmax.f32 %v2389, %v2448
          %v2486 = vmax.f32 %v2390, %v2450
          %v2487 = vmax.f32 %v2391, %v2452
          %v2488 = vmax.f32 %v2392, %v2454
          %v2489 = vmax.f32 %v2393, %v2456
          %v2490 = vmax.f32 %v2394, %v2458
          %v2491 = vsub.f32 %v2363, %v2459
          %v2492 = vsub.f32 %v2364, %v2460
          %v2493 = vsub.f32 %v2365, %v2461
          %v2494 = vsub.f32 %v2366, %v2462
          %v2495 = vsub.f32 %v2367, %v2463
          %v2496 = vsub.f32 %v2368, %v2464
          %v2497 = vsub.f32 %v2369, %v2465
          %v2498 = vsub.f32 %v2370, %v2466
          %v2499 = vsub.f32 %v2371, %v2467
          %v2500 = vsub.f32 %v2372, %v2468
          %v2501 = vsub.f32 %v2373, %v2469
          %v2502 = vsub.f32 %v2374, %v2470
          %v2503 = vsub.f32 %v2375, %v2471
          %v2504 = vsub.f32 %v2376, %v2472
          %v2505 = vsub.f32 %v2377, %v2473
          %v2506 = vsub.f32 %v2378, %v2474
          %v2507 = vsub.f32 %v2379, %v2475
          %v2508 = vsub.f32 %v2380, %v2476
          %v2509 = vsub.f32 %v2381, %v2477
          %v2510 = vsub.f32 %v2382, %v2478
          %v2511 = vsub.f32 %v2383, %v2479
          %v2512 = vsub.f32 %v2384, %v2480
          %v2513 = vsub.f32 %v2385, %v2481
          %v2514 = vsub.f32 %v2386, %v2482
          %v2515 = vsub.f32 %v2387, %v2483
          %v2516 = vsub.f32 %v2388, %v2484
          %v2517 = vsub.f32 %v2389, %v2485
          %v2518 = vsub.f32 %v2390, %v2486
          %v2519 = vsub.f32 %v2391, %v2487
          %v2520 = vsub.f32 %v2392, %v2488
          %v2521 = vsub.f32 %v2393, %v2489
          %v2522 = vsub.f32 %v2394, %v2490
          %v2523 = vmul.f32 %v2491, 1.442695
          %v2524 = vpow.pop %v2523
          %v2525 = vmul.f32 %v2492, 1.442695
          %v2526 = vpow.pop %v2525
          %v2527 = vmul.f32 %v2493, 1.442695
          %v2528 = vpow.pop %v2527
          %v2529 = vmul.f32 %v2494, 1.442695
          %v2530 = vpow.pop %v2529
          %v2531 = vmul.f32 %v2495, 1.442695
          %v2532 = vpow.pop %v2531
          %v2533 = vmul.f32 %v2496, 1.442695
          %v2534 = vpow.pop %v2533
          %v2535 = vmul.f32 %v2497, 1.442695
          %v2536 = vpow.pop %v2535
          %v2537 = vmul.f32 %v2498, 1.442695
          %v2538 = vpow.pop %v2537
          %v2539 = vmul.f32 %v2499, 1.442695
          %v2540 = vpow.pop %v2539
          %v2541 = vmul.f32 %v2500, 1.442695
          %v2542 = vpow.pop %v2541
          %v2543 = vmul.f32 %v2501, 1.442695
          %v2544 = vpow.pop %v2543
          %v2545 = vmul.f32 %v2502, 1.442695
          %v2546 = vpow.pop %v2545
          %v2547 = vmul.f32 %v2503, 1.442695
          %v2548 = vpow.pop %v2547
          %v2549 = vmul.f32 %v2504, 1.442695
          %v2550 = vpow.pop %v2549
          %v2551 = vmul.f32 %v2505, 1.442695
          %v2552 = vpow.pop %v2551
          %v2553 = vmul.f32 %v2506, 1.442695
          %v2554 = vpow.pop %v2553
          %v2555 = vmul.f32 %v2507, 1.442695
          %v2556 = vpow.pop %v2555
          %v2557 = vmul.f32 %v2508, 1.442695
          %v2558 = vpow.pop %v2557
          %v2559 = vmul.f32 %v2509, 1.442695
          %v2560 = vpow.pop %v2559
          %v2561 = vmul.f32 %v2510, 1.442695
          %v2562 = vpow.pop %v2561
          %v2563 = vmul.f32 %v2511, 1.442695
          %v2564 = vpow.pop %v2563
          %v2565 = vmul.f32 %v2512, 1.442695
          %v2566 = vpow.pop %v2565
          %v2567 = vmul.f32 %v2513, 1.442695
          %v2568 = vpow.pop %v2567
          %v2569 = vmul.f32 %v2514, 1.442695
          %v2570 = vpow.pop %v2569
          %v2571 = vmul.f32 %v2515, 1.442695
          %v2572 = vpow.pop %v2571
          %v2573 = vmul.f32 %v2516, 1.442695
          %v2574 = vpow.pop %v2573
          %v2575 = vmul.f32 %v2517, 1.442695
          %v2576 = vpow.pop %v2575
          %v2577 = vmul.f32 %v2518, 1.442695
          %v2578 = vpow.pop %v2577
          %v2579 = vmul.f32 %v2519, 1.442695
          %v2580 = vpow.pop %v2579
          %v2581 = vmul.f32 %v2520, 1.442695
          %v2582 = vpow.pop %v2581
          %v2583 = vmul.f32 %v2521, 1.442695
          %v2584 = vpow.pop %v2583
          %v2585 = vmul.f32 %v2522, 1.442695
          %v2586 = vpow.pop %v2585
          %2588 = vset.pattern.permute.xlu0 0
          %2589 = vperm.xlu0 %2588, %v2459
          %v2590 = vpop.permute.xlu0 %2589
          %2593 = vset.pattern.permute.xlu0 0
          %2594 = vperm.xlu0 %2593, %v2460
          %v2595 = vpop.permute.xlu0 %2594
          %2598 = vset.pattern.permute.xlu0 0
          %2599 = vperm.xlu0 %2598, %v2461
          %v2600 = vpop.permute.xlu0 %2599
          %2603 = vset.pattern.permute.xlu0 0
          %2604 = vperm.xlu0 %2603, %v2462
          %v2605 = vpop.permute.xlu0 %2604
          %2608 = vset.pattern.permute.xlu0 0
          %2609 = vperm.xlu0 %2608, %v2463
          %v2610 = vpop.permute.xlu0 %2609
          %2613 = vset.pattern.permute.xlu0 0
          %2614 = vperm.xlu0 %2613, %v2464
          %v2615 = vpop.permute.xlu0 %2614
          %2618 = vset.pattern.permute.xlu0 0
          %2619 = vperm.xlu0 %2618, %v2465
          %v2620 = vpop.permute.xlu0 %2619
          %2623 = vset.pattern.permute.xlu0 0
          %2624 = vperm.xlu0 %2623, %v2466
          %v2625 = vpop.permute.xlu0 %2624
          %2628 = vset.pattern.permute.xlu0 0
          %2629 = vperm.xlu0 %2628, %v2467
          %v2630 = vpop.permute.xlu0 %2629
          %2633 = vset.pattern.permute.xlu0 0
          %2634 = vperm.xlu0 %2633, %v2468
          %v2635 = vpop.permute.xlu0 %2634
          %2638 = vset.pattern.permute.xlu0 0
          %2639 = vperm.xlu0 %2638, %v2469
          %v2640 = vpop.permute.xlu0 %2639
          %2643 = vset.pattern.permute.xlu0 0
          %2644 = vperm.xlu0 %2643, %v2470
          %v2645 = vpop.permute.xlu0 %2644
          %2648 = vset.pattern.permute.xlu0 0
          %2649 = vperm.xlu0 %2648, %v2471
          %v2650 = vpop.permute.xlu0 %2649
          %2653 = vset.pattern.permute.xlu0 0
          %2654 = vperm.xlu0 %2653, %v2472
          %v2655 = vpop.permute.xlu0 %2654
          %2658 = vset.pattern.permute.xlu0 0
          %2659 = vperm.xlu0 %2658, %v2473
          %v2660 = vpop.permute.xlu0 %2659
          %2663 = vset.pattern.permute.xlu0 0
          %2664 = vperm.xlu0 %2663, %v2474
          %v2665 = vpop.permute.xlu0 %2664
          %2668 = vset.pattern.permute.xlu0 0
          %2669 = vperm.xlu0 %2668, %v2475
          %v2670 = vpop.permute.xlu0 %2669
          %2673 = vset.pattern.permute.xlu0 0
          %2674 = vperm.xlu0 %2673, %v2476
          %v2675 = vpop.permute.xlu0 %2674
          %2678 = vset.pattern.permute.xlu0 0
          %2679 = vperm.xlu0 %2678, %v2477
          %v2680 = vpop.permute.xlu0 %2679
          %2683 = vset.pattern.permute.xlu0 0
          %2684 = vperm.xlu0 %2683, %v2478
          %v2685 = vpop.permute.xlu0 %2684
          %2688 = vset.pattern.permute.xlu0 0
          %2689 = vperm.xlu0 %2688, %v2479
          %v2690 = vpop.permute.xlu0 %2689
          %2693 = vset.pattern.permute.xlu0 0
          %2694 = vperm.xlu0 %2693, %v2480
          %v2695 = vpop.permute.xlu0 %2694
          %2698 = vset.pattern.permute.xlu0 0
          %2699 = vperm.xlu0 %2698, %v2481
          %v2700 = vpop.permute.xlu0 %2699
          %2703 = vset.pattern.permute.xlu0 0
          %2704 = vperm.xlu0 %2703, %v2482
          %v2705 = vpop.permute.xlu0 %2704
          %2708 = vset.pattern.permute.xlu0 0
          %2709 = vperm.xlu0 %2708, %v2483
          %v2710 = vpop.permute.xlu0 %2709
          %2713 = vset.pattern.permute.xlu0 0
          %2714 = vperm.xlu0 %2713, %v2484
          %v2715 = vpop.permute.xlu0 %2714
          %2718 = vset.pattern.permute.xlu0 0
          %2719 = vperm.xlu0 %2718, %v2485
          %v2720 = vpop.permute.xlu0 %2719
          %2723 = vset.pattern.permute.xlu0 0
          %2724 = vperm.xlu0 %2723, %v2486
          %v2725 = vpop.permute.xlu0 %2724
          %2728 = vset.pattern.permute.xlu0 0
          %2729 = vperm.xlu0 %2728, %v2487
          %v2730 = vpop.permute.xlu0 %2729
          %2733 = vset.pattern.permute.xlu0 0
          %2734 = vperm.xlu0 %2733, %v2488
          %v2735 = vpop.permute.xlu0 %2734
          %2738 = vset.pattern.permute.xlu0 0
          %2739 = vperm.xlu0 %2738, %v2489
          %v2740 = vpop.permute.xlu0 %2739
          %2743 = vset.pattern.permute.xlu0 0
          %2744 = vperm.xlu0 %2743, %v2490
          %v2745 = vpop.permute.xlu0 %2744
          %v2747 = vsub.f32 %v2204, %v2590
          %v2748 = vsub.f32 %v2207, %v2595
          %v2749 = vsub.f32 %v2212, %v2600
          %v2750 = vsub.f32 %v2215, %v2605
          %v2751 = vsub.f32 %v2220, %v2610
          %v2752 = vsub.f32 %v2223, %v2615
          %v2753 = vsub.f32 %v2228, %v2620
          %v2754 = vsub.f32 %v2231, %v2625
          %v2755 = vsub.f32 %v2236, %v2630
          %v2756 = vsub.f32 %v2239, %v2635
          %v2757 = vsub.f32 %v2244, %v2640
          %v2758 = vsub.f32 %v2247, %v2645
          %v2759 = vsub.f32 %v2252, %v2650
          %v2760 = vsub.f32 %v2255, %v2655
          %v2761 = vsub.f32 %v2260, %v2660
          %v2762 = vsub.f32 %v2263, %v2665
          %v2763 = vsub.f32 %v2301, %v2670
          %v2764 = vsub.f32 %v2304, %v2675
          %v2765 = vsub.f32 %v2309, %v2680
          %v2766 = vsub.f32 %v2312, %v2685
          %v2767 = vsub.f32 %v2317, %v2690
          %v2768 = vsub.f32 %v2320, %v2695
          %v2769 = vsub.f32 %v2325, %v2700
          %v2770 = vsub.f32 %v2328, %v2705
          %v2771 = vsub.f32 %v2333, %v2710
          %v2772 = vsub.f32 %v2336, %v2715
          %v2773 = vsub.f32 %v2341, %v2720
          %v2774 = vsub.f32 %v2344, %v2725
          %v2775 = vsub.f32 %v2349, %v2730
          %v2776 = vsub.f32 %v2352, %v2735
          %v2777 = vsub.f32 %v2357, %v2740
          %v2778 = vsub.f32 %v2360, %v2745
          %v2779 = vmul.f32 %v2747, 1.442695
          %v2780 = vpow.pop %v2779
          %v2781 = vmul.f32 %v2748, 1.442695
          %v2782 = vpow.pop %v2781
          %v2783 = vmul.f32 %v2749, 1.442695
          %v2784 = vpow.pop %v2783
          %v2785 = vmul.f32 %v2750, 1.442695
          %v2786 = vpow.pop %v2785
          %v2787 = vmul.f32 %v2751, 1.442695
          %v2788 = vpow.pop %v2787
          %v2789 = vmul.f32 %v2752, 1.442695
          %v2790 = vpow.pop %v2789
          %v2791 = vmul.f32 %v2753, 1.442695
          %v2792 = vpow.pop %v2791
          %v2793 = vmul.f32 %v2754, 1.442695
          %v2794 = vpow.pop %v2793
          %v2795 = vmul.f32 %v2755, 1.442695
          %v2796 = vpow.pop %v2795
          %v2797 = vmul.f32 %v2756, 1.442695
          %v2798 = vpow.pop %v2797
          %v2799 = vmul.f32 %v2757, 1.442695
          %v2800 = vpow.pop %v2799
          %v2801 = vmul.f32 %v2758, 1.442695
          %v2802 = vpow.pop %v2801
          %v2803 = vmul.f32 %v2759, 1.442695
          %v2804 = vpow.pop %v2803
          %v2805 = vmul.f32 %v2760, 1.442695
          %v2806 = vpow.pop %v2805
          %v2807 = vmul.f32 %v2761, 1.442695
          %v2808 = vpow.pop %v2807
          %v2809 = vmul.f32 %v2762, 1.442695
          %v2810 = vpow.pop %v2809
          %v2811 = vmul.f32 %v2763, 1.442695
          %v2812 = vpow.pop %v2811
          %v2813 = vmul.f32 %v2764, 1.442695
          %v2814 = vpow.pop %v2813
          %v2815 = vmul.f32 %v2765, 1.442695
          %v2816 = vpow.pop %v2815
          %v2817 = vmul.f32 %v2766, 1.442695
          %v2818 = vpow.pop %v2817
          %v2819 = vmul.f32 %v2767, 1.442695
          %v2820 = vpow.pop %v2819
          %v2821 = vmul.f32 %v2768, 1.442695
          %v2822 = vpow.pop %v2821
          %v2823 = vmul.f32 %v2769, 1.442695
          %v2824 = vpow.pop %v2823
          %v2825 = vmul.f32 %v2770, 1.442695
          %v2826 = vpow.pop %v2825
          %v2827 = vmul.f32 %v2771, 1.442695
          %v2828 = vpow.pop %v2827
          %v2829 = vmul.f32 %v2772, 1.442695
          %v2830 = vpow.pop %v2829
          %v2831 = vmul.f32 %v2773, 1.442695
          %v2832 = vpow.pop %v2831
          %v2833 = vmul.f32 %v2774, 1.442695
          %v2834 = vpow.pop %v2833
          %v2835 = vmul.f32 %v2775, 1.442695
          %v2836 = vpow.pop %v2835
          %v2837 = vmul.f32 %v2776, 1.442695
          %v2838 = vpow.pop %v2837
          %v2839 = vmul.f32 %v2777, 1.442695
          %v2840 = vpow.pop %v2839
          %v2841 = vmul.f32 %v2778, 1.442695
          %v2842 = vpow.pop %v2841
          %v2843 = vld [vmem:[#allocation5] sm:$0xff]
          %v2844 = vld [vmem:[#allocation5 + $0x8] sm:$0xff]
          %v2845 = vld [vmem:[#allocation5 + $0x10] sm:$0xff]
          %v2846 = vld [vmem:[#allocation5 + $0x18] sm:$0xff]
          %v2847 = vld [vmem:[#allocation5 + $0x20] sm:$0xff]
          %v2848 = vld [vmem:[#allocation5 + $0x28] sm:$0xff]
          %v2849 = vld [vmem:[#allocation5 + $0x30] sm:$0xff]
          %v2850 = vld [vmem:[#allocation5 + $0x38] sm:$0xff]
          %v2851 = vld [vmem:[#allocation5 + $0x40] sm:$0xff]
          %v2852 = vld [vmem:[#allocation5 + $0x48] sm:$0xff]
          %v2853 = vld [vmem:[#allocation5 + $0x50] sm:$0xff]
          %v2854 = vld [vmem:[#allocation5 + $0x58] sm:$0xff]
          %v2855 = vld [vmem:[#allocation5 + $0x60] sm:$0xff]
          %v2856 = vld [vmem:[#allocation5 + $0x68] sm:$0xff]
          %v2857 = vld [vmem:[#allocation5 + $0x70] sm:$0xff]
          %v2858 = vld [vmem:[#allocation5 + $0x78] sm:$0xff]
          %v2859 = vld [vmem:[#allocation5 + $0x80] sm:$0xff]
          %v2860 = vld [vmem:[#allocation5 + $0x88] sm:$0xff]
          %v2861 = vld [vmem:[#allocation5 + $0x90] sm:$0xff]
          %v2862 = vld [vmem:[#allocation5 + $0x98] sm:$0xff]
          %v2863 = vld [vmem:[#allocation5 + $0xa0] sm:$0xff]
          %v2864 = vld [vmem:[#allocation5 + $0xa8] sm:$0xff]
          %v2865 = vld [vmem:[#allocation5 + $0xb0] sm:$0xff]
          %v2866 = vld [vmem:[#allocation5 + $0xb8] sm:$0xff]
          %v2867 = vld [vmem:[#allocation5 + $0xc0] sm:$0xff]
          %v2868 = vld [vmem:[#allocation5 + $0xc8] sm:$0xff]
          %v2869 = vld [vmem:[#allocation5 + $0xd0] sm:$0xff]
          %v2870 = vld [vmem:[#allocation5 + $0xd8] sm:$0xff]
          %v2871 = vld [vmem:[#allocation5 + $0xe0] sm:$0xff]
          %v2872 = vld [vmem:[#allocation5 + $0xe8] sm:$0xff]
          %v2873 = vld [vmem:[#allocation5 + $0xf0] sm:$0xff]
          %v2874 = vld [vmem:[#allocation5 + $0xf8] sm:$0xff]
          %v2875 = vmul.f32 %v2524, %v2843
          %v2876 = vmul.f32 %v2526, %v2844
          %v2877 = vmul.f32 %v2528, %v2845
          %v2878 = vmul.f32 %v2530, %v2846
          %v2879 = vmul.f32 %v2532, %v2847
          %v2880 = vmul.f32 %v2534, %v2848
          %v2881 = vmul.f32 %v2536, %v2849
          %v2882 = vmul.f32 %v2538, %v2850
          %v2883 = vmul.f32 %v2540, %v2851
          %v2884 = vmul.f32 %v2542, %v2852
          %v2885 = vmul.f32 %v2544, %v2853
          %v2886 = vmul.f32 %v2546, %v2854
          %v2887 = vmul.f32 %v2548, %v2855
          %v2888 = vmul.f32 %v2550, %v2856
          %v2889 = vmul.f32 %v2552, %v2857
          %v2890 = vmul.f32 %v2554, %v2858
          %v2891 = vmul.f32 %v2556, %v2859
          %v2892 = vmul.f32 %v2558, %v2860
          %v2893 = vmul.f32 %v2560, %v2861
          %v2894 = vmul.f32 %v2562, %v2862
          %v2895 = vmul.f32 %v2564, %v2863
          %v2896 = vmul.f32 %v2566, %v2864
          %v2897 = vmul.f32 %v2568, %v2865
          %v2898 = vmul.f32 %v2570, %v2866
          %v2899 = vmul.f32 %v2572, %v2867
          %v2900 = vmul.f32 %v2574, %v2868
          %v2901 = vmul.f32 %v2576, %v2869
          %v2902 = vmul.f32 %v2578, %v2870
          %v2903 = vmul.f32 %v2580, %v2871
          %v2904 = vmul.f32 %v2582, %v2872
          %v2905 = vmul.f32 %v2584, %v2873
          %v2906 = vmul.f32 %v2586, %v2874
          %2907 = vadd.xlane.f32.xlu0 %v2780
          %v2908 = vpop.xlane.xlu0 %2907
          %2909 = vadd.xlane.f32.xlu0 %v2782
          %v2910 = vpop.xlane.xlu0 %2909
          %2911 = vadd.xlane.f32.xlu0 %v2784
          %v2912 = vpop.xlane.xlu0 %2911
          %2913 = vadd.xlane.f32.xlu0 %v2786
          %v2914 = vpop.xlane.xlu0 %2913
          %2915 = vadd.xlane.f32.xlu0 %v2788
          %v2916 = vpop.xlane.xlu0 %2915
          %2917 = vadd.xlane.f32.xlu0 %v2790
          %v2918 = vpop.xlane.xlu0 %2917
          %2919 = vadd.xlane.f32.xlu0 %v2792
          %v2920 = vpop.xlane.xlu0 %2919
          %2921 = vadd.xlane.f32.xlu0 %v2794
          %v2922 = vpop.xlane.xlu0 %2921
          %2923 = vadd.xlane.f32.xlu0 %v2796
          %v2924 = vpop.xlane.xlu0 %2923
          %2925 = vadd.xlane.f32.xlu0 %v2798
          %v2926 = vpop.xlane.xlu0 %2925
          %2927 = vadd.xlane.f32.xlu0 %v2800
          %v2928 = vpop.xlane.xlu0 %2927
          %2929 = vadd.xlane.f32.xlu0 %v2802
          %v2930 = vpop.xlane.xlu0 %2929
          %2931 = vadd.xlane.f32.xlu0 %v2804
          %v2932 = vpop.xlane.xlu0 %2931
          %2933 = vadd.xlane.f32.xlu0 %v2806
          %v2934 = vpop.xlane.xlu0 %2933
          %2935 = vadd.xlane.f32.xlu0 %v2808
          %v2936 = vpop.xlane.xlu0 %2935
          %2937 = vadd.xlane.f32.xlu0 %v2810
          %v2938 = vpop.xlane.xlu0 %2937
          %2939 = vadd.xlane.f32.xlu0 %v2812
          %v2940 = vpop.xlane.xlu0 %2939
          %2941 = vadd.xlane.f32.xlu0 %v2814
          %v2942 = vpop.xlane.xlu0 %2941
          %2943 = vadd.xlane.f32.xlu0 %v2816
          %v2944 = vpop.xlane.xlu0 %2943
          %2945 = vadd.xlane.f32.xlu0 %v2818
          %v2946 = vpop.xlane.xlu0 %2945
          %2947 = vadd.xlane.f32.xlu0 %v2820
          %v2948 = vpop.xlane.xlu0 %2947
          %2949 = vadd.xlane.f32.xlu0 %v2822
          %v2950 = vpop.xlane.xlu0 %2949
          %2951 = vadd.xlane.f32.xlu0 %v2824
          %v2952 = vpop.xlane.xlu0 %2951
          %2953 = vadd.xlane.f32.xlu0 %v2826
          %v2954 = vpop.xlane.xlu0 %2953
          %2955 = vadd.xlane.f32.xlu0 %v2828
          %v2956 = vpop.xlane.xlu0 %2955
          %2957 = vadd.xlane.f32.xlu0 %v2830
          %v2958 = vpop.xlane.xlu0 %2957
          %2959 = vadd.xlane.f32.xlu0 %v2832
          %v2960 = vpop.xlane.xlu0 %2959
          %2961 = vadd.xlane.f32.xlu0 %v2834
          %v2962 = vpop.xlane.xlu0 %2961
          %2963 = vadd.xlane.f32.xlu0 %v2836
          %v2964 = vpop.xlane.xlu0 %2963
          %2965 = vadd.xlane.f32.xlu0 %v2838
          %v2966 = vpop.xlane.xlu0 %2965
          %2967 = vadd.xlane.f32.xlu0 %v2840
          %v2968 = vpop.xlane.xlu0 %2967
          %2969 = vadd.xlane.f32.xlu0 %v2842
          %v2970 = vpop.xlane.xlu0 %2969
          %v2971 = vadd.f32 %v2875, %v2908
          %v2972 = vadd.f32 %v2876, %v2910
          %v2973 = vadd.f32 %v2877, %v2912
          %v2974 = vadd.f32 %v2878, %v2914
          %v2975 = vadd.f32 %v2879, %v2916
          %v2976 = vadd.f32 %v2880, %v2918
          %v2977 = vadd.f32 %v2881, %v2920
          %v2978 = vadd.f32 %v2882, %v2922
          %v2979 = vadd.f32 %v2883, %v2924
          %v2980 = vadd.f32 %v2884, %v2926
          %v2981 = vadd.f32 %v2885, %v2928
          %v2982 = vadd.f32 %v2886, %v2930
          %v2983 = vadd.f32 %v2887, %v2932
          %v2984 = vadd.f32 %v2888, %v2934
          %v2985 = vadd.f32 %v2889, %v2936
          %v2986 = vadd.f32 %v2890, %v2938
          %v2987 = vadd.f32 %v2891, %v2940
          %v2988 = vadd.f32 %v2892, %v2942
          %v2989 = vadd.f32 %v2893, %v2944
          %v2990 = vadd.f32 %v2894, %v2946
          %v2991 = vadd.f32 %v2895, %v2948
          %v2992 = vadd.f32 %v2896, %v2950
          %v2993 = vadd.f32 %v2897, %v2952
          %v2994 = vadd.f32 %v2898, %v2954
          %v2995 = vadd.f32 %v2899, %v2956
          %v2996 = vadd.f32 %v2900, %v2958
          %v2997 = vadd.f32 %v2901, %v2960
          %v2998 = vadd.f32 %v2902, %v2962
          %v2999 = vadd.f32 %v2903, %v2964
          %v3000 = vadd.f32 %v2904, %v2966
          %v3001 = vadd.f32 %v2905, %v2968
          %v3002 = vadd.f32 %v2906, %v2970
          %3003 = vst.msk [vmem:[#allocation5] sm:$0xff] %vm2027, %v2971
          %3004 = vst.msk [vmem:[#allocation5 + $0x8] sm:$0xff] %vm2027, %v2972
          %3005 = vst.msk [vmem:[#allocation5 + $0x10] sm:$0xff] %vm2027, %v2973
          %3006 = vst.msk [vmem:[#allocation5 + $0x18] sm:$0xff] %vm2027, %v2974
          %3007 = vst.msk [vmem:[#allocation5 + $0x20] sm:$0xff] %vm2027, %v2975
          %3008 = vst.msk [vmem:[#allocation5 + $0x28] sm:$0xff] %vm2027, %v2976
          %3009 = vst.msk [vmem:[#allocation5 + $0x30] sm:$0xff] %vm2027, %v2977
          %3010 = vst.msk [vmem:[#allocation5 + $0x38] sm:$0xff] %vm2027, %v2978
          %3011 = vst.msk [vmem:[#allocation5 + $0x40] sm:$0xff] %vm2027, %v2979
          %3012 = vst.msk [vmem:[#allocation5 + $0x48] sm:$0xff] %vm2027, %v2980
          %3013 = vst.msk [vmem:[#allocation5 + $0x50] sm:$0xff] %vm2027, %v2981
          %3014 = vst.msk [vmem:[#allocation5 + $0x58] sm:$0xff] %vm2027, %v2982
          %3015 = vst.msk [vmem:[#allocation5 + $0x60] sm:$0xff] %vm2027, %v2983
          %3016 = vst.msk [vmem:[#allocation5 + $0x68] sm:$0xff] %vm2027, %v2984
          %3017 = vst.msk [vmem:[#allocation5 + $0x70] sm:$0xff] %vm2027, %v2985
          %3018 = vst.msk [vmem:[#allocation5 + $0x78] sm:$0xff] %vm2027, %v2986
          %3019 = vst.msk [vmem:[#allocation5 + $0x80] sm:$0xff] %vm2027, %v2987
          %3020 = vst.msk [vmem:[#allocation5 + $0x88] sm:$0xff] %vm2027, %v2988
          %3021 = vst.msk [vmem:[#allocation5 + $0x90] sm:$0xff] %vm2027, %v2989
          %3022 = vst.msk [vmem:[#allocation5 + $0x98] sm:$0xff] %vm2027, %v2990
          %3023 = vst.msk [vmem:[#allocation5 + $0xa0] sm:$0xff] %vm2027, %v2991
          %3024 = vst.msk [vmem:[#allocation5 + $0xa8] sm:$0xff] %vm2027, %v2992
          %3025 = vst.msk [vmem:[#allocation5 + $0xb0] sm:$0xff] %vm2027, %v2993
          %3026 = vst.msk [vmem:[#allocation5 + $0xb8] sm:$0xff] %vm2027, %v2994
          %3027 = vst.msk [vmem:[#allocation5 + $0xc0] sm:$0xff] %vm2027, %v2995
          %3028 = vst.msk [vmem:[#allocation5 + $0xc8] sm:$0xff] %vm2027, %v2996
          %3029 = vst.msk [vmem:[#allocation5 + $0xd0] sm:$0xff] %vm2027, %v2997
          %3030 = vst.msk [vmem:[#allocation5 + $0xd8] sm:$0xff] %vm2027, %v2998
          %3031 = vst.msk [vmem:[#allocation5 + $0xe0] sm:$0xff] %vm2027, %v2999
          %3032 = vst.msk [vmem:[#allocation5 + $0xe8] sm:$0xff] %vm2027, %v3000
          %3033 = vst.msk [vmem:[#allocation5 + $0xf0] sm:$0xff] %vm2027, %v3001
          %3034 = vst.msk [vmem:[#allocation5 + $0xf8] sm:$0xff] %vm2027, %v3002
          %v3035 = vld [vmem:[#allocation6] sm:$0xff]
          %v3036 = vld [vmem:[#allocation6 + $0x8] sm:$0xff]
          %v3037 = vld [vmem:[#allocation6 + $0x10] sm:$0xff]
          %v3038 = vld [vmem:[#allocation6 + $0x18] sm:$0xff]
          %v3039 = vld [vmem:[#allocation6 + $0x20] sm:$0xff]
          %v3040 = vld [vmem:[#allocation6 + $0x28] sm:$0xff]
          %v3041 = vld [vmem:[#allocation6 + $0x30] sm:$0xff]
          %v3042 = vld [vmem:[#allocation6 + $0x38] sm:$0xff]
          %v3043 = vld [vmem:[#allocation6 + $0x40] sm:$0xff]
          %v3044 = vld [vmem:[#allocation6 + $0x48] sm:$0xff]
          %v3045 = vld [vmem:[#allocation6 + $0x50] sm:$0xff]
          %v3046 = vld [vmem:[#allocation6 + $0x58] sm:$0xff]
          %v3047 = vld [vmem:[#allocation6 + $0x60] sm:$0xff]
          %v3048 = vld [vmem:[#allocation6 + $0x68] sm:$0xff]
          %v3049 = vld [vmem:[#allocation6 + $0x70] sm:$0xff]
          %v3050 = vld [vmem:[#allocation6 + $0x78] sm:$0xff]
          %v3051 = vld [vmem:[#allocation6 + $0x80] sm:$0xff]
          %v3052 = vld [vmem:[#allocation6 + $0x88] sm:$0xff]
          %v3053 = vld [vmem:[#allocation6 + $0x90] sm:$0xff]
          %v3054 = vld [vmem:[#allocation6 + $0x98] sm:$0xff]
          %v3055 = vld [vmem:[#allocation6 + $0xa0] sm:$0xff]
          %v3056 = vld [vmem:[#allocation6 + $0xa8] sm:$0xff]
          %v3057 = vld [vmem:[#allocation6 + $0xb0] sm:$0xff]
          %v3058 = vld [vmem:[#allocation6 + $0xb8] sm:$0xff]
          %v3059 = vld [vmem:[#allocation6 + $0xc0] sm:$0xff]
          %v3060 = vld [vmem:[#allocation6 + $0xc8] sm:$0xff]
          %v3061 = vld [vmem:[#allocation6 + $0xd0] sm:$0xff]
          %v3062 = vld [vmem:[#allocation6 + $0xd8] sm:$0xff]
          %v3063 = vld [vmem:[#allocation6 + $0xe0] sm:$0xff]
          %v3064 = vld [vmem:[#allocation6 + $0xe8] sm:$0xff]
          %v3065 = vld [vmem:[#allocation6 + $0xf0] sm:$0xff]
          %v3066 = vld [vmem:[#allocation6 + $0xf8] sm:$0xff]
          %3068 = vset.pattern.permute.xlu0 0
          %3069 = vperm.xlu0 %3068, %v2524
          %v3070 = vpop.permute.xlu0 %3069
          %3073 = vset.pattern.permute.xlu0 0
          %3074 = vperm.xlu0 %3073, %v2526
          %v3075 = vpop.permute.xlu0 %3074
          %3078 = vset.pattern.permute.xlu0 0
          %3079 = vperm.xlu0 %3078, %v2528
          %v3080 = vpop.permute.xlu0 %3079
          %3083 = vset.pattern.permute.xlu0 0
          %3084 = vperm.xlu0 %3083, %v2530
          %v3085 = vpop.permute.xlu0 %3084
          %3088 = vset.pattern.permute.xlu0 0
          %3089 = vperm.xlu0 %3088, %v2532
          %v3090 = vpop.permute.xlu0 %3089
          %3093 = vset.pattern.permute.xlu0 0
          %3094 = vperm.xlu0 %3093, %v2534
          %v3095 = vpop.permute.xlu0 %3094
          %3098 = vset.pattern.permute.xlu0 0
          %3099 = vperm.xlu0 %3098, %v2536
          %v3100 = vpop.permute.xlu0 %3099
          %3103 = vset.pattern.permute.xlu0 0
          %3104 = vperm.xlu0 %3103, %v2538
          %v3105 = vpop.permute.xlu0 %3104
          %3108 = vset.pattern.permute.xlu0 0
          %3109 = vperm.xlu0 %3108, %v2540
          %v3110 = vpop.permute.xlu0 %3109
          %3113 = vset.pattern.permute.xlu0 0
          %3114 = vperm.xlu0 %3113, %v2542
          %v3115 = vpop.permute.xlu0 %3114
          %3118 = vset.pattern.permute.xlu0 0
          %3119 = vperm.xlu0 %3118, %v2544
          %v3120 = vpop.permute.xlu0 %3119
          %3123 = vset.pattern.permute.xlu0 0
          %3124 = vperm.xlu0 %3123, %v2546
          %v3125 = vpop.permute.xlu0 %3124
          %3128 = vset.pattern.permute.xlu0 0
          %3129 = vperm.xlu0 %3128, %v2548
          %v3130 = vpop.permute.xlu0 %3129
          %3133 = vset.pattern.permute.xlu0 0
          %3134 = vperm.xlu0 %3133, %v2550
          %v3135 = vpop.permute.xlu0 %3134
          %3138 = vset.pattern.permute.xlu0 0
          %3139 = vperm.xlu0 %3138, %v2552
          %v3140 = vpop.permute.xlu0 %3139
          %3143 = vset.pattern.permute.xlu0 0
          %3144 = vperm.xlu0 %3143, %v2554
          %v3145 = vpop.permute.xlu0 %3144
          %3148 = vset.pattern.permute.xlu0 0
          %3149 = vperm.xlu0 %3148, %v2556
          %v3150 = vpop.permute.xlu0 %3149
          %3153 = vset.pattern.permute.xlu0 0
          %3154 = vperm.xlu0 %3153, %v2558
          %v3155 = vpop.permute.xlu0 %3154
          %3158 = vset.pattern.permute.xlu0 0
          %3159 = vperm.xlu0 %3158, %v2560
          %v3160 = vpop.permute.xlu0 %3159
          %3163 = vset.pattern.permute.xlu0 0
          %3164 = vperm.xlu0 %3163, %v2562
          %v3165 = vpop.permute.xlu0 %3164
          %3168 = vset.pattern.permute.xlu0 0
          %3169 = vperm.xlu0 %3168, %v2564
          %v3170 = vpop.permute.xlu0 %3169
          %3173 = vset.pattern.permute.xlu0 0
          %3174 = vperm.xlu0 %3173, %v2566
          %v3175 = vpop.permute.xlu0 %3174
          %3178 = vset.pattern.permute.xlu0 0
          %3179 = vperm.xlu0 %3178, %v2568
          %v3180 = vpop.permute.xlu0 %3179
          %3183 = vset.pattern.permute.xlu0 0
          %3184 = vperm.xlu0 %3183, %v2570
          %v3185 = vpop.permute.xlu0 %3184
          %3188 = vset.pattern.permute.xlu0 0
          %3189 = vperm.xlu0 %3188, %v2572
          %v3190 = vpop.permute.xlu0 %3189
          %3193 = vset.pattern.permute.xlu0 0
          %3194 = vperm.xlu0 %3193, %v2574
          %v3195 = vpop.permute.xlu0 %3194
          %3198 = vset.pattern.permute.xlu0 0
          %3199 = vperm.xlu0 %3198, %v2576
          %v3200 = vpop.permute.xlu0 %3199
          %3203 = vset.pattern.permute.xlu0 0
          %3204 = vperm.xlu0 %3203, %v2578
          %v3205 = vpop.permute.xlu0 %3204
          %3208 = vset.pattern.permute.xlu0 0
          %3209 = vperm.xlu0 %3208, %v2580
          %v3210 = vpop.permute.xlu0 %3209
          %3213 = vset.pattern.permute.xlu0 0
          %3214 = vperm.xlu0 %3213, %v2582
          %v3215 = vpop.permute.xlu0 %3214
          %3218 = vset.pattern.permute.xlu0 0
          %3219 = vperm.xlu0 %3218, %v2584
          %v3220 = vpop.permute.xlu0 %3219
          %3223 = vset.pattern.permute.xlu0 0
          %3224 = vperm.xlu0 %3223, %v2586
          %v3225 = vpop.permute.xlu0 %3224
          %v3227 = vmul.f32 %v3070, %v3035
          %v3228 = vmul.f32 %v3075, %v3036
          %v3229 = vmul.f32 %v3080, %v3037
          %v3230 = vmul.f32 %v3085, %v3038
          %v3231 = vmul.f32 %v3090, %v3039
          %v3232 = vmul.f32 %v3095, %v3040
          %v3233 = vmul.f32 %v3100, %v3041
          %v3234 = vmul.f32 %v3105, %v3042
          %v3235 = vmul.f32 %v3110, %v3043
          %v3236 = vmul.f32 %v3115, %v3044
          %v3237 = vmul.f32 %v3120, %v3045
          %v3238 = vmul.f32 %v3125, %v3046
          %v3239 = vmul.f32 %v3130, %v3047
          %v3240 = vmul.f32 %v3135, %v3048
          %v3241 = vmul.f32 %v3140, %v3049
          %v3242 = vmul.f32 %v3145, %v3050
          %v3243 = vmul.f32 %v3150, %v3051
          %v3244 = vmul.f32 %v3155, %v3052
          %v3245 = vmul.f32 %v3160, %v3053
          %v3246 = vmul.f32 %v3165, %v3054
          %v3247 = vmul.f32 %v3170, %v3055
          %v3248 = vmul.f32 %v3175, %v3056
          %v3249 = vmul.f32 %v3180, %v3057
          %v3250 = vmul.f32 %v3185, %v3058
          %v3251 = vmul.f32 %v3190, %v3059
          %v3252 = vmul.f32 %v3195, %v3060
          %v3253 = vmul.f32 %v3200, %v3061
          %v3254 = vmul.f32 %v3205, %v3062
          %v3255 = vmul.f32 %v3210, %v3063
          %v3256 = vmul.f32 %v3215, %v3064
          %v3257 = vmul.f32 %v3220, %v3065
          %v3258 = vmul.f32 %v3225, %v3066
          %v3259 = vpack.c.bf16 %v2782, %v2780
          %v3260 = vpack.c.bf16 %v2786, %v2784
          %v3261 = vpack.c.bf16 %v2790, %v2788
          %v3262 = vpack.c.bf16 %v2794, %v2792
          %v3263 = vpack.c.bf16 %v2798, %v2796
          %v3264 = vpack.c.bf16 %v2802, %v2800
          %v3265 = vpack.c.bf16 %v2806, %v2804
          %v3266 = vpack.c.bf16 %v2810, %v2808
          %v3267 = vpack.c.bf16 %v2814, %v2812
          %v3268 = vpack.c.bf16 %v2818, %v2816
          %v3269 = vpack.c.bf16 %v2822, %v2820
          %v3270 = vpack.c.bf16 %v2826, %v2824
          %v3271 = vpack.c.bf16 %v2830, %v2828
          %v3272 = vpack.c.bf16 %v2834, %v2832
          %v3273 = vpack.c.bf16 %v2838, %v2836
          %v3274 = vpack.c.bf16 %v2842, %v2840
          %3275 = vmatprep.subr.bf16.mxu0 0
          %3276 = vmatpush1.bf16.msra.mxu0 %v2153
          %3277 = vmatprep.subr.bf16.mxu0 0
          %3278 = vmatpush1.bf16.msra.mxu0 %v2154
          %3279 = vmatprep.subr.bf16.mxu0 0
          %3280 = vmatpush1.bf16.msra.mxu0 %v2155
          %3281 = vmatprep.subr.bf16.mxu0 0
          %3282 = vmatpush1.bf16.msra.mxu0 %v2156
          %3283 = vmatprep.subr.bf16.mxu0 0
          %3284 = vmatpush1.bf16.msra.mxu0 %v2157
          %3285 = vmatprep.subr.bf16.mxu0 0
          %3286 = vmatpush1.bf16.msra.mxu0 %v2158
          %3287 = vmatprep.subr.bf16.mxu0 0
          %3288 = vmatpush1.bf16.msra.mxu0 %v2159
          %3289 = vmatprep.subr.bf16.mxu0 0
          %3290 = vmatpush1.bf16.msra.mxu0 %v2160
          %3291 = vmatprep.subr.bf16.mxu0 0
          %3292 = vmatpush1.bf16.msra.mxu0 0
          %3293 = vmatprep.subr.bf16.mxu0 0
          %3294 = vmatpush1.bf16.msra.mxu0 0
          %3295 = vmatprep.subr.bf16.mxu0 0
          %3296 = vmatpush1.bf16.msra.mxu0 0
          %3297 = vmatprep.subr.bf16.mxu0 0
          %3298 = vmatpush1.bf16.msra.mxu0 0
          %3299 = vmatprep.subr.bf16.mxu0 0
          %3300 = vmatpush1.bf16.msra.mxu0 0
          %3301 = vmatprep.subr.bf16.mxu0 0
          %3302 = vmatpush1.bf16.msra.mxu0 0
          %3303 = vmatprep.subr.bf16.mxu0 0
          %3304 = vmatpush1.bf16.msra.mxu0 0
          %3305 = vmatprep.subr.bf16.mxu0 0
          %3306 = vmatpush1.bf16.msra.mxu0 0
          %3307 = vmatprep.mubr.bf16.mxu0 0
          %3308 = vmatmul.mubr.bf16.gmra.mrb[0].mxu0 %v3259
          %v3309 = vpop.f32.mrb[0].mxu0
          %v3310 = vadd.f32 0.0, %v3309
          %v3311 = vpop.f32.mrb[0].mxu0
          %v3312 = vpop.f32.mrb[0].mxu0
          %v3313 = vadd.f32 0.0, %v3312
          %v3314 = vpop.f32.mrb[0].mxu0
          %3315 = vmatprep.mubr.bf16.mxu0 0
          %3316 = vmatmul.mubr.bf16.gmra.mrb[0].mxu0 %v3260
          %v3317 = vpop.f32.mrb[0].mxu0
          %v3318 = vadd.f32 0.0, %v3317
          %v3319 = vpop.f32.mrb[0].mxu0
          %v3320 = vpop.f32.mrb[0].mxu0
          %v3321 = vadd.f32 0.0, %v3320
          %v3322 = vpop.f32.mrb[0].mxu0
          %3323 = vmatprep.mubr.bf16.mxu0 0
          %3324 = vmatmul.mubr.bf16.gmra.mrb[0].mxu0 %v3261
          %v3325 = vpop.f32.mrb[0].mxu0
          %v3326 = vadd.f32 0.0, %v3325
          %v3327 = vpop.f32.mrb[0].mxu0
          %v3328 = vpop.f32.mrb[0].mxu0
          %v3329 = vadd.f32 0.0, %v3328
          %v3330 = vpop.f32.mrb[0].mxu0
          %3331 = vmatprep.mubr.bf16.mxu0 0
          %3332 = vmatmul.mubr.bf16.gmra.mrb[0].mxu0 %v3262
          %v3333 = vpop.f32.mrb[0].mxu0
          %v3334 = vadd.f32 0.0, %v3333
          %v3335 = vpop.f32.mrb[0].mxu0
          %v3336 = vpop.f32.mrb[0].mxu0
          %v3337 = vadd.f32 0.0, %v3336
          %v3338 = vpop.f32.mrb[0].mxu0
          %3339 = vmatprep.mubr.bf16.mxu0 0
          %3340 = vmatmul.mubr.bf16.gmra.mrb[0].mxu0 %v3263
          %v3341 = vpop.f32.mrb[0].mxu0
          %v3342 = vadd.f32 0.0, %v3341
          %v3343 = vpop.f32.mrb[0].mxu0
          %v3344 = vpop.f32.mrb[0].mxu0
          %v3345 = vadd.f32 0.0, %v3344
          %v3346 = vpop.f32.mrb[0].mxu0
          %3347 = vmatprep.mubr.bf16.mxu0 0
          %3348 = vmatmul.mubr.bf16.gmra.mrb[0].mxu0 %v3264
          %v3349 = vpop.f32.mrb[0].mxu0
          %v3350 = vadd.f32 0.0, %v3349
          %v3351 = vpop.f32.mrb[0].mxu0
          %v3352 = vpop.f32.mrb[0].mxu0
          %v3353 = vadd.f32 0.0, %v3352
          %v3354 = vpop.f32.mrb[0].mxu0
          %3355 = vmatprep.mubr.bf16.mxu0 0
          %3356 = vmatmul.mubr.bf16.gmra.mrb[0].mxu0 %v3265
          %v3357 = vpop.f32.mrb[0].mxu0
          %v3358 = vadd.f32 0.0, %v3357
          %v3359 = vpop.f32.mrb[0].mxu0
          %v3360 = vpop.f32.mrb[0].mxu0
          %v3361 = vadd.f32 0.0, %v3360
          %v3362 = vpop.f32.mrb[0].mxu0
          %3363 = vmatprep.mubr.bf16.mxu0 0
          %3364 = vmatmul.mubr.bf16.gmra.mrb[0].mxu0 %v3266
          %v3365 = vpop.f32.mrb[0].mxu0
          %v3366 = vadd.f32 0.0, %v3365
          %v3367 = vpop.f32.mrb[0].mxu0
          %v3368 = vpop.f32.mrb[0].mxu0
          %v3369 = vadd.f32 0.0, %v3368
          %v3370 = vpop.f32.mrb[0].mxu0
          %3371 = vdwg.mxu0
          %3372 = vmatprep.subr.bf16.mxu0 0
          %3373 = vmatpush1.bf16.msra.mxu0 %v2161
          %3374 = vmatprep.subr.bf16.mxu0 0
          %3375 = vmatpush1.bf16.msra.mxu0 %v2162
          %3376 = vmatprep.subr.bf16.mxu0 0
          %3377 = vmatpush1.bf16.msra.mxu0 %v2163
          %3378 = vmatprep.subr.bf16.mxu0 0
          %3379 = vmatpush1.bf16.msra.mxu0 %v2164
          %3380 = vmatprep.subr.bf16.mxu0 0
          %3381 = vmatpush1.bf16.msra.mxu0 %v2165
          %3382 = vmatprep.subr.bf16.mxu0 0
          %3383 = vmatpush1.bf16.msra.mxu0 %v2166
          %3384 = vmatprep.subr.bf16.mxu0 0
          %3385 = vmatpush1.bf16.msra.mxu0 %v2167
          %3386 = vmatprep.subr.bf16.mxu0 0
          %3387 = vmatpush1.bf16.msra.mxu0 %v2168
          %3388 = vmatprep.subr.bf16.mxu0 0
          %3389 = vmatpush1.bf16.msra.mxu0 0
          %3390 = vmatprep.subr.bf16.mxu0 0
          %3391 = vmatpush1.bf16.msra.mxu0 0
          %3392 = vmatprep.subr.bf16.mxu0 0
          %3393 = vmatpush1.bf16.msra.mxu0 0
          %3394 = vmatprep.subr.bf16.mxu0 0
          %3395 = vmatpush1.bf16.msra.mxu0 0
          %3396 = vmatprep.subr.bf16.mxu0 0
          %3397 = vmatpush1.bf16.msra.mxu0 0
          %3398 = vmatprep.subr.bf16.mxu0 0
          %3399 = vmatpush1.bf16.msra.mxu0 0
          %3400 = vmatprep.subr.bf16.mxu0 0
          %3401 = vmatpush1.bf16.msra.mxu0 0
          %3402 = vmatprep.subr.bf16.mxu0 0
          %3403 = vmatpush1.bf16.msra.mxu0 0
          %3404 = vmatprep.mubr.bf16.mxu0 0
          %3405 = vmatmul.mubr.bf16.gmra.mrb[0].mxu0 %v3267
          %v3406 = vpop.f32.mrb[0].mxu0
          %v3407 = vadd.f32 0.0, %v3406
          %v3408 = vpop.f32.mrb[0].mxu0
          %v3409 = vpop.f32.mrb[0].mxu0
          %v3410 = vadd.f32 0.0, %v3409
          %v3411 = vpop.f32.mrb[0].mxu0
          %3412 = vmatprep.mubr.bf16.mxu0 0
          %3413 = vmatmul.mubr.bf16.gmra.mrb[0].mxu0 %v3268
          %v3414 = vpop.f32.mrb[0].mxu0
          %v3415 = vadd.f32 0.0, %v3414
          %v3416 = vpop.f32.mrb[0].mxu0
          %v3417 = vpop.f32.mrb[0].mxu0
          %v3418 = vadd.f32 0.0, %v3417
          %v3419 = vpop.f32.mrb[0].mxu0
          %3420 = vmatprep.mubr.bf16.mxu0 0
          %3421 = vmatmul.mubr.bf16.gmra.mrb[0].mxu0 %v3269
          %v3422 = vpop.f32.mrb[0].mxu0
          %v3423 = vadd.f32 0.0, %v3422
          %v3424 = vpop.f32.mrb[0].mxu0
          %v3425 = vpop.f32.mrb[0].mxu0
          %v3426 = vadd.f32 0.0, %v3425
          %v3427 = vpop.f32.mrb[0].mxu0
          %3428 = vmatprep.mubr.bf16.mxu0 0
          %3429 = vmatmul.mubr.bf16.gmra.mrb[0].mxu0 %v3270
          %v3430 = vpop.f32.mrb[0].mxu0
          %v3431 = vadd.f32 0.0, %v3430
          %v3432 = vpop.f32.mrb[0].mxu0
          %v3433 = vpop.f32.mrb[0].mxu0
          %v3434 = vadd.f32 0.0, %v3433
          %v3435 = vpop.f32.mrb[0].mxu0
          %3436 = vmatprep.mubr.bf16.mxu0 0
          %3437 = vmatmul.mubr.bf16.gmra.mrb[0].mxu0 %v3271
          %v3438 = vpop.f32.mrb[0].mxu0
          %v3439 = vadd.f32 0.0, %v3438
          %v3440 = vpop.f32.mrb[0].mxu0
          %v3441 = vpop.f32.mrb[0].mxu0
          %v3442 = vadd.f32 0.0, %v3441
          %v3443 = vpop.f32.mrb[0].mxu0
          %3444 = vmatprep.mubr.bf16.mxu0 0
          %3445 = vmatmul.mubr.bf16.gmra.mrb[0].mxu0 %v3272
          %v3446 = vpop.f32.mrb[0].mxu0
          %v3447 = vadd.f32 0.0, %v3446
          %v3448 = vpop.f32.mrb[0].mxu0
          %v3449 = vpop.f32.mrb[0].mxu0
          %v3450 = vadd.f32 0.0, %v3449
          %v3451 = vpop.f32.mrb[0].mxu0
          %3452 = vmatprep.mubr.bf16.mxu0 0
          %3453 = vmatmul.mubr.bf16.gmra.mrb[0].mxu0 %v3273
          %v3454 = vpop.f32.mrb[0].mxu0
          %v3455 = vadd.f32 0.0, %v3454
          %v3456 = vpop.f32.mrb[0].mxu0
          %v3457 = vpop.f32.mrb[0].mxu0
          %v3458 = vadd.f32 0.0, %v3457
          %v3459 = vpop.f32.mrb[0].mxu0
          %3460 = vmatprep.mubr.bf16.mxu0 0
          %3461 = vmatmul.mubr.bf16.gmra.mrb[0].mxu0 %v3274
          %v3462 = vpop.f32.mrb[0].mxu0
          %v3463 = vadd.f32 0.0, %v3462
          %v3464 = vpop.f32.mrb[0].mxu0
          %v3465 = vpop.f32.mrb[0].mxu0
          %v3466 = vadd.f32 0.0, %v3465
          %v3467 = vpop.f32.mrb[0].mxu0
          %3468 = vdwg.mxu0
          %v3469 = vadd.f32 %v3227, %v3310
          %v3470 = vadd.f32 %v3228, %v3313
          %v3471 = vadd.f32 %v3229, %v3318
          %v3472 = vadd.f32 %v3230, %v3321
          %v3473 = vadd.f32 %v3231, %v3326
          %v3474 = vadd.f32 %v3232, %v3329
          %v3475 = vadd.f32 %v3233, %v3334
          %v3476 = vadd.f32 %v3234, %v3337
          %v3477 = vadd.f32 %v3235, %v3342
          %v3478 = vadd.f32 %v3236, %v3345
          %v3479 = vadd.f32 %v3237, %v3350
          %v3480 = vadd.f32 %v3238, %v3353
          %v3481 = vadd.f32 %v3239, %v3358
          %v3482 = vadd.f32 %v3240, %v3361
          %v3483 = vadd.f32 %v3241, %v3366
          %v3484 = vadd.f32 %v3242, %v3369
          %v3485 = vadd.f32 %v3243, %v3407
          %v3486 = vadd.f32 %v3244, %v3410
          %v3487 = vadd.f32 %v3245, %v3415
          %v3488 = vadd.f32 %v3246, %v3418
          %v3489 = vadd.f32 %v3247, %v3423
          %v3490 = vadd.f32 %v3248, %v3426
          %v3491 = vadd.f32 %v3249, %v3431
          %v3492 = vadd.f32 %v3250, %v3434
          %v3493 = vadd.f32 %v3251, %v3439
          %v3494 = vadd.f32 %v3252, %v3442
          %v3495 = vadd.f32 %v3253, %v3447
          %v3496 = vadd.f32 %v3254, %v3450
          %v3497 = vadd.f32 %v3255, %v3455
          %v3498 = vadd.f32 %v3256, %v3458
          %v3499 = vadd.f32 %v3257, %v3463
          %v3500 = vadd.f32 %v3258, %v3466
          %3501 = vst [vmem:[#allocation6] sm:$0xff] %v3469
          %3502 = vst [vmem:[#allocation6 + $0x8] sm:$0xff] %v3470
          %3503 = vst [vmem:[#allocation6 + $0x10] sm:$0xff] %v3471
          %3504 = vst [vmem:[#allocation6 + $0x18] sm:$0xff] %v3472
          %3505 = vst [vmem:[#allocation6 + $0x20] sm:$0xff] %v3473
          %3506 = vst [vmem:[#allocation6 + $0x28] sm:$0xff] %v3474
          %3507 = vst [vmem:[#allocation6 + $0x30] sm:$0xff] %v3475
          %3508 = vst [vmem:[#allocation6 + $0x38] sm:$0xff] %v3476
          %3509 = vst [vmem:[#allocation6 + $0x40] sm:$0xff] %v3477
          %3510 = vst [vmem:[#allocation6 + $0x48] sm:$0xff] %v3478
          %3511 = vst [vmem:[#allocation6 + $0x50] sm:$0xff] %v3479
          %3512 = vst [vmem:[#allocation6 + $0x58] sm:$0xff] %v3480
          %3513 = vst [vmem:[#allocation6 + $0x60] sm:$0xff] %v3481
          %3514 = vst [vmem:[#allocation6 + $0x68] sm:$0xff] %v3482
          %3515 = vst [vmem:[#allocation6 + $0x70] sm:$0xff] %v3483
          %3516 = vst [vmem:[#allocation6 + $0x78] sm:$0xff] %v3484
          %3517 = vst [vmem:[#allocation6 + $0x80] sm:$0xff] %v3485
          %3518 = vst [vmem:[#allocation6 + $0x88] sm:$0xff] %v3486
          %3519 = vst [vmem:[#allocation6 + $0x90] sm:$0xff] %v3487
          %3520 = vst [vmem:[#allocation6 + $0x98] sm:$0xff] %v3488
          %3521 = vst [vmem:[#allocation6 + $0xa0] sm:$0xff] %v3489
          %3522 = vst [vmem:[#allocation6 + $0xa8] sm:$0xff] %v3490
          %3523 = vst [vmem:[#allocation6 + $0xb0] sm:$0xff] %v3491
          %3524 = vst [vmem:[#allocation6 + $0xb8] sm:$0xff] %v3492
          %3525 = vst [vmem:[#allocation6 + $0xc0] sm:$0xff] %v3493
          %3526 = vst [vmem:[#allocation6 + $0xc8] sm:$0xff] %v3494
          %3527 = vst [vmem:[#allocation6 + $0xd0] sm:$0xff] %v3495
          %3528 = vst [vmem:[#allocation6 + $0xd8] sm:$0xff] %v3496
          %3529 = vst [vmem:[#allocation6 + $0xe0] sm:$0xff] %v3497
          %3530 = vst [vmem:[#allocation6 + $0xe8] sm:$0xff] %v3498
          %3531 = vst [vmem:[#allocation6 + $0xf0] sm:$0xff] %v3499
          %3532 = vst [vmem:[#allocation6 + $0xf8] sm:$0xff] %v3500
          %3533 = vst.msk [vmem:[#allocation4] sm:$0xff] %vm2027, %v2459
          %3534 = vst.msk [vmem:[#allocation4 + $0x8] sm:$0xff] %vm2027, %v2460
          %3535 = vst.msk [vmem:[#allocation4 + $0x10] sm:$0xff] %vm2027, %v2461
          %3536 = vst.msk [vmem:[#allocation4 + $0x18] sm:$0xff] %vm2027, %v2462
          %3537 = vst.msk [vmem:[#allocation4 + $0x20] sm:$0xff] %vm2027, %v2463
          %3538 = vst.msk [vmem:[#allocation4 + $0x28] sm:$0xff] %vm2027, %v2464
          %3539 = vst.msk [vmem:[#allocation4 + $0x30] sm:$0xff] %vm2027, %v2465
          %3540 = vst.msk [vmem:[#allocation4 + $0x38] sm:$0xff] %vm2027, %v2466
          %3541 = vst.msk [vmem:[#allocation4 + $0x40] sm:$0xff] %vm2027, %v2467
          %3542 = vst.msk [vmem:[#allocation4 + $0x48] sm:$0xff] %vm2027, %v2468
          %3543 = vst.msk [vmem:[#allocation4 + $0x50] sm:$0xff] %vm2027, %v2469
          %3544 = vst.msk [vmem:[#allocation4 + $0x58] sm:$0xff] %vm2027, %v2470
          %3545 = vst.msk [vmem:[#allocation4 + $0x60] sm:$0xff] %vm2027, %v2471
          %3546 = vst.msk [vmem:[#allocation4 + $0x68] sm:$0xff] %vm2027, %v2472
          %3547 = vst.msk [vmem:[#allocation4 + $0x70] sm:$0xff] %vm2027, %v2473
          %3548 = vst.msk [vmem:[#allocation4 + $0x78] sm:$0xff] %vm2027, %v2474
          %3549 = vst.msk [vmem:[#allocation4 + $0x80] sm:$0xff] %vm2027, %v2475
          %3550 = vst.msk [vmem:[#allocation4 + $0x88] sm:$0xff] %vm2027, %v2476
          %3551 = vst.msk [vmem:[#allocation4 + $0x90] sm:$0xff] %vm2027, %v2477
          %3552 = vst.msk [vmem:[#allocation4 + $0x98] sm:$0xff] %vm2027, %v2478
          %3553 = vst.msk [vmem:[#allocation4 + $0xa0] sm:$0xff] %vm2027, %v2479
          %3554 = vst.msk [vmem:[#allocation4 + $0xa8] sm:$0xff] %vm2027, %v2480
          %3555 = vst.msk [vmem:[#allocation4 + $0xb0] sm:$0xff] %vm2027, %v2481
          %3556 = vst.msk [vmem:[#allocation4 + $0xb8] sm:$0xff] %vm2027, %v2482
          %3557 = vst.msk [vmem:[#allocation4 + $0xc0] sm:$0xff] %vm2027, %v2483
          %3558 = vst.msk [vmem:[#allocation4 + $0xc8] sm:$0xff] %vm2027, %v2484
          %3559 = vst.msk [vmem:[#allocation4 + $0xd0] sm:$0xff] %vm2027, %v2485
          %3560 = vst.msk [vmem:[#allocation4 + $0xd8] sm:$0xff] %vm2027, %v2486
          %3561 = vst.msk [vmem:[#allocation4 + $0xe0] sm:$0xff] %vm2027, %v2487
          %3562 = vst.msk [vmem:[#allocation4 + $0xe8] sm:$0xff] %vm2027, %v2488
          %3563 = vst.msk [vmem:[#allocation4 + $0xf0] sm:$0xff] %vm2027, %v2489
          %3564 = vst.msk [vmem:[#allocation4 + $0xf8] sm:$0xff] %vm2027, %v2490
        $region109: #{tpu_custom_call.1} parent=75 // loop_footer
          %s2127 = sadd.s32 %s2125, 1
        $region110: #{tpu_custom_call.1} parent=75 // loop_footer_branch
          %2124 = sbr.rel target = $region106
        $region111: #{tpu_custom_call.1} parent=75 // loop_exit
          _
        %v3565 = vlaneseq
        %v3566 = vshrl.u32 %v3565, 7
        %v3567 = vadd.s32 %v3566, 8
        %v3568 = vadd.s32 %v3566, 16
        %v3569 = vadd.s32 %v3566, 24
        %v3570 = vadd.s32 %v3566, 32
        %v3571 = vadd.s32 %v3566, 40
        %v3572 = vadd.s32 %v3566, 48
        %v3573 = vadd.s32 %v3566, 56
        %v3574 = vadd.s32 %v3566, 64
        %v3575 = vadd.s32 %v3566, 72
        %v3576 = vadd.s32 %v3566, 80
        %v3577 = vadd.s32 %v3566, 88
        %v3578 = vadd.s32 %v3566, 96
        %v3579 = vadd.s32 %v3566, 104
        %v3580 = vadd.s32 %v3566, 112
        %v3581 = vadd.s32 %v3566, 120
        %v3582 = vlaneseq
        %v3583 = vand.u32 %v3582, 127
        %vm3584 = vcmp.gt.s32.totalorder %v3583, %v3566
        %vm3585 = vcmp.gt.s32.totalorder %v3583, %v3567
        %vm3586 = vcmp.gt.s32.totalorder %v3583, %v3568
        %vm3587 = vcmp.gt.s32.totalorder %v3583, %v3569
        %vm3588 = vcmp.gt.s32.totalorder %v3583, %v3570
        %vm3589 = vcmp.gt.s32.totalorder %v3583, %v3571
        %vm3590 = vcmp.gt.s32.totalorder %v3583, %v3572
        %vm3591 = vcmp.gt.s32.totalorder %v3583, %v3573
        %vm3592 = vcmp.gt.s32.totalorder %v3583, %v3574
        %vm3593 = vcmp.gt.s32.totalorder %v3583, %v3575
        %vm3594 = vcmp.gt.s32.totalorder %v3583, %v3576
        %vm3595 = vcmp.gt.s32.totalorder %v3583, %v3577
        %vm3596 = vcmp.gt.s32.totalorder %v3583, %v3578
        %vm3597 = vcmp.gt.s32.totalorder %v3583, %v3579
        %vm3598 = vcmp.gt.s32.totalorder %v3583, %v3580
        %vm3599 = vcmp.gt.s32.totalorder %v3583, %v3581
        %v3600 = vld [vmem:[%s1610] sm:$0xff]
        %v3601 = vld [vmem:[%s1610 + $0x8] sm:$0xff]
        %v3602 = vld [vmem:[%s1610 + $0x10] sm:$0xff]
        %v3603 = vld [vmem:[%s1610 + $0x18] sm:$0xff]
        %v3604 = vld [vmem:[%s1610 + $0x20] sm:$0xff]
        %v3605 = vld [vmem:[%s1610 + $0x28] sm:$0xff]
        %v3606 = vld [vmem:[%s1610 + $0x30] sm:$0xff]
        %v3607 = vld [vmem:[%s1610 + $0x38] sm:$0xff]
        %v3608 = vld [vmem:[%s1610 + $0x80] sm:$0xff]
        %v3609 = vld [vmem:[%s1610 + $0x88] sm:$0xff]
        %v3610 = vld [vmem:[%s1610 + $0x90] sm:$0xff]
        %v3611 = vld [vmem:[%s1610 + $0x98] sm:$0xff]
        %v3612 = vld [vmem:[%s1610 + $0xa0] sm:$0xff]
        %v3613 = vld [vmem:[%s1610 + $0xa8] sm:$0xff]
        %v3614 = vld [vmem:[%s1610 + $0xb0] sm:$0xff]
        %v3615 = vld [vmem:[%s1610 + $0xb8] sm:$0xff]
        %v3616 = vld [vmem:[%s1628] sm:$0xff]
        %v3617 = vld [vmem:[%s1628 + $0x8] sm:$0xff]
        %v3618 = vld [vmem:[%s1628 + $0x10] sm:$0xff]
        %v3619 = vld [vmem:[%s1628 + $0x18] sm:$0xff]
        %v3620 = vld [vmem:[%s1628 + $0x20] sm:$0xff]
        %v3621 = vld [vmem:[%s1628 + $0x28] sm:$0xff]
        %v3622 = vld [vmem:[%s1628 + $0x30] sm:$0xff]
        %v3623 = vld [vmem:[%s1628 + $0x38] sm:$0xff]
        %v3624 = vld [vmem:[%s1628 + $0x80] sm:$0xff]
        %v3625 = vld [vmem:[%s1628 + $0x88] sm:$0xff]
        %v3626 = vld [vmem:[%s1628 + $0x90] sm:$0xff]
        %v3627 = vld [vmem:[%s1628 + $0x98] sm:$0xff]
        %v3628 = vld [vmem:[%s1628 + $0xa0] sm:$0xff]
        %v3629 = vld [vmem:[%s1628 + $0xa8] sm:$0xff]
        %v3630 = vld [vmem:[%s1628 + $0xb0] sm:$0xff]
        %v3631 = vld [vmem:[%s1628 + $0xb8] sm:$0xff]
        %3632 = vmatprep.subr.bf16.mxu0 0
        %3633 = vmatpush1.bf16.xpose.msra.mxu0 %v3600
        %3634 = vmatprep.subr.bf16.mxu0 0
        %3635 = vmatpush1.bf16.xpose.msra.mxu0 %v3601
        %3636 = vmatprep.subr.bf16.mxu0 0
        %3637 = vmatpush1.bf16.xpose.msra.mxu0 %v3602
        %3638 = vmatprep.subr.bf16.mxu0 0
        %3639 = vmatpush1.bf16.xpose.msra.mxu0 %v3603
        %3640 = vmatprep.subr.bf16.mxu0 0
        %3641 = vmatpush1.bf16.xpose.msra.mxu0 %v3604
        %3642 = vmatprep.subr.bf16.mxu0 0
        %3643 = vmatpush1.bf16.xpose.msra.mxu0 %v3605
        %3644 = vmatprep.subr.bf16.mxu0 0
        %3645 = vmatpush1.bf16.xpose.msra.mxu0 %v3606
        %3646 = vmatprep.subr.bf16.mxu0 0
        %3647 = vmatpush1.bf16.xpose.msra.mxu0 %v3607
        %3648 = vmatprep.subr.bf16.mxu0 0
        %3649 = vmatpush1.bf16.xpose.msra.mxu0 0
        %3650 = vmatprep.subr.bf16.mxu0 0
        %3651 = vmatpush1.bf16.xpose.msra.mxu0 0
        %3652 = vmatprep.subr.bf16.mxu0 0
        %3653 = vmatpush1.bf16.xpose.msra.mxu0 0
        %3654 = vmatprep.subr.bf16.mxu0 0
        %3655 = vmatpush1.bf16.xpose.msra.mxu0 0
        %3656 = vmatprep.subr.bf16.mxu0 0
        %3657 = vmatpush1.bf16.xpose.msra.mxu0 0
        %3658 = vmatprep.subr.bf16.mxu0 0
        %3659 = vmatpush1.bf16.xpose.msra.mxu0 0
        %3660 = vmatprep.subr.bf16.mxu0 0
        %3661 = vmatpush1.bf16.xpose.msra.mxu0 0
        %3662 = vmatprep.subr.bf16.mxu0 0
        %3663 = vmatpush1.bf16.xpose.msra.mxu0 0
        %3664 = vmatprep.mubr.bf16.mxu0 0
        %3665 = vmatmul.mubr.bf16.gmra.mrb[0].mxu0 %v2011
        %v3666 = vpop.f32.mrb[0].mxu0
        %v3667 = vadd.f32 0.0, %v3666
        %v3668 = vpop.f32.mrb[0].mxu0
        %v3669 = vpop.f32.mrb[0].mxu0
        %v3670 = vadd.f32 0.0, %v3669
        %v3671 = vpop.f32.mrb[0].mxu0
        %3672 = vmatprep.mubr.bf16.mxu0 0
        %3673 = vmatmul.mubr.bf16.gmra.mrb[0].mxu0 %v2012
        %v3674 = vpop.f32.mrb[0].mxu0
        %v3675 = vadd.f32 0.0, %v3674
        %v3676 = vpop.f32.mrb[0].mxu0
        %v3677 = vpop.f32.mrb[0].mxu0
        %v3678 = vadd.f32 0.0, %v3677
        %v3679 = vpop.f32.mrb[0].mxu0
        %3680 = vmatprep.mubr.bf16.mxu0 0
        %3681 = vmatmul.mubr.bf16.gmra.mrb[0].mxu0 %v2013
        %v3682 = vpop.f32.mrb[0].mxu0
        %v3683 = vadd.f32 0.0, %v3682
        %v3684 = vpop.f32.mrb[0].mxu0
        %v3685 = vpop.f32.mrb[0].mxu0
        %v3686 = vadd.f32 0.0, %v3685
        %v3687 = vpop.f32.mrb[0].mxu0
        %3688 = vmatprep.mubr.bf16.mxu0 0
        %3689 = vmatmul.mubr.bf16.gmra.mrb[0].mxu0 %v2014
        %v3690 = vpop.f32.mrb[0].mxu0
        %v3691 = vadd.f32 0.0, %v3690
        %v3692 = vpop.f32.mrb[0].mxu0
        %v3693 = vpop.f32.mrb[0].mxu0
        %v3694 = vadd.f32 0.0, %v3693
        %v3695 = vpop.f32.mrb[0].mxu0
        %3696 = vmatprep.mubr.bf16.mxu0 0
        %3697 = vmatmul.mubr.bf16.gmra.mrb[0].mxu0 %v2015
        %v3698 = vpop.f32.mrb[0].mxu0
        %v3699 = vadd.f32 0.0, %v3698
        %v3700 = vpop.f32.mrb[0].mxu0
        %v3701 = vpop.f32.mrb[0].mxu0
        %v3702 = vadd.f32 0.0, %v3701
        %v3703 = vpop.f32.mrb[0].mxu0
        %3704 = vmatprep.mubr.bf16.mxu0 0
        %3705 = vmatmul.mubr.bf16.gmra.mrb[0].mxu0 %v2016
        %v3706 = vpop.f32.mrb[0].mxu0
        %v3707 = vadd.f32 0.0, %v3706
        %v3708 = vpop.f32.mrb[0].mxu0
        %v3709 = vpop.f32.mrb[0].mxu0
        %v3710 = vadd.f32 0.0, %v3709
        %v3711 = vpop.f32.mrb[0].mxu0
        %3712 = vmatprep.mubr.bf16.mxu0 0
        %3713 = vmatmul.mubr.bf16.gmra.mrb[0].mxu0 %v2017
        %v3714 = vpop.f32.mrb[0].mxu0
        %v3715 = vadd.f32 0.0, %v3714
        %v3716 = vpop.f32.mrb[0].mxu0
        %v3717 = vpop.f32.mrb[0].mxu0
        %v3718 = vadd.f32 0.0, %v3717
        %v3719 = vpop.f32.mrb[0].mxu0
        %3720 = vmatprep.mubr.bf16.mxu0 0
        %3721 = vmatmul.mubr.bf16.gmra.mrb[0].mxu0 %v2018
        %v3722 = vpop.f32.mrb[0].mxu0
        %v3723 = vadd.f32 0.0, %v3722
        %v3724 = vpop.f32.mrb[0].mxu0
        %v3725 = vpop.f32.mrb[0].mxu0
        %v3726 = vadd.f32 0.0, %v3725
        %v3727 = vpop.f32.mrb[0].mxu0
        %3728 = vdwg.mxu0
        %3729 = vmatprep.subr.bf16.mxu0 0
        %3730 = vmatpush1.bf16.xpose.msra.mxu0 %v3608
        %3731 = vmatprep.subr.bf16.mxu0 0
        %3732 = vmatpush1.bf16.xpose.msra.mxu0 %v3609
        %3733 = vmatprep.subr.bf16.mxu0 0
        %3734 = vmatpush1.bf16.xpose.msra.mxu0 %v3610
        %3735 = vmatprep.subr.bf16.mxu0 0
        %3736 = vmatpush1.bf16.xpose.msra.mxu0 %v3611
        %3737 = vmatprep.subr.bf16.mxu0 0
        %3738 = vmatpush1.bf16.xpose.msra.mxu0 %v3612
        %3739 = vmatprep.subr.bf16.mxu0 0
        %3740 = vmatpush1.bf16.xpose.msra.mxu0 %v3613
        %3741 = vmatprep.subr.bf16.mxu0 0
        %3742 = vmatpush1.bf16.xpose.msra.mxu0 %v3614
        %3743 = vmatprep.subr.bf16.mxu0 0
        %3744 = vmatpush1.bf16.xpose.msra.mxu0 %v3615
        %3745 = vmatprep.subr.bf16.mxu0 0
        %3746 = vmatpush1.bf16.xpose.msra.mxu0 0
        %3747 = vmatprep.subr.bf16.mxu0 0
        %3748 = vmatpush1.bf16.xpose.msra.mxu0 0
        %3749 = vmatprep.subr.bf16.mxu0 0
        %3750 = vmatpush1.bf16.xpose.msra.mxu0 0
        %3751 = vmatprep.subr.bf16.mxu0 0
        %3752 = vmatpush1.bf16.xpose.msra.mxu0 0
        %3753 = vmatprep.subr.bf16.mxu0 0
        %3754 = vmatpush1.bf16.xpose.msra.mxu0 0
        %3755 = vmatprep.subr.bf16.mxu0 0
        %3756 = vmatpush1.bf16.xpose.msra.mxu0 0
        %3757 = vmatprep.subr.bf16.mxu0 0
        %3758 = vmatpush1.bf16.xpose.msra.mxu0 0
        %3759 = vmatprep.subr.bf16.mxu0 0
        %3760 = vmatpush1.bf16.xpose.msra.mxu0 0
        %3761 = vmatprep.mubr.bf16.mxu0 0
        %3762 = vmatmul.mubr.bf16.gmra.mrb[0].mxu0 %v2019
        %v3763 = vpop.f32.mrb[0].mxu0
        %v3764 = vadd.f32 0.0, %v3763
        %v3765 = vpop.f32.mrb[0].mxu0
        %v3766 = vpop.f32.mrb[0].mxu0
        %v3767 = vadd.f32 0.0, %v3766
        %v3768 = vpop.f32.mrb[0].mxu0
        %3769 = vmatprep.mubr.bf16.mxu0 0
        %3770 = vmatmul.mubr.bf16.gmra.mrb[0].mxu0 %v2020
        %v3771 = vpop.f32.mrb[0].mxu0
        %v3772 = vadd.f32 0.0, %v3771
        %v3773 = vpop.f32.mrb[0].mxu0
        %v3774 = vpop.f32.mrb[0].mxu0
        %v3775 = vadd.f32 0.0, %v3774
        %v3776 = vpop.f32.mrb[0].mxu0
        %3777 = vmatprep.mubr.bf16.mxu0 0
        %3778 = vmatmul.mubr.bf16.gmra.mrb[0].mxu0 %v2021
        %v3779 = vpop.f32.mrb[0].mxu0
        %v3780 = vadd.f32 0.0, %v3779
        %v3781 = vpop.f32.mrb[0].mxu0
        %v3782 = vpop.f32.mrb[0].mxu0
        %v3783 = vadd.f32 0.0, %v3782
        %v3784 = vpop.f32.mrb[0].mxu0
        %3785 = vmatprep.mubr.bf16.mxu0 0
        %3786 = vmatmul.mubr.bf16.gmra.mrb[0].mxu0 %v2022
        %v3787 = vpop.f32.mrb[0].mxu0
        %v3788 = vadd.f32 0.0, %v3787
        %v3789 = vpop.f32.mrb[0].mxu0
        %v3790 = vpop.f32.mrb[0].mxu0
        %v3791 = vadd.f32 0.0, %v3790
        %v3792 = vpop.f32.mrb[0].mxu0
        %3793 = vmatprep.mubr.bf16.mxu0 0
        %3794 = vmatmul.mubr.bf16.gmra.mrb[0].mxu0 %v2023
        %v3795 = vpop.f32.mrb[0].mxu0
        %v3796 = vadd.f32 0.0, %v3795
        %v3797 = vpop.f32.mrb[0].mxu0
        %v3798 = vpop.f32.mrb[0].mxu0
        %v3799 = vadd.f32 0.0, %v3798
        %v3800 = vpop.f32.mrb[0].mxu0
        %3801 = vmatprep.mubr.bf16.mxu0 0
        %3802 = vmatmul.mubr.bf16.gmra.mrb[0].mxu0 %v2024
        %v3803 = vpop.f32.mrb[0].mxu0
        %v3804 = vadd.f32 0.0, %v3803
        %v3805 = vpop.f32.mrb[0].mxu0
        %v3806 = vpop.f32.mrb[0].mxu0
        %v3807 = vadd.f32 0.0, %v3806
        %v3808 = vpop.f32.mrb[0].mxu0
        %3809 = vmatprep.mubr.bf16.mxu0 0
        %3810 = vmatmul.mubr.bf16.gmra.mrb[0].mxu0 %v2025
        %v3811 = vpop.f32.mrb[0].mxu0
        %v3812 = vadd.f32 0.0, %v3811
        %v3813 = vpop.f32.mrb[0].mxu0
        %v3814 = vpop.f32.mrb[0].mxu0
        %v3815 = vadd.f32 0.0, %v3814
        %v3816 = vpop.f32.mrb[0].mxu0
        %3817 = vmatprep.mubr.bf16.mxu0 0
        %3818 = vmatmul.mubr.bf16.gmra.mrb[0].mxu0 %v2026
        %v3819 = vpop.f32.mrb[0].mxu0
        %v3820 = vadd.f32 0.0, %v3819
        %v3821 = vpop.f32.mrb[0].mxu0
        %v3822 = vpop.f32.mrb[0].mxu0
        %v3823 = vadd.f32 0.0, %v3822
        %v3824 = vpop.f32.mrb[0].mxu0
        %3825 = vdwg.mxu0
        %v3826 = vsel %vm3584, 1, 0
        %v3827 = vsel %vm3585, 1, 0
        %v3828 = vsel %vm3586, 1, 0
        %v3829 = vsel %vm3587, 1, 0
        %v3830 = vsel %vm3588, 1, 0
        %v3831 = vsel %vm3589, 1, 0
        %v3832 = vsel %vm3590, 1, 0
        %v3833 = vsel %vm3591, 1, 0
        %v3834 = vsel %vm3592, 1, 0
        %v3835 = vsel %vm3593, 1, 0
        %v3836 = vsel %vm3594, 1, 0
        %v3837 = vsel %vm3595, 1, 0
        %v3838 = vsel %vm3596, 1, 0
        %v3839 = vsel %vm3597, 1, 0
        %v3840 = vsel %vm3598, 1, 0
        %v3841 = vsel %vm3599, 1, 0
        %vm3842 = vcmp.eq.s32.totalorder %v3826, 1
        %vm3843 = vcmp.eq.s32.totalorder %v3827, 1
        %vm3844 = vcmp.eq.s32.totalorder %v3828, 1
        %vm3845 = vcmp.eq.s32.totalorder %v3829, 1
        %vm3846 = vcmp.eq.s32.totalorder %v3830, 1
        %vm3847 = vcmp.eq.s32.totalorder %v3831, 1
        %vm3848 = vcmp.eq.s32.totalorder %v3832, 1
        %vm3849 = vcmp.eq.s32.totalorder %v3833, 1
        %vm3850 = vcmp.eq.s32.totalorder %v3834, 1
        %vm3851 = vcmp.eq.s32.totalorder %v3835, 1
        %vm3852 = vcmp.eq.s32.totalorder %v3836, 1
        %vm3853 = vcmp.eq.s32.totalorder %v3837, 1
        %vm3854 = vcmp.eq.s32.totalorder %v3838, 1
        %vm3855 = vcmp.eq.s32.totalorder %v3839, 1
        %vm3856 = vcmp.eq.s32.totalorder %v3840, 1
        %vm3857 = vcmp.eq.s32.totalorder %v3841, 1
        %v3858 = vsel %vm3842, -1e+30, %v3667
        %v3859 = vsel %vm3843, -1e+30, %v3670
        %v3860 = vsel %vm3844, -1e+30, %v3675
        %v3861 = vsel %vm3845, -1e+30, %v3678
        %v3862 = vsel %vm3846, -1e+30, %v3683
        %v3863 = vsel %vm3847, -1e+30, %v3686
        %v3864 = vsel %vm3848, -1e+30, %v3691
        %v3865 = vsel %vm3849, -1e+30, %v3694
        %v3866 = vsel %vm3850, -1e+30, %v3699
        %v3867 = vsel %vm3851, -1e+30, %v3702
        %v3868 = vsel %vm3852, -1e+30, %v3707
        %v3869 = vsel %vm3853, -1e+30, %v3710
        %v3870 = vsel %vm3854, -1e+30, %v3715
        %v3871 = vsel %vm3855, -1e+30, %v3718
        %v3872 = vsel %vm3856, -1e+30, %v3723
        %v3873 = vsel %vm3857, -1e+30, %v3726
        %v3874 = vsel %vm3842, -1e+30, %v3764
        %v3875 = vsel %vm3843, -1e+30, %v3767
        %v3876 = vsel %vm3844, -1e+30, %v3772
        %v3877 = vsel %vm3845, -1e+30, %v3775
        %v3878 = vsel %vm3846, -1e+30, %v3780
        %v3879 = vsel %vm3847, -1e+30, %v3783
        %v3880 = vsel %vm3848, -1e+30, %v3788
        %v3881 = vsel %vm3849, -1e+30, %v3791
        %v3882 = vsel %vm3850, -1e+30, %v3796
        %v3883 = vsel %vm3851, -1e+30, %v3799
        %v3884 = vsel %vm3852, -1e+30, %v3804
        %v3885 = vsel %vm3853, -1e+30, %v3807
        %v3886 = vsel %vm3854, -1e+30, %v3812
        %v3887 = vsel %vm3855, -1e+30, %v3815
        %v3888 = vsel %vm3856, -1e+30, %v3820
        %v3889 = vsel %vm3857, -1e+30, %v3823
        %v3890 = vld [vmem:[#allocation4] sm:$0xff]
        %v3891 = vld [vmem:[#allocation4 + $0x8] sm:$0xff]
        %v3892 = vld [vmem:[#allocation4 + $0x10] sm:$0xff]
        %v3893 = vld [vmem:[#allocation4 + $0x18] sm:$0xff]
        %v3894 = vld [vmem:[#allocation4 + $0x20] sm:$0xff]
        %v3895 = vld [vmem:[#allocation4 + $0x28] sm:$0xff]
        %v3896 = vld [vmem:[#allocation4 + $0x30] sm:$0xff]
        %v3897 = vld [vmem:[#allocation4 + $0x38] sm:$0xff]
        %v3898 = vld [vmem:[#allocation4 + $0x40] sm:$0xff]
        %v3899 = vld [vmem:[#allocation4 + $0x48] sm:$0xff]
        %v3900 = vld [vmem:[#allocation4 + $0x50] sm:$0xff]
        %v3901 = vld [vmem:[#allocation4 + $0x58] sm:$0xff]
        %v3902 = vld [vmem:[#allocation4 + $0x60] sm:$0xff]
        %v3903 = vld [vmem:[#allocation4 + $0x68] sm:$0xff]
        %v3904 = vld [vmem:[#allocation4 + $0x70] sm:$0xff]
        %v3905 = vld [vmem:[#allocation4 + $0x78] sm:$0xff]
        %v3906 = vld [vmem:[#allocation4 + $0x80] sm:$0xff]
        %v3907 = vld [vmem:[#allocation4 + $0x88] sm:$0xff]
        %v3908 = vld [vmem:[#allocation4 + $0x90] sm:$0xff]
        %v3909 = vld [vmem:[#allocation4 + $0x98] sm:$0xff]
        %v3910 = vld [vmem:[#allocation4 + $0xa0] sm:$0xff]
        %v3911 = vld [vmem:[#allocation4 + $0xa8] sm:$0xff]
        %v3912 = vld [vmem:[#allocation4 + $0xb0] sm:$0xff]
        %v3913 = vld [vmem:[#allocation4 + $0xb8] sm:$0xff]
        %v3914 = vld [vmem:[#allocation4 + $0xc0] sm:$0xff]
        %v3915 = vld [vmem:[#allocation4 + $0xc8] sm:$0xff]
        %v3916 = vld [vmem:[#allocation4 + $0xd0] sm:$0xff]
        %v3917 = vld [vmem:[#allocation4 + $0xd8] sm:$0xff]
        %v3918 = vld [vmem:[#allocation4 + $0xe0] sm:$0xff]
        %v3919 = vld [vmem:[#allocation4 + $0xe8] sm:$0xff]
        %v3920 = vld [vmem:[#allocation4 + $0xf0] sm:$0xff]
        %v3921 = vld [vmem:[#allocation4 + $0xf8] sm:$0xff]
        %3922 = vmax.xlane.f32.xlu0 %v3858
        %v3923 = vpop.xlane.xlu0 %3922
        %3924 = vmax.xlane.f32.xlu0 %v3859
        %v3925 = vpop.xlane.xlu0 %3924
        %3926 = vmax.xlane.f32.xlu0 %v3860
        %v3927 = vpop.xlane.xlu0 %3926
        %3928 = vmax.xlane.f32.xlu0 %v3861
        %v3929 = vpop.xlane.xlu0 %3928
        %3930 = vmax.xlane.f32.xlu0 %v3862
        %v3931 = vpop.xlane.xlu0 %3930
        %3932 = vmax.xlane.f32.xlu0 %v3863
        %v3933 = vpop.xlane.xlu0 %3932
        %3934 = vmax.xlane.f32.xlu0 %v3864
        %v3935 = vpop.xlane.xlu0 %3934
        %3936 = vmax.xlane.f32.xlu0 %v3865
        %v3937 = vpop.xlane.xlu0 %3936
        %3938 = vmax.xlane.f32.xlu0 %v3866
        %v3939 = vpop.xlane.xlu0 %3938
        %3940 = vmax.xlane.f32.xlu0 %v3867
        %v3941 = vpop.xlane.xlu0 %3940
        %3942 = vmax.xlane.f32.xlu0 %v3868
        %v3943 = vpop.xlane.xlu0 %3942
        %3944 = vmax.xlane.f32.xlu0 %v3869
        %v3945 = vpop.xlane.xlu0 %3944
        %3946 = vmax.xlane.f32.xlu0 %v3870
        %v3947 = vpop.xlane.xlu0 %3946
        %3948 = vmax.xlane.f32.xlu0 %v3871
        %v3949 = vpop.xlane.xlu0 %3948
        %3950 = vmax.xlane.f32.xlu0 %v3872
        %v3951 = vpop.xlane.xlu0 %3950
        %3952 = vmax.xlane.f32.xlu0 %v3873
        %v3953 = vpop.xlane.xlu0 %3952
        %3954 = vmax.xlane.f32.xlu0 %v3874
        %v3955 = vpop.xlane.xlu0 %3954
        %3956 = vmax.xlane.f32.xlu0 %v3875
        %v3957 = vpop.xlane.xlu0 %3956
        %3958 = vmax.xlane.f32.xlu0 %v3876
        %v3959 = vpop.xlane.xlu0 %3958
        %3960 = vmax.xlane.f32.xlu0 %v3877
        %v3961 = vpop.xlane.xlu0 %3960
        %3962 = vmax.xlane.f32.xlu0 %v3878
        %v3963 = vpop.xlane.xlu0 %3962
        %3964 = vmax.xlane.f32.xlu0 %v3879
        %v3965 = vpop.xlane.xlu0 %3964
        %3966 = vmax.xlane.f32.xlu0 %v3880
        %v3967 = vpop.xlane.xlu0 %3966
        %3968 = vmax.xlane.f32.xlu0 %v3881
        %v3969 = vpop.xlane.xlu0 %3968
        %3970 = vmax.xlane.f32.xlu0 %v3882
        %v3971 = vpop.xlane.xlu0 %3970
        %3972 = vmax.xlane.f32.xlu0 %v3883
        %v3973 = vpop.xlane.xlu0 %3972
        %3974 = vmax.xlane.f32.xlu0 %v3884
        %v3975 = vpop.xlane.xlu0 %3974
        %3976 = vmax.xlane.f32.xlu0 %v3885
        %v3977 = vpop.xlane.xlu0 %3976
        %3978 = vmax.xlane.f32.xlu0 %v3886
        %v3979 = vpop.xlane.xlu0 %3978
        %3980 = vmax.xlane.f32.xlu0 %v3887
        %v3981 = vpop.xlane.xlu0 %3980
        %3982 = vmax.xlane.f32.xlu0 %v3888
        %v3983 = vpop.xlane.xlu0 %3982
        %3984 = vmax.xlane.f32.xlu0 %v3889
        %v3985 = vpop.xlane.xlu0 %3984
        %v3986 = vmax.f32 %v3890, %v3923
        %v3987 = vmax.f32 %v3891, %v3925
        %v3988 = vmax.f32 %v3892, %v3927
        %v3989 = vmax.f32 %v3893, %v3929
        %v3990 = vmax.f32 %v3894, %v3931
        %v3991 = vmax.f32 %v3895, %v3933
        %v3992 = vmax.f32 %v3896, %v3935
        %v3993 = vmax.f32 %v3897, %v3937
        %v3994 = vmax.f32 %v3898, %v3939
        %v3995 = vmax.f32 %v3899, %v3941
        %v3996 = vmax.f32 %v3900, %v3943
        %v3997 = vmax.f32 %v3901, %v3945
        %v3998 = vmax.f32 %v3902, %v3947
        %v3999 = vmax.f32 %v3903, %v3949
        %v4000 = vmax.f32 %v3904, %v3951
        %v4001 = vmax.f32 %v3905, %v3953
        %v4002 = vmax.f32 %v3906, %v3955
        %v4003 = vmax.f32 %v3907, %v3957
        %v4004 = vmax.f32 %v3908, %v3959
        %v4005 = vmax.f32 %v3909, %v3961
        %v4006 = vmax.f32 %v3910, %v3963
        %v4007 = vmax.f32 %v3911, %v3965
        %v4008 = vmax.f32 %v3912, %v3967
        %v4009 = vmax.f32 %v3913, %v3969
        %v4010 = vmax.f32 %v3914, %v3971
        %v4011 = vmax.f32 %v3915, %v3973
        %v4012 = vmax.f32 %v3916, %v3975
        %v4013 = vmax.f32 %v3917, %v3977
        %v4014 = vmax.f32 %v3918, %v3979
        %v4015 = vmax.f32 %v3919, %v3981
        %v4016 = vmax.f32 %v3920, %v3983
        %v4017 = vmax.f32 %v3921, %v3985
        %v4018 = vsub.f32 %v3890, %v3986
        %v4019 = vsub.f32 %v3891, %v3987
        %v4020 = vsub.f32 %v3892, %v3988
        %v4021 = vsub.f32 %v3893, %v3989
        %v4022 = vsub.f32 %v3894, %v3990
        %v4023 = vsub.f32 %v3895, %v3991
        %v4024 = vsub.f32 %v3896, %v3992
        %v4025 = vsub.f32 %v3897, %v3993
        %v4026 = vsub.f32 %v3898, %v3994
        %v4027 = vsub.f32 %v3899, %v3995
        %v4028 = vsub.f32 %v3900, %v3996
        %v4029 = vsub.f32 %v3901, %v3997
        %v4030 = vsub.f32 %v3902, %v3998
        %v4031 = vsub.f32 %v3903, %v3999
        %v4032 = vsub.f32 %v3904, %v4000
        %v4033 = vsub.f32 %v3905, %v4001
        %v4034 = vsub.f32 %v3906, %v4002
        %v4035 = vsub.f32 %v3907, %v4003
        %v4036 = vsub.f32 %v3908, %v4004
        %v4037 = vsub.f32 %v3909, %v4005
        %v4038 = vsub.f32 %v3910, %v4006
        %v4039 = vsub.f32 %v3911, %v4007
        %v4040 = vsub.f32 %v3912, %v4008
        %v4041 = vsub.f32 %v3913, %v4009
        %v4042 = vsub.f32 %v3914, %v4010
        %v4043 = vsub.f32 %v3915, %v4011
        %v4044 = vsub.f32 %v3916, %v4012
        %v4045 = vsub.f32 %v3917, %v4013
        %v4046 = vsub.f32 %v3918, %v4014
        %v4047 = vsub.f32 %v3919, %v4015
        %v4048 = vsub.f32 %v3920, %v4016
        %v4049 = vsub.f32 %v3921, %v4017
        %v4050 = vmul.f32 %v4018, 1.442695
        %v4051 = vpow.pop %v4050
        %v4052 = vmul.f32 %v4019, 1.442695
        %v4053 = vpow.pop %v4052
        %v4054 = vmul.f32 %v4020, 1.442695
        %v4055 = vpow.pop %v4054
        %v4056 = vmul.f32 %v4021, 1.442695
        %v4057 = vpow.pop %v4056
        %v4058 = vmul.f32 %v4022, 1.442695
        %v4059 = vpow.pop %v4058
        %v4060 = vmul.f32 %v4023, 1.442695
        %v4061 = vpow.pop %v4060
        %v4062 = vmul.f32 %v4024, 1.442695
        %v4063 = vpow.pop %v4062
        %v4064 = vmul.f32 %v4025, 1.442695
        %v4065 = vpow.pop %v4064
        %v4066 = vmul.f32 %v4026, 1.442695
        %v4067 = vpow.pop %v4066
        %v4068 = vmul.f32 %v4027, 1.442695
        %v4069 = vpow.pop %v4068
        %v4070 = vmul.f32 %v4028, 1.442695
        %v4071 = vpow.pop %v4070
        %v4072 = vmul.f32 %v4029, 1.442695
        %v4073 = vpow.pop %v4072
        %v4074 = vmul.f32 %v4030, 1.442695
        %v4075 = vpow.pop %v4074
        %v4076 = vmul.f32 %v4031, 1.442695
        %v4077 = vpow.pop %v4076
        %v4078 = vmul.f32 %v4032, 1.442695
        %v4079 = vpow.pop %v4078
        %v4080 = vmul.f32 %v4033, 1.442695
        %v4081 = vpow.pop %v4080
        %v4082 = vmul.f32 %v4034, 1.442695
        %v4083 = vpow.pop %v4082
        %v4084 = vmul.f32 %v4035, 1.442695
        %v4085 = vpow.pop %v4084
        %v4086 = vmul.f32 %v4036, 1.442695
        %v4087 = vpow.pop %v4086
        %v4088 = vmul.f32 %v4037, 1.442695
        %v4089 = vpow.pop %v4088
        %v4090 = vmul.f32 %v4038, 1.442695
        %v4091 = vpow.pop %v4090
        %v4092 = vmul.f32 %v4039, 1.442695
        %v4093 = vpow.pop %v4092
        %v4094 = vmul.f32 %v4040, 1.442695
        %v4095 = vpow.pop %v4094
        %v4096 = vmul.f32 %v4041, 1.442695
        %v4097 = vpow.pop %v4096
        %v4098 = vmul.f32 %v4042, 1.442695
        %v4099 = vpow.pop %v4098
        %v4100 = vmul.f32 %v4043, 1.442695
        %v4101 = vpow.pop %v4100
        %v4102 = vmul.f32 %v4044, 1.442695
        %v4103 = vpow.pop %v4102
        %v4104 = vmul.f32 %v4045, 1.442695
        %v4105 = vpow.pop %v4104
        %v4106 = vmul.f32 %v4046, 1.442695
        %v4107 = vpow.pop %v4106
        %v4108 = vmul.f32 %v4047, 1.442695
        %v4109 = vpow.pop %v4108
        %v4110 = vmul.f32 %v4048, 1.442695
        %v4111 = vpow.pop %v4110
        %v4112 = vmul.f32 %v4049, 1.442695
        %v4113 = vpow.pop %v4112
        %4115 = vset.pattern.permute.xlu0 0
        %4116 = vperm.xlu0 %4115, %v3986
        %v4117 = vpop.permute.xlu0 %4116
        %4120 = vset.pattern.permute.xlu0 0
        %4121 = vperm.xlu0 %4120, %v3987
        %v4122 = vpop.permute.xlu0 %4121
        %4125 = vset.pattern.permute.xlu0 0
        %4126 = vperm.xlu0 %4125, %v3988
        %v4127 = vpop.permute.xlu0 %4126
        %4130 = vset.pattern.permute.xlu0 0
        %4131 = vperm.xlu0 %4130, %v3989
        %v4132 = vpop.permute.xlu0 %4131
        %4135 = vset.pattern.permute.xlu0 0
        %4136 = vperm.xlu0 %4135, %v3990
        %v4137 = vpop.permute.xlu0 %4136
        %4140 = vset.pattern.permute.xlu0 0
        %4141 = vperm.xlu0 %4140, %v3991
        %v4142 = vpop.permute.xlu0 %4141
        %4145 = vset.pattern.permute.xlu0 0
        %4146 = vperm.xlu0 %4145, %v3992
        %v4147 = vpop.permute.xlu0 %4146
        %4150 = vset.pattern.permute.xlu0 0
        %4151 = vperm.xlu0 %4150, %v3993
        %v4152 = vpop.permute.xlu0 %4151
        %4155 = vset.pattern.permute.xlu0 0
        %4156 = vperm.xlu0 %4155, %v3994
        %v4157 = vpop.permute.xlu0 %4156
        %4160 = vset.pattern.permute.xlu0 0
        %4161 = vperm.xlu0 %4160, %v3995
        %v4162 = vpop.permute.xlu0 %4161
        %4165 = vset.pattern.permute.xlu0 0
        %4166 = vperm.xlu0 %4165, %v3996
        %v4167 = vpop.permute.xlu0 %4166
        %4170 = vset.pattern.permute.xlu0 0
        %4171 = vperm.xlu0 %4170, %v3997
        %v4172 = vpop.permute.xlu0 %4171
        %4175 = vset.pattern.permute.xlu0 0
        %4176 = vperm.xlu0 %4175, %v3998
        %v4177 = vpop.permute.xlu0 %4176
        %4180 = vset.pattern.permute.xlu0 0
        %4181 = vperm.xlu0 %4180, %v3999
        %v4182 = vpop.permute.xlu0 %4181
        %4185 = vset.pattern.permute.xlu0 0
        %4186 = vperm.xlu0 %4185, %v4000
        %v4187 = vpop.permute.xlu0 %4186
        %4190 = vset.pattern.permute.xlu0 0
        %4191 = vperm.xlu0 %4190, %v4001
        %v4192 = vpop.permute.xlu0 %4191
        %4195 = vset.pattern.permute.xlu0 0
        %4196 = vperm.xlu0 %4195, %v4002
        %v4197 = vpop.permute.xlu0 %4196
        %4200 = vset.pattern.permute.xlu0 0
        %4201 = vperm.xlu0 %4200, %v4003
        %v4202 = vpop.permute.xlu0 %4201
        %4205 = vset.pattern.permute.xlu0 0
        %4206 = vperm.xlu0 %4205, %v4004
        %v4207 = vpop.permute.xlu0 %4206
        %4210 = vset.pattern.permute.xlu0 0
        %4211 = vperm.xlu0 %4210, %v4005
        %v4212 = vpop.permute.xlu0 %4211
        %4215 = vset.pattern.permute.xlu0 0
        %4216 = vperm.xlu0 %4215, %v4006
        %v4217 = vpop.permute.xlu0 %4216
        %4220 = vset.pattern.permute.xlu0 0
        %4221 = vperm.xlu0 %4220, %v4007
        %v4222 = vpop.permute.xlu0 %4221
        %4225 = vset.pattern.permute.xlu0 0
        %4226 = vperm.xlu0 %4225, %v4008
        %v4227 = vpop.permute.xlu0 %4226
        %4230 = vset.pattern.permute.xlu0 0
        %4231 = vperm.xlu0 %4230, %v4009
        %v4232 = vpop.permute.xlu0 %4231
        %4235 = vset.pattern.permute.xlu0 0
        %4236 = vperm.xlu0 %4235, %v4010
        %v4237 = vpop.permute.xlu0 %4236
        %4240 = vset.pattern.permute.xlu0 0
        %4241 = vperm.xlu0 %4240, %v4011
        %v4242 = vpop.permute.xlu0 %4241
        %4245 = vset.pattern.permute.xlu0 0
        %4246 = vperm.xlu0 %4245, %v4012
        %v4247 = vpop.permute.xlu0 %4246
        %4250 = vset.pattern.permute.xlu0 0
        %4251 = vperm.xlu0 %4250, %v4013
        %v4252 = vpop.permute.xlu0 %4251
        %4255 = vset.pattern.permute.xlu0 0
        %4256 = vperm.xlu0 %4255, %v4014
        %v4257 = vpop.permute.xlu0 %4256
        %4260 = vset.pattern.permute.xlu0 0
        %4261 = vperm.xlu0 %4260, %v4015
        %v4262 = vpop.permute.xlu0 %4261
        %4265 = vset.pattern.permute.xlu0 0
        %4266 = vperm.xlu0 %4265, %v4016
        %v4267 = vpop.permute.xlu0 %4266
        %4270 = vset.pattern.permute.xlu0 0
        %4271 = vperm.xlu0 %4270, %v4017
        %v4272 = vpop.permute.xlu0 %4271
        %v4274 = vsub.f32 %v3858, %v4117
        %v4275 = vsub.f32 %v3859, %v4122
        %v4276 = vsub.f32 %v3860, %v4127
        %v4277 = vsub.f32 %v3861, %v4132
        %v4278 = vsub.f32 %v3862, %v4137
        %v4279 = vsub.f32 %v3863, %v4142
        %v4280 = vsub.f32 %v3864, %v4147
        %v4281 = vsub.f32 %v3865, %v4152
        %v4282 = vsub.f32 %v3866, %v4157
        %v4283 = vsub.f32 %v3867, %v4162
        %v4284 = vsub.f32 %v3868, %v4167
        %v4285 = vsub.f32 %v3869, %v4172
        %v4286 = vsub.f32 %v3870, %v4177
        %v4287 = vsub.f32 %v3871, %v4182
        %v4288 = vsub.f32 %v3872, %v4187
        %v4289 = vsub.f32 %v3873, %v4192
        %v4290 = vsub.f32 %v3874, %v4197
        %v4291 = vsub.f32 %v3875, %v4202
        %v4292 = vsub.f32 %v3876, %v4207
        %v4293 = vsub.f32 %v3877, %v4212
        %v4294 = vsub.f32 %v3878, %v4217
        %v4295 = vsub.f32 %v3879, %v4222
        %v4296 = vsub.f32 %v3880, %v4227
        %v4297 = vsub.f32 %v3881, %v4232
        %v4298 = vsub.f32 %v3882, %v4237
        %v4299 = vsub.f32 %v3883, %v4242
        %v4300 = vsub.f32 %v3884, %v4247
        %v4301 = vsub.f32 %v3885, %v4252
        %v4302 = vsub.f32 %v3886, %v4257
        %v4303 = vsub.f32 %v3887, %v4262
        %v4304 = vsub.f32 %v3888, %v4267
        %v4305 = vsub.f32 %v3889, %v4272
        %v4306 = vmul.f32 %v4274, 1.442695
        %v4307 = vpow.pop %v4306
        %v4308 = vmul.f32 %v4275, 1.442695
        %v4309 = vpow.pop %v4308
        %v4310 = vmul.f32 %v4276, 1.442695
        %v4311 = vpow.pop %v4310
        %v4312 = vmul.f32 %v4277, 1.442695
        %v4313 = vpow.pop %v4312
        %v4314 = vmul.f32 %v4278, 1.442695
        %v4315 = vpow.pop %v4314
        %v4316 = vmul.f32 %v4279, 1.442695
        %v4317 = vpow.pop %v4316
        %v4318 = vmul.f32 %v4280, 1.442695
        %v4319 = vpow.pop %v4318
        %v4320 = vmul.f32 %v4281, 1.442695
        %v4321 = vpow.pop %v4320
        %v4322 = vmul.f32 %v4282, 1.442695
        %v4323 = vpow.pop %v4322
        %v4324 = vmul.f32 %v4283, 1.442695
        %v4325 = vpow.pop %v4324
        %v4326 = vmul.f32 %v4284, 1.442695
        %v4327 = vpow.pop %v4326
        %v4328 = vmul.f32 %v4285, 1.442695
        %v4329 = vpow.pop %v4328
        %v4330 = vmul.f32 %v4286, 1.442695
        %v4331 = vpow.pop %v4330
        %v4332 = vmul.f32 %v4287, 1.442695
        %v4333 = vpow.pop %v4332
        %v4334 = vmul.f32 %v4288, 1.442695
        %v4335 = vpow.pop %v4334
        %v4336 = vmul.f32 %v4289, 1.442695
        %v4337 = vpow.pop %v4336
        %v4338 = vmul.f32 %v4290, 1.442695
        %v4339 = vpow.pop %v4338
        %v4340 = vmul.f32 %v4291, 1.442695
        %v4341 = vpow.pop %v4340
        %v4342 = vmul.f32 %v4292, 1.442695
        %v4343 = vpow.pop %v4342
        %v4344 = vmul.f32 %v4293, 1.442695
        %v4345 = vpow.pop %v4344
        %v4346 = vmul.f32 %v4294, 1.442695
        %v4347 = vpow.pop %v4346
        %v4348 = vmul.f32 %v4295, 1.442695
        %v4349 = vpow.pop %v4348
        %v4350 = vmul.f32 %v4296, 1.442695
        %v4351 = vpow.pop %v4350
        %v4352 = vmul.f32 %v4297, 1.442695
        %v4353 = vpow.pop %v4352
        %v4354 = vmul.f32 %v4298, 1.442695
        %v4355 = vpow.pop %v4354
        %v4356 = vmul.f32 %v4299, 1.442695
        %v4357 = vpow.pop %v4356
        %v4358 = vmul.f32 %v4300, 1.442695
        %v4359 = vpow.pop %v4358
        %v4360 = vmul.f32 %v4301, 1.442695
        %v4361 = vpow.pop %v4360
        %v4362 = vmul.f32 %v4302, 1.442695
        %v4363 = vpow.pop %v4362
        %v4364 = vmul.f32 %v4303, 1.442695
        %v4365 = vpow.pop %v4364
        %v4366 = vmul.f32 %v4304, 1.442695
        %v4367 = vpow.pop %v4366
        %v4368 = vmul.f32 %v4305, 1.442695
        %v4369 = vpow.pop %v4368
        %v4370 = vld [vmem:[#allocation5] sm:$0xff]
        %v4371 = vld [vmem:[#allocation5 + $0x8] sm:$0xff]
        %v4372 = vld [vmem:[#allocation5 + $0x10] sm:$0xff]
        %v4373 = vld [vmem:[#allocation5 + $0x18] sm:$0xff]
        %v4374 = vld [vmem:[#allocation5 + $0x20] sm:$0xff]
        %v4375 = vld [vmem:[#allocation5 + $0x28] sm:$0xff]
        %v4376 = vld [vmem:[#allocation5 + $0x30] sm:$0xff]
        %v4377 = vld [vmem:[#allocation5 + $0x38] sm:$0xff]
        %v4378 = vld [vmem:[#allocation5 + $0x40] sm:$0xff]
        %v4379 = vld [vmem:[#allocation5 + $0x48] sm:$0xff]
        %v4380 = vld [vmem:[#allocation5 + $0x50] sm:$0xff]
        %v4381 = vld [vmem:[#allocation5 + $0x58] sm:$0xff]
        %v4382 = vld [vmem:[#allocation5 + $0x60] sm:$0xff]
        %v4383 = vld [vmem:[#allocation5 + $0x68] sm:$0xff]
        %v4384 = vld [vmem:[#allocation5 + $0x70] sm:$0xff]
        %v4385 = vld [vmem:[#allocation5 + $0x78] sm:$0xff]
        %v4386 = vld [vmem:[#allocation5 + $0x80] sm:$0xff]
        %v4387 = vld [vmem:[#allocation5 + $0x88] sm:$0xff]
        %v4388 = vld [vmem:[#allocation5 + $0x90] sm:$0xff]
        %v4389 = vld [vmem:[#allocation5 + $0x98] sm:$0xff]
        %v4390 = vld [vmem:[#allocation5 + $0xa0] sm:$0xff]
        %v4391 = vld [vmem:[#allocation5 + $0xa8] sm:$0xff]
        %v4392 = vld [vmem:[#allocation5 + $0xb0] sm:$0xff]
        %v4393 = vld [vmem:[#allocation5 + $0xb8] sm:$0xff]
        %v4394 = vld [vmem:[#allocation5 + $0xc0] sm:$0xff]
        %v4395 = vld [vmem:[#allocation5 + $0xc8] sm:$0xff]
        %v4396 = vld [vmem:[#allocation5 + $0xd0] sm:$0xff]
        %v4397 = vld [vmem:[#allocation5 + $0xd8] sm:$0xff]
        %v4398 = vld [vmem:[#allocation5 + $0xe0] sm:$0xff]
        %v4399 = vld [vmem:[#allocation5 + $0xe8] sm:$0xff]
        %v4400 = vld [vmem:[#allocation5 + $0xf0] sm:$0xff]
        %v4401 = vld [vmem:[#allocation5 + $0xf8] sm:$0xff]
        %v4402 = vmul.f32 %v4051, %v4370
        %v4403 = vmul.f32 %v4053, %v4371
        %v4404 = vmul.f32 %v4055, %v4372
        %v4405 = vmul.f32 %v4057, %v4373
        %v4406 = vmul.f32 %v4059, %v4374
        %v4407 = vmul.f32 %v4061, %v4375
        %v4408 = vmul.f32 %v4063, %v4376
        %v4409 = vmul.f32 %v4065, %v4377
        %v4410 = vmul.f32 %v4067, %v4378
        %v4411 = vmul.f32 %v4069, %v4379
        %v4412 = vmul.f32 %v4071, %v4380
        %v4413 = vmul.f32 %v4073, %v4381
        %v4414 = vmul.f32 %v4075, %v4382
        %v4415 = vmul.f32 %v4077, %v4383
        %v4416 = vmul.f32 %v4079, %v4384
        %v4417 = vmul.f32 %v4081, %v4385
        %v4418 = vmul.f32 %v4083, %v4386
        %v4419 = vmul.f32 %v4085, %v4387
        %v4420 = vmul.f32 %v4087, %v4388
        %v4421 = vmul.f32 %v4089, %v4389
        %v4422 = vmul.f32 %v4091, %v4390
        %v4423 = vmul.f32 %v4093, %v4391
        %v4424 = vmul.f32 %v4095, %v4392
        %v4425 = vmul.f32 %v4097, %v4393
        %v4426 = vmul.f32 %v4099, %v4394
        %v4427 = vmul.f32 %v4101, %v4395
        %v4428 = vmul.f32 %v4103, %v4396
        %v4429 = vmul.f32 %v4105, %v4397
        %v4430 = vmul.f32 %v4107, %v4398
        %v4431 = vmul.f32 %v4109, %v4399
        %v4432 = vmul.f32 %v4111, %v4400
        %v4433 = vmul.f32 %v4113, %v4401
        %4434 = vadd.xlane.f32.xlu0 %v4307
        %v4435 = vpop.xlane.xlu0 %4434
        %4436 = vadd.xlane.f32.xlu0 %v4309
        %v4437 = vpop.xlane.xlu0 %4436
        %4438 = vadd.xlane.f32.xlu0 %v4311
        %v4439 = vpop.xlane.xlu0 %4438
        %4440 = vadd.xlane.f32.xlu0 %v4313
        %v4441 = vpop.xlane.xlu0 %4440
        %4442 = vadd.xlane.f32.xlu0 %v4315
        %v4443 = vpop.xlane.xlu0 %4442
        %4444 = vadd.xlane.f32.xlu0 %v4317
        %v4445 = vpop.xlane.xlu0 %4444
        %4446 = vadd.xlane.f32.xlu0 %v4319
        %v4447 = vpop.xlane.xlu0 %4446
        %4448 = vadd.xlane.f32.xlu0 %v4321
        %v4449 = vpop.xlane.xlu0 %4448
        %4450 = vadd.xlane.f32.xlu0 %v4323
        %v4451 = vpop.xlane.xlu0 %4450
        %4452 = vadd.xlane.f32.xlu0 %v4325
        %v4453 = vpop.xlane.xlu0 %4452
        %4454 = vadd.xlane.f32.xlu0 %v4327
        %v4455 = vpop.xlane.xlu0 %4454
        %4456 = vadd.xlane.f32.xlu0 %v4329
        %v4457 = vpop.xlane.xlu0 %4456
        %4458 = vadd.xlane.f32.xlu0 %v4331
        %v4459 = vpop.xlane.xlu0 %4458
        %4460 = vadd.xlane.f32.xlu0 %v4333
        %v4461 = vpop.xlane.xlu0 %4460
        %4462 = vadd.xlane.f32.xlu0 %v4335
        %v4463 = vpop.xlane.xlu0 %4462
        %4464 = vadd.xlane.f32.xlu0 %v4337
        %v4465 = vpop.xlane.xlu0 %4464
        %4466 = vadd.xlane.f32.xlu0 %v4339
        %v4467 = vpop.xlane.xlu0 %4466
        %4468 = vadd.xlane.f32.xlu0 %v4341
        %v4469 = vpop.xlane.xlu0 %4468
        %4470 = vadd.xlane.f32.xlu0 %v4343
        %v4471 = vpop.xlane.xlu0 %4470
        %4472 = vadd.xlane.f32.xlu0 %v4345
        %v4473 = vpop.xlane.xlu0 %4472
        %4474 = vadd.xlane.f32.xlu0 %v4347
        %v4475 = vpop.xlane.xlu0 %4474
        %4476 = vadd.xlane.f32.xlu0 %v4349
        %v4477 = vpop.xlane.xlu0 %4476
        %4478 = vadd.xlane.f32.xlu0 %v4351
        %v4479 = vpop.xlane.xlu0 %4478
        %4480 = vadd.xlane.f32.xlu0 %v4353
        %v4481 = vpop.xlane.xlu0 %4480
        %4482 = vadd.xlane.f32.xlu0 %v4355
        %v4483 = vpop.xlane.xlu0 %4482
        %4484 = vadd.xlane.f32.xlu0 %v4357
        %v4485 = vpop.xlane.xlu0 %4484
        %4486 = vadd.xlane.f32.xlu0 %v4359
        %v4487 = vpop.xlane.xlu0 %4486
        %4488 = vadd.xlane.f32.xlu0 %v4361
        %v4489 = vpop.xlane.xlu0 %4488
        %4490 = vadd.xlane.f32.xlu0 %v4363
        %v4491 = vpop.xlane.xlu0 %4490
        %4492 = vadd.xlane.f32.xlu0 %v4365
        %v4493 = vpop.xlane.xlu0 %4492
        %4494 = vadd.xlane.f32.xlu0 %v4367
        %v4495 = vpop.xlane.xlu0 %4494
        %4496 = vadd.xlane.f32.xlu0 %v4369
        %v4497 = vpop.xlane.xlu0 %4496
        %v4498 = vadd.f32 %v4402, %v4435
        %v4499 = vadd.f32 %v4403, %v4437
        %v4500 = vadd.f32 %v4404, %v4439
        %v4501 = vadd.f32 %v4405, %v4441
        %v4502 = vadd.f32 %v4406, %v4443
        %v4503 = vadd.f32 %v4407, %v4445
        %v4504 = vadd.f32 %v4408, %v4447
        %v4505 = vadd.f32 %v4409, %v4449
        %v4506 = vadd.f32 %v4410, %v4451
        %v4507 = vadd.f32 %v4411, %v4453
        %v4508 = vadd.f32 %v4412, %v4455
        %v4509 = vadd.f32 %v4413, %v4457
        %v4510 = vadd.f32 %v4414, %v4459
        %v4511 = vadd.f32 %v4415, %v4461
        %v4512 = vadd.f32 %v4416, %v4463
        %v4513 = vadd.f32 %v4417, %v4465
        %v4514 = vadd.f32 %v4418, %v4467
        %v4515 = vadd.f32 %v4419, %v4469
        %v4516 = vadd.f32 %v4420, %v4471
        %v4517 = vadd.f32 %v4421, %v4473
        %v4518 = vadd.f32 %v4422, %v4475
        %v4519 = vadd.f32 %v4423, %v4477
        %v4520 = vadd.f32 %v4424, %v4479
        %v4521 = vadd.f32 %v4425, %v4481
        %v4522 = vadd.f32 %v4426, %v4483
        %v4523 = vadd.f32 %v4427, %v4485
        %v4524 = vadd.f32 %v4428, %v4487
        %v4525 = vadd.f32 %v4429, %v4489
        %v4526 = vadd.f32 %v4430, %v4491
        %v4527 = vadd.f32 %v4431, %v4493
        %v4528 = vadd.f32 %v4432, %v4495
        %v4529 = vadd.f32 %v4433, %v4497
        %4530 = vst.msk [vmem:[#allocation5] sm:$0xff] %vm2027, %v4498
        %4531 = vst.msk [vmem:[#allocation5 + $0x8] sm:$0xff] %vm2027, %v4499
        %4532 = vst.msk [vmem:[#allocation5 + $0x10] sm:$0xff] %vm2027, %v4500
        %4533 = vst.msk [vmem:[#allocation5 + $0x18] sm:$0xff] %vm2027, %v4501
        %4534 = vst.msk [vmem:[#allocation5 + $0x20] sm:$0xff] %vm2027, %v4502
        %4535 = vst.msk [vmem:[#allocation5 + $0x28] sm:$0xff] %vm2027, %v4503
        %4536 = vst.msk [vmem:[#allocation5 + $0x30] sm:$0xff] %vm2027, %v4504
        %4537 = vst.msk [vmem:[#allocation5 + $0x38] sm:$0xff] %vm2027, %v4505
        %4538 = vst.msk [vmem:[#allocation5 + $0x40] sm:$0xff] %vm2027, %v4506
        %4539 = vst.msk [vmem:[#allocation5 + $0x48] sm:$0xff] %vm2027, %v4507
        %4540 = vst.msk [vmem:[#allocation5 + $0x50] sm:$0xff] %vm2027, %v4508
        %4541 = vst.msk [vmem:[#allocation5 + $0x58] sm:$0xff] %vm2027, %v4509
        %4542 = vst.msk [vmem:[#allocation5 + $0x60] sm:$0xff] %vm2027, %v4510
        %4543 = vst.msk [vmem:[#allocation5 + $0x68] sm:$0xff] %vm2027, %v4511
        %4544 = vst.msk [vmem:[#allocation5 + $0x70] sm:$0xff] %vm2027, %v4512
        %4545 = vst.msk [vmem:[#allocation5 + $0x78] sm:$0xff] %vm2027, %v4513
        %4546 = vst.msk [vmem:[#allocation5 + $0x80] sm:$0xff] %vm2027, %v4514
        %4547 = vst.msk [vmem:[#allocation5 + $0x88] sm:$0xff] %vm2027, %v4515
        %4548 = vst.msk [vmem:[#allocation5 + $0x90] sm:$0xff] %vm2027, %v4516
        %4549 = vst.msk [vmem:[#allocation5 + $0x98] sm:$0xff] %vm2027, %v4517
        %4550 = vst.msk [vmem:[#allocation5 + $0xa0] sm:$0xff] %vm2027, %v4518
        %4551 = vst.msk [vmem:[#allocation5 + $0xa8] sm:$0xff] %vm2027, %v4519
        %4552 = vst.msk [vmem:[#allocation5 + $0xb0] sm:$0xff] %vm2027, %v4520
        %4553 = vst.msk [vmem:[#allocation5 + $0xb8] sm:$0xff] %vm2027, %v4521
        %4554 = vst.msk [vmem:[#allocation5 + $0xc0] sm:$0xff] %vm2027, %v4522
        %4555 = vst.msk [vmem:[#allocation5 + $0xc8] sm:$0xff] %vm2027, %v4523
        %4556 = vst.msk [vmem:[#allocation5 + $0xd0] sm:$0xff] %vm2027, %v4524
        %4557 = vst.msk [vmem:[#allocation5 + $0xd8] sm:$0xff] %vm2027, %v4525
        %4558 = vst.msk [vmem:[#allocation5 + $0xe0] sm:$0xff] %vm2027, %v4526
        %4559 = vst.msk [vmem:[#allocation5 + $0xe8] sm:$0xff] %vm2027, %v4527
        %4560 = vst.msk [vmem:[#allocation5 + $0xf0] sm:$0xff] %vm2027, %v4528
        %4561 = vst.msk [vmem:[#allocation5 + $0xf8] sm:$0xff] %vm2027, %v4529
        %v4562 = vld [vmem:[#allocation6] sm:$0xff]
        %v4563 = vld [vmem:[#allocation6 + $0x8] sm:$0xff]
        %v4564 = vld [vmem:[#allocation6 + $0x10] sm:$0xff]
        %v4565 = vld [vmem:[#allocation6 + $0x18] sm:$0xff]
        %v4566 = vld [vmem:[#allocation6 + $0x20] sm:$0xff]
        %v4567 = vld [vmem:[#allocation6 + $0x28] sm:$0xff]
        %v4568 = vld [vmem:[#allocation6 + $0x30] sm:$0xff]
        %v4569 = vld [vmem:[#allocation6 + $0x38] sm:$0xff]
        %v4570 = vld [vmem:[#allocation6 + $0x40] sm:$0xff]
        %v4571 = vld [vmem:[#allocation6 + $0x48] sm:$0xff]
        %v4572 = vld [vmem:[#allocation6 + $0x50] sm:$0xff]
        %v4573 = vld [vmem:[#allocation6 + $0x58] sm:$0xff]
        %v4574 = vld [vmem:[#allocation6 + $0x60] sm:$0xff]
        %v4575 = vld [vmem:[#allocation6 + $0x68] sm:$0xff]
        %v4576 = vld [vmem:[#allocation6 + $0x70] sm:$0xff]
        %v4577 = vld [vmem:[#allocation6 + $0x78] sm:$0xff]
        %v4578 = vld [vmem:[#allocation6 + $0x80] sm:$0xff]
        %v4579 = vld [vmem:[#allocation6 + $0x88] sm:$0xff]
        %v4580 = vld [vmem:[#allocation6 + $0x90] sm:$0xff]
        %v4581 = vld [vmem:[#allocation6 + $0x98] sm:$0xff]
        %v4582 = vld [vmem:[#allocation6 + $0xa0] sm:$0xff]
        %v4583 = vld [vmem:[#allocation6 + $0xa8] sm:$0xff]
        %v4584 = vld [vmem:[#allocation6 + $0xb0] sm:$0xff]
        %v4585 = vld [vmem:[#allocation6 + $0xb8] sm:$0xff]
        %v4586 = vld [vmem:[#allocation6 + $0xc0] sm:$0xff]
        %v4587 = vld [vmem:[#allocation6 + $0xc8] sm:$0xff]
        %v4588 = vld [vmem:[#allocation6 + $0xd0] sm:$0xff]
        %v4589 = vld [vmem:[#allocation6 + $0xd8] sm:$0xff]
        %v4590 = vld [vmem:[#allocation6 + $0xe0] sm:$0xff]
        %v4591 = vld [vmem:[#allocation6 + $0xe8] sm:$0xff]
        %v4592 = vld [vmem:[#allocation6 + $0xf0] sm:$0xff]
        %v4593 = vld [vmem:[#allocation6 + $0xf8] sm:$0xff]
        %4595 = vset.pattern.permute.xlu0 0
        %4596 = vperm.xlu0 %4595, %v4051
        %v4597 = vpop.permute.xlu0 %4596
        %4600 = vset.pattern.permute.xlu0 0
        %4601 = vperm.xlu0 %4600, %v4053
        %v4602 = vpop.permute.xlu0 %4601
        %4605 = vset.pattern.permute.xlu0 0
        %4606 = vperm.xlu0 %4605, %v4055
        %v4607 = vpop.permute.xlu0 %4606
        %4610 = vset.pattern.permute.xlu0 0
        %4611 = vperm.xlu0 %4610, %v4057
        %v4612 = vpop.permute.xlu0 %4611
        %4615 = vset.pattern.permute.xlu0 0
        %4616 = vperm.xlu0 %4615, %v4059
        %v4617 = vpop.permute.xlu0 %4616
        %4620 = vset.pattern.permute.xlu0 0
        %4621 = vperm.xlu0 %4620, %v4061
        %v4622 = vpop.permute.xlu0 %4621
        %4625 = vset.pattern.permute.xlu0 0
        %4626 = vperm.xlu0 %4625, %v4063
        %v4627 = vpop.permute.xlu0 %4626
        %4630 = vset.pattern.permute.xlu0 0
        %4631 = vperm.xlu0 %4630, %v4065
        %v4632 = vpop.permute.xlu0 %4631
        %4635 = vset.pattern.permute.xlu0 0
        %4636 = vperm.xlu0 %4635, %v4067
        %v4637 = vpop.permute.xlu0 %4636
        %4640 = vset.pattern.permute.xlu0 0
        %4641 = vperm.xlu0 %4640, %v4069
        %v4642 = vpop.permute.xlu0 %4641
        %4645 = vset.pattern.permute.xlu0 0
        %4646 = vperm.xlu0 %4645, %v4071
        %v4647 = vpop.permute.xlu0 %4646
        %4650 = vset.pattern.permute.xlu0 0
        %4651 = vperm.xlu0 %4650, %v4073
        %v4652 = vpop.permute.xlu0 %4651
        %4655 = vset.pattern.permute.xlu0 0
        %4656 = vperm.xlu0 %4655, %v4075
        %v4657 = vpop.permute.xlu0 %4656
        %4660 = vset.pattern.permute.xlu0 0
        %4661 = vperm.xlu0 %4660, %v4077
        %v4662 = vpop.permute.xlu0 %4661
        %4665 = vset.pattern.permute.xlu0 0
        %4666 = vperm.xlu0 %4665, %v4079
        %v4667 = vpop.permute.xlu0 %4666
        %4670 = vset.pattern.permute.xlu0 0
        %4671 = vperm.xlu0 %4670, %v4081
        %v4672 = vpop.permute.xlu0 %4671
        %4675 = vset.pattern.permute.xlu0 0
        %4676 = vperm.xlu0 %4675, %v4083
        %v4677 = vpop.permute.xlu0 %4676
        %4680 = vset.pattern.permute.xlu0 0
        %4681 = vperm.xlu0 %4680, %v4085
        %v4682 = vpop.permute.xlu0 %4681
        %4685 = vset.pattern.permute.xlu0 0
        %4686 = vperm.xlu0 %4685, %v4087
        %v4687 = vpop.permute.xlu0 %4686
        %4690 = vset.pattern.permute.xlu0 0
        %4691 = vperm.xlu0 %4690, %v4089
        %v4692 = vpop.permute.xlu0 %4691
        %4695 = vset.pattern.permute.xlu0 0
        %4696 = vperm.xlu0 %4695, %v4091
        %v4697 = vpop.permute.xlu0 %4696
        %4700 = vset.pattern.permute.xlu0 0
        %4701 = vperm.xlu0 %4700, %v4093
        %v4702 = vpop.permute.xlu0 %4701
        %4705 = vset.pattern.permute.xlu0 0
        %4706 = vperm.xlu0 %4705, %v4095
        %v4707 = vpop.permute.xlu0 %4706
        %4710 = vset.pattern.permute.xlu0 0
        %4711 = vperm.xlu0 %4710, %v4097
        %v4712 = vpop.permute.xlu0 %4711
        %4715 = vset.pattern.permute.xlu0 0
        %4716 = vperm.xlu0 %4715, %v4099
        %v4717 = vpop.permute.xlu0 %4716
        %4720 = vset.pattern.permute.xlu0 0
        %4721 = vperm.xlu0 %4720, %v4101
        %v4722 = vpop.permute.xlu0 %4721
        %4725 = vset.pattern.permute.xlu0 0
        %4726 = vperm.xlu0 %4725, %v4103
        %v4727 = vpop.permute.xlu0 %4726
        %4730 = vset.pattern.permute.xlu0 0
        %4731 = vperm.xlu0 %4730, %v4105
        %v4732 = vpop.permute.xlu0 %4731
        %4735 = vset.pattern.permute.xlu0 0
        %4736 = vperm.xlu0 %4735, %v4107
        %v4737 = vpop.permute.xlu0 %4736
        %4740 = vset.pattern.permute.xlu0 0
        %4741 = vperm.xlu0 %4740, %v4109
        %v4742 = vpop.permute.xlu0 %4741
        %4745 = vset.pattern.permute.xlu0 0
        %4746 = vperm.xlu0 %4745, %v4111
        %v4747 = vpop.permute.xlu0 %4746
        %4750 = vset.pattern.permute.xlu0 0
        %4751 = vperm.xlu0 %4750, %v4113
        %v4752 = vpop.permute.xlu0 %4751
        %v4754 = vmul.f32 %v4597, %v4562
        %v4755 = vmul.f32 %v4602, %v4563
        %v4756 = vmul.f32 %v4607, %v4564
        %v4757 = vmul.f32 %v4612, %v4565
        %v4758 = vmul.f32 %v4617, %v4566
        %v4759 = vmul.f32 %v4622, %v4567
        %v4760 = vmul.f32 %v4627, %v4568
        %v4761 = vmul.f32 %v4632, %v4569
        %v4762 = vmul.f32 %v4637, %v4570
        %v4763 = vmul.f32 %v4642, %v4571
        %v4764 = vmul.f32 %v4647, %v4572
        %v4765 = vmul.f32 %v4652, %v4573
        %v4766 = vmul.f32 %v4657, %v4574
        %v4767 = vmul.f32 %v4662, %v4575
        %v4768 = vmul.f32 %v4667, %v4576
        %v4769 = vmul.f32 %v4672, %v4577
        %v4770 = vmul.f32 %v4677, %v4578
        %v4771 = vmul.f32 %v4682, %v4579
        %v4772 = vmul.f32 %v4687, %v4580
        %v4773 = vmul.f32 %v4692, %v4581
        %v4774 = vmul.f32 %v4697, %v4582
        %v4775 = vmul.f32 %v4702, %v4583
        %v4776 = vmul.f32 %v4707, %v4584
        %v4777 = vmul.f32 %v4712, %v4585
        %v4778 = vmul.f32 %v4717, %v4586
        %v4779 = vmul.f32 %v4722, %v4587
        %v4780 = vmul.f32 %v4727, %v4588
        %v4781 = vmul.f32 %v4732, %v4589
        %v4782 = vmul.f32 %v4737, %v4590
        %v4783 = vmul.f32 %v4742, %v4591
        %v4784 = vmul.f32 %v4747, %v4592
        %v4785 = vmul.f32 %v4752, %v4593
        %v4786 = vpack.c.bf16 %v4309, %v4307
        %v4787 = vpack.c.bf16 %v4313, %v4311
        %v4788 = vpack.c.bf16 %v4317, %v4315
        %v4789 = vpack.c.bf16 %v4321, %v4319
        %v4790 = vpack.c.bf16 %v4325, %v4323
        %v4791 = vpack.c.bf16 %v4329, %v4327
        %v4792 = vpack.c.bf16 %v4333, %v4331
        %v4793 = vpack.c.bf16 %v4337, %v4335
        %v4794 = vpack.c.bf16 %v4341, %v4339
        %v4795 = vpack.c.bf16 %v4345, %v4343
        %v4796 = vpack.c.bf16 %v4349, %v4347
        %v4797 = vpack.c.bf16 %v4353, %v4351
        %v4798 = vpack.c.bf16 %v4357, %v4355
        %v4799 = vpack.c.bf16 %v4361, %v4359
        %v4800 = vpack.c.bf16 %v4365, %v4363
        %v4801 = vpack.c.bf16 %v4369, %v4367
        %4802 = vmatprep.subr.bf16.mxu0 0
        %4803 = vmatpush1.bf16.msra.mxu0 %v3616
        %4804 = vmatprep.subr.bf16.mxu0 0
        %4805 = vmatpush1.bf16.msra.mxu0 %v3617
        %4806 = vmatprep.subr.bf16.mxu0 0
        %4807 = vmatpush1.bf16.msra.mxu0 %v3618
        %4808 = vmatprep.subr.bf16.mxu0 0
        %4809 = vmatpush1.bf16.msra.mxu0 %v3619
        %4810 = vmatprep.subr.bf16.mxu0 0
        %4811 = vmatpush1.bf16.msra.mxu0 %v3620
        %4812 = vmatprep.subr.bf16.mxu0 0
        %4813 = vmatpush1.bf16.msra.mxu0 %v3621
        %4814 = vmatprep.subr.bf16.mxu0 0
        %4815 = vmatpush1.bf16.msra.mxu0 %v3622
        %4816 = vmatprep.subr.bf16.mxu0 0
        %4817 = vmatpush1.bf16.msra.mxu0 %v3623
        %4818 = vmatprep.subr.bf16.mxu0 0
        %4819 = vmatpush1.bf16.msra.mxu0 0
        %4820 = vmatprep.subr.bf16.mxu0 0
        %4821 = vmatpush1.bf16.msra.mxu0 0
        %4822 = vmatprep.subr.bf16.mxu0 0
        %4823 = vmatpush1.bf16.msra.mxu0 0
        %4824 = vmatprep.subr.bf16.mxu0 0
        %4825 = vmatpush1.bf16.msra.mxu0 0
        %4826 = vmatprep.subr.bf16.mxu0 0
        %4827 = vmatpush1.bf16.msra.mxu0 0
        %4828 = vmatprep.subr.bf16.mxu0 0
        %4829 = vmatpush1.bf16.msra.mxu0 0
        %4830 = vmatprep.subr.bf16.mxu0 0
        %4831 = vmatpush1.bf16.msra.mxu0 0
        %4832 = vmatprep.subr.bf16.mxu0 0
        %4833 = vmatpush1.bf16.msra.mxu0 0
        %4834 = vmatprep.mubr.bf16.mxu0 0
        %4835 = vmatmul.mubr.bf16.gmra.mrb[0].mxu0 %v4786
        %v4836 = vpop.f32.mrb[0].mxu0
        %v4837 = vadd.f32 0.0, %v4836
        %v4838 = vpop.f32.mrb[0].mxu0
        %v4839 = vpop.f32.mrb[0].mxu0
        %v4840 = vadd.f32 0.0, %v4839
        %v4841 = vpop.f32.mrb[0].mxu0
        %4842 = vmatprep.mubr.bf16.mxu0 0
        %4843 = vmatmul.mubr.bf16.gmra.mrb[0].mxu0 %v4787
        %v4844 = vpop.f32.mrb[0].mxu0
        %v4845 = vadd.f32 0.0, %v4844
        %v4846 = vpop.f32.mrb[0].mxu0
        %v4847 = vpop.f32.mrb[0].mxu0
        %v4848 = vadd.f32 0.0, %v4847
        %v4849 = vpop.f32.mrb[0].mxu0
        %4850 = vmatprep.mubr.bf16.mxu0 0
        %4851 = vmatmul.mubr.bf16.gmra.mrb[0].mxu0 %v4788
        %v4852 = vpop.f32.mrb[0].mxu0
        %v4853 = vadd.f32 0.0, %v4852
        %v4854 = vpop.f32.mrb[0].mxu0
        %v4855 = vpop.f32.mrb[0].mxu0
        %v4856 = vadd.f32 0.0, %v4855
        %v4857 = vpop.f32.mrb[0].mxu0
        %4858 = vmatprep.mubr.bf16.mxu0 0
        %4859 = vmatmul.mubr.bf16.gmra.mrb[0].mxu0 %v4789
        %v4860 = vpop.f32.mrb[0].mxu0
        %v4861 = vadd.f32 0.0, %v4860
        %v4862 = vpop.f32.mrb[0].mxu0
        %v4863 = vpop.f32.mrb[0].mxu0
        %v4864 = vadd.f32 0.0, %v4863
        %v4865 = vpop.f32.mrb[0].mxu0
        %4866 = vmatprep.mubr.bf16.mxu0 0
        %4867 = vmatmul.mubr.bf16.gmra.mrb[0].mxu0 %v4790
        %v4868 = vpop.f32.mrb[0].mxu0
        %v4869 = vadd.f32 0.0, %v4868
        %v4870 = vpop.f32.mrb[0].mxu0
        %v4871 = vpop.f32.mrb[0].mxu0
        %v4872 = vadd.f32 0.0, %v4871
        %v4873 = vpop.f32.mrb[0].mxu0
        %4874 = vmatprep.mubr.bf16.mxu0 0
        %4875 = vmatmul.mubr.bf16.gmra.mrb[0].mxu0 %v4791
        %v4876 = vpop.f32.mrb[0].mxu0
        %v4877 = vadd.f32 0.0, %v4876
        %v4878 = vpop.f32.mrb[0].mxu0
        %v4879 = vpop.f32.mrb[0].mxu0
        %v4880 = vadd.f32 0.0, %v4879
        %v4881 = vpop.f32.mrb[0].mxu0
        %4882 = vmatprep.mubr.bf16.mxu0 0
        %4883 = vmatmul.mubr.bf16.gmra.mrb[0].mxu0 %v4792
        %v4884 = vpop.f32.mrb[0].mxu0
        %v4885 = vadd.f32 0.0, %v4884
        %v4886 = vpop.f32.mrb[0].mxu0
        %v4887 = vpop.f32.mrb[0].mxu0
        %v4888 = vadd.f32 0.0, %v4887
        %v4889 = vpop.f32.mrb[0].mxu0
        %4890 = vmatprep.mubr.bf16.mxu0 0
        %4891 = vmatmul.mubr.bf16.gmra.mrb[0].mxu0 %v4793
        %v4892 = vpop.f32.mrb[0].mxu0
        %v4893 = vadd.f32 0.0, %v4892
        %v4894 = vpop.f32.mrb[0].mxu0
        %v4895 = vpop.f32.mrb[0].mxu0
        %v4896 = vadd.f32 0.0, %v4895
        %v4897 = vpop.f32.mrb[0].mxu0
        %4898 = vdwg.mxu0
        %4899 = vmatprep.subr.bf16.mxu0 0
        %4900 = vmatpush1.bf16.msra.mxu0 %v3624
        %4901 = vmatprep.subr.bf16.mxu0 0
        %4902 = vmatpush1.bf16.msra.mxu0 %v3625
        %4903 = vmatprep.subr.bf16.mxu0 0
        %4904 = vmatpush1.bf16.msra.mxu0 %v3626
        %4905 = vmatprep.subr.bf16.mxu0 0
        %4906 = vmatpush1.bf16.msra.mxu0 %v3627
        %4907 = vmatprep.subr.bf16.mxu0 0
        %4908 = vmatpush1.bf16.msra.mxu0 %v3628
        %4909 = vmatprep.subr.bf16.mxu0 0
        %4910 = vmatpush1.bf16.msra.mxu0 %v3629
        %4911 = vmatprep.subr.bf16.mxu0 0
        %4912 = vmatpush1.bf16.msra.mxu0 %v3630
        %4913 = vmatprep.subr.bf16.mxu0 0
        %4914 = vmatpush1.bf16.msra.mxu0 %v3631
        %4915 = vmatprep.subr.bf16.mxu0 0
        %4916 = vmatpush1.bf16.msra.mxu0 0
        %4917 = vmatprep.subr.bf16.mxu0 0
        %4918 = vmatpush1.bf16.msra.mxu0 0
        %4919 = vmatprep.subr.bf16.mxu0 0
        %4920 = vmatpush1.bf16.msra.mxu0 0
        %4921 = vmatprep.subr.bf16.mxu0 0
        %4922 = vmatpush1.bf16.msra.mxu0 0
        %4923 = vmatprep.subr.bf16.mxu0 0
        %4924 = vmatpush1.bf16.msra.mxu0 0
        %4925 = vmatprep.subr.bf16.mxu0 0
        %4926 = vmatpush1.bf16.msra.mxu0 0
        %4927 = vmatprep.subr.bf16.mxu0 0
        %4928 = vmatpush1.bf16.msra.mxu0 0
        %4929 = vmatprep.subr.bf16.mxu0 0
        %4930 = vmatpush1.bf16.msra.mxu0 0
        %4931 = vmatprep.mubr.bf16.mxu0 0
        %4932 = vmatmul.mubr.bf16.gmra.mrb[0].mxu0 %v4794
        %v4933 = vpop.f32.mrb[0].mxu0
        %v4934 = vadd.f32 0.0, %v4933
        %v4935 = vpop.f32.mrb[0].mxu0
        %v4936 = vpop.f32.mrb[0].mxu0
        %v4937 = vadd.f32 0.0, %v4936
        %v4938 = vpop.f32.mrb[0].mxu0
        %4939 = vmatprep.mubr.bf16.mxu0 0
        %4940 = vmatmul.mubr.bf16.gmra.mrb[0].mxu0 %v4795
        %v4941 = vpop.f32.mrb[0].mxu0
        %v4942 = vadd.f32 0.0, %v4941
        %v4943 = vpop.f32.mrb[0].mxu0
        %v4944 = vpop.f32.mrb[0].mxu0
        %v4945 = vadd.f32 0.0, %v4944
        %v4946 = vpop.f32.mrb[0].mxu0
        %4947 = vmatprep.mubr.bf16.mxu0 0
        %4948 = vmatmul.mubr.bf16.gmra.mrb[0].mxu0 %v4796
        %v4949 = vpop.f32.mrb[0].mxu0
        %v4950 = vadd.f32 0.0, %v4949
        %v4951 = vpop.f32.mrb[0].mxu0
        %v4952 = vpop.f32.mrb[0].mxu0
        %v4953 = vadd.f32 0.0, %v4952
        %v4954 = vpop.f32.mrb[0].mxu0
        %4955 = vmatprep.mubr.bf16.mxu0 0
        %4956 = vmatmul.mubr.bf16.gmra.mrb[0].mxu0 %v4797
        %v4957 = vpop.f32.mrb[0].mxu0
        %v4958 = vadd.f32 0.0, %v4957
        %v4959 = vpop.f32.mrb[0].mxu0
        %v4960 = vpop.f32.mrb[0].mxu0
        %v4961 = vadd.f32 0.0, %v4960
        %v4962 = vpop.f32.mrb[0].mxu0
        %4963 = vmatprep.mubr.bf16.mxu0 0
        %4964 = vmatmul.mubr.bf16.gmra.mrb[0].mxu0 %v4798
        %v4965 = vpop.f32.mrb[0].mxu0
        %v4966 = vadd.f32 0.0, %v4965
        %v4967 = vpop.f32.mrb[0].mxu0
        %v4968 = vpop.f32.mrb[0].mxu0
        %v4969 = vadd.f32 0.0, %v4968
        %v4970 = vpop.f32.mrb[0].mxu0
        %4971 = vmatprep.mubr.bf16.mxu0 0
        %4972 = vmatmul.mubr.bf16.gmra.mrb[0].mxu0 %v4799
        %v4973 = vpop.f32.mrb[0].mxu0
        %v4974 = vadd.f32 0.0, %v4973
        %v4975 = vpop.f32.mrb[0].mxu0
        %v4976 = vpop.f32.mrb[0].mxu0
        %v4977 = vadd.f32 0.0, %v4976
        %v4978 = vpop.f32.mrb[0].mxu0
        %4979 = vmatprep.mubr.bf16.mxu0 0
        %4980 = vmatmul.mubr.bf16.gmra.mrb[0].mxu0 %v4800
        %v4981 = vpop.f32.mrb[0].mxu0
        %v4982 = vadd.f32 0.0, %v4981
        %v4983 = vpop.f32.mrb[0].mxu0
        %v4984 = vpop.f32.mrb[0].mxu0
        %v4985 = vadd.f32 0.0, %v4984
        %v4986 = vpop.f32.mrb[0].mxu0
        %4987 = vmatprep.mubr.bf16.mxu0 0
        %4988 = vmatmul.mubr.bf16.gmra.mrb[0].mxu0 %v4801
        %v4989 = vpop.f32.mrb[0].mxu0
        %v4990 = vadd.f32 0.0, %v4989
        %v4991 = vpop.f32.mrb[0].mxu0
        %v4992 = vpop.f32.mrb[0].mxu0
        %v4993 = vadd.f32 0.0, %v4992
        %v4994 = vpop.f32.mrb[0].mxu0
        %4995 = vdwg.mxu0
        %v4996 = vadd.f32 %v4754, %v4837
        %v4997 = vadd.f32 %v4755, %v4840
        %v4998 = vadd.f32 %v4756, %v4845
        %v4999 = vadd.f32 %v4757, %v4848
        %v5000 = vadd.f32 %v4758, %v4853
        %v5001 = vadd.f32 %v4759, %v4856
        %v5002 = vadd.f32 %v4760, %v4861
        %v5003 = vadd.f32 %v4761, %v4864
        %v5004 = vadd.f32 %v4762, %v4869
        %v5005 = vadd.f32 %v4763, %v4872
        %v5006 = vadd.f32 %v4764, %v4877
        %v5007 = vadd.f32 %v4765, %v4880
        %v5008 = vadd.f32 %v4766, %v4885
        %v5009 = vadd.f32 %v4767, %v4888
        %v5010 = vadd.f32 %v4768, %v4893
        %v5011 = vadd.f32 %v4769, %v4896
        %v5012 = vadd.f32 %v4770, %v4934
        %v5013 = vadd.f32 %v4771, %v4937
        %v5014 = vadd.f32 %v4772, %v4942
        %v5015 = vadd.f32 %v4773, %v4945
        %v5016 = vadd.f32 %v4774, %v4950
        %v5017 = vadd.f32 %v4775, %v4953
        %v5018 = vadd.f32 %v4776, %v4958
        %v5019 = vadd.f32 %v4777, %v4961
        %v5020 = vadd.f32 %v4778, %v4966
        %v5021 = vadd.f32 %v4779, %v4969
        %v5022 = vadd.f32 %v4780, %v4974
        %v5023 = vadd.f32 %v4781, %v4977
        %v5024 = vadd.f32 %v4782, %v4982
        %v5025 = vadd.f32 %v4783, %v4985
        %v5026 = vadd.f32 %v4784, %v4990
        %v5027 = vadd.f32 %v4785, %v4993
        %5028 = vst [vmem:[#allocation6] sm:$0xff] %v4996
        %5029 = vst [vmem:[#allocation6 + $0x8] sm:$0xff] %v4997
        %5030 = vst [vmem:[#allocation6 + $0x10] sm:$0xff] %v4998
        %5031 = vst [vmem:[#allocation6 + $0x18] sm:$0xff] %v4999
        %5032 = vst [vmem:[#allocation6 + $0x20] sm:$0xff] %v5000
        %5033 = vst [vmem:[#allocation6 + $0x28] sm:$0xff] %v5001
        %5034 = vst [vmem:[#allocation6 + $0x30] sm:$0xff] %v5002
        %5035 = vst [vmem:[#allocation6 + $0x38] sm:$0xff] %v5003
        %5036 = vst [vmem:[#allocation6 + $0x40] sm:$0xff] %v5004
        %5037 = vst [vmem:[#allocation6 + $0x48] sm:$0xff] %v5005
        %5038 = vst [vmem:[#allocation6 + $0x50] sm:$0xff] %v5006
        %5039 = vst [vmem:[#allocation6 + $0x58] sm:$0xff] %v5007
        %5040 = vst [vmem:[#allocation6 + $0x60] sm:$0xff] %v5008
        %5041 = vst [vmem:[#allocation6 + $0x68] sm:$0xff] %v5009
        %5042 = vst [vmem:[#allocation6 + $0x70] sm:$0xff] %v5010
        %5043 = vst [vmem:[#allocation6 + $0x78] sm:$0xff] %v5011
        %5044 = vst [vmem:[#allocation6 + $0x80] sm:$0xff] %v5012
        %5045 = vst [vmem:[#allocation6 + $0x88] sm:$0xff] %v5013
        %5046 = vst [vmem:[#allocation6 + $0x90] sm:$0xff] %v5014
        %5047 = vst [vmem:[#allocation6 + $0x98] sm:$0xff] %v5015
        %5048 = vst [vmem:[#allocation6 + $0xa0] sm:$0xff] %v5016
        %5049 = vst [vmem:[#allocation6 + $0xa8] sm:$0xff] %v5017
        %5050 = vst [vmem:[#allocation6 + $0xb0] sm:$0xff] %v5018
        %5051 = vst [vmem:[#allocation6 + $0xb8] sm:$0xff] %v5019
        %5052 = vst [vmem:[#allocation6 + $0xc0] sm:$0xff] %v5020
        %5053 = vst [vmem:[#allocation6 + $0xc8] sm:$0xff] %v5021
        %5054 = vst [vmem:[#allocation6 + $0xd0] sm:$0xff] %v5022
        %5055 = vst [vmem:[#allocation6 + $0xd8] sm:$0xff] %v5023
        %5056 = vst [vmem:[#allocation6 + $0xe0] sm:$0xff] %v5024
        %5057 = vst [vmem:[#allocation6 + $0xe8] sm:$0xff] %v5025
        %5058 = vst [vmem:[#allocation6 + $0xf0] sm:$0xff] %v5026
        %5059 = vst [vmem:[#allocation6 + $0xf8] sm:$0xff] %v5027
        %5060 = vst.msk [vmem:[#allocation4] sm:$0xff] %vm2027, %v3986
        %5061 = vst.msk [vmem:[#allocation4 + $0x8] sm:$0xff] %vm2027, %v3987
        %5062 = vst.msk [vmem:[#allocation4 + $0x10] sm:$0xff] %vm2027, %v3988
        %5063 = vst.msk [vmem:[#allocation4 + $0x18] sm:$0xff] %vm2027, %v3989
        %5064 = vst.msk [vmem:[#allocation4 + $0x20] sm:$0xff] %vm2027, %v3990
        %5065 = vst.msk [vmem:[#allocation4 + $0x28] sm:$0xff] %vm2027, %v3991
        %5066 = vst.msk [vmem:[#allocation4 + $0x30] sm:$0xff] %vm2027, %v3992
        %5067 = vst.msk [vmem:[#allocation4 + $0x38] sm:$0xff] %vm2027, %v3993
        %5068 = vst.msk [vmem:[#allocation4 + $0x40] sm:$0xff] %vm2027, %v3994
        %5069 = vst.msk [vmem:[#allocation4 + $0x48] sm:$0xff] %vm2027, %v3995
        %5070 = vst.msk [vmem:[#allocation4 + $0x50] sm:$0xff] %vm2027, %v3996
        %5071 = vst.msk [vmem:[#allocation4 + $0x58] sm:$0xff] %vm2027, %v3997
        %5072 = vst.msk [vmem:[#allocation4 + $0x60] sm:$0xff] %vm2027, %v3998
        %5073 = vst.msk [vmem:[#allocation4 + $0x68] sm:$0xff] %vm2027, %v3999
        %5074 = vst.msk [vmem:[#allocation4 + $0x70] sm:$0xff] %vm2027, %v4000
        %5075 = vst.msk [vmem:[#allocation4 + $0x78] sm:$0xff] %vm2027, %v4001
        %5076 = vst.msk [vmem:[#allocation4 + $0x80] sm:$0xff] %vm2027, %v4002
        %5077 = vst.msk [vmem:[#allocation4 + $0x88] sm:$0xff] %vm2027, %v4003
        %5078 = vst.msk [vmem:[#allocation4 + $0x90] sm:$0xff] %vm2027, %v4004
        %5079 = vst.msk [vmem:[#allocation4 + $0x98] sm:$0xff] %vm2027, %v4005
        %5080 = vst.msk [vmem:[#allocation4 + $0xa0] sm:$0xff] %vm2027, %v4006
        %5081 = vst.msk [vmem:[#allocation4 + $0xa8] sm:$0xff] %vm2027, %v4007
        %5082 = vst.msk [vmem:[#allocation4 + $0xb0] sm:$0xff] %vm2027, %v4008
        %5083 = vst.msk [vmem:[#allocation4 + $0xb8] sm:$0xff] %vm2027, %v4009
        %5084 = vst.msk [vmem:[#allocation4 + $0xc0] sm:$0xff] %vm2027, %v4010
        %5085 = vst.msk [vmem:[#allocation4 + $0xc8] sm:$0xff] %vm2027, %v4011
        %5086 = vst.msk [vmem:[#allocation4 + $0xd0] sm:$0xff] %vm2027, %v4012
        %5087 = vst.msk [vmem:[#allocation4 + $0xd8] sm:$0xff] %vm2027, %v4013
        %5088 = vst.msk [vmem:[#allocation4 + $0xe0] sm:$0xff] %vm2027, %v4014
        %5089 = vst.msk [vmem:[#allocation4 + $0xe8] sm:$0xff] %vm2027, %v4015
        %5090 = vst.msk [vmem:[#allocation4 + $0xf0] sm:$0xff] %vm2027, %v4016
        %5091 = vst.msk [vmem:[#allocation4 + $0xf8] sm:$0xff] %vm2027, %v4017
        %v5092 = vld [vmem:[#allocation5] sm:$0xff]
        %v5093 = vld [vmem:[#allocation5 + $0x8] sm:$0xff]
        %v5094 = vld [vmem:[#allocation5 + $0x10] sm:$0xff]
        %v5095 = vld [vmem:[#allocation5 + $0x18] sm:$0xff]
        %v5096 = vld [vmem:[#allocation5 + $0x20] sm:$0xff]
        %v5097 = vld [vmem:[#allocation5 + $0x28] sm:$0xff]
        %v5098 = vld [vmem:[#allocation5 + $0x30] sm:$0xff]
        %v5099 = vld [vmem:[#allocation5 + $0x38] sm:$0xff]
        %v5100 = vld [vmem:[#allocation5 + $0x40] sm:$0xff]
        %v5101 = vld [vmem:[#allocation5 + $0x48] sm:$0xff]
        %v5102 = vld [vmem:[#allocation5 + $0x50] sm:$0xff]
        %v5103 = vld [vmem:[#allocation5 + $0x58] sm:$0xff]
        %v5104 = vld [vmem:[#allocation5 + $0x60] sm:$0xff]
        %v5105 = vld [vmem:[#allocation5 + $0x68] sm:$0xff]
        %v5106 = vld [vmem:[#allocation5 + $0x70] sm:$0xff]
        %v5107 = vld [vmem:[#allocation5 + $0x78] sm:$0xff]
        %v5108 = vld [vmem:[#allocation5 + $0x80] sm:$0xff]
        %v5109 = vld [vmem:[#allocation5 + $0x88] sm:$0xff]
        %v5110 = vld [vmem:[#allocation5 + $0x90] sm:$0xff]
        %v5111 = vld [vmem:[#allocation5 + $0x98] sm:$0xff]
        %v5112 = vld [vmem:[#allocation5 + $0xa0] sm:$0xff]
        %v5113 = vld [vmem:[#allocation5 + $0xa8] sm:$0xff]
        %v5114 = vld [vmem:[#allocation5 + $0xb0] sm:$0xff]
        %v5115 = vld [vmem:[#allocation5 + $0xb8] sm:$0xff]
        %v5116 = vld [vmem:[#allocation5 + $0xc0] sm:$0xff]
        %v5117 = vld [vmem:[#allocation5 + $0xc8] sm:$0xff]
        %v5118 = vld [vmem:[#allocation5 + $0xd0] sm:$0xff]
        %v5119 = vld [vmem:[#allocation5 + $0xd8] sm:$0xff]
        %v5120 = vld [vmem:[#allocation5 + $0xe0] sm:$0xff]
        %v5121 = vld [vmem:[#allocation5 + $0xe8] sm:$0xff]
        %v5122 = vld [vmem:[#allocation5 + $0xf0] sm:$0xff]
        %v5123 = vld [vmem:[#allocation5 + $0xf8] sm:$0xff]
        %v5124 = vrcp.pop %v5092
        %v5125 = vrcp.pop %v5093
        %v5126 = vrcp.pop %v5094
        %v5127 = vrcp.pop %v5095
        %v5128 = vrcp.pop %v5096
        %v5129 = vrcp.pop %v5097
        %v5130 = vrcp.pop %v5098
        %v5131 = vrcp.pop %v5099
        %v5132 = vrcp.pop %v5100
        %v5133 = vrcp.pop %v5101
        %v5134 = vrcp.pop %v5102
        %v5135 = vrcp.pop %v5103
        %v5136 = vrcp.pop %v5104
        %v5137 = vrcp.pop %v5105
        %v5138 = vrcp.pop %v5106
        %v5139 = vrcp.pop %v5107
        %v5140 = vrcp.pop %v5108
        %v5141 = vrcp.pop %v5109
        %v5142 = vrcp.pop %v5110
        %v5143 = vrcp.pop %v5111
        %v5144 = vrcp.pop %v5112
        %v5145 = vrcp.pop %v5113
        %v5146 = vrcp.pop %v5114
        %v5147 = vrcp.pop %v5115
        %v5148 = vrcp.pop %v5116
        %v5149 = vrcp.pop %v5117
        %v5150 = vrcp.pop %v5118
        %v5151 = vrcp.pop %v5119
        %v5152 = vrcp.pop %v5120
        %v5153 = vrcp.pop %v5121
        %v5154 = vrcp.pop %v5122
        %v5155 = vrcp.pop %v5123
        %v5156 = vld [vmem:[#allocation6] sm:$0xff]
        %v5157 = vld [vmem:[#allocation6 + $0x8] sm:$0xff]
        %v5158 = vld [vmem:[#allocation6 + $0x10] sm:$0xff]
        %v5159 = vld [vmem:[#allocation6 + $0x18] sm:$0xff]
        %v5160 = vld [vmem:[#allocation6 + $0x20] sm:$0xff]
        %v5161 = vld [vmem:[#allocation6 + $0x28] sm:$0xff]
        %v5162 = vld [vmem:[#allocation6 + $0x30] sm:$0xff]
        %v5163 = vld [vmem:[#allocation6 + $0x38] sm:$0xff]
        %v5164 = vld [vmem:[#allocation6 + $0x40] sm:$0xff]
        %v5165 = vld [vmem:[#allocation6 + $0x48] sm:$0xff]
        %v5166 = vld [vmem:[#allocation6 + $0x50] sm:$0xff]
        %v5167 = vld [vmem:[#allocation6 + $0x58] sm:$0xff]
        %v5168 = vld [vmem:[#allocation6 + $0x60] sm:$0xff]
        %v5169 = vld [vmem:[#allocation6 + $0x68] sm:$0xff]
        %v5170 = vld [vmem:[#allocation6 + $0x70] sm:$0xff]
        %v5171 = vld [vmem:[#allocation6 + $0x78] sm:$0xff]
        %5173 = vset.pattern.permute.xlu0 0
        %5174 = vperm.xlu0 %5173, %v5124
        %v5175 = vpop.permute.xlu0 %5174
        %5178 = vset.pattern.permute.xlu0 0
        %5179 = vperm.xlu0 %5178, %v5125
        %v5180 = vpop.permute.xlu0 %5179
        %5183 = vset.pattern.permute.xlu0 0
        %5184 = vperm.xlu0 %5183, %v5126
        %v5185 = vpop.permute.xlu0 %5184
        %5188 = vset.pattern.permute.xlu0 0
        %5189 = vperm.xlu0 %5188, %v5127
        %v5190 = vpop.permute.xlu0 %5189
        %5193 = vset.pattern.permute.xlu0 0
        %5194 = vperm.xlu0 %5193, %v5128
        %v5195 = vpop.permute.xlu0 %5194
        %5198 = vset.pattern.permute.xlu0 0
        %5199 = vperm.xlu0 %5198, %v5129
        %v5200 = vpop.permute.xlu0 %5199
        %5203 = vset.pattern.permute.xlu0 0
        %5204 = vperm.xlu0 %5203, %v5130
        %v5205 = vpop.permute.xlu0 %5204
        %5208 = vset.pattern.permute.xlu0 0
        %5209 = vperm.xlu0 %5208, %v5131
        %v5210 = vpop.permute.xlu0 %5209
        %5213 = vset.pattern.permute.xlu0 0
        %5214 = vperm.xlu0 %5213, %v5132
        %v5215 = vpop.permute.xlu0 %5214
        %5218 = vset.pattern.permute.xlu0 0
        %5219 = vperm.xlu0 %5218, %v5133
        %v5220 = vpop.permute.xlu0 %5219
        %5223 = vset.pattern.permute.xlu0 0
        %5224 = vperm.xlu0 %5223, %v5134
        %v5225 = vpop.permute.xlu0 %5224
        %5228 = vset.pattern.permute.xlu0 0
        %5229 = vperm.xlu0 %5228, %v5135
        %v5230 = vpop.permute.xlu0 %5229
        %5233 = vset.pattern.permute.xlu0 0
        %5234 = vperm.xlu0 %5233, %v5136
        %v5235 = vpop.permute.xlu0 %5234
        %5238 = vset.pattern.permute.xlu0 0
        %5239 = vperm.xlu0 %5238, %v5137
        %v5240 = vpop.permute.xlu0 %5239
        %5243 = vset.pattern.permute.xlu0 0
        %5244 = vperm.xlu0 %5243, %v5138
        %v5245 = vpop.permute.xlu0 %5244
        %5248 = vset.pattern.permute.xlu0 0
        %5249 = vperm.xlu0 %5248, %v5139
        %v5250 = vpop.permute.xlu0 %5249
        %v5252 = vmul.f32 %v5156, %v5175
        %v5253 = vmul.f32 %v5157, %v5180
        %v5254 = vmul.f32 %v5158, %v5185
        %v5255 = vmul.f32 %v5159, %v5190
        %v5256 = vmul.f32 %v5160, %v5195
        %v5257 = vmul.f32 %v5161, %v5200
        %v5258 = vmul.f32 %v5162, %v5205
        %v5259 = vmul.f32 %v5163, %v5210
        %v5260 = vmul.f32 %v5164, %v5215
        %v5261 = vmul.f32 %v5165, %v5220
        %v5262 = vmul.f32 %v5166, %v5225
        %v5263 = vmul.f32 %v5167, %v5230
        %v5264 = vmul.f32 %v5168, %v5235
        %v5265 = vmul.f32 %v5169, %v5240
        %v5266 = vmul.f32 %v5170, %v5245
        %v5267 = vmul.f32 %v5171, %v5250
        %v5268 = vpack.c.bf16 %v5253, %v5252
        %v5269 = vpack.c.bf16 %v5255, %v5254
        %v5270 = vpack.c.bf16 %v5257, %v5256
        %v5271 = vpack.c.bf16 %v5259, %v5258
        %v5272 = vpack.c.bf16 %v5261, %v5260
        %v5273 = vpack.c.bf16 %v5263, %v5262
        %v5274 = vpack.c.bf16 %v5265, %v5264
        %v5275 = vpack.c.bf16 %v5267, %v5266
        %s5276 = scalar_lea.vmem [#allocation6], 128
        %v5277 = vld [vmem:[%s5276] sm:$0xff]
        %v5278 = vld [vmem:[%s5276 + $0x8] sm:$0xff]
        %v5279 = vld [vmem:[%s5276 + $0x10] sm:$0xff]
        %v5280 = vld [vmem:[%s5276 + $0x18] sm:$0xff]
        %v5281 = vld [vmem:[%s5276 + $0x20] sm:$0xff]
        %v5282 = vld [vmem:[%s5276 + $0x28] sm:$0xff]
        %v5283 = vld [vmem:[%s5276 + $0x30] sm:$0xff]
        %v5284 = vld [vmem:[%s5276 + $0x38] sm:$0xff]
        %v5285 = vld [vmem:[%s5276 + $0x40] sm:$0xff]
        %v5286 = vld [vmem:[%s5276 + $0x48] sm:$0xff]
        %v5287 = vld [vmem:[%s5276 + $0x50] sm:$0xff]
        %v5288 = vld [vmem:[%s5276 + $0x58] sm:$0xff]
        %v5289 = vld [vmem:[%s5276 + $0x60] sm:$0xff]
        %v5290 = vld [vmem:[%s5276 + $0x68] sm:$0xff]
        %v5291 = vld [vmem:[%s5276 + $0x70] sm:$0xff]
        %v5292 = vld [vmem:[%s5276 + $0x78] sm:$0xff]
        %5294 = vset.pattern.permute.xlu0 0
        %5295 = vperm.xlu0 %5294, %v5140
        %v5296 = vpop.permute.xlu0 %5295
        %5299 = vset.pattern.permute.xlu0 0
        %5300 = vperm.xlu0 %5299, %v5141
        %v5301 = vpop.permute.xlu0 %5300
        %5304 = vset.pattern.permute.xlu0 0
        %5305 = vperm.xlu0 %5304, %v5142
        %v5306 = vpop.permute.xlu0 %5305
        %5309 = vset.pattern.permute.xlu0 0
        %5310 = vperm.xlu0 %5309, %v5143
        %v5311 = vpop.permute.xlu0 %5310
        %5314 = vset.pattern.permute.xlu0 0
        %5315 = vperm.xlu0 %5314, %v5144
        %v5316 = vpop.permute.xlu0 %5315
        %5319 = vset.pattern.permute.xlu0 0
        %5320 = vperm.xlu0 %5319, %v5145
        %v5321 = vpop.permute.xlu0 %5320
        %5324 = vset.pattern.permute.xlu0 0
        %5325 = vperm.xlu0 %5324, %v5146
        %v5326 = vpop.permute.xlu0 %5325
        %5329 = vset.pattern.permute.xlu0 0
        %5330 = vperm.xlu0 %5329, %v5147
        %v5331 = vpop.permute.xlu0 %5330
        %5334 = vset.pattern.permute.xlu0 0
        %5335 = vperm.xlu0 %5334, %v5148
        %v5336 = vpop.permute.xlu0 %5335
        %5339 = vset.pattern.permute.xlu0 0
        %5340 = vperm.xlu0 %5339, %v5149
        %v5341 = vpop.permute.xlu0 %5340
        %5344 = vset.pattern.permute.xlu0 0
        %5345 = vperm.xlu0 %5344, %v5150
        %v5346 = vpop.permute.xlu0 %5345
        %5349 = vset.pattern.permute.xlu0 0
        %5350 = vperm.xlu0 %5349, %v5151
        %v5351 = vpop.permute.xlu0 %5350
        %5354 = vset.pattern.permute.xlu0 0
        %5355 = vperm.xlu0 %5354, %v5152
        %v5356 = vpop.permute.xlu0 %5355
        %5359 = vset.pattern.permute.xlu0 0
        %5360 = vperm.xlu0 %5359, %v5153
        %v5361 = vpop.permute.xlu0 %5360
        %5364 = vset.pattern.permute.xlu0 0
        %5365 = vperm.xlu0 %5364, %v5154
        %v5366 = vpop.permute.xlu0 %5365
        %5369 = vset.pattern.permute.xlu0 0
        %5370 = vperm.xlu0 %5369, %v5155
        %v5371 = vpop.permute.xlu0 %5370
        %v5373 = vmul.f32 %v5277, %v5296
        %v5374 = vmul.f32 %v5278, %v5301
        %v5375 = vmul.f32 %v5279, %v5306
        %v5376 = vmul.f32 %v5280, %v5311
        %v5377 = vmul.f32 %v5281, %v5316
        %v5378 = vmul.f32 %v5282, %v5321
        %v5379 = vmul.f32 %v5283, %v5326
        %v5380 = vmul.f32 %v5284, %v5331
        %v5381 = vmul.f32 %v5285, %v5336
        %v5382 = vmul.f32 %v5286, %v5341
        %v5383 = vmul.f32 %v5287, %v5346
        %v5384 = vmul.f32 %v5288, %v5351
        %v5385 = vmul.f32 %v5289, %v5356
        %v5386 = vmul.f32 %v5290, %v5361
        %v5387 = vmul.f32 %v5291, %v5366
        %v5388 = vmul.f32 %v5292, %v5371
        %v5389 = vpack.c.bf16 %v5374, %v5373
        %v5390 = vpack.c.bf16 %v5376, %v5375
        %v5391 = vpack.c.bf16 %v5378, %v5377
        %v5392 = vpack.c.bf16 %v5380, %v5379
        %v5393 = vpack.c.bf16 %v5382, %v5381
        %v5394 = vpack.c.bf16 %v5384, %v5383
        %v5395 = vpack.c.bf16 %v5386, %v5385
        %v5396 = vpack.c.bf16 %v5388, %v5387
        %v5397 = vld [vmem:[#allocation15] sm:$0xff]
        %v5398 = vld [vmem:[#allocation15 + $0x8] sm:$0xff]
        %v5399 = vld [vmem:[#allocation15 + $0x10] sm:$0xff]
        %v5400 = vld [vmem:[#allocation15 + $0x18] sm:$0xff]
        %v5401 = vld [vmem:[#allocation15 + $0x20] sm:$0xff]
        %v5402 = vld [vmem:[#allocation15 + $0x28] sm:$0xff]
        %v5403 = vld [vmem:[#allocation15 + $0x30] sm:$0xff]
        %v5404 = vld [vmem:[#allocation15 + $0x38] sm:$0xff]
        %v5405 = vld [vmem:[#allocation15 + $0x40] sm:$0xff]
        %v5406 = vld [vmem:[#allocation15 + $0x48] sm:$0xff]
        %v5407 = vld [vmem:[#allocation15 + $0x50] sm:$0xff]
        %v5408 = vld [vmem:[#allocation15 + $0x58] sm:$0xff]
        %v5409 = vld [vmem:[#allocation15 + $0x60] sm:$0xff]
        %v5410 = vld [vmem:[#allocation15 + $0x68] sm:$0xff]
        %v5411 = vld [vmem:[#allocation15 + $0x70] sm:$0xff]
        %v5412 = vld [vmem:[#allocation15 + $0x78] sm:$0xff]
        %v5413 = vld [vmem:[#allocation15 + $0x80] sm:$0xff]
        %v5414 = vld [vmem:[#allocation15 + $0x88] sm:$0xff]
        %v5415 = vld [vmem:[#allocation15 + $0x90] sm:$0xff]
        %v5416 = vld [vmem:[#allocation15 + $0x98] sm:$0xff]
        %v5417 = vld [vmem:[#allocation15 + $0xa0] sm:$0xff]
        %v5418 = vld [vmem:[#allocation15 + $0xa8] sm:$0xff]
        %v5419 = vld [vmem:[#allocation15 + $0xb0] sm:$0xff]
        %v5420 = vld [vmem:[#allocation15 + $0xb8] sm:$0xff]
        %v5421 = vld [vmem:[#allocation15 + $0xc0] sm:$0xff]
        %v5422 = vld [vmem:[#allocation15 + $0xc8] sm:$0xff]
        %v5423 = vld [vmem:[#allocation15 + $0xd0] sm:$0xff]
        %v5424 = vld [vmem:[#allocation15 + $0xd8] sm:$0xff]
        %v5425 = vld [vmem:[#allocation15 + $0xe0] sm:$0xff]
        %v5426 = vld [vmem:[#allocation15 + $0xe8] sm:$0xff]
        %v5427 = vld [vmem:[#allocation15 + $0xf0] sm:$0xff]
        %v5428 = vld [vmem:[#allocation15 + $0xf8] sm:$0xff]
        %v5429 = vld [vmem:[%s7] sm:$0x3]
        %v5431 = vlaneseq
        %v5432 = vshrl.u32 %v5431, 7
        %v5433 = vsub.s32 0, %v5432
        %v5434 = vrot.slane %v5429, %v5433
        %v5435 = vlaneseq
        %v5436 = vshrl.u32 %v5435, 7
        %v5437 = vsub.s32 1, %v5436
        %v5438 = vrot.slane %v5429, %v5437
        %v5473 = vunpack.c.l.b16 %v5397
        %v5474 = vunpack.c.h.b16 %v5397
        %v5475 = vunpack.c.l.b16 %v5398
        %v5476 = vunpack.c.h.b16 %v5398
        %v5477 = vunpack.c.l.b16 %v5399
        %v5478 = vunpack.c.h.b16 %v5399
        %v5479 = vunpack.c.l.b16 %v5400
        %v5480 = vunpack.c.h.b16 %v5400
        %v5481 = vunpack.c.l.b16 %v5401
        %v5482 = vunpack.c.h.b16 %v5401
        %v5483 = vunpack.c.l.b16 %v5402
        %v5484 = vunpack.c.h.b16 %v5402
        %v5485 = vunpack.c.l.b16 %v5403
        %v5486 = vunpack.c.h.b16 %v5403
        %v5487 = vunpack.c.l.b16 %v5404
        %v5488 = vunpack.c.h.b16 %v5404
        %v5489 = vunpack.c.l.b16 %v5405
        %v5490 = vunpack.c.h.b16 %v5405
        %v5491 = vunpack.c.l.b16 %v5406
        %v5492 = vunpack.c.h.b16 %v5406
        %v5493 = vunpack.c.l.b16 %v5407
        %v5494 = vunpack.c.h.b16 %v5407
        %v5495 = vunpack.c.l.b16 %v5408
        %v5496 = vunpack.c.h.b16 %v5408
        %v5497 = vunpack.c.l.b16 %v5409
        %v5498 = vunpack.c.h.b16 %v5409
        %v5499 = vunpack.c.l.b16 %v5410
        %v5500 = vunpack.c.h.b16 %v5410
        %v5501 = vunpack.c.l.b16 %v5411
        %v5502 = vunpack.c.h.b16 %v5411
        %v5503 = vunpack.c.l.b16 %v5412
        %v5504 = vunpack.c.h.b16 %v5412
        %v5505 = vunpack.c.l.b16 %v5413
        %v5506 = vunpack.c.h.b16 %v5413
        %v5507 = vunpack.c.l.b16 %v5414
        %v5508 = vunpack.c.h.b16 %v5414
        %v5509 = vunpack.c.l.b16 %v5415
        %v5510 = vunpack.c.h.b16 %v5415
        %v5511 = vunpack.c.l.b16 %v5416
        %v5512 = vunpack.c.h.b16 %v5416
        %v5513 = vunpack.c.l.b16 %v5417
        %v5514 = vunpack.c.h.b16 %v5417
        %v5515 = vunpack.c.l.b16 %v5418
        %v5516 = vunpack.c.h.b16 %v5418
        %v5517 = vunpack.c.l.b16 %v5419
        %v5518 = vunpack.c.h.b16 %v5419
        %v5519 = vunpack.c.l.b16 %v5420
        %v5520 = vunpack.c.h.b16 %v5420
        %v5521 = vunpack.c.l.b16 %v5421
        %v5522 = vunpack.c.h.b16 %v5421
        %v5523 = vunpack.c.l.b16 %v5422
        %v5524 = vunpack.c.h.b16 %v5422
        %v5525 = vunpack.c.l.b16 %v5423
        %v5526 = vunpack.c.h.b16 %v5423
        %v5527 = vunpack.c.l.b16 %v5424
        %v5528 = vunpack.c.h.b16 %v5424
        %v5529 = vunpack.c.l.b16 %v5425
        %v5530 = vunpack.c.h.b16 %v5425
        %v5531 = vunpack.c.l.b16 %v5426
        %v5532 = vunpack.c.h.b16 %v5426
        %v5533 = vunpack.c.l.b16 %v5427
        %v5534 = vunpack.c.h.b16 %v5427
        %v5535 = vunpack.c.l.b16 %v5428
        %v5536 = vunpack.c.h.b16 %v5428
        %v5537 = vpack.c.b16 %v5475, %v5473
        %v5538 = vpack.c.b16 %v5476, %v5474
        %v5539 = vpack.c.b16 %v5479, %v5477
        %v5540 = vpack.c.b16 %v5480, %v5478
        %v5541 = vpack.c.b16 %v5483, %v5481
        %v5542 = vpack.c.b16 %v5484, %v5482
        %v5543 = vpack.c.b16 %v5487, %v5485
        %v5544 = vpack.c.b16 %v5488, %v5486
        %v5545 = vpack.c.b16 %v5491, %v5489
        %v5546 = vpack.c.b16 %v5492, %v5490
        %v5547 = vpack.c.b16 %v5495, %v5493
        %v5548 = vpack.c.b16 %v5496, %v5494
        %v5549 = vpack.c.b16 %v5499, %v5497
        %v5550 = vpack.c.b16 %v5500, %v5498
        %v5551 = vpack.c.b16 %v5503, %v5501
        %v5552 = vpack.c.b16 %v5504, %v5502
        %v5553 = vpack.c.b16 %v5507, %v5505
        %v5554 = vpack.c.b16 %v5508, %v5506
        %v5555 = vpack.c.b16 %v5511, %v5509
        %v5556 = vpack.c.b16 %v5512, %v5510
        %v5557 = vpack.c.b16 %v5515, %v5513
        %v5558 = vpack.c.b16 %v5516, %v5514
        %v5559 = vpack.c.b16 %v5519, %v5517
        %v5560 = vpack.c.b16 %v5520, %v5518
        %v5561 = vpack.c.b16 %v5523, %v5521
        %v5562 = vpack.c.b16 %v5524, %v5522
        %v5563 = vpack.c.b16 %v5527, %v5525
        %v5564 = vpack.c.b16 %v5528, %v5526
        %v5565 = vpack.c.b16 %v5531, %v5529
        %v5566 = vpack.c.b16 %v5532, %v5530
        %v5567 = vpack.c.b16 %v5535, %v5533
        %v5568 = vpack.c.b16 %v5536, %v5534
        %5601 = vmatprep.subr.bf16.mxu0 %v5538
        %5602 = vmatpush1.bf16.msra.mxu0 %v5537
        %5603 = vmatprep.subr.bf16.mxu0 %v5540
        %5604 = vmatpush1.bf16.msra.mxu0 %v5539
        %5605 = vmatprep.subr.bf16.mxu0 %v5542
        %5606 = vmatpush1.bf16.msra.mxu0 %v5541
        %5607 = vmatprep.subr.bf16.mxu0 %v5544
        %5608 = vmatpush1.bf16.msra.mxu0 %v5543
        %5609 = vmatprep.subr.bf16.mxu0 %v5546
        %5610 = vmatpush1.bf16.msra.mxu0 %v5545
        %5611 = vmatprep.subr.bf16.mxu0 %v5548
        %5612 = vmatpush1.bf16.msra.mxu0 %v5547
        %5613 = vmatprep.subr.bf16.mxu0 %v5550
        %5614 = vmatpush1.bf16.msra.mxu0 %v5549
        %5615 = vmatprep.subr.bf16.mxu0 %v5552
        %5616 = vmatpush1.bf16.msra.mxu0 %v5551
        %5617 = vmatprep.subr.bf16.mxu0 %v5554
        %5618 = vmatpush1.bf16.msra.mxu0 %v5553
        %5619 = vmatprep.subr.bf16.mxu0 %v5556
        %5620 = vmatpush1.bf16.msra.mxu0 %v5555
        %5621 = vmatprep.subr.bf16.mxu0 %v5558
        %5622 = vmatpush1.bf16.msra.mxu0 %v5557
        %5623 = vmatprep.subr.bf16.mxu0 %v5560
        %5624 = vmatpush1.bf16.msra.mxu0 %v5559
        %5625 = vmatprep.subr.bf16.mxu0 %v5562
        %5626 = vmatpush1.bf16.msra.mxu0 %v5561
        %5627 = vmatprep.subr.bf16.mxu0 %v5564
        %5628 = vmatpush1.bf16.msra.mxu0 %v5563
        %5629 = vmatprep.subr.bf16.mxu0 %v5566
        %5630 = vmatpush1.bf16.msra.mxu0 %v5565
        %5631 = vmatprep.subr.bf16.mxu0 %v5568
        %5632 = vmatpush1.bf16.msra.mxu0 %v5567
        %5633 = vmatprep.mubr.bf16.mxu0 %v5389
        %5634 = vmatmul.mubr.bf16.gmra.mrb[0].mxu0 %v5268
        %v5635 = vpop.f32.mrb[0].mxu0
        %v5636 = vadd.f32 %v5434, %v5635
        %v5637 = vpop.f32.mrb[0].mxu0
        %v5638 = vadd.f32 %v5438, %v5637
        %v5639 = vpop.f32.mrb[0].mxu0
        %v5640 = vadd.f32 %v5434, %v5639
        %v5641 = vpop.f32.mrb[0].mxu0
        %v5642 = vadd.f32 %v5438, %v5641
        %5643 = vmatprep.mubr.bf16.mxu0 %v5390
        %5644 = vmatmul.mubr.bf16.gmra.mrb[0].mxu0 %v5269
        %v5645 = vpop.f32.mrb[0].mxu0
        %v5646 = vadd.f32 %v5434, %v5645
        %v5647 = vpop.f32.mrb[0].mxu0
        %v5648 = vadd.f32 %v5438, %v5647
        %v5649 = vpop.f32.mrb[0].mxu0
        %v5650 = vadd.f32 %v5434, %v5649
        %v5651 = vpop.f32.mrb[0].mxu0
        %v5652 = vadd.f32 %v5438, %v5651
        %5653 = vmatprep.mubr.bf16.mxu0 %v5391
        %5654 = vmatmul.mubr.bf16.gmra.mrb[0].mxu0 %v5270
        %v5655 = vpop.f32.mrb[0].mxu0
        %v5656 = vadd.f32 %v5434, %v5655
        %v5657 = vpop.f32.mrb[0].mxu0
        %v5658 = vadd.f32 %v5438, %v5657
        %v5659 = vpop.f32.mrb[0].mxu0
        %v5660 = vadd.f32 %v5434, %v5659
        %v5661 = vpop.f32.mrb[0].mxu0
        %v5662 = vadd.f32 %v5438, %v5661
        %5663 = vmatprep.mubr.bf16.mxu0 %v5392
        %5664 = vmatmul.mubr.bf16.gmra.mrb[0].mxu0 %v5271
        %v5665 = vpop.f32.mrb[0].mxu0
        %v5666 = vadd.f32 %v5434, %v5665
        %v5667 = vpop.f32.mrb[0].mxu0
        %v5668 = vadd.f32 %v5438, %v5667
        %v5669 = vpop.f32.mrb[0].mxu0
        %v5670 = vadd.f32 %v5434, %v5669
        %v5671 = vpop.f32.mrb[0].mxu0
        %v5672 = vadd.f32 %v5438, %v5671
        %5673 = vmatprep.mubr.bf16.mxu0 %v5393
        %5674 = vmatmul.mubr.bf16.gmra.mrb[0].mxu0 %v5272
        %v5675 = vpop.f32.mrb[0].mxu0
        %v5676 = vadd.f32 %v5434, %v5675
        %v5677 = vpop.f32.mrb[0].mxu0
        %v5678 = vadd.f32 %v5438, %v5677
        %v5679 = vpop.f32.mrb[0].mxu0
        %v5680 = vadd.f32 %v5434, %v5679
        %v5681 = vpop.f32.mrb[0].mxu0
        %v5682 = vadd.f32 %v5438, %v5681
        %5683 = vmatprep.mubr.bf16.mxu0 %v5394
        %5684 = vmatmul.mubr.bf16.gmra.mrb[0].mxu0 %v5273
        %v5685 = vpop.f32.mrb[0].mxu0
        %v5686 = vadd.f32 %v5434, %v5685
        %v5687 = vpop.f32.mrb[0].mxu0
        %v5688 = vadd.f32 %v5438, %v5687
        %v5689 = vpop.f32.mrb[0].mxu0
        %v5690 = vadd.f32 %v5434, %v5689
        %v5691 = vpop.f32.mrb[0].mxu0
        %v5692 = vadd.f32 %v5438, %v5691
        %5693 = vmatprep.mubr.bf16.mxu0 %v5395
        %5694 = vmatmul.mubr.bf16.gmra.mrb[0].mxu0 %v5274
        %v5695 = vpop.f32.mrb[0].mxu0
        %v5696 = vadd.f32 %v5434, %v5695
        %v5697 = vpop.f32.mrb[0].mxu0
        %v5698 = vadd.f32 %v5438, %v5697
        %v5699 = vpop.f32.mrb[0].mxu0
        %v5700 = vadd.f32 %v5434, %v5699
        %v5701 = vpop.f32.mrb[0].mxu0
        %v5702 = vadd.f32 %v5438, %v5701
        %5703 = vmatprep.mubr.bf16.mxu0 %v5396
        %5704 = vmatmul.mubr.bf16.gmra.mrb[0].mxu0 %v5275
        %v5705 = vpop.f32.mrb[0].mxu0
        %v5706 = vadd.f32 %v5434, %v5705
        %v5707 = vpop.f32.mrb[0].mxu0
        %v5708 = vadd.f32 %v5438, %v5707
        %v5709 = vpop.f32.mrb[0].mxu0
        %v5710 = vadd.f32 %v5434, %v5709
        %v5711 = vpop.f32.mrb[0].mxu0
        %v5712 = vadd.f32 %v5438, %v5711
        %5713 = vdwg.mxu0
        %v5714 = vadd.f32 %v596, %v5636
        %v5715 = vadd.f32 %v597, %v5638
        %v5716 = vadd.f32 %v598, %v5640
        %v5717 = vadd.f32 %v599, %v5642
        %v5718 = vadd.f32 %v600, %v5646
        %v5719 = vadd.f32 %v601, %v5648
        %v5720 = vadd.f32 %v602, %v5650
        %v5721 = vadd.f32 %v603, %v5652
        %v5722 = vadd.f32 %v604, %v5656
        %v5723 = vadd.f32 %v605, %v5658
        %v5724 = vadd.f32 %v606, %v5660
        %v5725 = vadd.f32 %v607, %v5662
        %v5726 = vadd.f32 %v608, %v5666
        %v5727 = vadd.f32 %v609, %v5668
        %v5728 = vadd.f32 %v610, %v5670
        %v5729 = vadd.f32 %v611, %v5672
        %v5730 = vadd.f32 %v612, %v5676
        %v5731 = vadd.f32 %v613, %v5678
        %v5732 = vadd.f32 %v614, %v5680
        %v5733 = vadd.f32 %v615, %v5682
        %v5734 = vadd.f32 %v616, %v5686
        %v5735 = vadd.f32 %v617, %v5688
        %v5736 = vadd.f32 %v618, %v5690
        %v5737 = vadd.f32 %v619, %v5692
        %v5738 = vadd.f32 %v620, %v5696
        %v5739 = vadd.f32 %v621, %v5698
        %v5740 = vadd.f32 %v622, %v5700
        %v5741 = vadd.f32 %v623, %v5702
        %v5742 = vadd.f32 %v624, %v5706
        %v5743 = vadd.f32 %v625, %v5708
        %v5744 = vadd.f32 %v626, %v5710
        %v5745 = vadd.f32 %v627, %v5712
        %v5746 = vld [vmem:[%s8] sm:$0x3]
        %v5747 = vld [vmem:[%s9] sm:$0x3]
        %v5748 = vadd.f32 %v5714, %v5715
        %5749 = vadd.xlane.f32.xlu0 %v5748
        %v5750 = vpop.xlane.xlu0 %5749
        %v5751 = vadd.f32 %v5716, %v5717
        %5752 = vadd.xlane.f32.xlu0 %v5751
        %v5753 = vpop.xlane.xlu0 %5752
        %v5754 = vadd.f32 %v5718, %v5719
        %5755 = vadd.xlane.f32.xlu0 %v5754
        %v5756 = vpop.xlane.xlu0 %5755
        %v5757 = vadd.f32 %v5720, %v5721
        %5758 = vadd.xlane.f32.xlu0 %v5757
        %v5759 = vpop.xlane.xlu0 %5758
        %v5760 = vadd.f32 %v5722, %v5723
        %5761 = vadd.xlane.f32.xlu0 %v5760
        %v5762 = vpop.xlane.xlu0 %5761
        %v5763 = vadd.f32 %v5724, %v5725
        %5764 = vadd.xlane.f32.xlu0 %v5763
        %v5765 = vpop.xlane.xlu0 %5764
        %v5766 = vadd.f32 %v5726, %v5727
        %5767 = vadd.xlane.f32.xlu0 %v5766
        %v5768 = vpop.xlane.xlu0 %5767
        %v5769 = vadd.f32 %v5728, %v5729
        %5770 = vadd.xlane.f32.xlu0 %v5769
        %v5771 = vpop.xlane.xlu0 %5770
        %v5772 = vadd.f32 %v5730, %v5731
        %5773 = vadd.xlane.f32.xlu0 %v5772
        %v5774 = vpop.xlane.xlu0 %5773
        %v5775 = vadd.f32 %v5732, %v5733
        %5776 = vadd.xlane.f32.xlu0 %v5775
        %v5777 = vpop.xlane.xlu0 %5776
        %v5778 = vadd.f32 %v5734, %v5735
        %5779 = vadd.xlane.f32.xlu0 %v5778
        %v5780 = vpop.xlane.xlu0 %5779
        %v5781 = vadd.f32 %v5736, %v5737
        %5782 = vadd.xlane.f32.xlu0 %v5781
        %v5783 = vpop.xlane.xlu0 %5782
        %v5784 = vadd.f32 %v5738, %v5739
        %5785 = vadd.xlane.f32.xlu0 %v5784
        %v5786 = vpop.xlane.xlu0 %5785
        %v5787 = vadd.f32 %v5740, %v5741
        %5788 = vadd.xlane.f32.xlu0 %v5787
        %v5789 = vpop.xlane.xlu0 %5788
        %v5790 = vadd.f32 %v5742, %v5743
        %5791 = vadd.xlane.f32.xlu0 %v5790
        %v5792 = vpop.xlane.xlu0 %5791
        %v5793 = vadd.f32 %v5744, %v5745
        %5794 = vadd.xlane.f32.xlu0 %v5793
        %v5795 = vpop.xlane.xlu0 %5794
        %v5796 = vmul.f32 %v5750, %v678
        %v5797 = vmul.f32 %v5753, %v678
        %v5798 = vmul.f32 %v5756, %v678
        %v5799 = vmul.f32 %v5759, %v678
        %v5800 = vmul.f32 %v5762, %v678
        %v5801 = vmul.f32 %v5765, %v678
        %v5802 = vmul.f32 %v5768, %v678
        %v5803 = vmul.f32 %v5771, %v678
        %v5804 = vmul.f32 %v5774, %v678
        %v5805 = vmul.f32 %v5777, %v678
        %v5806 = vmul.f32 %v5780, %v678
        %v5807 = vmul.f32 %v5783, %v678
        %v5808 = vmul.f32 %v5786, %v678
        %v5809 = vmul.f32 %v5789, %v678
        %v5810 = vmul.f32 %v5792, %v678
        %v5811 = vmul.f32 %v5795, %v678
        %v5812 = vsub.f32 %v5714, %v5796
        %v5813 = vsub.f32 %v5715, %v5796
        %v5814 = vsub.f32 %v5716, %v5797
        %v5815 = vsub.f32 %v5717, %v5797
        %v5816 = vsub.f32 %v5718, %v5798
        %v5817 = vsub.f32 %v5719, %v5798
        %v5818 = vsub.f32 %v5720, %v5799
        %v5819 = vsub.f32 %v5721, %v5799
        %v5820 = vsub.f32 %v5722, %v5800
        %v5821 = vsub.f32 %v5723, %v5800
        %v5822 = vsub.f32 %v5724, %v5801
        %v5823 = vsub.f32 %v5725, %v5801
        %v5824 = vsub.f32 %v5726, %v5802
        %v5825 = vsub.f32 %v5727, %v5802
        %v5826 = vsub.f32 %v5728, %v5803
        %v5827 = vsub.f32 %v5729, %v5803
        %v5828 = vsub.f32 %v5730, %v5804
        %v5829 = vsub.f32 %v5731, %v5804
        %v5830 = vsub.f32 %v5732, %v5805
        %v5831 = vsub.f32 %v5733, %v5805
        %v5832 = vsub.f32 %v5734, %v5806
        %v5833 = vsub.f32 %v5735, %v5806
        %v5834 = vsub.f32 %v5736, %v5807
        %v5835 = vsub.f32 %v5737, %v5807
        %v5836 = vsub.f32 %v5738, %v5808
        %v5837 = vsub.f32 %v5739, %v5808
        %v5838 = vsub.f32 %v5740, %v5809
        %v5839 = vsub.f32 %v5741, %v5809
        %v5840 = vsub.f32 %v5742, %v5810
        %v5841 = vsub.f32 %v5743, %v5810
        %v5842 = vsub.f32 %v5744, %v5811
        %v5843 = vsub.f32 %v5745, %v5811
        %v5844 = vmul.f32 %v5812, %v5812
        %v5845 = vmul.f32 %v5813, %v5813
        %v5846 = vmul.f32 %v5814, %v5814
        %v5847 = vmul.f32 %v5815, %v5815
        %v5848 = vmul.f32 %v5816, %v5816
        %v5849 = vmul.f32 %v5817, %v5817
        %v5850 = vmul.f32 %v5818, %v5818
        %v5851 = vmul.f32 %v5819, %v5819
        %v5852 = vmul.f32 %v5820, %v5820
        %v5853 = vmul.f32 %v5821, %v5821
        %v5854 = vmul.f32 %v5822, %v5822
        %v5855 = vmul.f32 %v5823, %v5823
        %v5856 = vmul.f32 %v5824, %v5824
        %v5857 = vmul.f32 %v5825, %v5825
        %v5858 = vmul.f32 %v5826, %v5826
        %v5859 = vmul.f32 %v5827, %v5827
        %v5860 = vmul.f32 %v5828, %v5828
        %v5861 = vmul.f32 %v5829, %v5829
        %v5862 = vmul.f32 %v5830, %v5830
        %v5863 = vmul.f32 %v5831, %v5831
        %v5864 = vmul.f32 %v5832, %v5832
        %v5865 = vmul.f32 %v5833, %v5833
        %v5866 = vmul.f32 %v5834, %v5834
        %v5867 = vmul.f32 %v5835, %v5835
        %v5868 = vmul.f32 %v5836, %v5836
        %v5869 = vmul.f32 %v5837, %v5837
        %v5870 = vmul.f32 %v5838, %v5838
        %v5871 = vmul.f32 %v5839, %v5839
        %v5872 = vmul.f32 %v5840, %v5840
        %v5873 = vmul.f32 %v5841, %v5841
        %v5874 = vmul.f32 %v5842, %v5842
        %v5875 = vmul.f32 %v5843, %v5843
        %v5876 = vadd.f32 %v5844, %v5845
        %5877 = vadd.xlane.f32.xlu0 %v5876
        %v5878 = vpop.xlane.xlu0 %5877
        %v5879 = vadd.f32 %v5846, %v5847
        %5880 = vadd.xlane.f32.xlu0 %v5879
        %v5881 = vpop.xlane.xlu0 %5880
        %v5882 = vadd.f32 %v5848, %v5849
        %5883 = vadd.xlane.f32.xlu0 %v5882
        %v5884 = vpop.xlane.xlu0 %5883
        %v5885 = vadd.f32 %v5850, %v5851
        %5886 = vadd.xlane.f32.xlu0 %v5885
        %v5887 = vpop.xlane.xlu0 %5886
        %v5888 = vadd.f32 %v5852, %v5853
        %5889 = vadd.xlane.f32.xlu0 %v5888
        %v5890 = vpop.xlane.xlu0 %5889
        %v5891 = vadd.f32 %v5854, %v5855
        %5892 = vadd.xlane.f32.xlu0 %v5891
        %v5893 = vpop.xlane.xlu0 %5892
        %v5894 = vadd.f32 %v5856, %v5857
        %5895 = vadd.xlane.f32.xlu0 %v5894
        %v5896 = vpop.xlane.xlu0 %5895
        %v5897 = vadd.f32 %v5858, %v5859
        %5898 = vadd.xlane.f32.xlu0 %v5897
        %v5899 = vpop.xlane.xlu0 %5898
        %v5900 = vadd.f32 %v5860, %v5861
        %5901 = vadd.xlane.f32.xlu0 %v5900
        %v5902 = vpop.xlane.xlu0 %5901
        %v5903 = vadd.f32 %v5862, %v5863
        %5904 = vadd.xlane.f32.xlu0 %v5903
        %v5905 = vpop.xlane.xlu0 %5904
        %v5906 = vadd.f32 %v5864, %v5865
        %5907 = vadd.xlane.f32.xlu0 %v5906
        %v5908 = vpop.xlane.xlu0 %5907
        %v5909 = vadd.f32 %v5866, %v5867
        %5910 = vadd.xlane.f32.xlu0 %v5909
        %v5911 = vpop.xlane.xlu0 %5910
        %v5912 = vadd.f32 %v5868, %v5869
        %5913 = vadd.xlane.f32.xlu0 %v5912
        %v5914 = vpop.xlane.xlu0 %5913
        %v5915 = vadd.f32 %v5870, %v5871
        %5916 = vadd.xlane.f32.xlu0 %v5915
        %v5917 = vpop.xlane.xlu0 %5916
        %v5918 = vadd.f32 %v5872, %v5873
        %5919 = vadd.xlane.f32.xlu0 %v5918
        %v5920 = vpop.xlane.xlu0 %5919
        %v5921 = vadd.f32 %v5874, %v5875
        %5922 = vadd.xlane.f32.xlu0 %v5921
        %v5923 = vpop.xlane.xlu0 %5922
        %v5924 = vmul.f32 %v5878, %v678
        %v5925 = vmul.f32 %v5881, %v678
        %v5926 = vmul.f32 %v5884, %v678
        %v5927 = vmul.f32 %v5887, %v678
        %v5928 = vmul.f32 %v5890, %v678
        %v5929 = vmul.f32 %v5893, %v678
        %v5930 = vmul.f32 %v5896, %v678
        %v5931 = vmul.f32 %v5899, %v678
        %v5932 = vmul.f32 %v5902, %v678
        %v5933 = vmul.f32 %v5905, %v678
        %v5934 = vmul.f32 %v5908, %v678
        %v5935 = vmul.f32 %v5911, %v678
        %v5936 = vmul.f32 %v5914, %v678
        %v5937 = vmul.f32 %v5917, %v678
        %v5938 = vmul.f32 %v5920, %v678
        %v5939 = vmul.f32 %v5923, %v678
        %v5940 = vadd.f32 %v5924, 1e-05
        %v5941 = vadd.f32 %v5925, 1e-05
        %v5942 = vadd.f32 %v5926, 1e-05
        %v5943 = vadd.f32 %v5927, 1e-05
        %v5944 = vadd.f32 %v5928, 1e-05
        %v5945 = vadd.f32 %v5929, 1e-05
        %v5946 = vadd.f32 %v5930, 1e-05
        %v5947 = vadd.f32 %v5931, 1e-05
        %v5948 = vadd.f32 %v5932, 1e-05
        %v5949 = vadd.f32 %v5933, 1e-05
        %v5950 = vadd.f32 %v5934, 1e-05
        %v5951 = vadd.f32 %v5935, 1e-05
        %v5952 = vadd.f32 %v5936, 1e-05
        %v5953 = vadd.f32 %v5937, 1e-05
        %v5954 = vadd.f32 %v5938, 1e-05
        %v5955 = vadd.f32 %v5939, 1e-05
        %v5956 = vrsqrt.pop %v5940
        %v5957 = vrsqrt.pop %v5941
        %v5958 = vrsqrt.pop %v5942
        %v5959 = vrsqrt.pop %v5943
        %v5960 = vrsqrt.pop %v5944
        %v5961 = vrsqrt.pop %v5945
        %v5962 = vrsqrt.pop %v5946
        %v5963 = vrsqrt.pop %v5947
        %v5964 = vrsqrt.pop %v5948
        %v5965 = vrsqrt.pop %v5949
        %v5966 = vrsqrt.pop %v5950
        %v5967 = vrsqrt.pop %v5951
        %v5968 = vrsqrt.pop %v5952
        %v5969 = vrsqrt.pop %v5953
        %v5970 = vrsqrt.pop %v5954
        %v5971 = vrsqrt.pop %v5955
        %v5972 = vmul.f32 %v5812, %v5956
        %v5973 = vmul.f32 %v5813, %v5956
        %v5974 = vmul.f32 %v5814, %v5957
        %v5975 = vmul.f32 %v5815, %v5957
        %v5976 = vmul.f32 %v5816, %v5958
        %v5977 = vmul.f32 %v5817, %v5958
        %v5978 = vmul.f32 %v5818, %v5959
        %v5979 = vmul.f32 %v5819, %v5959
        %v5980 = vmul.f32 %v5820, %v5960
        %v5981 = vmul.f32 %v5821, %v5960
        %v5982 = vmul.f32 %v5822, %v5961
        %v5983 = vmul.f32 %v5823, %v5961
        %v5984 = vmul.f32 %v5824, %v5962
        %v5985 = vmul.f32 %v5825, %v5962
        %v5986 = vmul.f32 %v5826, %v5963
        %v5987 = vmul.f32 %v5827, %v5963
        %v5988 = vmul.f32 %v5828, %v5964
        %v5989 = vmul.f32 %v5829, %v5964
        %v5990 = vmul.f32 %v5830, %v5965
        %v5991 = vmul.f32 %v5831, %v5965
        %v5992 = vmul.f32 %v5832, %v5966
        %v5993 = vmul.f32 %v5833, %v5966
        %v5994 = vmul.f32 %v5834, %v5967
        %v5995 = vmul.f32 %v5835, %v5967
        %v5996 = vmul.f32 %v5836, %v5968
        %v5997 = vmul.f32 %v5837, %v5968
        %v5998 = vmul.f32 %v5838, %v5969
        %v5999 = vmul.f32 %v5839, %v5969
        %v6000 = vmul.f32 %v5840, %v5970
        %v6001 = vmul.f32 %v5841, %v5970
        %v6002 = vmul.f32 %v5842, %v5971
        %v6003 = vmul.f32 %v5843, %v5971
        %v6005 = vlaneseq
        %v6006 = vshrl.u32 %v6005, 7
        %v6007 = vsub.s32 0, %v6006
        %v6008 = vrot.slane %v5746, %v6007
        %v6009 = vlaneseq
        %v6010 = vshrl.u32 %v6009, 7
        %v6011 = vsub.s32 1, %v6010
        %v6012 = vrot.slane %v5746, %v6011
        %v6015 = vmul.f32 %v5972, %v6008
        %v6016 = vmul.f32 %v5973, %v6012
        %v6017 = vmul.f32 %v5974, %v6008
        %v6018 = vmul.f32 %v5975, %v6012
        %v6019 = vmul.f32 %v5976, %v6008
        %v6020 = vmul.f32 %v5977, %v6012
        %v6021 = vmul.f32 %v5978, %v6008
        %v6022 = vmul.f32 %v5979, %v6012
        %v6023 = vmul.f32 %v5980, %v6008
        %v6024 = vmul.f32 %v5981, %v6012
        %v6025 = vmul.f32 %v5982, %v6008
        %v6026 = vmul.f32 %v5983, %v6012
        %v6027 = vmul.f32 %v5984, %v6008
        %v6028 = vmul.f32 %v5985, %v6012
        %v6029 = vmul.f32 %v5986, %v6008
        %v6030 = vmul.f32 %v5987, %v6012
        %v6031 = vmul.f32 %v5988, %v6008
        %v6032 = vmul.f32 %v5989, %v6012
        %v6033 = vmul.f32 %v5990, %v6008
        %v6034 = vmul.f32 %v5991, %v6012
        %v6035 = vmul.f32 %v5992, %v6008
        %v6036 = vmul.f32 %v5993, %v6012
        %v6037 = vmul.f32 %v5994, %v6008
        %v6038 = vmul.f32 %v5995, %v6012
        %v6039 = vmul.f32 %v5996, %v6008
        %v6040 = vmul.f32 %v5997, %v6012
        %v6041 = vmul.f32 %v5998, %v6008
        %v6042 = vmul.f32 %v5999, %v6012
        %v6043 = vmul.f32 %v6000, %v6008
        %v6044 = vmul.f32 %v6001, %v6012
        %v6045 = vmul.f32 %v6002, %v6008
        %v6046 = vmul.f32 %v6003, %v6012
        %v6048 = vlaneseq
        %v6049 = vshrl.u32 %v6048, 7
        %v6050 = vsub.s32 0, %v6049
        %v6051 = vrot.slane %v5747, %v6050
        %v6052 = vlaneseq
        %v6053 = vshrl.u32 %v6052, 7
        %v6054 = vsub.s32 1, %v6053
        %v6055 = vrot.slane %v5747, %v6054
        %v6058 = vadd.f32 %v6015, %v6051
        %v6059 = vadd.f32 %v6016, %v6055
        %v6060 = vadd.f32 %v6017, %v6051
        %v6061 = vadd.f32 %v6018, %v6055
        %v6062 = vadd.f32 %v6019, %v6051
        %v6063 = vadd.f32 %v6020, %v6055
        %v6064 = vadd.f32 %v6021, %v6051
        %v6065 = vadd.f32 %v6022, %v6055
        %v6066 = vadd.f32 %v6023, %v6051
        %v6067 = vadd.f32 %v6024, %v6055
        %v6068 = vadd.f32 %v6025, %v6051
        %v6069 = vadd.f32 %v6026, %v6055
        %v6070 = vadd.f32 %v6027, %v6051
        %v6071 = vadd.f32 %v6028, %v6055
        %v6072 = vadd.f32 %v6029, %v6051
        %v6073 = vadd.f32 %v6030, %v6055
        %v6074 = vadd.f32 %v6031, %v6051
        %v6075 = vadd.f32 %v6032, %v6055
        %v6076 = vadd.f32 %v6033, %v6051
        %v6077 = vadd.f32 %v6034, %v6055
        %v6078 = vadd.f32 %v6035, %v6051
        %v6079 = vadd.f32 %v6036, %v6055
        %v6080 = vadd.f32 %v6037, %v6051
        %v6081 = vadd.f32 %v6038, %v6055
        %v6082 = vadd.f32 %v6039, %v6051
        %v6083 = vadd.f32 %v6040, %v6055
        %v6084 = vadd.f32 %v6041, %v6051
        %v6085 = vadd.f32 %v6042, %v6055
        %v6086 = vadd.f32 %v6043, %v6051
        %v6087 = vadd.f32 %v6044, %v6055
        %v6088 = vadd.f32 %v6045, %v6051
        %v6089 = vadd.f32 %v6046, %v6055
        %v6090 = vpack.c.bf16 %v6060, %v6058
        %v6091 = vpack.c.bf16 %v6061, %v6059
        %v6092 = vpack.c.bf16 %v6064, %v6062
        %v6093 = vpack.c.bf16 %v6065, %v6063
        %v6094 = vpack.c.bf16 %v6068, %v6066
        %v6095 = vpack.c.bf16 %v6069, %v6067
        %v6096 = vpack.c.bf16 %v6072, %v6070
        %v6097 = vpack.c.bf16 %v6073, %v6071
        %v6098 = vpack.c.bf16 %v6076, %v6074
        %v6099 = vpack.c.bf16 %v6077, %v6075
        %v6100 = vpack.c.bf16 %v6080, %v6078
        %v6101 = vpack.c.bf16 %v6081, %v6079
        %v6102 = vpack.c.bf16 %v6084, %v6082
        %v6103 = vpack.c.bf16 %v6085, %v6083
        %v6104 = vpack.c.bf16 %v6088, %v6086
        %v6105 = vpack.c.bf16 %v6089, %v6087
        %v6106 = vld [vmem:[#allocation16] sm:$0xff]
        %v6107 = vld [vmem:[#allocation16 + $0x8] sm:$0xff]
        %v6108 = vld [vmem:[#allocation16 + $0x10] sm:$0xff]
        %v6109 = vld [vmem:[#allocation16 + $0x18] sm:$0xff]
        %v6110 = vld [vmem:[#allocation16 + $0x20] sm:$0xff]
        %v6111 = vld [vmem:[#allocation16 + $0x28] sm:$0xff]
        %v6112 = vld [vmem:[#allocation16 + $0x30] sm:$0xff]
        %v6113 = vld [vmem:[#allocation16 + $0x38] sm:$0xff]
        %v6114 = vld [vmem:[#allocation16 + $0x40] sm:$0xff]
        %v6115 = vld [vmem:[#allocation16 + $0x48] sm:$0xff]
        %v6116 = vld [vmem:[#allocation16 + $0x50] sm:$0xff]
        %v6117 = vld [vmem:[#allocation16 + $0x58] sm:$0xff]
        %v6118 = vld [vmem:[#allocation16 + $0x60] sm:$0xff]
        %v6119 = vld [vmem:[#allocation16 + $0x68] sm:$0xff]
        %v6120 = vld [vmem:[#allocation16 + $0x70] sm:$0xff]
        %v6121 = vld [vmem:[#allocation16 + $0x78] sm:$0xff]
        %v6122 = vld [vmem:[#allocation16 + $0x80] sm:$0xff]
        %v6123 = vld [vmem:[#allocation16 + $0x88] sm:$0xff]
        %v6124 = vld [vmem:[#allocation16 + $0x90] sm:$0xff]
        %v6125 = vld [vmem:[#allocation16 + $0x98] sm:$0xff]
        %v6126 = vld [vmem:[#allocation16 + $0xa0] sm:$0xff]
        %v6127 = vld [vmem:[#allocation16 + $0xa8] sm:$0xff]
        %v6128 = vld [vmem:[#allocation16 + $0xb0] sm:$0xff]
        %v6129 = vld [vmem:[#allocation16 + $0xb8] sm:$0xff]
        %v6130 = vld [vmem:[#allocation16 + $0xc0] sm:$0xff]
        %v6131 = vld [vmem:[#allocation16 + $0xc8] sm:$0xff]
        %v6132 = vld [vmem:[#allocation16 + $0xd0] sm:$0xff]
        %v6133 = vld [vmem:[#allocation16 + $0xd8] sm:$0xff]
        %v6134 = vld [vmem:[#allocation16 + $0xe0] sm:$0xff]
        %v6135 = vld [vmem:[#allocation16 + $0xe8] sm:$0xff]
        %v6136 = vld [vmem:[#allocation16 + $0xf0] sm:$0xff]
        %v6137 = vld [vmem:[#allocation16 + $0xf8] sm:$0xff]
        %v6138 = vld [vmem:[#allocation16 + $0x100] sm:$0xff]
        %v6139 = vld [vmem:[#allocation16 + $0x108] sm:$0xff]
        %v6140 = vld [vmem:[#allocation16 + $0x110] sm:$0xff]
        %v6141 = vld [vmem:[#allocation16 + $0x118] sm:$0xff]
        %v6142 = vld [vmem:[#allocation16 + $0x120] sm:$0xff]
        %v6143 = vld [vmem:[#allocation16 + $0x128] sm:$0xff]
        %v6144 = vld [vmem:[#allocation16 + $0x130] sm:$0xff]
        %v6145 = vld [vmem:[#allocation16 + $0x138] sm:$0xff]
        %v6146 = vld [vmem:[#allocation16 + $0x140] sm:$0xff]
        %v6147 = vld [vmem:[#allocation16 + $0x148] sm:$0xff]
        %v6148 = vld [vmem:[#allocation16 + $0x150] sm:$0xff]
        %v6149 = vld [vmem:[#allocation16 + $0x158] sm:$0xff]
        %v6150 = vld [vmem:[#allocation16 + $0x160] sm:$0xff]
        %v6151 = vld [vmem:[#allocation16 + $0x168] sm:$0xff]
        %v6152 = vld [vmem:[#allocation16 + $0x170] sm:$0xff]
        %v6153 = vld [vmem:[#allocation16 + $0x178] sm:$0xff]
        %v6154 = vld [vmem:[#allocation16 + $0x180] sm:$0xff]
        %v6155 = vld [vmem:[#allocation16 + $0x188] sm:$0xff]
        %v6156 = vld [vmem:[#allocation16 + $0x190] sm:$0xff]
        %v6157 = vld [vmem:[#allocation16 + $0x198] sm:$0xff]
        %v6158 = vld [vmem:[#allocation16 + $0x1a0] sm:$0xff]
        %v6159 = vld [vmem:[#allocation16 + $0x1a8] sm:$0xff]
        %v6160 = vld [vmem:[#allocation16 + $0x1b0] sm:$0xff]
        %v6161 = vld [vmem:[#allocation16 + $0x1b8] sm:$0xff]
        %v6162 = vld [vmem:[#allocation16 + $0x1c0] sm:$0xff]
        %v6163 = vld [vmem:[#allocation16 + $0x1c8] sm:$0xff]
        %v6164 = vld [vmem:[#allocation16 + $0x1d0] sm:$0xff]
        %v6165 = vld [vmem:[#allocation16 + $0x1d8] sm:$0xff]
        %v6166 = vld [vmem:[#allocation16 + $0x1e0] sm:$0xff]
        %v6167 = vld [vmem:[#allocation16 + $0x1e8] sm:$0xff]
        %v6168 = vld [vmem:[#allocation16 + $0x1f0] sm:$0xff]
        %v6169 = vld [vmem:[#allocation16 + $0x1f8] sm:$0xff]
        %v6170 = vld [vmem:[#allocation16 + $0x200] sm:$0xff]
        %v6171 = vld [vmem:[#allocation16 + $0x208] sm:$0xff]
        %v6172 = vld [vmem:[#allocation16 + $0x210] sm:$0xff]
        %v6173 = vld [vmem:[#allocation16 + $0x218] sm:$0xff]
        %v6174 = vld [vmem:[#allocation16 + $0x220] sm:$0xff]
        %v6175 = vld [vmem:[#allocation16 + $0x228] sm:$0xff]
        %v6176 = vld [vmem:[#allocation16 + $0x230] sm:$0xff]
        %v6177 = vld [vmem:[#allocation16 + $0x238] sm:$0xff]
        %v6178 = vld [vmem:[#allocation16 + $0x240] sm:$0xff]
        %v6179 = vld [vmem:[#allocation16 + $0x248] sm:$0xff]
        %v6180 = vld [vmem:[#allocation16 + $0x250] sm:$0xff]
        %v6181 = vld [vmem:[#allocation16 + $0x258] sm:$0xff]
        %v6182 = vld [vmem:[#allocation16 + $0x260] sm:$0xff]
        %v6183 = vld [vmem:[#allocation16 + $0x268] sm:$0xff]
        %v6184 = vld [vmem:[#allocation16 + $0x270] sm:$0xff]
        %v6185 = vld [vmem:[#allocation16 + $0x278] sm:$0xff]
        %v6186 = vld [vmem:[#allocation16 + $0x280] sm:$0xff]
        %v6187 = vld [vmem:[#allocation16 + $0x288] sm:$0xff]
        %v6188 = vld [vmem:[#allocation16 + $0x290] sm:$0xff]
        %v6189 = vld [vmem:[#allocation16 + $0x298] sm:$0xff]
        %v6190 = vld [vmem:[#allocation16 + $0x2a0] sm:$0xff]
        %v6191 = vld [vmem:[#allocation16 + $0x2a8] sm:$0xff]
        %v6192 = vld [vmem:[#allocation16 + $0x2b0] sm:$0xff]
        %v6193 = vld [vmem:[#allocation16 + $0x2b8] sm:$0xff]
        %v6194 = vld [vmem:[#allocation16 + $0x2c0] sm:$0xff]
        %v6195 = vld [vmem:[#allocation16 + $0x2c8] sm:$0xff]
        %v6196 = vld [vmem:[#allocation16 + $0x2d0] sm:$0xff]
        %v6197 = vld [vmem:[#allocation16 + $0x2d8] sm:$0xff]
        %v6198 = vld [vmem:[#allocation16 + $0x2e0] sm:$0xff]
        %v6199 = vld [vmem:[#allocation16 + $0x2e8] sm:$0xff]
        %v6200 = vld [vmem:[#allocation16 + $0x2f0] sm:$0xff]
        %v6201 = vld [vmem:[#allocation16 + $0x2f8] sm:$0xff]
        %v6202 = vld [vmem:[#allocation16 + $0x300] sm:$0xff]
        %v6203 = vld [vmem:[#allocation16 + $0x308] sm:$0xff]
        %v6204 = vld [vmem:[#allocation16 + $0x310] sm:$0xff]
        %v6205 = vld [vmem:[#allocation16 + $0x318] sm:$0xff]
        %v6206 = vld [vmem:[#allocation16 + $0x320] sm:$0xff]
        %v6207 = vld [vmem:[#allocation16 + $0x328] sm:$0xff]
        %v6208 = vld [vmem:[#allocation16 + $0x330] sm:$0xff]
        %v6209 = vld [vmem:[#allocation16 + $0x338] sm:$0xff]
        %v6210 = vld [vmem:[#allocation16 + $0x340] sm:$0xff]
        %v6211 = vld [vmem:[#allocation16 + $0x348] sm:$0xff]
        %v6212 = vld [vmem:[#allocation16 + $0x350] sm:$0xff]
        %v6213 = vld [vmem:[#allocation16 + $0x358] sm:$0xff]
        %v6214 = vld [vmem:[#allocation16 + $0x360] sm:$0xff]
        %v6215 = vld [vmem:[#allocation16 + $0x368] sm:$0xff]
        %v6216 = vld [vmem:[#allocation16 + $0x370] sm:$0xff]
        %v6217 = vld [vmem:[#allocation16 + $0x378] sm:$0xff]
        %v6218 = vld [vmem:[#allocation16 + $0x380] sm:$0xff]
        %v6219 = vld [vmem:[#allocation16 + $0x388] sm:$0xff]
        %v6220 = vld [vmem:[#allocation16 + $0x390] sm:$0xff]
        %v6221 = vld [vmem:[#allocation16 + $0x398] sm:$0xff]
        %v6222 = vld [vmem:[#allocation16 + $0x3a0] sm:$0xff]
        %v6223 = vld [vmem:[#allocation16 + $0x3a8] sm:$0xff]
        %v6224 = vld [vmem:[#allocation16 + $0x3b0] sm:$0xff]
        %v6225 = vld [vmem:[#allocation16 + $0x3b8] sm:$0xff]
        %v6226 = vld [vmem:[#allocation16 + $0x3c0] sm:$0xff]
        %v6227 = vld [vmem:[#allocation16 + $0x3c8] sm:$0xff]
        %v6228 = vld [vmem:[#allocation16 + $0x3d0] sm:$0xff]
        %v6229 = vld [vmem:[#allocation16 + $0x3d8] sm:$0xff]
        %v6230 = vld [vmem:[#allocation16 + $0x3e0] sm:$0xff]
        %v6231 = vld [vmem:[#allocation16 + $0x3e8] sm:$0xff]
        %v6232 = vld [vmem:[#allocation16 + $0x3f0] sm:$0xff]
        %v6233 = vld [vmem:[#allocation16 + $0x3f8] sm:$0xff]
        %v6234 = vld [vmem:[%s11] sm:$0xff]
        %v6236 = vlaneseq
        %v6237 = vshrl.u32 %v6236, 7
        %v6238 = vsub.s32 0, %v6237
        %v6239 = vrot.slane %v6234, %v6238
        %v6240 = vlaneseq
        %v6241 = vshrl.u32 %v6240, 7
        %v6242 = vsub.s32 1, %v6241
        %v6243 = vrot.slane %v6234, %v6242
        %v6244 = vlaneseq
        %v6245 = vshrl.u32 %v6244, 7
        %v6246 = vsub.s32 2, %v6245
        %v6247 = vrot.slane %v6234, %v6246
        %v6248 = vlaneseq
        %v6249 = vshrl.u32 %v6248, 7
        %v6250 = vsub.s32 3, %v6249
        %v6251 = vrot.slane %v6234, %v6250
        %v6252 = vlaneseq
        %v6253 = vshrl.u32 %v6252, 7
        %v6254 = vsub.s32 4, %v6253
        %v6255 = vrot.slane %v6234, %v6254
        %v6256 = vlaneseq
        %v6257 = vshrl.u32 %v6256, 7
        %v6258 = vsub.s32 5, %v6257
        %v6259 = vrot.slane %v6234, %v6258
        %v6260 = vlaneseq
        %v6261 = vshrl.u32 %v6260, 7
        %v6262 = vsub.s32 6, %v6261
        %v6263 = vrot.slane %v6234, %v6262
        %v6264 = vlaneseq
        %v6265 = vshrl.u32 %v6264, 7
        %v6266 = vsub.s32 7, %v6265
        %v6267 = vrot.slane %v6234, %v6266
        %v6404 = vunpack.c.l.b16 %v6106
        %v6405 = vunpack.c.h.b16 %v6106
        %v6406 = vunpack.c.l.b16 %v6107
        %v6407 = vunpack.c.h.b16 %v6107
        %v6408 = vunpack.c.l.b16 %v6108
        %v6409 = vunpack.c.h.b16 %v6108
        %v6410 = vunpack.c.l.b16 %v6109
        %v6411 = vunpack.c.h.b16 %v6109
        %v6412 = vunpack.c.l.b16 %v6110
        %v6413 = vunpack.c.h.b16 %v6110
        %v6414 = vunpack.c.l.b16 %v6111
        %v6415 = vunpack.c.h.b16 %v6111
        %v6416 = vunpack.c.l.b16 %v6112
        %v6417 = vunpack.c.h.b16 %v6112
        %v6418 = vunpack.c.l.b16 %v6113
        %v6419 = vunpack.c.h.b16 %v6113
        %v6420 = vunpack.c.l.b16 %v6114
        %v6421 = vunpack.c.h.b16 %v6114
        %v6422 = vunpack.c.l.b16 %v6115
        %v6423 = vunpack.c.h.b16 %v6115
        %v6424 = vunpack.c.l.b16 %v6116
        %v6425 = vunpack.c.h.b16 %v6116
        %v6426 = vunpack.c.l.b16 %v6117
        %v6427 = vunpack.c.h.b16 %v6117
        %v6428 = vunpack.c.l.b16 %v6118
        %v6429 = vunpack.c.h.b16 %v6118
        %v6430 = vunpack.c.l.b16 %v6119
        %v6431 = vunpack.c.h.b16 %v6119
        %v6432 = vunpack.c.l.b16 %v6120
        %v6433 = vunpack.c.h.b16 %v6120
        %v6434 = vunpack.c.l.b16 %v6121
        %v6435 = vunpack.c.h.b16 %v6121
        %v6436 = vunpack.c.l.b16 %v6122
        %v6437 = vunpack.c.h.b16 %v6122
        %v6438 = vunpack.c.l.b16 %v6123
        %v6439 = vunpack.c.h.b16 %v6123
        %v6440 = vunpack.c.l.b16 %v6124
        %v6441 = vunpack.c.h.b16 %v6124
        %v6442 = vunpack.c.l.b16 %v6125
        %v6443 = vunpack.c.h.b16 %v6125
        %v6444 = vunpack.c.l.b16 %v6126
        %v6445 = vunpack.c.h.b16 %v6126
        %v6446 = vunpack.c.l.b16 %v6127
        %v6447 = vunpack.c.h.b16 %v6127
        %v6448 = vunpack.c.l.b16 %v6128
        %v6449 = vunpack.c.h.b16 %v6128
        %v6450 = vunpack.c.l.b16 %v6129
        %v6451 = vunpack.c.h.b16 %v6129
        %v6452 = vunpack.c.l.b16 %v6130
        %v6453 = vunpack.c.h.b16 %v6130
        %v6454 = vunpack.c.l.b16 %v6131
        %v6455 = vunpack.c.h.b16 %v6131
        %v6456 = vunpack.c.l.b16 %v6132
        %v6457 = vunpack.c.h.b16 %v6132
        %v6458 = vunpack.c.l.b16 %v6133
        %v6459 = vunpack.c.h.b16 %v6133
        %v6460 = vunpack.c.l.b16 %v6134
        %v6461 = vunpack.c.h.b16 %v6134
        %v6462 = vunpack.c.l.b16 %v6135
        %v6463 = vunpack.c.h.b16 %v6135
        %v6464 = vunpack.c.l.b16 %v6136
        %v6465 = vunpack.c.h.b16 %v6136
        %v6466 = vunpack.c.l.b16 %v6137
        %v6467 = vunpack.c.h.b16 %v6137
        %v6468 = vunpack.c.l.b16 %v6138
        %v6469 = vunpack.c.h.b16 %v6138
        %v6470 = vunpack.c.l.b16 %v6139
        %v6471 = vunpack.c.h.b16 %v6139
        %v6472 = vunpack.c.l.b16 %v6140
        %v6473 = vunpack.c.h.b16 %v6140
        %v6474 = vunpack.c.l.b16 %v6141
        %v6475 = vunpack.c.h.b16 %v6141
        %v6476 = vunpack.c.l.b16 %v6142
        %v6477 = vunpack.c.h.b16 %v6142
        %v6478 = vunpack.c.l.b16 %v6143
        %v6479 = vunpack.c.h.b16 %v6143
        %v6480 = vunpack.c.l.b16 %v6144
        %v6481 = vunpack.c.h.b16 %v6144
        %v6482 = vunpack.c.l.b16 %v6145
        %v6483 = vunpack.c.h.b16 %v6145
        %v6484 = vunpack.c.l.b16 %v6146
        %v6485 = vunpack.c.h.b16 %v6146
        %v6486 = vunpack.c.l.b16 %v6147
        %v6487 = vunpack.c.h.b16 %v6147
        %v6488 = vunpack.c.l.b16 %v6148
        %v6489 = vunpack.c.h.b16 %v6148
        %v6490 = vunpack.c.l.b16 %v6149
        %v6491 = vunpack.c.h.b16 %v6149
        %v6492 = vunpack.c.l.b16 %v6150
        %v6493 = vunpack.c.h.b16 %v6150
        %v6494 = vunpack.c.l.b16 %v6151
        %v6495 = vunpack.c.h.b16 %v6151
        %v6496 = vunpack.c.l.b16 %v6152
        %v6497 = vunpack.c.h.b16 %v6152
        %v6498 = vunpack.c.l.b16 %v6153
        %v6499 = vunpack.c.h.b16 %v6153
        %v6500 = vunpack.c.l.b16 %v6154
        %v6501 = vunpack.c.h.b16 %v6154
        %v6502 = vunpack.c.l.b16 %v6155
        %v6503 = vunpack.c.h.b16 %v6155
        %v6504 = vunpack.c.l.b16 %v6156
        %v6505 = vunpack.c.h.b16 %v6156
        %v6506 = vunpack.c.l.b16 %v6157
        %v6507 = vunpack.c.h.b16 %v6157
        %v6508 = vunpack.c.l.b16 %v6158
        %v6509 = vunpack.c.h.b16 %v6158
        %v6510 = vunpack.c.l.b16 %v6159
        %v6511 = vunpack.c.h.b16 %v6159
        %v6512 = vunpack.c.l.b16 %v6160
        %v6513 = vunpack.c.h.b16 %v6160
        %v6514 = vunpack.c.l.b16 %v6161
        %v6515 = vunpack.c.h.b16 %v6161
        %v6516 = vunpack.c.l.b16 %v6162
        %v6517 = vunpack.c.h.b16 %v6162
        %v6518 = vunpack.c.l.b16 %v6163
        %v6519 = vunpack.c.h.b16 %v6163
        %v6520 = vunpack.c.l.b16 %v6164
        %v6521 = vunpack.c.h.b16 %v6164
        %v6522 = vunpack.c.l.b16 %v6165
        %v6523 = vunpack.c.h.b16 %v6165
        %v6524 = vunpack.c.l.b16 %v6166
        %v6525 = vunpack.c.h.b16 %v6166
        %v6526 = vunpack.c.l.b16 %v6167
        %v6527 = vunpack.c.h.b16 %v6167
        %v6528 = vunpack.c.l.b16 %v6168
        %v6529 = vunpack.c.h.b16 %v6168
        %v6530 = vunpack.c.l.b16 %v6169
        %v6531 = vunpack.c.h.b16 %v6169
        %v6532 = vunpack.c.l.b16 %v6170
        %v6533 = vunpack.c.h.b16 %v6170
        %v6534 = vunpack.c.l.b16 %v6171
        %v6535 = vunpack.c.h.b16 %v6171
        %v6536 = vunpack.c.l.b16 %v6172
        %v6537 = vunpack.c.h.b16 %v6172
        %v6538 = vunpack.c.l.b16 %v6173
        %v6539 = vunpack.c.h.b16 %v6173
        %v6540 = vunpack.c.l.b16 %v6174
        %v6541 = vunpack.c.h.b16 %v6174
        %v6542 = vunpack.c.l.b16 %v6175
        %v6543 = vunpack.c.h.b16 %v6175
        %v6544 = vunpack.c.l.b16 %v6176
        %v6545 = vunpack.c.h.b16 %v6176
        %v6546 = vunpack.c.l.b16 %v6177
        %v6547 = vunpack.c.h.b16 %v6177
        %v6548 = vunpack.c.l.b16 %v6178
        %v6549 = vunpack.c.h.b16 %v6178
        %v6550 = vunpack.c.l.b16 %v6179
        %v6551 = vunpack.c.h.b16 %v6179
        %v6552 = vunpack.c.l.b16 %v6180
        %v6553 = vunpack.c.h.b16 %v6180
        %v6554 = vunpack.c.l.b16 %v6181
        %v6555 = vunpack.c.h.b16 %v6181
        %v6556 = vunpack.c.l.b16 %v6182
        %v6557 = vunpack.c.h.b16 %v6182
        %v6558 = vunpack.c.l.b16 %v6183
        %v6559 = vunpack.c.h.b16 %v6183
        %v6560 = vunpack.c.l.b16 %v6184
        %v6561 = vunpack.c.h.b16 %v6184
        %v6562 = vunpack.c.l.b16 %v6185
        %v6563 = vunpack.c.h.b16 %v6185
        %v6564 = vunpack.c.l.b16 %v6186
        %v6565 = vunpack.c.h.b16 %v6186
        %v6566 = vunpack.c.l.b16 %v6187
        %v6567 = vunpack.c.h.b16 %v6187
        %v6568 = vunpack.c.l.b16 %v6188
        %v6569 = vunpack.c.h.b16 %v6188
        %v6570 = vunpack.c.l.b16 %v6189
        %v6571 = vunpack.c.h.b16 %v6189
        %v6572 = vunpack.c.l.b16 %v6190
        %v6573 = vunpack.c.h.b16 %v6190
        %v6574 = vunpack.c.l.b16 %v6191
        %v6575 = vunpack.c.h.b16 %v6191
        %v6576 = vunpack.c.l.b16 %v6192
        %v6577 = vunpack.c.h.b16 %v6192
        %v6578 = vunpack.c.l.b16 %v6193
        %v6579 = vunpack.c.h.b16 %v6193
        %v6580 = vunpack.c.l.b16 %v6194
        %v6581 = vunpack.c.h.b16 %v6194
        %v6582 = vunpack.c.l.b16 %v6195
        %v6583 = vunpack.c.h.b16 %v6195
        %v6584 = vunpack.c.l.b16 %v6196
        %v6585 = vunpack.c.h.b16 %v6196
        %v6586 = vunpack.c.l.b16 %v6197
        %v6587 = vunpack.c.h.b16 %v6197
        %v6588 = vunpack.c.l.b16 %v6198
        %v6589 = vunpack.c.h.b16 %v6198
        %v6590 = vunpack.c.l.b16 %v6199
        %v6591 = vunpack.c.h.b16 %v6199
        %v6592 = vunpack.c.l.b16 %v6200
        %v6593 = vunpack.c.h.b16 %v6200
        %v6594 = vunpack.c.l.b16 %v6201
        %v6595 = vunpack.c.h.b16 %v6201
        %v6596 = vunpack.c.l.b16 %v6202
        %v6597 = vunpack.c.h.b16 %v6202
        %v6598 = vunpack.c.l.b16 %v6203
        %v6599 = vunpack.c.h.b16 %v6203
        %v6600 = vunpack.c.l.b16 %v6204
        %v6601 = vunpack.c.h.b16 %v6204
        %v6602 = vunpack.c.l.b16 %v6205
        %v6603 = vunpack.c.h.b16 %v6205
        %v6604 = vunpack.c.l.b16 %v6206
        %v6605 = vunpack.c.h.b16 %v6206
        %v6606 = vunpack.c.l.b16 %v6207
        %v6607 = vunpack.c.h.b16 %v6207
        %v6608 = vunpack.c.l.b16 %v6208
        %v6609 = vunpack.c.h.b16 %v6208
        %v6610 = vunpack.c.l.b16 %v6209
        %v6611 = vunpack.c.h.b16 %v6209
        %v6612 = vunpack.c.l.b16 %v6210
        %v6613 = vunpack.c.h.b16 %v6210
        %v6614 = vunpack.c.l.b16 %v6211
        %v6615 = vunpack.c.h.b16 %v6211
        %v6616 = vunpack.c.l.b16 %v6212
        %v6617 = vunpack.c.h.b16 %v6212
        %v6618 = vunpack.c.l.b16 %v6213
        %v6619 = vunpack.c.h.b16 %v6213
        %v6620 = vunpack.c.l.b16 %v6214
        %v6621 = vunpack.c.h.b16 %v6214
        %v6622 = vunpack.c.l.b16 %v6215
        %v6623 = vunpack.c.h.b16 %v6215
        %v6624 = vunpack.c.l.b16 %v6216
        %v6625 = vunpack.c.h.b16 %v6216
        %v6626 = vunpack.c.l.b16 %v6217
        %v6627 = vunpack.c.h.b16 %v6217
        %v6628 = vunpack.c.l.b16 %v6218
        %v6629 = vunpack.c.h.b16 %v6218
        %v6630 = vunpack.c.l.b16 %v6219
        %v6631 = vunpack.c.h.b16 %v6219
        %v6632 = vunpack.c.l.b16 %v6220
        %v6633 = vunpack.c.h.b16 %v6220
        %v6634 = vunpack.c.l.b16 %v6221
        %v6635 = vunpack.c.h.b16 %v6221
        %v6636 = vunpack.c.l.b16 %v6222
        %v6637 = vunpack.c.h.b16 %v6222
        %v6638 = vunpack.c.l.b16 %v6223
        %v6639 = vunpack.c.h.b16 %v6223
        %v6640 = vunpack.c.l.b16 %v6224
        %v6641 = vunpack.c.h.b16 %v6224
        %v6642 = vunpack.c.l.b16 %v6225
        %v6643 = vunpack.c.h.b16 %v6225
        %v6644 = vunpack.c.l.b16 %v6226
        %v6645 = vunpack.c.h.b16 %v6226
        %v6646 = vunpack.c.l.b16 %v6227
        %v6647 = vunpack.c.h.b16 %v6227
        %v6648 = vunpack.c.l.b16 %v6228
        %v6649 = vunpack.c.h.b16 %v6228
        %v6650 = vunpack.c.l.b16 %v6229
        %v6651 = vunpack.c.h.b16 %v6229
        %v6652 = vunpack.c.l.b16 %v6230
        %v6653 = vunpack.c.h.b16 %v6230
        %v6654 = vunpack.c.l.b16 %v6231
        %v6655 = vunpack.c.h.b16 %v6231
        %v6656 = vunpack.c.l.b16 %v6232
        %v6657 = vunpack.c.h.b16 %v6232
        %v6658 = vunpack.c.l.b16 %v6233
        %v6659 = vunpack.c.h.b16 %v6233
        %v6660 = vpack.c.b16 %v6412, %v6404
        %v6661 = vpack.c.b16 %v6413, %v6405
        %v6662 = vpack.c.b16 %v6414, %v6406
        %v6663 = vpack.c.b16 %v6415, %v6407
        %v6664 = vpack.c.b16 %v6416, %v6408
        %v6665 = vpack.c.b16 %v6417, %v6409
        %v6666 = vpack.c.b16 %v6418, %v6410
        %v6667 = vpack.c.b16 %v6419, %v6411
        %v6668 = vpack.c.b16 %v6428, %v6420
        %v6669 = vpack.c.b16 %v6429, %v6421
        %v6670 = vpack.c.b16 %v6430, %v6422
        %v6671 = vpack.c.b16 %v6431, %v6423
        %v6672 = vpack.c.b16 %v6432, %v6424
        %v6673 = vpack.c.b16 %v6433, %v6425
        %v6674 = vpack.c.b16 %v6434, %v6426
        %v6675 = vpack.c.b16 %v6435, %v6427
        %v6676 = vpack.c.b16 %v6444, %v6436
        %v6677 = vpack.c.b16 %v6445, %v6437
        %v6678 = vpack.c.b16 %v6446, %v6438
        %v6679 = vpack.c.b16 %v6447, %v6439
        %v6680 = vpack.c.b16 %v6448, %v6440
        %v6681 = vpack.c.b16 %v6449, %v6441
        %v6682 = vpack.c.b16 %v6450, %v6442
        %v6683 = vpack.c.b16 %v6451, %v6443
        %v6684 = vpack.c.b16 %v6460, %v6452
        %v6685 = vpack.c.b16 %v6461, %v6453
        %v6686 = vpack.c.b16 %v6462, %v6454
        %v6687 = vpack.c.b16 %v6463, %v6455
        %v6688 = vpack.c.b16 %v6464, %v6456
        %v6689 = vpack.c.b16 %v6465, %v6457
        %v6690 = vpack.c.b16 %v6466, %v6458
        %v6691 = vpack.c.b16 %v6467, %v6459
        %v6692 = vpack.c.b16 %v6476, %v6468
        %v6693 = vpack.c.b16 %v6477, %v6469
        %v6694 = vpack.c.b16 %v6478, %v6470
        %v6695 = vpack.c.b16 %v6479, %v6471
        %v6696 = vpack.c.b16 %v6480, %v6472
        %v6697 = vpack.c.b16 %v6481, %v6473
        %v6698 = vpack.c.b16 %v6482, %v6474
        %v6699 = vpack.c.b16 %v6483, %v6475
        %v6700 = vpack.c.b16 %v6492, %v6484
        %v6701 = vpack.c.b16 %v6493, %v6485
        %v6702 = vpack.c.b16 %v6494, %v6486
        %v6703 = vpack.c.b16 %v6495, %v6487
        %v6704 = vpack.c.b16 %v6496, %v6488
        %v6705 = vpack.c.b16 %v6497, %v6489
        %v6706 = vpack.c.b16 %v6498, %v6490
        %v6707 = vpack.c.b16 %v6499, %v6491
        %v6708 = vpack.c.b16 %v6508, %v6500
        %v6709 = vpack.c.b16 %v6509, %v6501
        %v6710 = vpack.c.b16 %v6510, %v6502
        %v6711 = vpack.c.b16 %v6511, %v6503
        %v6712 = vpack.c.b16 %v6512, %v6504
        %v6713 = vpack.c.b16 %v6513, %v6505
        %v6714 = vpack.c.b16 %v6514, %v6506
        %v6715 = vpack.c.b16 %v6515, %v6507
        %v6716 = vpack.c.b16 %v6524, %v6516
        %v6717 = vpack.c.b16 %v6525, %v6517
        %v6718 = vpack.c.b16 %v6526, %v6518
        %v6719 = vpack.c.b16 %v6527, %v6519
        %v6720 = vpack.c.b16 %v6528, %v6520
        %v6721 = vpack.c.b16 %v6529, %v6521
        %v6722 = vpack.c.b16 %v6530, %v6522
        %v6723 = vpack.c.b16 %v6531, %v6523
        %v6724 = vpack.c.b16 %v6540, %v6532
        %v6725 = vpack.c.b16 %v6541, %v6533
        %v6726 = vpack.c.b16 %v6542, %v6534
        %v6727 = vpack.c.b16 %v6543, %v6535
        %v6728 = vpack.c.b16 %v6544, %v6536
        %v6729 = vpack.c.b16 %v6545, %v6537
        %v6730 = vpack.c.b16 %v6546, %v6538
        %v6731 = vpack.c.b16 %v6547, %v6539
        %v6732 = vpack.c.b16 %v6556, %v6548
        %v6733 = vpack.c.b16 %v6557, %v6549
        %v6734 = vpack.c.b16 %v6558, %v6550
        %v6735 = vpack.c.b16 %v6559, %v6551
        %v6736 = vpack.c.b16 %v6560, %v6552
        %v6737 = vpack.c.b16 %v6561, %v6553
        %v6738 = vpack.c.b16 %v6562, %v6554
        %v6739 = vpack.c.b16 %v6563, %v6555
        %v6740 = vpack.c.b16 %v6572, %v6564
        %v6741 = vpack.c.b16 %v6573, %v6565
        %v6742 = vpack.c.b16 %v6574, %v6566
        %v6743 = vpack.c.b16 %v6575, %v6567
        %v6744 = vpack.c.b16 %v6576, %v6568
        %v6745 = vpack.c.b16 %v6577, %v6569
        %v6746 = vpack.c.b16 %v6578, %v6570
        %v6747 = vpack.c.b16 %v6579, %v6571
        %v6748 = vpack.c.b16 %v6588, %v6580
        %v6749 = vpack.c.b16 %v6589, %v6581
        %v6750 = vpack.c.b16 %v6590, %v6582
        %v6751 = vpack.c.b16 %v6591, %v6583
        %v6752 = vpack.c.b16 %v6592, %v6584
        %v6753 = vpack.c.b16 %v6593, %v6585
        %v6754 = vpack.c.b16 %v6594, %v6586
        %v6755 = vpack.c.b16 %v6595, %v6587
        %v6756 = vpack.c.b16 %v6604, %v6596
        %v6757 = vpack.c.b16 %v6605, %v6597
        %v6758 = vpack.c.b16 %v6606, %v6598
        %v6759 = vpack.c.b16 %v6607, %v6599
        %v6760 = vpack.c.b16 %v6608, %v6600
        %v6761 = vpack.c.b16 %v6609, %v6601
        %v6762 = vpack.c.b16 %v6610, %v6602
        %v6763 = vpack.c.b16 %v6611, %v6603
        %v6764 = vpack.c.b16 %v6620, %v6612
        %v6765 = vpack.c.b16 %v6621, %v6613
        %v6766 = vpack.c.b16 %v6622, %v6614
        %v6767 = vpack.c.b16 %v6623, %v6615
        %v6768 = vpack.c.b16 %v6624, %v6616
        %v6769 = vpack.c.b16 %v6625, %v6617
        %v6770 = vpack.c.b16 %v6626, %v6618
        %v6771 = vpack.c.b16 %v6627, %v6619
        %v6772 = vpack.c.b16 %v6636, %v6628
        %v6773 = vpack.c.b16 %v6637, %v6629
        %v6774 = vpack.c.b16 %v6638, %v6630
        %v6775 = vpack.c.b16 %v6639, %v6631
        %v6776 = vpack.c.b16 %v6640, %v6632
        %v6777 = vpack.c.b16 %v6641, %v6633
        %v6778 = vpack.c.b16 %v6642, %v6634
        %v6779 = vpack.c.b16 %v6643, %v6635
        %v6780 = vpack.c.b16 %v6652, %v6644
        %v6781 = vpack.c.b16 %v6653, %v6645
        %v6782 = vpack.c.b16 %v6654, %v6646
        %v6783 = vpack.c.b16 %v6655, %v6647
        %v6784 = vpack.c.b16 %v6656, %v6648
        %v6785 = vpack.c.b16 %v6657, %v6649
        %v6786 = vpack.c.b16 %v6658, %v6650
        %v6787 = vpack.c.b16 %v6659, %v6651
        %6916 = vmatprep.subr.bf16.mxu0 %v6661
        %6917 = vmatpush1.bf16.msra.mxu0 %v6660
        %6918 = vmatprep.subr.bf16.mxu0 %v6669
        %6919 = vmatpush1.bf16.msra.mxu0 %v6668
        %6920 = vmatprep.subr.bf16.mxu0 %v6677
        %6921 = vmatpush1.bf16.msra.mxu0 %v6676
        %6922 = vmatprep.subr.bf16.mxu0 %v6685
        %6923 = vmatpush1.bf16.msra.mxu0 %v6684
        %6924 = vmatprep.subr.bf16.mxu0 %v6693
        %6925 = vmatpush1.bf16.msra.mxu0 %v6692
        %6926 = vmatprep.subr.bf16.mxu0 %v6701
        %6927 = vmatpush1.bf16.msra.mxu0 %v6700
        %6928 = vmatprep.subr.bf16.mxu0 %v6709
        %6929 = vmatpush1.bf16.msra.mxu0 %v6708
        %6930 = vmatprep.subr.bf16.mxu0 %v6717
        %6931 = vmatpush1.bf16.msra.mxu0 %v6716
        %6932 = vmatprep.subr.bf16.mxu0 %v6725
        %6933 = vmatpush1.bf16.msra.mxu0 %v6724
        %6934 = vmatprep.subr.bf16.mxu0 %v6733
        %6935 = vmatpush1.bf16.msra.mxu0 %v6732
        %6936 = vmatprep.subr.bf16.mxu0 %v6741
        %6937 = vmatpush1.bf16.msra.mxu0 %v6740
        %6938 = vmatprep.subr.bf16.mxu0 %v6749
        %6939 = vmatpush1.bf16.msra.mxu0 %v6748
        %6940 = vmatprep.subr.bf16.mxu0 %v6757
        %6941 = vmatpush1.bf16.msra.mxu0 %v6756
        %6942 = vmatprep.subr.bf16.mxu0 %v6765
        %6943 = vmatpush1.bf16.msra.mxu0 %v6764
        %6944 = vmatprep.subr.bf16.mxu0 %v6773
        %6945 = vmatpush1.bf16.msra.mxu0 %v6772
        %6946 = vmatprep.subr.bf16.mxu0 %v6781
        %6947 = vmatpush1.bf16.msra.mxu0 %v6780
        %6948 = vmatprep.mubr.bf16.mxu0 %v6091
        %6949 = vmatmul.mubr.bf16.gmra.mrb[0].mxu0 %v6090
        %v6950 = vpop.f32.mrb[0].mxu0
        %v6951 = vadd.f32 %v6239, %v6950
        %v6952 = vpop.f32.mrb[0].mxu0
        %v6953 = vadd.f32 %v6243, %v6952
        %v6954 = vpop.f32.mrb[0].mxu0
        %v6955 = vadd.f32 %v6239, %v6954
        %v6956 = vpop.f32.mrb[0].mxu0
        %v6957 = vadd.f32 %v6243, %v6956
        %6958 = vmatprep.mubr.bf16.mxu0 %v6093
        %6959 = vmatmul.mubr.bf16.gmra.mrb[0].mxu0 %v6092
        %v6960 = vpop.f32.mrb[0].mxu0
        %v6961 = vadd.f32 %v6239, %v6960
        %v6962 = vpop.f32.mrb[0].mxu0
        %v6963 = vadd.f32 %v6243, %v6962
        %v6964 = vpop.f32.mrb[0].mxu0
        %v6965 = vadd.f32 %v6239, %v6964
        %v6966 = vpop.f32.mrb[0].mxu0
        %v6967 = vadd.f32 %v6243, %v6966
        %6968 = vmatprep.mubr.bf16.mxu0 %v6095
        %6969 = vmatmul.mubr.bf16.gmra.mrb[0].mxu0 %v6094
        %v6970 = vpop.f32.mrb[0].mxu0
        %v6971 = vadd.f32 %v6239, %v6970
        %v6972 = vpop.f32.mrb[0].mxu0
        %v6973 = vadd.f32 %v6243, %v6972
        %v6974 = vpop.f32.mrb[0].mxu0
        %v6975 = vadd.f32 %v6239, %v6974
        %v6976 = vpop.f32.mrb[0].mxu0
        %v6977 = vadd.f32 %v6243, %v6976
        %6978 = vmatprep.mubr.bf16.mxu0 %v6097
        %6979 = vmatmul.mubr.bf16.gmra.mrb[0].mxu0 %v6096
        %v6980 = vpop.f32.mrb[0].mxu0
        %v6981 = vadd.f32 %v6239, %v6980
        %v6982 = vpop.f32.mrb[0].mxu0
        %v6983 = vadd.f32 %v6243, %v6982
        %v6984 = vpop.f32.mrb[0].mxu0
        %v6985 = vadd.f32 %v6239, %v6984
        %v6986 = vpop.f32.mrb[0].mxu0
        %v6987 = vadd.f32 %v6243, %v6986
        %6988 = vmatprep.mubr.bf16.mxu0 %v6099
        %6989 = vmatmul.mubr.bf16.gmra.mrb[0].mxu0 %v6098
        %v6990 = vpop.f32.mrb[0].mxu0
        %v6991 = vadd.f32 %v6239, %v6990
        %v6992 = vpop.f32.mrb[0].mxu0
        %v6993 = vadd.f32 %v6243, %v6992
        %v6994 = vpop.f32.mrb[0].mxu0
        %v6995 = vadd.f32 %v6239, %v6994
        %v6996 = vpop.f32.mrb[0].mxu0
        %v6997 = vadd.f32 %v6243, %v6996
        %6998 = vmatprep.mubr.bf16.mxu0 %v6101
        %6999 = vmatmul.mubr.bf16.gmra.mrb[0].mxu0 %v6100
        %v7000 = vpop.f32.mrb[0].mxu0
        %v7001 = vadd.f32 %v6239, %v7000
        %v7002 = vpop.f32.mrb[0].mxu0
        %v7003 = vadd.f32 %v6243, %v7002
        %v7004 = vpop.f32.mrb[0].mxu0
        %v7005 = vadd.f32 %v6239, %v7004
        %v7006 = vpop.f32.mrb[0].mxu0
        %v7007 = vadd.f32 %v6243, %v7006
        %7008 = vmatprep.mubr.bf16.mxu0 %v6103
        %7009 = vmatmul.mubr.bf16.gmra.mrb[0].mxu0 %v6102
        %v7010 = vpop.f32.mrb[0].mxu0
        %v7011 = vadd.f32 %v6239, %v7010
        %v7012 = vpop.f32.mrb[0].mxu0
        %v7013 = vadd.f32 %v6243, %v7012
        %v7014 = vpop.f32.mrb[0].mxu0
        %v7015 = vadd.f32 %v6239, %v7014
        %v7016 = vpop.f32.mrb[0].mxu0
        %v7017 = vadd.f32 %v6243, %v7016
        %7018 = vmatprep.mubr.bf16.mxu0 %v6105
        %7019 = vmatmul.mubr.bf16.gmra.mrb[0].mxu0 %v6104
        %v7020 = vpop.f32.mrb[0].mxu0
        %v7021 = vadd.f32 %v6239, %v7020
        %v7022 = vpop.f32.mrb[0].mxu0
        %v7023 = vadd.f32 %v6243, %v7022
        %v7024 = vpop.f32.mrb[0].mxu0
        %v7025 = vadd.f32 %v6239, %v7024
        %v7026 = vpop.f32.mrb[0].mxu0
        %v7027 = vadd.f32 %v6243, %v7026
        %7028 = vdwg.mxu0
        %7029 = vmatprep.subr.bf16.mxu0 %v6663
        %7030 = vmatpush1.bf16.msra.mxu0 %v6662
        %7031 = vmatprep.subr.bf16.mxu0 %v6671
        %7032 = vmatpush1.bf16.msra.mxu0 %v6670
        %7033 = vmatprep.subr.bf16.mxu0 %v6679
        %7034 = vmatpush1.bf16.msra.mxu0 %v6678
        %7035 = vmatprep.subr.bf16.mxu0 %v6687
        %7036 = vmatpush1.bf16.msra.mxu0 %v6686
        %7037 = vmatprep.subr.bf16.mxu0 %v6695
        %7038 = vmatpush1.bf16.msra.mxu0 %v6694
        %7039 = vmatprep.subr.bf16.mxu0 %v6703
        %7040 = vmatpush1.bf16.msra.mxu0 %v6702
        %7041 = vmatprep.subr.bf16.mxu0 %v6711
        %7042 = vmatpush1.bf16.msra.mxu0 %v6710
        %7043 = vmatprep.subr.bf16.mxu0 %v6719
        %7044 = vmatpush1.bf16.msra.mxu0 %v6718
        %7045 = vmatprep.subr.bf16.mxu0 %v6727
        %7046 = vmatpush1.bf16.msra.mxu0 %v6726
        %7047 = vmatprep.subr.bf16.mxu0 %v6735
        %7048 = vmatpush1.bf16.msra.mxu0 %v6734
        %7049 = vmatprep.subr.bf16.mxu0 %v6743
        %7050 = vmatpush1.bf16.msra.mxu0 %v6742
        %7051 = vmatprep.subr.bf16.mxu0 %v6751
        %7052 = vmatpush1.bf16.msra.mxu0 %v6750
        %7053 = vmatprep.subr.bf16.mxu0 %v6759
        %7054 = vmatpush1.bf16.msra.mxu0 %v6758
        %7055 = vmatprep.subr.bf16.mxu0 %v6767
        %7056 = vmatpush1.bf16.msra.mxu0 %v6766
        %7057 = vmatprep.subr.bf16.mxu0 %v6775
        %7058 = vmatpush1.bf16.msra.mxu0 %v6774
        %7059 = vmatprep.subr.bf16.mxu0 %v6783
        %7060 = vmatpush1.bf16.msra.mxu0 %v6782
        %7061 = vmatprep.mubr.bf16.mxu0 %v6091
        %7062 = vmatmul.mubr.bf16.gmra.mrb[0].mxu0 %v6090
        %v7063 = vpop.f32.mrb[0].mxu0
        %v7064 = vadd.f32 %v6247, %v7063
        %v7065 = vpop.f32.mrb[0].mxu0
        %v7066 = vadd.f32 %v6251, %v7065
        %v7067 = vpop.f32.mrb[0].mxu0
        %v7068 = vadd.f32 %v6247, %v7067
        %v7069 = vpop.f32.mrb[0].mxu0
        %v7070 = vadd.f32 %v6251, %v7069
        %7071 = vmatprep.mubr.bf16.mxu0 %v6093
        %7072 = vmatmul.mubr.bf16.gmra.mrb[0].mxu0 %v6092
        %v7073 = vpop.f32.mrb[0].mxu0
        %v7074 = vadd.f32 %v6247, %v7073
        %v7075 = vpop.f32.mrb[0].mxu0
        %v7076 = vadd.f32 %v6251, %v7075
        %v7077 = vpop.f32.mrb[0].mxu0
        %v7078 = vadd.f32 %v6247, %v7077
        %v7079 = vpop.f32.mrb[0].mxu0
        %v7080 = vadd.f32 %v6251, %v7079
        %7081 = vmatprep.mubr.bf16.mxu0 %v6095
        %7082 = vmatmul.mubr.bf16.gmra.mrb[0].mxu0 %v6094
        %v7083 = vpop.f32.mrb[0].mxu0
        %v7084 = vadd.f32 %v6247, %v7083
        %v7085 = vpop.f32.mrb[0].mxu0
        %v7086 = vadd.f32 %v6251, %v7085
        %v7087 = vpop.f32.mrb[0].mxu0
        %v7088 = vadd.f32 %v6247, %v7087
        %v7089 = vpop.f32.mrb[0].mxu0
        %v7090 = vadd.f32 %v6251, %v7089
        %7091 = vmatprep.mubr.bf16.mxu0 %v6097
        %7092 = vmatmul.mubr.bf16.gmra.mrb[0].mxu0 %v6096
        %v7093 = vpop.f32.mrb[0].mxu0
        %v7094 = vadd.f32 %v6247, %v7093
        %v7095 = vpop.f32.mrb[0].mxu0
        %v7096 = vadd.f32 %v6251, %v7095
        %v7097 = vpop.f32.mrb[0].mxu0
        %v7098 = vadd.f32 %v6247, %v7097
        %v7099 = vpop.f32.mrb[0].mxu0
        %v7100 = vadd.f32 %v6251, %v7099
        %7101 = vmatprep.mubr.bf16.mxu0 %v6099
        %7102 = vmatmul.mubr.bf16.gmra.mrb[0].mxu0 %v6098
        %v7103 = vpop.f32.mrb[0].mxu0
        %v7104 = vadd.f32 %v6247, %v7103
        %v7105 = vpop.f32.mrb[0].mxu0
        %v7106 = vadd.f32 %v6251, %v7105
        %v7107 = vpop.f32.mrb[0].mxu0
        %v7108 = vadd.f32 %v6247, %v7107
        %v7109 = vpop.f32.mrb[0].mxu0
        %v7110 = vadd.f32 %v6251, %v7109
        %7111 = vmatprep.mubr.bf16.mxu0 %v6101
        %7112 = vmatmul.mubr.bf16.gmra.mrb[0].mxu0 %v6100
        %v7113 = vpop.f32.mrb[0].mxu0
        %v7114 = vadd.f32 %v6247, %v7113
        %v7115 = vpop.f32.mrb[0].mxu0
        %v7116 = vadd.f32 %v6251, %v7115
        %v7117 = vpop.f32.mrb[0].mxu0
        %v7118 = vadd.f32 %v6247, %v7117
        %v7119 = vpop.f32.mrb[0].mxu0
        %v7120 = vadd.f32 %v6251, %v7119
        %7121 = vmatprep.mubr.bf16.mxu0 %v6103
        %7122 = vmatmul.mubr.bf16.gmra.mrb[0].mxu0 %v6102
        %v7123 = vpop.f32.mrb[0].mxu0
        %v7124 = vadd.f32 %v6247, %v7123
        %v7125 = vpop.f32.mrb[0].mxu0
        %v7126 = vadd.f32 %v6251, %v7125
        %v7127 = vpop.f32.mrb[0].mxu0
        %v7128 = vadd.f32 %v6247, %v7127
        %v7129 = vpop.f32.mrb[0].mxu0
        %v7130 = vadd.f32 %v6251, %v7129
        %7131 = vmatprep.mubr.bf16.mxu0 %v6105
        %7132 = vmatmul.mubr.bf16.gmra.mrb[0].mxu0 %v6104
        %v7133 = vpop.f32.mrb[0].mxu0
        %v7134 = vadd.f32 %v6247, %v7133
        %v7135 = vpop.f32.mrb[0].mxu0
        %v7136 = vadd.f32 %v6251, %v7135
        %v7137 = vpop.f32.mrb[0].mxu0
        %v7138 = vadd.f32 %v6247, %v7137
        %v7139 = vpop.f32.mrb[0].mxu0
        %v7140 = vadd.f32 %v6251, %v7139
        %7141 = vdwg.mxu0
        %7142 = vmatprep.subr.bf16.mxu0 %v6665
        %7143 = vmatpush1.bf16.msra.mxu0 %v6664
        %7144 = vmatprep.subr.bf16.mxu0 %v6673
        %7145 = vmatpush1.bf16.msra.mxu0 %v6672
        %7146 = vmatprep.subr.bf16.mxu0 %v6681
        %7147 = vmatpush1.bf16.msra.mxu0 %v6680
        %7148 = vmatprep.subr.bf16.mxu0 %v6689
        %7149 = vmatpush1.bf16.msra.mxu0 %v6688
        %7150 = vmatprep.subr.bf16.mxu0 %v6697
        %7151 = vmatpush1.bf16.msra.mxu0 %v6696
        %7152 = vmatprep.subr.bf16.mxu0 %v6705
        %7153 = vmatpush1.bf16.msra.mxu0 %v6704
        %7154 = vmatprep.subr.bf16.mxu0 %v6713
        %7155 = vmatpush1.bf16.msra.mxu0 %v6712
        %7156 = vmatprep.subr.bf16.mxu0 %v6721
        %7157 = vmatpush1.bf16.msra.mxu0 %v6720
        %7158 = vmatprep.subr.bf16.mxu0 %v6729
        %7159 = vmatpush1.bf16.msra.mxu0 %v6728
        %7160 = vmatprep.subr.bf16.mxu0 %v6737
        %7161 = vmatpush1.bf16.msra.mxu0 %v6736
        %7162 = vmatprep.subr.bf16.mxu0 %v6745
        %7163 = vmatpush1.bf16.msra.mxu0 %v6744
        %7164 = vmatprep.subr.bf16.mxu0 %v6753
        %7165 = vmatpush1.bf16.msra.mxu0 %v6752
        %7166 = vmatprep.subr.bf16.mxu0 %v6761
        %7167 = vmatpush1.bf16.msra.mxu0 %v6760
        %7168 = vmatprep.subr.bf16.mxu0 %v6769
        %7169 = vmatpush1.bf16.msra.mxu0 %v6768
        %7170 = vmatprep.subr.bf16.mxu0 %v6777
        %7171 = vmatpush1.bf16.msra.mxu0 %v6776
        %7172 = vmatprep.subr.bf16.mxu0 %v6785
        %7173 = vmatpush1.bf16.msra.mxu0 %v6784
        %7174 = vmatprep.mubr.bf16.mxu0 %v6091
        %7175 = vmatmul.mubr.bf16.gmra.mrb[0].mxu0 %v6090
        %v7176 = vpop.f32.mrb[0].mxu0
        %v7177 = vadd.f32 %v6255, %v7176
        %v7178 = vpop.f32.mrb[0].mxu0
        %v7179 = vadd.f32 %v6259, %v7178
        %v7180 = vpop.f32.mrb[0].mxu0
        %v7181 = vadd.f32 %v6255, %v7180
        %v7182 = vpop.f32.mrb[0].mxu0
        %v7183 = vadd.f32 %v6259, %v7182
        %7184 = vmatprep.mubr.bf16.mxu0 %v6093
        %7185 = vmatmul.mubr.bf16.gmra.mrb[0].mxu0 %v6092
        %v7186 = vpop.f32.mrb[0].mxu0
        %v7187 = vadd.f32 %v6255, %v7186
        %v7188 = vpop.f32.mrb[0].mxu0
        %v7189 = vadd.f32 %v6259, %v7188
        %v7190 = vpop.f32.mrb[0].mxu0
        %v7191 = vadd.f32 %v6255, %v7190
        %v7192 = vpop.f32.mrb[0].mxu0
        %v7193 = vadd.f32 %v6259, %v7192
        %7194 = vmatprep.mubr.bf16.mxu0 %v6095
        %7195 = vmatmul.mubr.bf16.gmra.mrb[0].mxu0 %v6094
        %v7196 = vpop.f32.mrb[0].mxu0
        %v7197 = vadd.f32 %v6255, %v7196
        %v7198 = vpop.f32.mrb[0].mxu0
        %v7199 = vadd.f32 %v6259, %v7198
        %v7200 = vpop.f32.mrb[0].mxu0
        %v7201 = vadd.f32 %v6255, %v7200
        %v7202 = vpop.f32.mrb[0].mxu0
        %v7203 = vadd.f32 %v6259, %v7202
        %7204 = vmatprep.mubr.bf16.mxu0 %v6097
        %7205 = vmatmul.mubr.bf16.gmra.mrb[0].mxu0 %v6096
        %v7206 = vpop.f32.mrb[0].mxu0
        %v7207 = vadd.f32 %v6255, %v7206
        %v7208 = vpop.f32.mrb[0].mxu0
        %v7209 = vadd.f32 %v6259, %v7208
        %v7210 = vpop.f32.mrb[0].mxu0
        %v7211 = vadd.f32 %v6255, %v7210
        %v7212 = vpop.f32.mrb[0].mxu0
        %v7213 = vadd.f32 %v6259, %v7212
        %7214 = vmatprep.mubr.bf16.mxu0 %v6099
        %7215 = vmatmul.mubr.bf16.gmra.mrb[0].mxu0 %v6098
        %v7216 = vpop.f32.mrb[0].mxu0
        %v7217 = vadd.f32 %v6255, %v7216
        %v7218 = vpop.f32.mrb[0].mxu0
        %v7219 = vadd.f32 %v6259, %v7218
        %v7220 = vpop.f32.mrb[0].mxu0
        %v7221 = vadd.f32 %v6255, %v7220
        %v7222 = vpop.f32.mrb[0].mxu0
        %v7223 = vadd.f32 %v6259, %v7222
        %7224 = vmatprep.mubr.bf16.mxu0 %v6101
        %7225 = vmatmul.mubr.bf16.gmra.mrb[0].mxu0 %v6100
        %v7226 = vpop.f32.mrb[0].mxu0
        %v7227 = vadd.f32 %v6255, %v7226
        %v7228 = vpop.f32.mrb[0].mxu0
        %v7229 = vadd.f32 %v6259, %v7228
        %v7230 = vpop.f32.mrb[0].mxu0
        %v7231 = vadd.f32 %v6255, %v7230
        %v7232 = vpop.f32.mrb[0].mxu0
        %v7233 = vadd.f32 %v6259, %v7232
        %7234 = vmatprep.mubr.bf16.mxu0 %v6103
        %7235 = vmatmul.mubr.bf16.gmra.mrb[0].mxu0 %v6102
        %v7236 = vpop.f32.mrb[0].mxu0
        %v7237 = vadd.f32 %v6255, %v7236
        %v7238 = vpop.f32.mrb[0].mxu0
        %v7239 = vadd.f32 %v6259, %v7238
        %v7240 = vpop.f32.mrb[0].mxu0
        %v7241 = vadd.f32 %v6255, %v7240
        %v7242 = vpop.f32.mrb[0].mxu0
        %v7243 = vadd.f32 %v6259, %v7242
        %7244 = vmatprep.mubr.bf16.mxu0 %v6105
        %7245 = vmatmul.mubr.bf16.gmra.mrb[0].mxu0 %v6104
        %v7246 = vpop.f32.mrb[0].mxu0
        %v7247 = vadd.f32 %v6255, %v7246
        %v7248 = vpop.f32.mrb[0].mxu0
        %v7249 = vadd.f32 %v6259, %v7248
        %v7250 = vpop.f32.mrb[0].mxu0
        %v7251 = vadd.f32 %v6255, %v7250
        %v7252 = vpop.f32.mrb[0].mxu0
        %v7253 = vadd.f32 %v6259, %v7252
        %7254 = vdwg.mxu0
        %7255 = vmatprep.subr.bf16.mxu0 %v6667
        %7256 = vmatpush1.bf16.msra.mxu0 %v6666
        %7257 = vmatprep.subr.bf16.mxu0 %v6675
        %7258 = vmatpush1.bf16.msra.mxu0 %v6674
        %7259 = vmatprep.subr.bf16.mxu0 %v6683
        %7260 = vmatpush1.bf16.msra.mxu0 %v6682
        %7261 = vmatprep.subr.bf16.mxu0 %v6691
        %7262 = vmatpush1.bf16.msra.mxu0 %v6690
        %7263 = vmatprep.subr.bf16.mxu0 %v6699
        %7264 = vmatpush1.bf16.msra.mxu0 %v6698
        %7265 = vmatprep.subr.bf16.mxu0 %v6707
        %7266 = vmatpush1.bf16.msra.mxu0 %v6706
        %7267 = vmatprep.subr.bf16.mxu0 %v6715
        %7268 = vmatpush1.bf16.msra.mxu0 %v6714
        %7269 = vmatprep.subr.bf16.mxu0 %v6723
        %7270 = vmatpush1.bf16.msra.mxu0 %v6722
        %7271 = vmatprep.subr.bf16.mxu0 %v6731
        %7272 = vmatpush1.bf16.msra.mxu0 %v6730
        %7273 = vmatprep.subr.bf16.mxu0 %v6739
        %7274 = vmatpush1.bf16.msra.mxu0 %v6738
        %7275 = vmatprep.subr.bf16.mxu0 %v6747
        %7276 = vmatpush1.bf16.msra.mxu0 %v6746
        %7277 = vmatprep.subr.bf16.mxu0 %v6755
        %7278 = vmatpush1.bf16.msra.mxu0 %v6754
        %7279 = vmatprep.subr.bf16.mxu0 %v6763
        %7280 = vmatpush1.bf16.msra.mxu0 %v6762
        %7281 = vmatprep.subr.bf16.mxu0 %v6771
        %7282 = vmatpush1.bf16.msra.mxu0 %v6770
        %7283 = vmatprep.subr.bf16.mxu0 %v6779
        %7284 = vmatpush1.bf16.msra.mxu0 %v6778
        %7285 = vmatprep.subr.bf16.mxu0 %v6787
        %7286 = vmatpush1.bf16.msra.mxu0 %v6786
        %7287 = vmatprep.mubr.bf16.mxu0 %v6091
        %7288 = vmatmul.mubr.bf16.gmra.mrb[0].mxu0 %v6090
        %v7289 = vpop.f32.mrb[0].mxu0
        %v7290 = vadd.f32 %v6263, %v7289
        %v7291 = vpop.f32.mrb[0].mxu0
        %v7292 = vadd.f32 %v6267, %v7291
        %v7293 = vpop.f32.mrb[0].mxu0
        %v7294 = vadd.f32 %v6263, %v7293
        %v7295 = vpop.f32.mrb[0].mxu0
        %v7296 = vadd.f32 %v6267, %v7295
        %7297 = vmatprep.mubr.bf16.mxu0 %v6093
        %7298 = vmatmul.mubr.bf16.gmra.mrb[0].mxu0 %v6092
        %v7299 = vpop.f32.mrb[0].mxu0
        %v7300 = vadd.f32 %v6263, %v7299
        %v7301 = vpop.f32.mrb[0].mxu0
        %v7302 = vadd.f32 %v6267, %v7301
        %v7303 = vpop.f32.mrb[0].mxu0
        %v7304 = vadd.f32 %v6263, %v7303
        %v7305 = vpop.f32.mrb[0].mxu0
        %v7306 = vadd.f32 %v6267, %v7305
        %7307 = vmatprep.mubr.bf16.mxu0 %v6095
        %7308 = vmatmul.mubr.bf16.gmra.mrb[0].mxu0 %v6094
        %v7309 = vpop.f32.mrb[0].mxu0
        %v7310 = vadd.f32 %v6263, %v7309
        %v7311 = vpop.f32.mrb[0].mxu0
        %v7312 = vadd.f32 %v6267, %v7311
        %v7313 = vpop.f32.mrb[0].mxu0
        %v7314 = vadd.f32 %v6263, %v7313
        %v7315 = vpop.f32.mrb[0].mxu0
        %v7316 = vadd.f32 %v6267, %v7315
        %7317 = vmatprep.mubr.bf16.mxu0 %v6097
        %7318 = vmatmul.mubr.bf16.gmra.mrb[0].mxu0 %v6096
        %v7319 = vpop.f32.mrb[0].mxu0
        %v7320 = vadd.f32 %v6263, %v7319
        %v7321 = vpop.f32.mrb[0].mxu0
        %v7322 = vadd.f32 %v6267, %v7321
        %v7323 = vpop.f32.mrb[0].mxu0
        %v7324 = vadd.f32 %v6263, %v7323
        %v7325 = vpop.f32.mrb[0].mxu0
        %v7326 = vadd.f32 %v6267, %v7325
        %7327 = vmatprep.mubr.bf16.mxu0 %v6099
        %7328 = vmatmul.mubr.bf16.gmra.mrb[0].mxu0 %v6098
        %v7329 = vpop.f32.mrb[0].mxu0
        %v7330 = vadd.f32 %v6263, %v7329
        %v7331 = vpop.f32.mrb[0].mxu0
        %v7332 = vadd.f32 %v6267, %v7331
        %v7333 = vpop.f32.mrb[0].mxu0
        %v7334 = vadd.f32 %v6263, %v7333
        %v7335 = vpop.f32.mrb[0].mxu0
        %v7336 = vadd.f32 %v6267, %v7335
        %7337 = vmatprep.mubr.bf16.mxu0 %v6101
        %7338 = vmatmul.mubr.bf16.gmra.mrb[0].mxu0 %v6100
        %v7339 = vpop.f32.mrb[0].mxu0
        %v7340 = vadd.f32 %v6263, %v7339
        %v7341 = vpop.f32.mrb[0].mxu0
        %v7342 = vadd.f32 %v6267, %v7341
        %v7343 = vpop.f32.mrb[0].mxu0
        %v7344 = vadd.f32 %v6263, %v7343
        %v7345 = vpop.f32.mrb[0].mxu0
        %v7346 = vadd.f32 %v6267, %v7345
        %7347 = vmatprep.mubr.bf16.mxu0 %v6103
        %7348 = vmatmul.mubr.bf16.gmra.mrb[0].mxu0 %v6102
        %v7349 = vpop.f32.mrb[0].mxu0
        %v7350 = vadd.f32 %v6263, %v7349
        %v7351 = vpop.f32.mrb[0].mxu0
        %v7352 = vadd.f32 %v6267, %v7351
        %v7353 = vpop.f32.mrb[0].mxu0
        %v7354 = vadd.f32 %v6263, %v7353
        %v7355 = vpop.f32.mrb[0].mxu0
        %v7356 = vadd.f32 %v6267, %v7355
        %7357 = vmatprep.mubr.bf16.mxu0 %v6105
        %7358 = vmatmul.mubr.bf16.gmra.mrb[0].mxu0 %v6104
        %v7359 = vpop.f32.mrb[0].mxu0
        %v7360 = vadd.f32 %v6263, %v7359
        %v7361 = vpop.f32.mrb[0].mxu0
        %v7362 = vadd.f32 %v6267, %v7361
        %v7363 = vpop.f32.mrb[0].mxu0
        %v7364 = vadd.f32 %v6263, %v7363
        %v7365 = vpop.f32.mrb[0].mxu0
        %v7366 = vadd.f32 %v6267, %v7365
        %7367 = vdwg.mxu0
        %v7368 = vmul.f32 %v6951, 0.5
        %v7369 = vmul.f32 %v6953, 0.5
        %v7370 = vmul.f32 %v7064, 0.5
        %v7371 = vmul.f32 %v7066, 0.5
        %v7372 = vmul.f32 %v7177, 0.5
        %v7373 = vmul.f32 %v7179, 0.5
        %v7374 = vmul.f32 %v7290, 0.5
        %v7375 = vmul.f32 %v7292, 0.5
        %v7376 = vmul.f32 %v6955, 0.5
        %v7377 = vmul.f32 %v6957, 0.5
        %v7378 = vmul.f32 %v7068, 0.5
        %v7379 = vmul.f32 %v7070, 0.5
        %v7380 = vmul.f32 %v7181, 0.5
        %v7381 = vmul.f32 %v7183, 0.5
        %v7382 = vmul.f32 %v7294, 0.5
        %v7383 = vmul.f32 %v7296, 0.5
        %v7384 = vmul.f32 %v6961, 0.5
        %v7385 = vmul.f32 %v6963, 0.5
        %v7386 = vmul.f32 %v7074, 0.5
        %v7387 = vmul.f32 %v7076, 0.5
        %v7388 = vmul.f32 %v7187, 0.5
        %v7389 = vmul.f32 %v7189, 0.5
        %v7390 = vmul.f32 %v7300, 0.5
        %v7391 = vmul.f32 %v7302, 0.5
        %v7392 = vmul.f32 %v6965, 0.5
        %v7393 = vmul.f32 %v6967, 0.5
        %v7394 = vmul.f32 %v7078, 0.5
        %v7395 = vmul.f32 %v7080, 0.5
        %v7396 = vmul.f32 %v7191, 0.5
        %v7397 = vmul.f32 %v7193, 0.5
        %v7398 = vmul.f32 %v7304, 0.5
        %v7399 = vmul.f32 %v7306, 0.5
        %v7400 = vmul.f32 %v6971, 0.5
        %v7401 = vmul.f32 %v6973, 0.5
        %v7402 = vmul.f32 %v7084, 0.5
        %v7403 = vmul.f32 %v7086, 0.5
        %v7404 = vmul.f32 %v7197, 0.5
        %v7405 = vmul.f32 %v7199, 0.5
        %v7406 = vmul.f32 %v7310, 0.5
        %v7407 = vmul.f32 %v7312, 0.5
        %v7408 = vmul.f32 %v6975, 0.5
        %v7409 = vmul.f32 %v6977, 0.5
        %v7410 = vmul.f32 %v7088, 0.5
        %v7411 = vmul.f32 %v7090, 0.5
        %v7412 = vmul.f32 %v7201, 0.5
        %v7413 = vmul.f32 %v7203, 0.5
        %v7414 = vmul.f32 %v7314, 0.5
        %v7415 = vmul.f32 %v7316, 0.5
        %v7416 = vmul.f32 %v6981, 0.5
        %v7417 = vmul.f32 %v6983, 0.5
        %v7418 = vmul.f32 %v7094, 0.5
        %v7419 = vmul.f32 %v7096, 0.5
        %v7420 = vmul.f32 %v7207, 0.5
        %v7421 = vmul.f32 %v7209, 0.5
        %v7422 = vmul.f32 %v7320, 0.5
        %v7423 = vmul.f32 %v7322, 0.5
        %v7424 = vmul.f32 %v6985, 0.5
        %v7425 = vmul.f32 %v6987, 0.5
        %v7426 = vmul.f32 %v7098, 0.5
        %v7427 = vmul.f32 %v7100, 0.5
        %v7428 = vmul.f32 %v7211, 0.5
        %v7429 = vmul.f32 %v7213, 0.5
        %v7430 = vmul.f32 %v7324, 0.5
        %v7431 = vmul.f32 %v7326, 0.5
        %v7432 = vmul.f32 %v6991, 0.5
        %v7433 = vmul.f32 %v6993, 0.5
        %v7434 = vmul.f32 %v7104, 0.5
        %v7435 = vmul.f32 %v7106, 0.5
        %v7436 = vmul.f32 %v7217, 0.5
        %v7437 = vmul.f32 %v7219, 0.5
        %v7438 = vmul.f32 %v7330, 0.5
        %v7439 = vmul.f32 %v7332, 0.5
        %v7440 = vmul.f32 %v6995, 0.5
        %v7441 = vmul.f32 %v6997, 0.5
        %v7442 = vmul.f32 %v7108, 0.5
        %v7443 = vmul.f32 %v7110, 0.5
        %v7444 = vmul.f32 %v7221, 0.5
        %v7445 = vmul.f32 %v7223, 0.5
        %v7446 = vmul.f32 %v7334, 0.5
        %v7447 = vmul.f32 %v7336, 0.5
        %v7448 = vmul.f32 %v7001, 0.5
        %v7449 = vmul.f32 %v7003, 0.5
        %v7450 = vmul.f32 %v7114, 0.5
        %v7451 = vmul.f32 %v7116, 0.5
        %v7452 = vmul.f32 %v7227, 0.5
        %v7453 = vmul.f32 %v7229, 0.5
        %v7454 = vmul.f32 %v7340, 0.5
        %v7455 = vmul.f32 %v7342, 0.5
        %v7456 = vmul.f32 %v7005, 0.5
        %v7457 = vmul.f32 %v7007, 0.5
        %v7458 = vmul.f32 %v7118, 0.5
        %v7459 = vmul.f32 %v7120, 0.5
        %v7460 = vmul.f32 %v7231, 0.5
        %v7461 = vmul.f32 %v7233, 0.5
        %v7462 = vmul.f32 %v7344, 0.5
        %v7463 = vmul.f32 %v7346, 0.5
        %v7464 = vmul.f32 %v7011, 0.5
        %v7465 = vmul.f32 %v7013, 0.5
        %v7466 = vmul.f32 %v7124, 0.5
        %v7467 = vmul.f32 %v7126, 0.5
        %v7468 = vmul.f32 %v7237, 0.5
        %v7469 = vmul.f32 %v7239, 0.5
        %v7470 = vmul.f32 %v7350, 0.5
        %v7471 = vmul.f32 %v7352, 0.5
        %v7472 = vmul.f32 %v7015, 0.5
        %v7473 = vmul.f32 %v7017, 0.5
        %v7474 = vmul.f32 %v7128, 0.5
        %v7475 = vmul.f32 %v7130, 0.5
        %v7476 = vmul.f32 %v7241, 0.5
        %v7477 = vmul.f32 %v7243, 0.5
        %v7478 = vmul.f32 %v7354, 0.5
        %v7479 = vmul.f32 %v7356, 0.5
        %v7480 = vmul.f32 %v7021, 0.5
        %v7481 = vmul.f32 %v7023, 0.5
        %v7482 = vmul.f32 %v7134, 0.5
        %v7483 = vmul.f32 %v7136, 0.5
        %v7484 = vmul.f32 %v7247, 0.5
        %v7485 = vmul.f32 %v7249, 0.5
        %v7486 = vmul.f32 %v7360, 0.5
        %v7487 = vmul.f32 %v7362, 0.5
        %v7488 = vmul.f32 %v7025, 0.5
        %v7489 = vmul.f32 %v7027, 0.5
        %v7490 = vmul.f32 %v7138, 0.5
        %v7491 = vmul.f32 %v7140, 0.5
        %v7492 = vmul.f32 %v7251, 0.5
        %v7493 = vmul.f32 %v7253, 0.5
        %v7494 = vmul.f32 %v7364, 0.5
        %v7495 = vmul.f32 %v7366, 0.5
        %v7496 = vmul.f32 %v6951, 0.70710677
        %v7497 = vmul.f32 %v6953, 0.70710677
        %v7498 = vmul.f32 %v7064, 0.70710677
        %v7499 = vmul.f32 %v7066, 0.70710677
        %v7500 = vmul.f32 %v7177, 0.70710677
        %v7501 = vmul.f32 %v7179, 0.70710677
        %v7502 = vmul.f32 %v7290, 0.70710677
        %v7503 = vmul.f32 %v7292, 0.70710677
        %v7504 = vmul.f32 %v6955, 0.70710677
        %v7505 = vmul.f32 %v6957, 0.70710677
        %v7506 = vmul.f32 %v7068, 0.70710677
        %v7507 = vmul.f32 %v7070, 0.70710677
        %v7508 = vmul.f32 %v7181, 0.70710677
        %v7509 = vmul.f32 %v7183, 0.70710677
        %v7510 = vmul.f32 %v7294, 0.70710677
        %v7511 = vmul.f32 %v7296, 0.70710677
        %v7512 = vmul.f32 %v6961, 0.70710677
        %v7513 = vmul.f32 %v6963, 0.70710677
        %v7514 = vmul.f32 %v7074, 0.70710677
        %v7515 = vmul.f32 %v7076, 0.70710677
        %v7516 = vmul.f32 %v7187, 0.70710677
        %v7517 = vmul.f32 %v7189, 0.70710677
        %v7518 = vmul.f32 %v7300, 0.70710677
        %v7519 = vmul.f32 %v7302, 0.70710677
        %v7520 = vmul.f32 %v6965, 0.70710677
        %v7521 = vmul.f32 %v6967, 0.70710677
        %v7522 = vmul.f32 %v7078, 0.70710677
        %v7523 = vmul.f32 %v7080, 0.70710677
        %v7524 = vmul.f32 %v7191, 0.70710677
        %v7525 = vmul.f32 %v7193, 0.70710677
        %v7526 = vmul.f32 %v7304, 0.70710677
        %v7527 = vmul.f32 %v7306, 0.70710677
        %v7528 = vmul.f32 %v6971, 0.70710677
        %v7529 = vmul.f32 %v6973, 0.70710677
        %v7530 = vmul.f32 %v7084, 0.70710677
        %v7531 = vmul.f32 %v7086, 0.70710677
        %v7532 = vmul.f32 %v7197, 0.70710677
        %v7533 = vmul.f32 %v7199, 0.70710677
        %v7534 = vmul.f32 %v7310, 0.70710677
        %v7535 = vmul.f32 %v7312, 0.70710677
        %v7536 = vmul.f32 %v6975, 0.70710677
        %v7537 = vmul.f32 %v6977, 0.70710677
        %v7538 = vmul.f32 %v7088, 0.70710677
        %v7539 = vmul.f32 %v7090, 0.70710677
        %v7540 = vmul.f32 %v7201, 0.70710677
        %v7541 = vmul.f32 %v7203, 0.70710677
        %v7542 = vmul.f32 %v7314, 0.70710677
        %v7543 = vmul.f32 %v7316, 0.70710677
        %v7544 = vmul.f32 %v6981, 0.70710677
        %v7545 = vmul.f32 %v6983, 0.70710677
        %v7546 = vmul.f32 %v7094, 0.70710677
        %v7547 = vmul.f32 %v7096, 0.70710677
        %v7548 = vmul.f32 %v7207, 0.70710677
        %v7549 = vmul.f32 %v7209, 0.70710677
        %v7550 = vmul.f32 %v7320, 0.70710677
        %v7551 = vmul.f32 %v7322, 0.70710677
        %v7552 = vmul.f32 %v6985, 0.70710677
        %v7553 = vmul.f32 %v6987, 0.70710677
        %v7554 = vmul.f32 %v7098, 0.70710677
        %v7555 = vmul.f32 %v7100, 0.70710677
        %v7556 = vmul.f32 %v7211, 0.70710677
        %v7557 = vmul.f32 %v7213, 0.70710677
        %v7558 = vmul.f32 %v7324, 0.70710677
        %v7559 = vmul.f32 %v7326, 0.70710677
        %v7560 = vmul.f32 %v6991, 0.70710677
        %v7561 = vmul.f32 %v6993, 0.70710677
        %v7562 = vmul.f32 %v7104, 0.70710677
        %v7563 = vmul.f32 %v7106, 0.70710677
        %v7564 = vmul.f32 %v7217, 0.70710677
        %v7565 = vmul.f32 %v7219, 0.70710677
        %v7566 = vmul.f32 %v7330, 0.70710677
        %v7567 = vmul.f32 %v7332, 0.70710677
        %v7568 = vmul.f32 %v6995, 0.70710677
        %v7569 = vmul.f32 %v6997, 0.70710677
        %v7570 = vmul.f32 %v7108, 0.70710677
        %v7571 = vmul.f32 %v7110, 0.70710677
        %v7572 = vmul.f32 %v7221, 0.70710677
        %v7573 = vmul.f32 %v7223, 0.70710677
        %v7574 = vmul.f32 %v7334, 0.70710677
        %v7575 = vmul.f32 %v7336, 0.70710677
        %v7576 = vmul.f32 %v7001, 0.70710677
        %v7577 = vmul.f32 %v7003, 0.70710677
        %v7578 = vmul.f32 %v7114, 0.70710677
        %v7579 = vmul.f32 %v7116, 0.70710677
        %v7580 = vmul.f32 %v7227, 0.70710677
        %v7581 = vmul.f32 %v7229, 0.70710677
        %v7582 = vmul.f32 %v7340, 0.70710677
        %v7583 = vmul.f32 %v7342, 0.70710677
        %v7584 = vmul.f32 %v7005, 0.70710677
        %v7585 = vmul.f32 %v7007, 0.70710677
        %v7586 = vmul.f32 %v7118, 0.70710677
        %v7587 = vmul.f32 %v7120, 0.70710677
        %v7588 = vmul.f32 %v7231, 0.70710677
        %v7589 = vmul.f32 %v7233, 0.70710677
        %v7590 = vmul.f32 %v7344, 0.70710677
        %v7591 = vmul.f32 %v7346, 0.70710677
        %v7592 = vmul.f32 %v7011, 0.70710677
        %v7593 = vmul.f32 %v7013, 0.70710677
        %v7594 = vmul.f32 %v7124, 0.70710677
        %v7595 = vmul.f32 %v7126, 0.70710677
        %v7596 = vmul.f32 %v7237, 0.70710677
        %v7597 = vmul.f32 %v7239, 0.70710677
        %v7598 = vmul.f32 %v7350, 0.70710677
        %v7599 = vmul.f32 %v7352, 0.70710677
        %v7600 = vmul.f32 %v7015, 0.70710677
        %v7601 = vmul.f32 %v7017, 0.70710677
        %v7602 = vmul.f32 %v7128, 0.70710677
        %v7603 = vmul.f32 %v7130, 0.70710677
        %v7604 = vmul.f32 %v7241, 0.70710677
        %v7605 = vmul.f32 %v7243, 0.70710677
        %v7606 = vmul.f32 %v7354, 0.70710677
        %v7607 = vmul.f32 %v7356, 0.70710677
        %v7608 = vmul.f32 %v7021, 0.70710677
        %v7609 = vmul.f32 %v7023, 0.70710677
        %v7610 = vmul.f32 %v7134, 0.70710677
        %v7611 = vmul.f32 %v7136, 0.70710677
        %v7612 = vmul.f32 %v7247, 0.70710677
        %v7613 = vmul.f32 %v7249, 0.70710677
        %v7614 = vmul.f32 %v7360, 0.70710677
        %v7615 = vmul.f32 %v7362, 0.70710677
        %v7616 = vmul.f32 %v7025, 0.70710677
        %v7617 = vmul.f32 %v7027, 0.70710677
        %v7618 = vmul.f32 %v7138, 0.70710677
        %v7619 = vmul.f32 %v7140, 0.70710677
        %v7620 = vmul.f32 %v7251, 0.70710677
        %v7621 = vmul.f32 %v7253, 0.70710677
        %v7622 = vmul.f32 %v7364, 0.70710677
        %v7623 = vmul.f32 %v7366, 0.70710677
        %v7624 = verf.f32.pop %v7496
        %v7625 = verf.f32.pop %v7497
        %v7626 = verf.f32.pop %v7498
        %v7627 = verf.f32.pop %v7499
        %v7628 = verf.f32.pop %v7500
        %v7629 = verf.f32.pop %v7501
        %v7630 = verf.f32.pop %v7502
        %v7631 = verf.f32.pop %v7503
        %v7632 = verf.f32.pop %v7504
        %v7633 = verf.f32.pop %v7505
        %v7634 = verf.f32.pop %v7506
        %v7635 = verf.f32.pop %v7507
        %v7636 = verf.f32.pop %v7508
        %v7637 = verf.f32.pop %v7509
        %v7638 = verf.f32.pop %v7510
        %v7639 = verf.f32.pop %v7511
        %v7640 = verf.f32.pop %v7512
        %v7641 = verf.f32.pop %v7513
        %v7642 = verf.f32.pop %v7514
        %v7643 = verf.f32.pop %v7515
        %v7644 = verf.f32.pop %v7516
        %v7645 = verf.f32.pop %v7517
        %v7646 = verf.f32.pop %v7518
        %v7647 = verf.f32.pop %v7519
        %v7648 = verf.f32.pop %v7520
        %v7649 = verf.f32.pop %v7521
        %v7650 = verf.f32.pop %v7522
        %v7651 = verf.f32.pop %v7523
        %v7652 = verf.f32.pop %v7524
        %v7653 = verf.f32.pop %v7525
        %v7654 = verf.f32.pop %v7526
        %v7655 = verf.f32.pop %v7527
        %v7656 = verf.f32.pop %v7528
        %v7657 = verf.f32.pop %v7529
        %v7658 = verf.f32.pop %v7530
        %v7659 = verf.f32.pop %v7531
        %v7660 = verf.f32.pop %v7532
        %v7661 = verf.f32.pop %v7533
        %v7662 = verf.f32.pop %v7534
        %v7663 = verf.f32.pop %v7535
        %v7664 = verf.f32.pop %v7536
        %v7665 = verf.f32.pop %v7537
        %v7666 = verf.f32.pop %v7538
        %v7667 = verf.f32.pop %v7539
        %v7668 = verf.f32.pop %v7540
        %v7669 = verf.f32.pop %v7541
        %v7670 = verf.f32.pop %v7542
        %v7671 = verf.f32.pop %v7543
        %v7672 = verf.f32.pop %v7544
        %v7673 = verf.f32.pop %v7545
        %v7674 = verf.f32.pop %v7546
        %v7675 = verf.f32.pop %v7547
        %v7676 = verf.f32.pop %v7548
        %v7677 = verf.f32.pop %v7549
        %v7678 = verf.f32.pop %v7550
        %v7679 = verf.f32.pop %v7551
        %v7680 = verf.f32.pop %v7552
        %v7681 = verf.f32.pop %v7553
        %v7682 = verf.f32.pop %v7554
        %v7683 = verf.f32.pop %v7555
        %v7684 = verf.f32.pop %v7556
        %v7685 = verf.f32.pop %v7557
        %v7686 = verf.f32.pop %v7558
        %v7687 = verf.f32.pop %v7559
        %v7688 = verf.f32.pop %v7560
        %v7689 = verf.f32.pop %v7561
        %v7690 = verf.f32.pop %v7562
        %v7691 = verf.f32.pop %v7563
        %v7692 = verf.f32.pop %v7564
        %v7693 = verf.f32.pop %v7565
        %v7694 = verf.f32.pop %v7566
        %v7695 = verf.f32.pop %v7567
        %v7696 = verf.f32.pop %v7568
        %v7697 = verf.f32.pop %v7569
        %v7698 = verf.f32.pop %v7570
        %v7699 = verf.f32.pop %v7571
        %v7700 = verf.f32.pop %v7572
        %v7701 = verf.f32.pop %v7573
        %v7702 = verf.f32.pop %v7574
        %v7703 = verf.f32.pop %v7575
        %v7704 = verf.f32.pop %v7576
        %v7705 = verf.f32.pop %v7577
        %v7706 = verf.f32.pop %v7578
        %v7707 = verf.f32.pop %v7579
        %v7708 = verf.f32.pop %v7580
        %v7709 = verf.f32.pop %v7581
        %v7710 = verf.f32.pop %v7582
        %v7711 = verf.f32.pop %v7583
        %v7712 = verf.f32.pop %v7584
        %v7713 = verf.f32.pop %v7585
        %v7714 = verf.f32.pop %v7586
        %v7715 = verf.f32.pop %v7587
        %v7716 = verf.f32.pop %v7588
        %v7717 = verf.f32.pop %v7589
        %v7718 = verf.f32.pop %v7590
        %v7719 = verf.f32.pop %v7591
        %v7720 = verf.f32.pop %v7592
        %v7721 = verf.f32.pop %v7593
        %v7722 = verf.f32.pop %v7594
        %v7723 = verf.f32.pop %v7595
        %v7724 = verf.f32.pop %v7596
        %v7725 = verf.f32.pop %v7597
        %v7726 = verf.f32.pop %v7598
        %v7727 = verf.f32.pop %v7599
        %v7728 = verf.f32.pop %v7600
        %v7729 = verf.f32.pop %v7601
        %v7730 = verf.f32.pop %v7602
        %v7731 = verf.f32.pop %v7603
        %v7732 = verf.f32.pop %v7604
        %v7733 = verf.f32.pop %v7605
        %v7734 = verf.f32.pop %v7606
        %v7735 = verf.f32.pop %v7607
        %v7736 = verf.f32.pop %v7608
        %v7737 = verf.f32.pop %v7609
        %v7738 = verf.f32.pop %v7610
        %v7739 = verf.f32.pop %v7611
        %v7740 = verf.f32.pop %v7612
        %v7741 = verf.f32.pop %v7613
        %v7742 = verf.f32.pop %v7614
        %v7743 = verf.f32.pop %v7615
        %v7744 = verf.f32.pop %v7616
        %v7745 = verf.f32.pop %v7617
        %v7746 = verf.f32.pop %v7618
        %v7747 = verf.f32.pop %v7619
        %v7748 = verf.f32.pop %v7620
        %v7749 = verf.f32.pop %v7621
        %v7750 = verf.f32.pop %v7622
        %v7751 = verf.f32.pop %v7623
        %v7752 = vadd.f32 %v7624, 1.0
        %v7753 = vadd.f32 %v7625, 1.0
        %v7754 = vadd.f32 %v7626, 1.0
        %v7755 = vadd.f32 %v7627, 1.0
        %v7756 = vadd.f32 %v7628, 1.0
        %v7757 = vadd.f32 %v7629, 1.0
        %v7758 = vadd.f32 %v7630, 1.0
        %v7759 = vadd.f32 %v7631, 1.0
        %v7760 = vadd.f32 %v7632, 1.0
        %v7761 = vadd.f32 %v7633, 1.0
        %v7762 = vadd.f32 %v7634, 1.0
        %v7763 = vadd.f32 %v7635, 1.0
        %v7764 = vadd.f32 %v7636, 1.0
        %v7765 = vadd.f32 %v7637, 1.0
        %v7766 = vadd.f32 %v7638, 1.0
        %v7767 = vadd.f32 %v7639, 1.0
        %v7768 = vadd.f32 %v7640, 1.0
        %v7769 = vadd.f32 %v7641, 1.0
        %v7770 = vadd.f32 %v7642, 1.0
        %v7771 = vadd.f32 %v7643, 1.0
        %v7772 = vadd.f32 %v7644, 1.0
        %v7773 = vadd.f32 %v7645, 1.0
        %v7774 = vadd.f32 %v7646, 1.0
        %v7775 = vadd.f32 %v7647, 1.0
        %v7776 = vadd.f32 %v7648, 1.0
        %v7777 = vadd.f32 %v7649, 1.0
        %v7778 = vadd.f32 %v7650, 1.0
        %v7779 = vadd.f32 %v7651, 1.0
        %v7780 = vadd.f32 %v7652, 1.0
        %v7781 = vadd.f32 %v7653, 1.0
        %v7782 = vadd.f32 %v7654, 1.0
        %v7783 = vadd.f32 %v7655, 1.0
        %v7784 = vadd.f32 %v7656, 1.0
        %v7785 = vadd.f32 %v7657, 1.0
        %v7786 = vadd.f32 %v7658, 1.0
        %v7787 = vadd.f32 %v7659, 1.0
        %v7788 = vadd.f32 %v7660, 1.0
        %v7789 = vadd.f32 %v7661, 1.0
        %v7790 = vadd.f32 %v7662, 1.0
        %v7791 = vadd.f32 %v7663, 1.0
        %v7792 = vadd.f32 %v7664, 1.0
        %v7793 = vadd.f32 %v7665, 1.0
        %v7794 = vadd.f32 %v7666, 1.0
        %v7795 = vadd.f32 %v7667, 1.0
        %v7796 = vadd.f32 %v7668, 1.0
        %v7797 = vadd.f32 %v7669, 1.0
        %v7798 = vadd.f32 %v7670, 1.0
        %v7799 = vadd.f32 %v7671, 1.0
        %v7800 = vadd.f32 %v7672, 1.0
        %v7801 = vadd.f32 %v7673, 1.0
        %v7802 = vadd.f32 %v7674, 1.0
        %v7803 = vadd.f32 %v7675, 1.0
        %v7804 = vadd.f32 %v7676, 1.0
        %v7805 = vadd.f32 %v7677, 1.0
        %v7806 = vadd.f32 %v7678, 1.0
        %v7807 = vadd.f32 %v7679, 1.0
        %v7808 = vadd.f32 %v7680, 1.0
        %v7809 = vadd.f32 %v7681, 1.0
        %v7810 = vadd.f32 %v7682, 1.0
        %v7811 = vadd.f32 %v7683, 1.0
        %v7812 = vadd.f32 %v7684, 1.0
        %v7813 = vadd.f32 %v7685, 1.0
        %v7814 = vadd.f32 %v7686, 1.0
        %v7815 = vadd.f32 %v7687, 1.0
        %v7816 = vadd.f32 %v7688, 1.0
        %v7817 = vadd.f32 %v7689, 1.0
        %v7818 = vadd.f32 %v7690, 1.0
        %v7819 = vadd.f32 %v7691, 1.0
        %v7820 = vadd.f32 %v7692, 1.0
        %v7821 = vadd.f32 %v7693, 1.0
        %v7822 = vadd.f32 %v7694, 1.0
        %v7823 = vadd.f32 %v7695, 1.0
        %v7824 = vadd.f32 %v7696, 1.0
        %v7825 = vadd.f32 %v7697, 1.0
        %v7826 = vadd.f32 %v7698, 1.0
        %v7827 = vadd.f32 %v7699, 1.0
        %v7828 = vadd.f32 %v7700, 1.0
        %v7829 = vadd.f32 %v7701, 1.0
        %v7830 = vadd.f32 %v7702, 1.0
        %v7831 = vadd.f32 %v7703, 1.0
        %v7832 = vadd.f32 %v7704, 1.0
        %v7833 = vadd.f32 %v7705, 1.0
        %v7834 = vadd.f32 %v7706, 1.0
        %v7835 = vadd.f32 %v7707, 1.0
        %v7836 = vadd.f32 %v7708, 1.0
        %v7837 = vadd.f32 %v7709, 1.0
        %v7838 = vadd.f32 %v7710, 1.0
        %v7839 = vadd.f32 %v7711, 1.0
        %v7840 = vadd.f32 %v7712, 1.0
        %v7841 = vadd.f32 %v7713, 1.0
        %v7842 = vadd.f32 %v7714, 1.0
        %v7843 = vadd.f32 %v7715, 1.0
        %v7844 = vadd.f32 %v7716, 1.0
        %v7845 = vadd.f32 %v7717, 1.0
        %v7846 = vadd.f32 %v7718, 1.0
        %v7847 = vadd.f32 %v7719, 1.0
        %v7848 = vadd.f32 %v7720, 1.0
        %v7849 = vadd.f32 %v7721, 1.0
        %v7850 = vadd.f32 %v7722, 1.0
        %v7851 = vadd.f32 %v7723, 1.0
        %v7852 = vadd.f32 %v7724, 1.0
        %v7853 = vadd.f32 %v7725, 1.0
        %v7854 = vadd.f32 %v7726, 1.0
        %v7855 = vadd.f32 %v7727, 1.0
        %v7856 = vadd.f32 %v7728, 1.0
        %v7857 = vadd.f32 %v7729, 1.0
        %v7858 = vadd.f32 %v7730, 1.0
        %v7859 = vadd.f32 %v7731, 1.0
        %v7860 = vadd.f32 %v7732, 1.0
        %v7861 = vadd.f32 %v7733, 1.0
        %v7862 = vadd.f32 %v7734, 1.0
        %v7863 = vadd.f32 %v7735, 1.0
        %v7864 = vadd.f32 %v7736, 1.0
        %v7865 = vadd.f32 %v7737, 1.0
        %v7866 = vadd.f32 %v7738, 1.0
        %v7867 = vadd.f32 %v7739, 1.0
        %v7868 = vadd.f32 %v7740, 1.0
        %v7869 = vadd.f32 %v7741, 1.0
        %v7870 = vadd.f32 %v7742, 1.0
        %v7871 = vadd.f32 %v7743, 1.0
        %v7872 = vadd.f32 %v7744, 1.0
        %v7873 = vadd.f32 %v7745, 1.0
        %v7874 = vadd.f32 %v7746, 1.0
        %v7875 = vadd.f32 %v7747, 1.0
        %v7876 = vadd.f32 %v7748, 1.0
        %v7877 = vadd.f32 %v7749, 1.0
        %v7878 = vadd.f32 %v7750, 1.0
        %v7879 = vadd.f32 %v7751, 1.0
        %v7880 = vmul.f32 %v7368, %v7752
        %v7881 = vmul.f32 %v7369, %v7753
        %v7882 = vmul.f32 %v7370, %v7754
        %v7883 = vmul.f32 %v7371, %v7755
        %v7884 = vmul.f32 %v7372, %v7756
        %v7885 = vmul.f32 %v7373, %v7757
        %v7886 = vmul.f32 %v7374, %v7758
        %v7887 = vmul.f32 %v7375, %v7759
        %v7888 = vmul.f32 %v7376, %v7760
        %v7889 = vmul.f32 %v7377, %v7761
        %v7890 = vmul.f32 %v7378, %v7762
        %v7891 = vmul.f32 %v7379, %v7763
        %v7892 = vmul.f32 %v7380, %v7764
        %v7893 = vmul.f32 %v7381, %v7765
        %v7894 = vmul.f32 %v7382, %v7766
        %v7895 = vmul.f32 %v7383, %v7767
        %v7896 = vmul.f32 %v7384, %v7768
        %v7897 = vmul.f32 %v7385, %v7769
        %v7898 = vmul.f32 %v7386, %v7770
        %v7899 = vmul.f32 %v7387, %v7771
        %v7900 = vmul.f32 %v7388, %v7772
        %v7901 = vmul.f32 %v7389, %v7773
        %v7902 = vmul.f32 %v7390, %v7774
        %v7903 = vmul.f32 %v7391, %v7775
        %v7904 = vmul.f32 %v7392, %v7776
        %v7905 = vmul.f32 %v7393, %v7777
        %v7906 = vmul.f32 %v7394, %v7778
        %v7907 = vmul.f32 %v7395, %v7779
        %v7908 = vmul.f32 %v7396, %v7780
        %v7909 = vmul.f32 %v7397, %v7781
        %v7910 = vmul.f32 %v7398, %v7782
        %v7911 = vmul.f32 %v7399, %v7783
        %v7912 = vmul.f32 %v7400, %v7784
        %v7913 = vmul.f32 %v7401, %v7785
        %v7914 = vmul.f32 %v7402, %v7786
        %v7915 = vmul.f32 %v7403, %v7787
        %v7916 = vmul.f32 %v7404, %v7788
        %v7917 = vmul.f32 %v7405, %v7789
        %v7918 = vmul.f32 %v7406, %v7790
        %v7919 = vmul.f32 %v7407, %v7791
        %v7920 = vmul.f32 %v7408, %v7792
        %v7921 = vmul.f32 %v7409, %v7793
        %v7922 = vmul.f32 %v7410, %v7794
        %v7923 = vmul.f32 %v7411, %v7795
        %v7924 = vmul.f32 %v7412, %v7796
        %v7925 = vmul.f32 %v7413, %v7797
        %v7926 = vmul.f32 %v7414, %v7798
        %v7927 = vmul.f32 %v7415, %v7799
        %v7928 = vmul.f32 %v7416, %v7800
        %v7929 = vmul.f32 %v7417, %v7801
        %v7930 = vmul.f32 %v7418, %v7802
        %v7931 = vmul.f32 %v7419, %v7803
        %v7932 = vmul.f32 %v7420, %v7804
        %v7933 = vmul.f32 %v7421, %v7805
        %v7934 = vmul.f32 %v7422, %v7806
        %v7935 = vmul.f32 %v7423, %v7807
        %v7936 = vmul.f32 %v7424, %v7808
        %v7937 = vmul.f32 %v7425, %v7809
        %v7938 = vmul.f32 %v7426, %v7810
        %v7939 = vmul.f32 %v7427, %v7811
        %v7940 = vmul.f32 %v7428, %v7812
        %v7941 = vmul.f32 %v7429, %v7813
        %v7942 = vmul.f32 %v7430, %v7814
        %v7943 = vmul.f32 %v7431, %v7815
        %v7944 = vmul.f32 %v7432, %v7816
        %v7945 = vmul.f32 %v7433, %v7817
        %v7946 = vmul.f32 %v7434, %v7818
        %v7947 = vmul.f32 %v7435, %v7819
        %v7948 = vmul.f32 %v7436, %v7820
        %v7949 = vmul.f32 %v7437, %v7821
        %v7950 = vmul.f32 %v7438, %v7822
        %v7951 = vmul.f32 %v7439, %v7823
        %v7952 = vmul.f32 %v7440, %v7824
        %v7953 = vmul.f32 %v7441, %v7825
        %v7954 = vmul.f32 %v7442, %v7826
        %v7955 = vmul.f32 %v7443, %v7827
        %v7956 = vmul.f32 %v7444, %v7828
        %v7957 = vmul.f32 %v7445, %v7829
        %v7958 = vmul.f32 %v7446, %v7830
        %v7959 = vmul.f32 %v7447, %v7831
        %v7960 = vmul.f32 %v7448, %v7832
        %v7961 = vmul.f32 %v7449, %v7833
        %v7962 = vmul.f32 %v7450, %v7834
        %v7963 = vmul.f32 %v7451, %v7835
        %v7964 = vmul.f32 %v7452, %v7836
        %v7965 = vmul.f32 %v7453, %v7837
        %v7966 = vmul.f32 %v7454, %v7838
        %v7967 = vmul.f32 %v7455, %v7839
        %v7968 = vmul.f32 %v7456, %v7840
        %v7969 = vmul.f32 %v7457, %v7841
        %v7970 = vmul.f32 %v7458, %v7842
        %v7971 = vmul.f32 %v7459, %v7843
        %v7972 = vmul.f32 %v7460, %v7844
        %v7973 = vmul.f32 %v7461, %v7845
        %v7974 = vmul.f32 %v7462, %v7846
        %v7975 = vmul.f32 %v7463, %v7847
        %v7976 = vmul.f32 %v7464, %v7848
        %v7977 = vmul.f32 %v7465, %v7849
        %v7978 = vmul.f32 %v7466, %v7850
        %v7979 = vmul.f32 %v7467, %v7851
        %v7980 = vmul.f32 %v7468, %v7852
        %v7981 = vmul.f32 %v7469, %v7853
        %v7982 = vmul.f32 %v7470, %v7854
        %v7983 = vmul.f32 %v7471, %v7855
        %v7984 = vmul.f32 %v7472, %v7856
        %v7985 = vmul.f32 %v7473, %v7857
        %v7986 = vmul.f32 %v7474, %v7858
        %v7987 = vmul.f32 %v7475, %v7859
        %v7988 = vmul.f32 %v7476, %v7860
        %v7989 = vmul.f32 %v7477, %v7861
        %v7990 = vmul.f32 %v7478, %v7862
        %v7991 = vmul.f32 %v7479, %v7863
        %v7992 = vmul.f32 %v7480, %v7864
        %v7993 = vmul.f32 %v7481, %v7865
        %v7994 = vmul.f32 %v7482, %v7866
        %v7995 = vmul.f32 %v7483, %v7867
        %v7996 = vmul.f32 %v7484, %v7868
        %v7997 = vmul.f32 %v7485, %v7869
        %v7998 = vmul.f32 %v7486, %v7870
        %v7999 = vmul.f32 %v7487, %v7871
        %v8000 = vmul.f32 %v7488, %v7872
        %v8001 = vmul.f32 %v7489, %v7873
        %v8002 = vmul.f32 %v7490, %v7874
        %v8003 = vmul.f32 %v7491, %v7875
        %v8004 = vmul.f32 %v7492, %v7876
        %v8005 = vmul.f32 %v7493, %v7877
        %v8006 = vmul.f32 %v7494, %v7878
        %v8007 = vmul.f32 %v7495, %v7879
        %v8008 = vpack.c.bf16 %v7888, %v7880
        %v8009 = vpack.c.bf16 %v7889, %v7881
        %v8010 = vpack.c.bf16 %v7890, %v7882
        %v8011 = vpack.c.bf16 %v7891, %v7883
        %v8012 = vpack.c.bf16 %v7892, %v7884
        %v8013 = vpack.c.bf16 %v7893, %v7885
        %v8014 = vpack.c.bf16 %v7894, %v7886
        %v8015 = vpack.c.bf16 %v7895, %v7887
        %v8016 = vpack.c.bf16 %v7904, %v7896
        %v8017 = vpack.c.bf16 %v7905, %v7897
        %v8018 = vpack.c.bf16 %v7906, %v7898
        %v8019 = vpack.c.bf16 %v7907, %v7899
        %v8020 = vpack.c.bf16 %v7908, %v7900
        %v8021 = vpack.c.bf16 %v7909, %v7901
        %v8022 = vpack.c.bf16 %v7910, %v7902
        %v8023 = vpack.c.bf16 %v7911, %v7903
        %v8024 = vpack.c.bf16 %v7920, %v7912
        %v8025 = vpack.c.bf16 %v7921, %v7913
        %v8026 = vpack.c.bf16 %v7922, %v7914
        %v8027 = vpack.c.bf16 %v7923, %v7915
        %v8028 = vpack.c.bf16 %v7924, %v7916
        %v8029 = vpack.c.bf16 %v7925, %v7917
        %v8030 = vpack.c.bf16 %v7926, %v7918
        %v8031 = vpack.c.bf16 %v7927, %v7919
        %v8032 = vpack.c.bf16 %v7936, %v7928
        %v8033 = vpack.c.bf16 %v7937, %v7929
        %v8034 = vpack.c.bf16 %v7938, %v7930
        %v8035 = vpack.c.bf16 %v7939, %v7931
        %v8036 = vpack.c.bf16 %v7940, %v7932
        %v8037 = vpack.c.bf16 %v7941, %v7933
        %v8038 = vpack.c.bf16 %v7942, %v7934
        %v8039 = vpack.c.bf16 %v7943, %v7935
        %v8040 = vpack.c.bf16 %v7952, %v7944
        %v8041 = vpack.c.bf16 %v7953, %v7945
        %v8042 = vpack.c.bf16 %v7954, %v7946
        %v8043 = vpack.c.bf16 %v7955, %v7947
        %v8044 = vpack.c.bf16 %v7956, %v7948
        %v8045 = vpack.c.bf16 %v7957, %v7949
        %v8046 = vpack.c.bf16 %v7958, %v7950
        %v8047 = vpack.c.bf16 %v7959, %v7951
        %v8048 = vpack.c.bf16 %v7968, %v7960
        %v8049 = vpack.c.bf16 %v7969, %v7961
        %v8050 = vpack.c.bf16 %v7970, %v7962
        %v8051 = vpack.c.bf16 %v7971, %v7963
        %v8052 = vpack.c.bf16 %v7972, %v7964
        %v8053 = vpack.c.bf16 %v7973, %v7965
        %v8054 = vpack.c.bf16 %v7974, %v7966
        %v8055 = vpack.c.bf16 %v7975, %v7967
        %v8056 = vpack.c.bf16 %v7984, %v7976
        %v8057 = vpack.c.bf16 %v7985, %v7977
        %v8058 = vpack.c.bf16 %v7986, %v7978
        %v8059 = vpack.c.bf16 %v7987, %v7979
        %v8060 = vpack.c.bf16 %v7988, %v7980
        %v8061 = vpack.c.bf16 %v7989, %v7981
        %v8062 = vpack.c.bf16 %v7990, %v7982
        %v8063 = vpack.c.bf16 %v7991, %v7983
        %v8064 = vpack.c.bf16 %v8000, %v7992
        %v8065 = vpack.c.bf16 %v8001, %v7993
        %v8066 = vpack.c.bf16 %v8002, %v7994
        %v8067 = vpack.c.bf16 %v8003, %v7995
        %v8068 = vpack.c.bf16 %v8004, %v7996
        %v8069 = vpack.c.bf16 %v8005, %v7997
        %v8070 = vpack.c.bf16 %v8006, %v7998
        %v8071 = vpack.c.bf16 %v8007, %v7999
        %v8072 = vld [vmem:[#allocation18] sm:$0xff]
        %v8073 = vld [vmem:[#allocation18 + $0x8] sm:$0xff]
        %v8074 = vld [vmem:[#allocation18 + $0x10] sm:$0xff]
        %v8075 = vld [vmem:[#allocation18 + $0x18] sm:$0xff]
        %v8076 = vld [vmem:[#allocation18 + $0x20] sm:$0xff]
        %v8077 = vld [vmem:[#allocation18 + $0x28] sm:$0xff]
        %v8078 = vld [vmem:[#allocation18 + $0x30] sm:$0xff]
        %v8079 = vld [vmem:[#allocation18 + $0x38] sm:$0xff]
        %v8080 = vld [vmem:[#allocation18 + $0x40] sm:$0xff]
        %v8081 = vld [vmem:[#allocation18 + $0x48] sm:$0xff]
        %v8082 = vld [vmem:[#allocation18 + $0x50] sm:$0xff]
        %v8083 = vld [vmem:[#allocation18 + $0x58] sm:$0xff]
        %v8084 = vld [vmem:[#allocation18 + $0x60] sm:$0xff]
        %v8085 = vld [vmem:[#allocation18 + $0x68] sm:$0xff]
        %v8086 = vld [vmem:[#allocation18 + $0x70] sm:$0xff]
        %v8087 = vld [vmem:[#allocation18 + $0x78] sm:$0xff]
        %v8088 = vld [vmem:[#allocation18 + $0x80] sm:$0xff]
        %v8089 = vld [vmem:[#allocation18 + $0x88] sm:$0xff]
        %v8090 = vld [vmem:[#allocation18 + $0x90] sm:$0xff]
        %v8091 = vld [vmem:[#allocation18 + $0x98] sm:$0xff]
        %v8092 = vld [vmem:[#allocation18 + $0xa0] sm:$0xff]
        %v8093 = vld [vmem:[#allocation18 + $0xa8] sm:$0xff]
        %v8094 = vld [vmem:[#allocation18 + $0xb0] sm:$0xff]
        %v8095 = vld [vmem:[#allocation18 + $0xb8] sm:$0xff]
        %v8096 = vld [vmem:[#allocation18 + $0xc0] sm:$0xff]
        %v8097 = vld [vmem:[#allocation18 + $0xc8] sm:$0xff]
        %v8098 = vld [vmem:[#allocation18 + $0xd0] sm:$0xff]
        %v8099 = vld [vmem:[#allocation18 + $0xd8] sm:$0xff]
        %v8100 = vld [vmem:[#allocation18 + $0xe0] sm:$0xff]
        %v8101 = vld [vmem:[#allocation18 + $0xe8] sm:$0xff]
        %v8102 = vld [vmem:[#allocation18 + $0xf0] sm:$0xff]
        %v8103 = vld [vmem:[#allocation18 + $0xf8] sm:$0xff]
        %v8104 = vld [vmem:[#allocation18 + $0x100] sm:$0xff]
        %v8105 = vld [vmem:[#allocation18 + $0x108] sm:$0xff]
        %v8106 = vld [vmem:[#allocation18 + $0x110] sm:$0xff]
        %v8107 = vld [vmem:[#allocation18 + $0x118] sm:$0xff]
        %v8108 = vld [vmem:[#allocation18 + $0x120] sm:$0xff]
        %v8109 = vld [vmem:[#allocation18 + $0x128] sm:$0xff]
        %v8110 = vld [vmem:[#allocation18 + $0x130] sm:$0xff]
        %v8111 = vld [vmem:[#allocation18 + $0x138] sm:$0xff]
        %v8112 = vld [vmem:[#allocation18 + $0x140] sm:$0xff]
        %v8113 = vld [vmem:[#allocation18 + $0x148] sm:$0xff]
        %v8114 = vld [vmem:[#allocation18 + $0x150] sm:$0xff]
        %v8115 = vld [vmem:[#allocation18 + $0x158] sm:$0xff]
        %v8116 = vld [vmem:[#allocation18 + $0x160] sm:$0xff]
        %v8117 = vld [vmem:[#allocation18 + $0x168] sm:$0xff]
        %v8118 = vld [vmem:[#allocation18 + $0x170] sm:$0xff]
        %v8119 = vld [vmem:[#allocation18 + $0x178] sm:$0xff]
        %v8120 = vld [vmem:[#allocation18 + $0x180] sm:$0xff]
        %v8121 = vld [vmem:[#allocation18 + $0x188] sm:$0xff]
        %v8122 = vld [vmem:[#allocation18 + $0x190] sm:$0xff]
        %v8123 = vld [vmem:[#allocation18 + $0x198] sm:$0xff]
        %v8124 = vld [vmem:[#allocation18 + $0x1a0] sm:$0xff]
        %v8125 = vld [vmem:[#allocation18 + $0x1a8] sm:$0xff]
        %v8126 = vld [vmem:[#allocation18 + $0x1b0] sm:$0xff]
        %v8127 = vld [vmem:[#allocation18 + $0x1b8] sm:$0xff]
        %v8128 = vld [vmem:[#allocation18 + $0x1c0] sm:$0xff]
        %v8129 = vld [vmem:[#allocation18 + $0x1c8] sm:$0xff]
        %v8130 = vld [vmem:[#allocation18 + $0x1d0] sm:$0xff]
        %v8131 = vld [vmem:[#allocation18 + $0x1d8] sm:$0xff]
        %v8132 = vld [vmem:[#allocation18 + $0x1e0] sm:$0xff]
        %v8133 = vld [vmem:[#allocation18 + $0x1e8] sm:$0xff]
        %v8134 = vld [vmem:[#allocation18 + $0x1f0] sm:$0xff]
        %v8135 = vld [vmem:[#allocation18 + $0x1f8] sm:$0xff]
        %v8136 = vld [vmem:[#allocation18 + $0x200] sm:$0xff]
        %v8137 = vld [vmem:[#allocation18 + $0x208] sm:$0xff]
        %v8138 = vld [vmem:[#allocation18 + $0x210] sm:$0xff]
        %v8139 = vld [vmem:[#allocation18 + $0x218] sm:$0xff]
        %v8140 = vld [vmem:[#allocation18 + $0x220] sm:$0xff]
        %v8141 = vld [vmem:[#allocation18 + $0x228] sm:$0xff]
        %v8142 = vld [vmem:[#allocation18 + $0x230] sm:$0xff]
        %v8143 = vld [vmem:[#allocation18 + $0x238] sm:$0xff]
        %v8144 = vld [vmem:[#allocation18 + $0x240] sm:$0xff]
        %v8145 = vld [vmem:[#allocation18 + $0x248] sm:$0xff]
        %v8146 = vld [vmem:[#allocation18 + $0x250] sm:$0xff]
        %v8147 = vld [vmem:[#allocation18 + $0x258] sm:$0xff]
        %v8148 = vld [vmem:[#allocation18 + $0x260] sm:$0xff]
        %v8149 = vld [vmem:[#allocation18 + $0x268] sm:$0xff]
        %v8150 = vld [vmem:[#allocation18 + $0x270] sm:$0xff]
        %v8151 = vld [vmem:[#allocation18 + $0x278] sm:$0xff]
        %v8152 = vld [vmem:[#allocation18 + $0x280] sm:$0xff]
        %v8153 = vld [vmem:[#allocation18 + $0x288] sm:$0xff]
        %v8154 = vld [vmem:[#allocation18 + $0x290] sm:$0xff]
        %v8155 = vld [vmem:[#allocation18 + $0x298] sm:$0xff]
        %v8156 = vld [vmem:[#allocation18 + $0x2a0] sm:$0xff]
        %v8157 = vld [vmem:[#allocation18 + $0x2a8] sm:$0xff]
        %v8158 = vld [vmem:[#allocation18 + $0x2b0] sm:$0xff]
        %v8159 = vld [vmem:[#allocation18 + $0x2b8] sm:$0xff]
        %v8160 = vld [vmem:[#allocation18 + $0x2c0] sm:$0xff]
        %v8161 = vld [vmem:[#allocation18 + $0x2c8] sm:$0xff]
        %v8162 = vld [vmem:[#allocation18 + $0x2d0] sm:$0xff]
        %v8163 = vld [vmem:[#allocation18 + $0x2d8] sm:$0xff]
        %v8164 = vld [vmem:[#allocation18 + $0x2e0] sm:$0xff]
        %v8165 = vld [vmem:[#allocation18 + $0x2e8] sm:$0xff]
        %v8166 = vld [vmem:[#allocation18 + $0x2f0] sm:$0xff]
        %v8167 = vld [vmem:[#allocation18 + $0x2f8] sm:$0xff]
        %v8168 = vld [vmem:[#allocation18 + $0x300] sm:$0xff]
        %v8169 = vld [vmem:[#allocation18 + $0x308] sm:$0xff]
        %v8170 = vld [vmem:[#allocation18 + $0x310] sm:$0xff]
        %v8171 = vld [vmem:[#allocation18 + $0x318] sm:$0xff]
        %v8172 = vld [vmem:[#allocation18 + $0x320] sm:$0xff]
        %v8173 = vld [vmem:[#allocation18 + $0x328] sm:$0xff]
        %v8174 = vld [vmem:[#allocation18 + $0x330] sm:$0xff]
        %v8175 = vld [vmem:[#allocation18 + $0x338] sm:$0xff]
        %v8176 = vld [vmem:[#allocation18 + $0x340] sm:$0xff]
        %v8177 = vld [vmem:[#allocation18 + $0x348] sm:$0xff]
        %v8178 = vld [vmem:[#allocation18 + $0x350] sm:$0xff]
        %v8179 = vld [vmem:[#allocation18 + $0x358] sm:$0xff]
        %v8180 = vld [vmem:[#allocation18 + $0x360] sm:$0xff]
        %v8181 = vld [vmem:[#allocation18 + $0x368] sm:$0xff]
        %v8182 = vld [vmem:[#allocation18 + $0x370] sm:$0xff]
        %v8183 = vld [vmem:[#allocation18 + $0x378] sm:$0xff]
        %v8184 = vld [vmem:[#allocation18 + $0x380] sm:$0xff]
        %v8185 = vld [vmem:[#allocation18 + $0x388] sm:$0xff]
        %v8186 = vld [vmem:[#allocation18 + $0x390] sm:$0xff]
        %v8187 = vld [vmem:[#allocation18 + $0x398] sm:$0xff]
        %v8188 = vld [vmem:[#allocation18 + $0x3a0] sm:$0xff]
        %v8189 = vld [vmem:[#allocation18 + $0x3a8] sm:$0xff]
        %v8190 = vld [vmem:[#allocation18 + $0x3b0] sm:$0xff]
        %v8191 = vld [vmem:[#allocation18 + $0x3b8] sm:$0xff]
        %v8192 = vld [vmem:[#allocation18 + $0x3c0] sm:$0xff]
        %v8193 = vld [vmem:[#allocation18 + $0x3c8] sm:$0xff]
        %v8194 = vld [vmem:[#allocation18 + $0x3d0] sm:$0xff]
        %v8195 = vld [vmem:[#allocation18 + $0x3d8] sm:$0xff]
        %v8196 = vld [vmem:[#allocation18 + $0x3e0] sm:$0xff]
        %v8197 = vld [vmem:[#allocation18 + $0x3e8] sm:$0xff]
        %v8198 = vld [vmem:[#allocation18 + $0x3f0] sm:$0xff]
        %v8199 = vld [vmem:[#allocation18 + $0x3f8] sm:$0xff]
        %v8200 = vld [vmem:[%s13] sm:$0x3]
        %v8202 = vlaneseq
        %v8203 = vshrl.u32 %v8202, 7
        %v8204 = vsub.s32 0, %v8203
        %v8205 = vrot.slane %v8200, %v8204
        %v8206 = vlaneseq
        %v8207 = vshrl.u32 %v8206, 7
        %v8208 = vsub.s32 1, %v8207
        %v8209 = vrot.slane %v8200, %v8208
        %v8340 = vunpack.c.l.b16 %v8072
        %v8341 = vunpack.c.h.b16 %v8072
        %v8342 = vunpack.c.l.b16 %v8073
        %v8343 = vunpack.c.h.b16 %v8073
        %v8344 = vunpack.c.l.b16 %v8074
        %v8345 = vunpack.c.h.b16 %v8074
        %v8346 = vunpack.c.l.b16 %v8075
        %v8347 = vunpack.c.h.b16 %v8075
        %v8348 = vunpack.c.l.b16 %v8076
        %v8349 = vunpack.c.h.b16 %v8076
        %v8350 = vunpack.c.l.b16 %v8077
        %v8351 = vunpack.c.h.b16 %v8077
        %v8352 = vunpack.c.l.b16 %v8078
        %v8353 = vunpack.c.h.b16 %v8078
        %v8354 = vunpack.c.l.b16 %v8079
        %v8355 = vunpack.c.h.b16 %v8079
        %v8356 = vunpack.c.l.b16 %v8080
        %v8357 = vunpack.c.h.b16 %v8080
        %v8358 = vunpack.c.l.b16 %v8081
        %v8359 = vunpack.c.h.b16 %v8081
        %v8360 = vunpack.c.l.b16 %v8082
        %v8361 = vunpack.c.h.b16 %v8082
        %v8362 = vunpack.c.l.b16 %v8083
        %v8363 = vunpack.c.h.b16 %v8083
        %v8364 = vunpack.c.l.b16 %v8084
        %v8365 = vunpack.c.h.b16 %v8084
        %v8366 = vunpack.c.l.b16 %v8085
        %v8367 = vunpack.c.h.b16 %v8085
        %v8368 = vunpack.c.l.b16 %v8086
        %v8369 = vunpack.c.h.b16 %v8086
        %v8370 = vunpack.c.l.b16 %v8087
        %v8371 = vunpack.c.h.b16 %v8087
        %v8372 = vunpack.c.l.b16 %v8088
        %v8373 = vunpack.c.h.b16 %v8088
        %v8374 = vunpack.c.l.b16 %v8089
        %v8375 = vunpack.c.h.b16 %v8089
        %v8376 = vunpack.c.l.b16 %v8090
        %v8377 = vunpack.c.h.b16 %v8090
        %v8378 = vunpack.c.l.b16 %v8091
        %v8379 = vunpack.c.h.b16 %v8091
        %v8380 = vunpack.c.l.b16 %v8092
        %v8381 = vunpack.c.h.b16 %v8092
        %v8382 = vunpack.c.l.b16 %v8093
        %v8383 = vunpack.c.h.b16 %v8093
        %v8384 = vunpack.c.l.b16 %v8094
        %v8385 = vunpack.c.h.b16 %v8094
        %v8386 = vunpack.c.l.b16 %v8095
        %v8387 = vunpack.c.h.b16 %v8095
        %v8388 = vunpack.c.l.b16 %v8096
        %v8389 = vunpack.c.h.b16 %v8096
        %v8390 = vunpack.c.l.b16 %v8097
        %v8391 = vunpack.c.h.b16 %v8097
        %v8392 = vunpack.c.l.b16 %v8098
        %v8393 = vunpack.c.h.b16 %v8098
        %v8394 = vunpack.c.l.b16 %v8099
        %v8395 = vunpack.c.h.b16 %v8099
        %v8396 = vunpack.c.l.b16 %v8100
        %v8397 = vunpack.c.h.b16 %v8100
        %v8398 = vunpack.c.l.b16 %v8101
        %v8399 = vunpack.c.h.b16 %v8101
        %v8400 = vunpack.c.l.b16 %v8102
        %v8401 = vunpack.c.h.b16 %v8102
        %v8402 = vunpack.c.l.b16 %v8103
        %v8403 = vunpack.c.h.b16 %v8103
        %v8404 = vunpack.c.l.b16 %v8104
        %v8405 = vunpack.c.h.b16 %v8104
        %v8406 = vunpack.c.l.b16 %v8105
        %v8407 = vunpack.c.h.b16 %v8105
        %v8408 = vunpack.c.l.b16 %v8106
        %v8409 = vunpack.c.h.b16 %v8106
        %v8410 = vunpack.c.l.b16 %v8107
        %v8411 = vunpack.c.h.b16 %v8107
        %v8412 = vunpack.c.l.b16 %v8108
        %v8413 = vunpack.c.h.b16 %v8108
        %v8414 = vunpack.c.l.b16 %v8109
        %v8415 = vunpack.c.h.b16 %v8109
        %v8416 = vunpack.c.l.b16 %v8110
        %v8417 = vunpack.c.h.b16 %v8110
        %v8418 = vunpack.c.l.b16 %v8111
        %v8419 = vunpack.c.h.b16 %v8111
        %v8420 = vunpack.c.l.b16 %v8112
        %v8421 = vunpack.c.h.b16 %v8112
        %v8422 = vunpack.c.l.b16 %v8113
        %v8423 = vunpack.c.h.b16 %v8113
        %v8424 = vunpack.c.l.b16 %v8114
        %v8425 = vunpack.c.h.b16 %v8114
        %v8426 = vunpack.c.l.b16 %v8115
        %v8427 = vunpack.c.h.b16 %v8115
        %v8428 = vunpack.c.l.b16 %v8116
        %v8429 = vunpack.c.h.b16 %v8116
        %v8430 = vunpack.c.l.b16 %v8117
        %v8431 = vunpack.c.h.b16 %v8117
        %v8432 = vunpack.c.l.b16 %v8118
        %v8433 = vunpack.c.h.b16 %v8118
        %v8434 = vunpack.c.l.b16 %v8119
        %v8435 = vunpack.c.h.b16 %v8119
        %v8436 = vunpack.c.l.b16 %v8120
        %v8437 = vunpack.c.h.b16 %v8120
        %v8438 = vunpack.c.l.b16 %v8121
        %v8439 = vunpack.c.h.b16 %v8121
        %v8440 = vunpack.c.l.b16 %v8122
        %v8441 = vunpack.c.h.b16 %v8122
        %v8442 = vunpack.c.l.b16 %v8123
        %v8443 = vunpack.c.h.b16 %v8123
        %v8444 = vunpack.c.l.b16 %v8124
        %v8445 = vunpack.c.h.b16 %v8124
        %v8446 = vunpack.c.l.b16 %v8125
        %v8447 = vunpack.c.h.b16 %v8125
        %v8448 = vunpack.c.l.b16 %v8126
        %v8449 = vunpack.c.h.b16 %v8126
        %v8450 = vunpack.c.l.b16 %v8127
        %v8451 = vunpack.c.h.b16 %v8127
        %v8452 = vunpack.c.l.b16 %v8128
        %v8453 = vunpack.c.h.b16 %v8128
        %v8454 = vunpack.c.l.b16 %v8129
        %v8455 = vunpack.c.h.b16 %v8129
        %v8456 = vunpack.c.l.b16 %v8130
        %v8457 = vunpack.c.h.b16 %v8130
        %v8458 = vunpack.c.l.b16 %v8131
        %v8459 = vunpack.c.h.b16 %v8131
        %v8460 = vunpack.c.l.b16 %v8132
        %v8461 = vunpack.c.h.b16 %v8132
        %v8462 = vunpack.c.l.b16 %v8133
        %v8463 = vunpack.c.h.b16 %v8133
        %v8464 = vunpack.c.l.b16 %v8134
        %v8465 = vunpack.c.h.b16 %v8134
        %v8466 = vunpack.c.l.b16 %v8135
        %v8467 = vunpack.c.h.b16 %v8135
        %v8468 = vunpack.c.l.b16 %v8136
        %v8469 = vunpack.c.h.b16 %v8136
        %v8470 = vunpack.c.l.b16 %v8137
        %v8471 = vunpack.c.h.b16 %v8137
        %v8472 = vunpack.c.l.b16 %v8138
        %v8473 = vunpack.c.h.b16 %v8138
        %v8474 = vunpack.c.l.b16 %v8139
        %v8475 = vunpack.c.h.b16 %v8139
        %v8476 = vunpack.c.l.b16 %v8140
        %v8477 = vunpack.c.h.b16 %v8140
        %v8478 = vunpack.c.l.b16 %v8141
        %v8479 = vunpack.c.h.b16 %v8141
        %v8480 = vunpack.c.l.b16 %v8142
        %v8481 = vunpack.c.h.b16 %v8142
        %v8482 = vunpack.c.l.b16 %v8143
        %v8483 = vunpack.c.h.b16 %v8143
        %v8484 = vunpack.c.l.b16 %v8144
        %v8485 = vunpack.c.h.b16 %v8144
        %v8486 = vunpack.c.l.b16 %v8145
        %v8487 = vunpack.c.h.b16 %v8145
        %v8488 = vunpack.c.l.b16 %v8146
        %v8489 = vunpack.c.h.b16 %v8146
        %v8490 = vunpack.c.l.b16 %v8147
        %v8491 = vunpack.c.h.b16 %v8147
        %v8492 = vunpack.c.l.b16 %v8148
        %v8493 = vunpack.c.h.b16 %v8148
        %v8494 = vunpack.c.l.b16 %v8149
        %v8495 = vunpack.c.h.b16 %v8149
        %v8496 = vunpack.c.l.b16 %v8150
        %v8497 = vunpack.c.h.b16 %v8150
        %v8498 = vunpack.c.l.b16 %v8151
        %v8499 = vunpack.c.h.b16 %v8151
        %v8500 = vunpack.c.l.b16 %v8152
        %v8501 = vunpack.c.h.b16 %v8152
        %v8502 = vunpack.c.l.b16 %v8153
        %v8503 = vunpack.c.h.b16 %v8153
        %v8504 = vunpack.c.l.b16 %v8154
        %v8505 = vunpack.c.h.b16 %v8154
        %v8506 = vunpack.c.l.b16 %v8155
        %v8507 = vunpack.c.h.b16 %v8155
        %v8508 = vunpack.c.l.b16 %v8156
        %v8509 = vunpack.c.h.b16 %v8156
        %v8510 = vunpack.c.l.b16 %v8157
        %v8511 = vunpack.c.h.b16 %v8157
        %v8512 = vunpack.c.l.b16 %v8158
        %v8513 = vunpack.c.h.b16 %v8158
        %v8514 = vunpack.c.l.b16 %v8159
        %v8515 = vunpack.c.h.b16 %v8159
        %v8516 = vunpack.c.l.b16 %v8160
        %v8517 = vunpack.c.h.b16 %v8160
        %v8518 = vunpack.c.l.b16 %v8161
        %v8519 = vunpack.c.h.b16 %v8161
        %v8520 = vunpack.c.l.b16 %v8162
        %v8521 = vunpack.c.h.b16 %v8162
        %v8522 = vunpack.c.l.b16 %v8163
        %v8523 = vunpack.c.h.b16 %v8163
        %v8524 = vunpack.c.l.b16 %v8164
        %v8525 = vunpack.c.h.b16 %v8164
        %v8526 = vunpack.c.l.b16 %v8165
        %v8527 = vunpack.c.h.b16 %v8165
        %v8528 = vunpack.c.l.b16 %v8166
        %v8529 = vunpack.c.h.b16 %v8166
        %v8530 = vunpack.c.l.b16 %v8167
        %v8531 = vunpack.c.h.b16 %v8167
        %v8532 = vunpack.c.l.b16 %v8168
        %v8533 = vunpack.c.h.b16 %v8168
        %v8534 = vunpack.c.l.b16 %v8169
        %v8535 = vunpack.c.h.b16 %v8169
        %v8536 = vunpack.c.l.b16 %v8170
        %v8537 = vunpack.c.h.b16 %v8170
        %v8538 = vunpack.c.l.b16 %v8171
        %v8539 = vunpack.c.h.b16 %v8171
        %v8540 = vunpack.c.l.b16 %v8172
        %v8541 = vunpack.c.h.b16 %v8172
        %v8542 = vunpack.c.l.b16 %v8173
        %v8543 = vunpack.c.h.b16 %v8173
        %v8544 = vunpack.c.l.b16 %v8174
        %v8545 = vunpack.c.h.b16 %v8174
        %v8546 = vunpack.c.l.b16 %v8175
        %v8547 = vunpack.c.h.b16 %v8175
        %v8548 = vunpack.c.l.b16 %v8176
        %v8549 = vunpack.c.h.b16 %v8176
        %v8550 = vunpack.c.l.b16 %v8177
        %v8551 = vunpack.c.h.b16 %v8177
        %v8552 = vunpack.c.l.b16 %v8178
        %v8553 = vunpack.c.h.b16 %v8178
        %v8554 = vunpack.c.l.b16 %v8179
        %v8555 = vunpack.c.h.b16 %v8179
        %v8556 = vunpack.c.l.b16 %v8180
        %v8557 = vunpack.c.h.b16 %v8180
        %v8558 = vunpack.c.l.b16 %v8181
        %v8559 = vunpack.c.h.b16 %v8181
        %v8560 = vunpack.c.l.b16 %v8182
        %v8561 = vunpack.c.h.b16 %v8182
        %v8562 = vunpack.c.l.b16 %v8183
        %v8563 = vunpack.c.h.b16 %v8183
        %v8564 = vunpack.c.l.b16 %v8184
        %v8565 = vunpack.c.h.b16 %v8184
        %v8566 = vunpack.c.l.b16 %v8185
        %v8567 = vunpack.c.h.b16 %v8185
        %v8568 = vunpack.c.l.b16 %v8186
        %v8569 = vunpack.c.h.b16 %v8186
        %v8570 = vunpack.c.l.b16 %v8187
        %v8571 = vunpack.c.h.b16 %v8187
        %v8572 = vunpack.c.l.b16 %v8188
        %v8573 = vunpack.c.h.b16 %v8188
        %v8574 = vunpack.c.l.b16 %v8189
        %v8575 = vunpack.c.h.b16 %v8189
        %v8576 = vunpack.c.l.b16 %v8190
        %v8577 = vunpack.c.h.b16 %v8190
        %v8578 = vunpack.c.l.b16 %v8191
        %v8579 = vunpack.c.h.b16 %v8191
        %v8580 = vunpack.c.l.b16 %v8192
        %v8581 = vunpack.c.h.b16 %v8192
        %v8582 = vunpack.c.l.b16 %v8193
        %v8583 = vunpack.c.h.b16 %v8193
        %v8584 = vunpack.c.l.b16 %v8194
        %v8585 = vunpack.c.h.b16 %v8194
        %v8586 = vunpack.c.l.b16 %v8195
        %v8587 = vunpack.c.h.b16 %v8195
        %v8588 = vunpack.c.l.b16 %v8196
        %v8589 = vunpack.c.h.b16 %v8196
        %v8590 = vunpack.c.l.b16 %v8197
        %v8591 = vunpack.c.h.b16 %v8197
        %v8592 = vunpack.c.l.b16 %v8198
        %v8593 = vunpack.c.h.b16 %v8198
        %v8594 = vunpack.c.l.b16 %v8199
        %v8595 = vunpack.c.h.b16 %v8199
        %v8596 = vpack.c.b16 %v8342, %v8340
        %v8597 = vpack.c.b16 %v8343, %v8341
        %v8598 = vpack.c.b16 %v8346, %v8344
        %v8599 = vpack.c.b16 %v8347, %v8345
        %v8600 = vpack.c.b16 %v8350, %v8348
        %v8601 = vpack.c.b16 %v8351, %v8349
        %v8602 = vpack.c.b16 %v8354, %v8352
        %v8603 = vpack.c.b16 %v8355, %v8353
        %v8604 = vpack.c.b16 %v8358, %v8356
        %v8605 = vpack.c.b16 %v8359, %v8357
        %v8606 = vpack.c.b16 %v8362, %v8360
        %v8607 = vpack.c.b16 %v8363, %v8361
        %v8608 = vpack.c.b16 %v8366, %v8364
        %v8609 = vpack.c.b16 %v8367, %v8365
        %v8610 = vpack.c.b16 %v8370, %v8368
        %v8611 = vpack.c.b16 %v8371, %v8369
        %v8612 = vpack.c.b16 %v8374, %v8372
        %v8613 = vpack.c.b16 %v8375, %v8373
        %v8614 = vpack.c.b16 %v8378, %v8376
        %v8615 = vpack.c.b16 %v8379, %v8377
        %v8616 = vpack.c.b16 %v8382, %v8380
        %v8617 = vpack.c.b16 %v8383, %v8381
        %v8618 = vpack.c.b16 %v8386, %v8384
        %v8619 = vpack.c.b16 %v8387, %v8385
        %v8620 = vpack.c.b16 %v8390, %v8388
        %v8621 = vpack.c.b16 %v8391, %v8389
        %v8622 = vpack.c.b16 %v8394, %v8392
        %v8623 = vpack.c.b16 %v8395, %v8393
        %v8624 = vpack.c.b16 %v8398, %v8396
        %v8625 = vpack.c.b16 %v8399, %v8397
        %v8626 = vpack.c.b16 %v8402, %v8400
        %v8627 = vpack.c.b16 %v8403, %v8401
        %v8628 = vpack.c.b16 %v8406, %v8404
        %v8629 = vpack.c.b16 %v8407, %v8405
        %v8630 = vpack.c.b16 %v8410, %v8408
        %v8631 = vpack.c.b16 %v8411, %v8409
        %v8632 = vpack.c.b16 %v8414, %v8412
        %v8633 = vpack.c.b16 %v8415, %v8413
        %v8634 = vpack.c.b16 %v8418, %v8416
        %v8635 = vpack.c.b16 %v8419, %v8417
        %v8636 = vpack.c.b16 %v8422, %v8420
        %v8637 = vpack.c.b16 %v8423, %v8421
        %v8638 = vpack.c.b16 %v8426, %v8424
        %v8639 = vpack.c.b16 %v8427, %v8425
        %v8640 = vpack.c.b16 %v8430, %v8428
        %v8641 = vpack.c.b16 %v8431, %v8429
        %v8642 = vpack.c.b16 %v8434, %v8432
        %v8643 = vpack.c.b16 %v8435, %v8433
        %v8644 = vpack.c.b16 %v8438, %v8436
        %v8645 = vpack.c.b16 %v8439, %v8437
        %v8646 = vpack.c.b16 %v8442, %v8440
        %v8647 = vpack.c.b16 %v8443, %v8441
        %v8648 = vpack.c.b16 %v8446, %v8444
        %v8649 = vpack.c.b16 %v8447, %v8445
        %v8650 = vpack.c.b16 %v8450, %v8448
        %v8651 = vpack.c.b16 %v8451, %v8449
        %v8652 = vpack.c.b16 %v8454, %v8452
        %v8653 = vpack.c.b16 %v8455, %v8453
        %v8654 = vpack.c.b16 %v8458, %v8456
        %v8655 = vpack.c.b16 %v8459, %v8457
        %v8656 = vpack.c.b16 %v8462, %v8460
        %v8657 = vpack.c.b16 %v8463, %v8461
        %v8658 = vpack.c.b16 %v8466, %v8464
        %v8659 = vpack.c.b16 %v8467, %v8465
        %v8660 = vpack.c.b16 %v8470, %v8468
        %v8661 = vpack.c.b16 %v8471, %v8469
        %v8662 = vpack.c.b16 %v8474, %v8472
        %v8663 = vpack.c.b16 %v8475, %v8473
        %v8664 = vpack.c.b16 %v8478, %v8476
        %v8665 = vpack.c.b16 %v8479, %v8477
        %v8666 = vpack.c.b16 %v8482, %v8480
        %v8667 = vpack.c.b16 %v8483, %v8481
        %v8668 = vpack.c.b16 %v8486, %v8484
        %v8669 = vpack.c.b16 %v8487, %v8485
        %v8670 = vpack.c.b16 %v8490, %v8488
        %v8671 = vpack.c.b16 %v8491, %v8489
        %v8672 = vpack.c.b16 %v8494, %v8492
        %v8673 = vpack.c.b16 %v8495, %v8493
        %v8674 = vpack.c.b16 %v8498, %v8496
        %v8675 = vpack.c.b16 %v8499, %v8497
        %v8676 = vpack.c.b16 %v8502, %v8500
        %v8677 = vpack.c.b16 %v8503, %v8501
        %v8678 = vpack.c.b16 %v8506, %v8504
        %v8679 = vpack.c.b16 %v8507, %v8505
        %v8680 = vpack.c.b16 %v8510, %v8508
        %v8681 = vpack.c.b16 %v8511, %v8509
        %v8682 = vpack.c.b16 %v8514, %v8512
        %v8683 = vpack.c.b16 %v8515, %v8513
        %v8684 = vpack.c.b16 %v8518, %v8516
        %v8685 = vpack.c.b16 %v8519, %v8517
        %v8686 = vpack.c.b16 %v8522, %v8520
        %v8687 = vpack.c.b16 %v8523, %v8521
        %v8688 = vpack.c.b16 %v8526, %v8524
        %v8689 = vpack.c.b16 %v8527, %v8525
        %v8690 = vpack.c.b16 %v8530, %v8528
        %v8691 = vpack.c.b16 %v8531, %v8529
        %v8692 = vpack.c.b16 %v8534, %v8532
        %v8693 = vpack.c.b16 %v8535, %v8533
        %v8694 = vpack.c.b16 %v8538, %v8536
        %v8695 = vpack.c.b16 %v8539, %v8537
        %v8696 = vpack.c.b16 %v8542, %v8540
        %v8697 = vpack.c.b16 %v8543, %v8541
        %v8698 = vpack.c.b16 %v8546, %v8544
        %v8699 = vpack.c.b16 %v8547, %v8545
        %v8700 = vpack.c.b16 %v8550, %v8548
        %v8701 = vpack.c.b16 %v8551, %v8549
        %v8702 = vpack.c.b16 %v8554, %v8552
        %v8703 = vpack.c.b16 %v8555, %v8553
        %v8704 = vpack.c.b16 %v8558, %v8556
        %v8705 = vpack.c.b16 %v8559, %v8557
        %v8706 = vpack.c.b16 %v8562, %v8560
        %v8707 = vpack.c.b16 %v8563, %v8561
        %v8708 = vpack.c.b16 %v8566, %v8564
        %v8709 = vpack.c.b16 %v8567, %v8565
        %v8710 = vpack.c.b16 %v8570, %v8568
        %v8711 = vpack.c.b16 %v8571, %v8569
        %v8712 = vpack.c.b16 %v8574, %v8572
        %v8713 = vpack.c.b16 %v8575, %v8573
        %v8714 = vpack.c.b16 %v8578, %v8576
        %v8715 = vpack.c.b16 %v8579, %v8577
        %v8716 = vpack.c.b16 %v8582, %v8580
        %v8717 = vpack.c.b16 %v8583, %v8581
        %v8718 = vpack.c.b16 %v8586, %v8584
        %v8719 = vpack.c.b16 %v8587, %v8585
        %v8720 = vpack.c.b16 %v8590, %v8588
        %v8721 = vpack.c.b16 %v8591, %v8589
        %v8722 = vpack.c.b16 %v8594, %v8592
        %v8723 = vpack.c.b16 %v8595, %v8593
        %8852 = vmatprep.subr.bf16.mxu0 %v8597
        %8853 = vmatpush1.bf16.msra.mxu0 %v8596
        %8854 = vmatprep.subr.bf16.mxu0 %v8599
        %8855 = vmatpush1.bf16.msra.mxu0 %v8598
        %8856 = vmatprep.subr.bf16.mxu0 %v8601
        %8857 = vmatpush1.bf16.msra.mxu0 %v8600
        %8858 = vmatprep.subr.bf16.mxu0 %v8603
        %8859 = vmatpush1.bf16.msra.mxu0 %v8602
        %8860 = vmatprep.subr.bf16.mxu0 %v8605
        %8861 = vmatpush1.bf16.msra.mxu0 %v8604
        %8862 = vmatprep.subr.bf16.mxu0 %v8607
        %8863 = vmatpush1.bf16.msra.mxu0 %v8606
        %8864 = vmatprep.subr.bf16.mxu0 %v8609
        %8865 = vmatpush1.bf16.msra.mxu0 %v8608
        %8866 = vmatprep.subr.bf16.mxu0 %v8611
        %8867 = vmatpush1.bf16.msra.mxu0 %v8610
        %8868 = vmatprep.subr.bf16.mxu0 %v8613
        %8869 = vmatpush1.bf16.msra.mxu0 %v8612
        %8870 = vmatprep.subr.bf16.mxu0 %v8615
        %8871 = vmatpush1.bf16.msra.mxu0 %v8614
        %8872 = vmatprep.subr.bf16.mxu0 %v8617
        %8873 = vmatpush1.bf16.msra.mxu0 %v8616
        %8874 = vmatprep.subr.bf16.mxu0 %v8619
        %8875 = vmatpush1.bf16.msra.mxu0 %v8618
        %8876 = vmatprep.subr.bf16.mxu0 %v8621
        %8877 = vmatpush1.bf16.msra.mxu0 %v8620
        %8878 = vmatprep.subr.bf16.mxu0 %v8623
        %8879 = vmatpush1.bf16.msra.mxu0 %v8622
        %8880 = vmatprep.subr.bf16.mxu0 %v8625
        %8881 = vmatpush1.bf16.msra.mxu0 %v8624
        %8882 = vmatprep.subr.bf16.mxu0 %v8627
        %8883 = vmatpush1.bf16.msra.mxu0 %v8626
        %8884 = vmatprep.mubr.bf16.mxu0 %v8009
        %8885 = vmatmul.mubr.bf16.gmra.mrb[0].mxu0 %v8008
        %v8886 = vpop.f32.mrb[0].mxu0
        %v8887 = vadd.f32 %v8205, %v8886
        %v8888 = vpop.f32.mrb[0].mxu0
        %v8889 = vadd.f32 %v8209, %v8888
        %v8890 = vpop.f32.mrb[0].mxu0
        %v8891 = vadd.f32 %v8205, %v8890
        %v8892 = vpop.f32.mrb[0].mxu0
        %v8893 = vadd.f32 %v8209, %v8892
        %8894 = vmatprep.mubr.bf16.mxu0 %v8017
        %8895 = vmatmul.mubr.bf16.gmra.mrb[0].mxu0 %v8016
        %v8896 = vpop.f32.mrb[0].mxu0
        %v8897 = vadd.f32 %v8205, %v8896
        %v8898 = vpop.f32.mrb[0].mxu0
        %v8899 = vadd.f32 %v8209, %v8898
        %v8900 = vpop.f32.mrb[0].mxu0
        %v8901 = vadd.f32 %v8205, %v8900
        %v8902 = vpop.f32.mrb[0].mxu0
        %v8903 = vadd.f32 %v8209, %v8902
        %8904 = vmatprep.mubr.bf16.mxu0 %v8025
        %8905 = vmatmul.mubr.bf16.gmra.mrb[0].mxu0 %v8024
        %v8906 = vpop.f32.mrb[0].mxu0
        %v8907 = vadd.f32 %v8205, %v8906
        %v8908 = vpop.f32.mrb[0].mxu0
        %v8909 = vadd.f32 %v8209, %v8908
        %v8910 = vpop.f32.mrb[0].mxu0
        %v8911 = vadd.f32 %v8205, %v8910
        %v8912 = vpop.f32.mrb[0].mxu0
        %v8913 = vadd.f32 %v8209, %v8912
        %8914 = vmatprep.mubr.bf16.mxu0 %v8033
        %8915 = vmatmul.mubr.bf16.gmra.mrb[0].mxu0 %v8032
        %v8916 = vpop.f32.mrb[0].mxu0
        %v8917 = vadd.f32 %v8205, %v8916
        %v8918 = vpop.f32.mrb[0].mxu0
        %v8919 = vadd.f32 %v8209, %v8918
        %v8920 = vpop.f32.mrb[0].mxu0
        %v8921 = vadd.f32 %v8205, %v8920
        %v8922 = vpop.f32.mrb[0].mxu0
        %v8923 = vadd.f32 %v8209, %v8922
        %8924 = vmatprep.mubr.bf16.mxu0 %v8041
        %8925 = vmatmul.mubr.bf16.gmra.mrb[0].mxu0 %v8040
        %v8926 = vpop.f32.mrb[0].mxu0
        %v8927 = vadd.f32 %v8205, %v8926
        %v8928 = vpop.f32.mrb[0].mxu0
        %v8929 = vadd.f32 %v8209, %v8928
        %v8930 = vpop.f32.mrb[0].mxu0
        %v8931 = vadd.f32 %v8205, %v8930
        %v8932 = vpop.f32.mrb[0].mxu0
        %v8933 = vadd.f32 %v8209, %v8932
        %8934 = vmatprep.mubr.bf16.mxu0 %v8049
        %8935 = vmatmul.mubr.bf16.gmra.mrb[0].mxu0 %v8048
        %v8936 = vpop.f32.mrb[0].mxu0
        %v8937 = vadd.f32 %v8205, %v8936
        %v8938 = vpop.f32.mrb[0].mxu0
        %v8939 = vadd.f32 %v8209, %v8938
        %v8940 = vpop.f32.mrb[0].mxu0
        %v8941 = vadd.f32 %v8205, %v8940
        %v8942 = vpop.f32.mrb[0].mxu0
        %v8943 = vadd.f32 %v8209, %v8942
        %8944 = vmatprep.mubr.bf16.mxu0 %v8057
        %8945 = vmatmul.mubr.bf16.gmra.mrb[0].mxu0 %v8056
        %v8946 = vpop.f32.mrb[0].mxu0
        %v8947 = vadd.f32 %v8205, %v8946
        %v8948 = vpop.f32.mrb[0].mxu0
        %v8949 = vadd.f32 %v8209, %v8948
        %v8950 = vpop.f32.mrb[0].mxu0
        %v8951 = vadd.f32 %v8205, %v8950
        %v8952 = vpop.f32.mrb[0].mxu0
        %v8953 = vadd.f32 %v8209, %v8952
        %8954 = vmatprep.mubr.bf16.mxu0 %v8065
        %8955 = vmatmul.mubr.bf16.gmra.mrb[0].mxu0 %v8064
        %v8956 = vpop.f32.mrb[0].mxu0
        %v8957 = vadd.f32 %v8205, %v8956
        %v8958 = vpop.f32.mrb[0].mxu0
        %v8959 = vadd.f32 %v8209, %v8958
        %v8960 = vpop.f32.mrb[0].mxu0
        %v8961 = vadd.f32 %v8205, %v8960
        %v8962 = vpop.f32.mrb[0].mxu0
        %v8963 = vadd.f32 %v8209, %v8962
        %8964 = vdwg.mxu0
        %8965 = vmatprep.subr.bf16.mxu0 %v8629
        %8966 = vmatpush1.bf16.msra.mxu0 %v8628
        %8967 = vmatprep.subr.bf16.mxu0 %v8631
        %8968 = vmatpush1.bf16.msra.mxu0 %v8630
        %8969 = vmatprep.subr.bf16.mxu0 %v8633
        %8970 = vmatpush1.bf16.msra.mxu0 %v8632
        %8971 = vmatprep.subr.bf16.mxu0 %v8635
        %8972 = vmatpush1.bf16.msra.mxu0 %v8634
        %8973 = vmatprep.subr.bf16.mxu0 %v8637
        %8974 = vmatpush1.bf16.msra.mxu0 %v8636
        %8975 = vmatprep.subr.bf16.mxu0 %v8639
        %8976 = vmatpush1.bf16.msra.mxu0 %v8638
        %8977 = vmatprep.subr.bf16.mxu0 %v8641
        %8978 = vmatpush1.bf16.msra.mxu0 %v8640
        %8979 = vmatprep.subr.bf16.mxu0 %v8643
        %8980 = vmatpush1.bf16.msra.mxu0 %v8642
        %8981 = vmatprep.subr.bf16.mxu0 %v8645
        %8982 = vmatpush1.bf16.msra.mxu0 %v8644
        %8983 = vmatprep.subr.bf16.mxu0 %v8647
        %8984 = vmatpush1.bf16.msra.mxu0 %v8646
        %8985 = vmatprep.subr.bf16.mxu0 %v8649
        %8986 = vmatpush1.bf16.msra.mxu0 %v8648
        %8987 = vmatprep.subr.bf16.mxu0 %v8651
        %8988 = vmatpush1.bf16.msra.mxu0 %v8650
        %8989 = vmatprep.subr.bf16.mxu0 %v8653
        %8990 = vmatpush1.bf16.msra.mxu0 %v8652
        %8991 = vmatprep.subr.bf16.mxu0 %v8655
        %8992 = vmatpush1.bf16.msra.mxu0 %v8654
        %8993 = vmatprep.subr.bf16.mxu0 %v8657
        %8994 = vmatpush1.bf16.msra.mxu0 %v8656
        %8995 = vmatprep.subr.bf16.mxu0 %v8659
        %8996 = vmatpush1.bf16.msra.mxu0 %v8658
        %8997 = vmatprep.mubr.bf16.mxu0 %v8011
        %8998 = vmatmul.mubr.bf16.gmra.mrb[0].mxu0 %v8010
        %v8999 = vpop.f32.mrb[0].mxu0
        %v9000 = vadd.f32 %v8887, %v8999
        %v9001 = vpop.f32.mrb[0].mxu0
        %v9002 = vadd.f32 %v8889, %v9001
        %v9003 = vpop.f32.mrb[0].mxu0
        %v9004 = vadd.f32 %v8891, %v9003
        %v9005 = vpop.f32.mrb[0].mxu0
        %v9006 = vadd.f32 %v8893, %v9005
        %9007 = vmatprep.mubr.bf16.mxu0 %v8019
        %9008 = vmatmul.mubr.bf16.gmra.mrb[0].mxu0 %v8018
        %v9009 = vpop.f32.mrb[0].mxu0
        %v9010 = vadd.f32 %v8897, %v9009
        %v9011 = vpop.f32.mrb[0].mxu0
        %v9012 = vadd.f32 %v8899, %v9011
        %v9013 = vpop.f32.mrb[0].mxu0
        %v9014 = vadd.f32 %v8901, %v9013
        %v9015 = vpop.f32.mrb[0].mxu0
        %v9016 = vadd.f32 %v8903, %v9015
        %9017 = vmatprep.mubr.bf16.mxu0 %v8027
        %9018 = vmatmul.mubr.bf16.gmra.mrb[0].mxu0 %v8026
        %v9019 = vpop.f32.mrb[0].mxu0
        %v9020 = vadd.f32 %v8907, %v9019
        %v9021 = vpop.f32.mrb[0].mxu0
        %v9022 = vadd.f32 %v8909, %v9021
        %v9023 = vpop.f32.mrb[0].mxu0
        %v9024 = vadd.f32 %v8911, %v9023
        %v9025 = vpop.f32.mrb[0].mxu0
        %v9026 = vadd.f32 %v8913, %v9025
        %9027 = vmatprep.mubr.bf16.mxu0 %v8035
        %9028 = vmatmul.mubr.bf16.gmra.mrb[0].mxu0 %v8034
        %v9029 = vpop.f32.mrb[0].mxu0
        %v9030 = vadd.f32 %v8917, %v9029
        %v9031 = vpop.f32.mrb[0].mxu0
        %v9032 = vadd.f32 %v8919, %v9031
        %v9033 = vpop.f32.mrb[0].mxu0
        %v9034 = vadd.f32 %v8921, %v9033
        %v9035 = vpop.f32.mrb[0].mxu0
        %v9036 = vadd.f32 %v8923, %v9035
        %9037 = vmatprep.mubr.bf16.mxu0 %v8043
        %9038 = vmatmul.mubr.bf16.gmra.mrb[0].mxu0 %v8042
        %v9039 = vpop.f32.mrb[0].mxu0
        %v9040 = vadd.f32 %v8927, %v9039
        %v9041 = vpop.f32.mrb[0].mxu0
        %v9042 = vadd.f32 %v8929, %v9041
        %v9043 = vpop.f32.mrb[0].mxu0
        %v9044 = vadd.f32 %v8931, %v9043
        %v9045 = vpop.f32.mrb[0].mxu0
        %v9046 = vadd.f32 %v8933, %v9045
        %9047 = vmatprep.mubr.bf16.mxu0 %v8051
        %9048 = vmatmul.mubr.bf16.gmra.mrb[0].mxu0 %v8050
        %v9049 = vpop.f32.mrb[0].mxu0
        %v9050 = vadd.f32 %v8937, %v9049
        %v9051 = vpop.f32.mrb[0].mxu0
        %v9052 = vadd.f32 %v8939, %v9051
        %v9053 = vpop.f32.mrb[0].mxu0
        %v9054 = vadd.f32 %v8941, %v9053
        %v9055 = vpop.f32.mrb[0].mxu0
        %v9056 = vadd.f32 %v8943, %v9055
        %9057 = vmatprep.mubr.bf16.mxu0 %v8059
        %9058 = vmatmul.mubr.bf16.gmra.mrb[0].mxu0 %v8058
        %v9059 = vpop.f32.mrb[0].mxu0
        %v9060 = vadd.f32 %v8947, %v9059
        %v9061 = vpop.f32.mrb[0].mxu0
        %v9062 = vadd.f32 %v8949, %v9061
        %v9063 = vpop.f32.mrb[0].mxu0
        %v9064 = vadd.f32 %v8951, %v9063
        %v9065 = vpop.f32.mrb[0].mxu0
        %v9066 = vadd.f32 %v8953, %v9065
        %9067 = vmatprep.mubr.bf16.mxu0 %v8067
        %9068 = vmatmul.mubr.bf16.gmra.mrb[0].mxu0 %v8066
        %v9069 = vpop.f32.mrb[0].mxu0
        %v9070 = vadd.f32 %v8957, %v9069
        %v9071 = vpop.f32.mrb[0].mxu0
        %v9072 = vadd.f32 %v8959, %v9071
        %v9073 = vpop.f32.mrb[0].mxu0
        %v9074 = vadd.f32 %v8961, %v9073
        %v9075 = vpop.f32.mrb[0].mxu0
        %v9076 = vadd.f32 %v8963, %v9075
        %9077 = vdwg.mxu0
        %9078 = vmatprep.subr.bf16.mxu0 %v8661
        %9079 = vmatpush1.bf16.msra.mxu0 %v8660
        %9080 = vmatprep.subr.bf16.mxu0 %v8663
        %9081 = vmatpush1.bf16.msra.mxu0 %v8662
        %9082 = vmatprep.subr.bf16.mxu0 %v8665
        %9083 = vmatpush1.bf16.msra.mxu0 %v8664
        %9084 = vmatprep.subr.bf16.mxu0 %v8667
        %9085 = vmatpush1.bf16.msra.mxu0 %v8666
        %9086 = vmatprep.subr.bf16.mxu0 %v8669
        %9087 = vmatpush1.bf16.msra.mxu0 %v8668
        %9088 = vmatprep.subr.bf16.mxu0 %v8671
        %9089 = vmatpush1.bf16.msra.mxu0 %v8670
        %9090 = vmatprep.subr.bf16.mxu0 %v8673
        %9091 = vmatpush1.bf16.msra.mxu0 %v8672
        %9092 = vmatprep.subr.bf16.mxu0 %v8675
        %9093 = vmatpush1.bf16.msra.mxu0 %v8674
        %9094 = vmatprep.subr.bf16.mxu0 %v8677
        %9095 = vmatpush1.bf16.msra.mxu0 %v8676
        %9096 = vmatprep.subr.bf16.mxu0 %v8679
        %9097 = vmatpush1.bf16.msra.mxu0 %v8678
        %9098 = vmatprep.subr.bf16.mxu0 %v8681
        %9099 = vmatpush1.bf16.msra.mxu0 %v8680
        %9100 = vmatprep.subr.bf16.mxu0 %v8683
        %9101 = vmatpush1.bf16.msra.mxu0 %v8682
        %9102 = vmatprep.subr.bf16.mxu0 %v8685
        %9103 = vmatpush1.bf16.msra.mxu0 %v8684
        %9104 = vmatprep.subr.bf16.mxu0 %v8687
        %9105 = vmatpush1.bf16.msra.mxu0 %v8686
        %9106 = vmatprep.subr.bf16.mxu0 %v8689
        %9107 = vmatpush1.bf16.msra.mxu0 %v8688
        %9108 = vmatprep.subr.bf16.mxu0 %v8691
        %9109 = vmatpush1.bf16.msra.mxu0 %v8690
        %9110 = vmatprep.mubr.bf16.mxu0 %v8013
        %9111 = vmatmul.mubr.bf16.gmra.mrb[0].mxu0 %v8012
        %v9112 = vpop.f32.mrb[0].mxu0
        %v9113 = vadd.f32 %v9000, %v9112
        %v9114 = vpop.f32.mrb[0].mxu0
        %v9115 = vadd.f32 %v9002, %v9114
        %v9116 = vpop.f32.mrb[0].mxu0
        %v9117 = vadd.f32 %v9004, %v9116
        %v9118 = vpop.f32.mrb[0].mxu0
        %v9119 = vadd.f32 %v9006, %v9118
        %9120 = vmatprep.mubr.bf16.mxu0 %v8021
        %9121 = vmatmul.mubr.bf16.gmra.mrb[0].mxu0 %v8020
        %v9122 = vpop.f32.mrb[0].mxu0
        %v9123 = vadd.f32 %v9010, %v9122
        %v9124 = vpop.f32.mrb[0].mxu0
        %v9125 = vadd.f32 %v9012, %v9124
        %v9126 = vpop.f32.mrb[0].mxu0
        %v9127 = vadd.f32 %v9014, %v9126
        %v9128 = vpop.f32.mrb[0].mxu0
        %v9129 = vadd.f32 %v9016, %v9128
        %9130 = vmatprep.mubr.bf16.mxu0 %v8029
        %9131 = vmatmul.mubr.bf16.gmra.mrb[0].mxu0 %v8028
        %v9132 = vpop.f32.mrb[0].mxu0
        %v9133 = vadd.f32 %v9020, %v9132
        %v9134 = vpop.f32.mrb[0].mxu0
        %v9135 = vadd.f32 %v9022, %v9134
        %v9136 = vpop.f32.mrb[0].mxu0
        %v9137 = vadd.f32 %v9024, %v9136
        %v9138 = vpop.f32.mrb[0].mxu0
        %v9139 = vadd.f32 %v9026, %v9138
        %9140 = vmatprep.mubr.bf16.mxu0 %v8037
        %9141 = vmatmul.mubr.bf16.gmra.mrb[0].mxu0 %v8036
        %v9142 = vpop.f32.mrb[0].mxu0
        %v9143 = vadd.f32 %v9030, %v9142
        %v9144 = vpop.f32.mrb[0].mxu0
        %v9145 = vadd.f32 %v9032, %v9144
        %v9146 = vpop.f32.mrb[0].mxu0
        %v9147 = vadd.f32 %v9034, %v9146
        %v9148 = vpop.f32.mrb[0].mxu0
        %v9149 = vadd.f32 %v9036, %v9148
        %9150 = vmatprep.mubr.bf16.mxu0 %v8045
        %9151 = vmatmul.mubr.bf16.gmra.mrb[0].mxu0 %v8044
        %v9152 = vpop.f32.mrb[0].mxu0
        %v9153 = vadd.f32 %v9040, %v9152
        %v9154 = vpop.f32.mrb[0].mxu0
        %v9155 = vadd.f32 %v9042, %v9154
        %v9156 = vpop.f32.mrb[0].mxu0
        %v9157 = vadd.f32 %v9044, %v9156
        %v9158 = vpop.f32.mrb[0].mxu0
        %v9159 = vadd.f32 %v9046, %v9158
        %9160 = vmatprep.mubr.bf16.mxu0 %v8053
        %9161 = vmatmul.mubr.bf16.gmra.mrb[0].mxu0 %v8052
        %v9162 = vpop.f32.mrb[0].mxu0
        %v9163 = vadd.f32 %v9050, %v9162
        %v9164 = vpop.f32.mrb[0].mxu0
        %v9165 = vadd.f32 %v9052, %v9164
        %v9166 = vpop.f32.mrb[0].mxu0
        %v9167 = vadd.f32 %v9054, %v9166
        %v9168 = vpop.f32.mrb[0].mxu0
        %v9169 = vadd.f32 %v9056, %v9168
        %9170 = vmatprep.mubr.bf16.mxu0 %v8061
        %9171 = vmatmul.mubr.bf16.gmra.mrb[0].mxu0 %v8060
        %v9172 = vpop.f32.mrb[0].mxu0
        %v9173 = vadd.f32 %v9060, %v9172
        %v9174 = vpop.f32.mrb[0].mxu0
        %v9175 = vadd.f32 %v9062, %v9174
        %v9176 = vpop.f32.mrb[0].mxu0
        %v9177 = vadd.f32 %v9064, %v9176
        %v9178 = vpop.f32.mrb[0].mxu0
        %v9179 = vadd.f32 %v9066, %v9178
        %9180 = vmatprep.mubr.bf16.mxu0 %v8069
        %9181 = vmatmul.mubr.bf16.gmra.mrb[0].mxu0 %v8068
        %v9182 = vpop.f32.mrb[0].mxu0
        %v9183 = vadd.f32 %v9070, %v9182
        %v9184 = vpop.f32.mrb[0].mxu0
        %v9185 = vadd.f32 %v9072, %v9184
        %v9186 = vpop.f32.mrb[0].mxu0
        %v9187 = vadd.f32 %v9074, %v9186
        %v9188 = vpop.f32.mrb[0].mxu0
        %v9189 = vadd.f32 %v9076, %v9188
        %9190 = vdwg.mxu0
        %9191 = vmatprep.subr.bf16.mxu0 %v8693
        %9192 = vmatpush1.bf16.msra.mxu0 %v8692
        %9193 = vmatprep.subr.bf16.mxu0 %v8695
        %9194 = vmatpush1.bf16.msra.mxu0 %v8694
        %9195 = vmatprep.subr.bf16.mxu0 %v8697
        %9196 = vmatpush1.bf16.msra.mxu0 %v8696
        %9197 = vmatprep.subr.bf16.mxu0 %v8699
        %9198 = vmatpush1.bf16.msra.mxu0 %v8698
        %9199 = vmatprep.subr.bf16.mxu0 %v8701
        %9200 = vmatpush1.bf16.msra.mxu0 %v8700
        %9201 = vmatprep.subr.bf16.mxu0 %v8703
        %9202 = vmatpush1.bf16.msra.mxu0 %v8702
        %9203 = vmatprep.subr.bf16.mxu0 %v8705
        %9204 = vmatpush1.bf16.msra.mxu0 %v8704
        %9205 = vmatprep.subr.bf16.mxu0 %v8707
        %9206 = vmatpush1.bf16.msra.mxu0 %v8706
        %9207 = vmatprep.subr.bf16.mxu0 %v8709
        %9208 = vmatpush1.bf16.msra.mxu0 %v8708
        %9209 = vmatprep.subr.bf16.mxu0 %v8711
        %9210 = vmatpush1.bf16.msra.mxu0 %v8710
        %9211 = vmatprep.subr.bf16.mxu0 %v8713
        %9212 = vmatpush1.bf16.msra.mxu0 %v8712
        %9213 = vmatprep.subr.bf16.mxu0 %v8715
        %9214 = vmatpush1.bf16.msra.mxu0 %v8714
        %9215 = vmatprep.subr.bf16.mxu0 %v8717
        %9216 = vmatpush1.bf16.msra.mxu0 %v8716
        %9217 = vmatprep.subr.bf16.mxu0 %v8719
        %9218 = vmatpush1.bf16.msra.mxu0 %v8718
        %9219 = vmatprep.subr.bf16.mxu0 %v8721
        %9220 = vmatpush1.bf16.msra.mxu0 %v8720
        %9221 = vmatprep.subr.bf16.mxu0 %v8723
        %9222 = vmatpush1.bf16.msra.mxu0 %v8722
        %9223 = vmatprep.mubr.bf16.mxu0 %v8015
        %9224 = vmatmul.mubr.bf16.gmra.mrb[0].mxu0 %v8014
        %v9225 = vpop.f32.mrb[0].mxu0
        %v9226 = vadd.f32 %v9113, %v9225
        %v9227 = vpop.f32.mrb[0].mxu0
        %v9228 = vadd.f32 %v9115, %v9227
        %v9229 = vpop.f32.mrb[0].mxu0
        %v9230 = vadd.f32 %v9117, %v9229
        %v9231 = vpop.f32.mrb[0].mxu0
        %v9232 = vadd.f32 %v9119, %v9231
        %9233 = vmatprep.mubr.bf16.mxu0 %v8023
        %9234 = vmatmul.mubr.bf16.gmra.mrb[0].mxu0 %v8022
        %v9235 = vpop.f32.mrb[0].mxu0
        %v9236 = vadd.f32 %v9123, %v9235
        %v9237 = vpop.f32.mrb[0].mxu0
        %v9238 = vadd.f32 %v9125, %v9237
        %v9239 = vpop.f32.mrb[0].mxu0
        %v9240 = vadd.f32 %v9127, %v9239
        %v9241 = vpop.f32.mrb[0].mxu0
        %v9242 = vadd.f32 %v9129, %v9241
        %9243 = vmatprep.mubr.bf16.mxu0 %v8031
        %9244 = vmatmul.mubr.bf16.gmra.mrb[0].mxu0 %v8030
        %v9245 = vpop.f32.mrb[0].mxu0
        %v9246 = vadd.f32 %v9133, %v9245
        %v9247 = vpop.f32.mrb[0].mxu0
        %v9248 = vadd.f32 %v9135, %v9247
        %v9249 = vpop.f32.mrb[0].mxu0
        %v9250 = vadd.f32 %v9137, %v9249
        %v9251 = vpop.f32.mrb[0].mxu0
        %v9252 = vadd.f32 %v9139, %v9251
        %9253 = vmatprep.mubr.bf16.mxu0 %v8039
        %9254 = vmatmul.mubr.bf16.gmra.mrb[0].mxu0 %v8038
        %v9255 = vpop.f32.mrb[0].mxu0
        %v9256 = vadd.f32 %v9143, %v9255
        %v9257 = vpop.f32.mrb[0].mxu0
        %v9258 = vadd.f32 %v9145, %v9257
        %v9259 = vpop.f32.mrb[0].mxu0
        %v9260 = vadd.f32 %v9147, %v9259
        %v9261 = vpop.f32.mrb[0].mxu0
        %v9262 = vadd.f32 %v9149, %v9261
        %9263 = vmatprep.mubr.bf16.mxu0 %v8047
        %9264 = vmatmul.mubr.bf16.gmra.mrb[0].mxu0 %v8046
        %v9265 = vpop.f32.mrb[0].mxu0
        %v9266 = vadd.f32 %v9153, %v9265
        %v9267 = vpop.f32.mrb[0].mxu0
        %v9268 = vadd.f32 %v9155, %v9267
        %v9269 = vpop.f32.mrb[0].mxu0
        %v9270 = vadd.f32 %v9157, %v9269
        %v9271 = vpop.f32.mrb[0].mxu0
        %v9272 = vadd.f32 %v9159, %v9271
        %9273 = vmatprep.mubr.bf16.mxu0 %v8055
        %9274 = vmatmul.mubr.bf16.gmra.mrb[0].mxu0 %v8054
        %v9275 = vpop.f32.mrb[0].mxu0
        %v9276 = vadd.f32 %v9163, %v9275
        %v9277 = vpop.f32.mrb[0].mxu0
        %v9278 = vadd.f32 %v9165, %v9277
        %v9279 = vpop.f32.mrb[0].mxu0
        %v9280 = vadd.f32 %v9167, %v9279
        %v9281 = vpop.f32.mrb[0].mxu0
        %v9282 = vadd.f32 %v9169, %v9281
        %9283 = vmatprep.mubr.bf16.mxu0 %v8063
        %9284 = vmatmul.mubr.bf16.gmra.mrb[0].mxu0 %v8062
        %v9285 = vpop.f32.mrb[0].mxu0
        %v9286 = vadd.f32 %v9173, %v9285
        %v9287 = vpop.f32.mrb[0].mxu0
        %v9288 = vadd.f32 %v9175, %v9287
        %v9289 = vpop.f32.mrb[0].mxu0
        %v9290 = vadd.f32 %v9177, %v9289
        %v9291 = vpop.f32.mrb[0].mxu0
        %v9292 = vadd.f32 %v9179, %v9291
        %9293 = vmatprep.mubr.bf16.mxu0 %v8071
        %9294 = vmatmul.mubr.bf16.gmra.mrb[0].mxu0 %v8070
        %v9295 = vpop.f32.mrb[0].mxu0
        %v9296 = vadd.f32 %v9183, %v9295
        %v9297 = vpop.f32.mrb[0].mxu0
        %v9298 = vadd.f32 %v9185, %v9297
        %v9299 = vpop.f32.mrb[0].mxu0
        %v9300 = vadd.f32 %v9187, %v9299
        %v9301 = vpop.f32.mrb[0].mxu0
        %v9302 = vadd.f32 %v9189, %v9301
        %9303 = vdwg.mxu0
        %v9304 = vadd.f32 %v5714, %v9226
        %v9305 = vadd.f32 %v5715, %v9228
        %v9306 = vadd.f32 %v5716, %v9230
        %v9307 = vadd.f32 %v5717, %v9232
        %v9308 = vadd.f32 %v5718, %v9236
        %v9309 = vadd.f32 %v5719, %v9238
        %v9310 = vadd.f32 %v5720, %v9240
        %v9311 = vadd.f32 %v5721, %v9242
        %v9312 = vadd.f32 %v5722, %v9246
        %v9313 = vadd.f32 %v5723, %v9248
        %v9314 = vadd.f32 %v5724, %v9250
        %v9315 = vadd.f32 %v5725, %v9252
        %v9316 = vadd.f32 %v5726, %v9256
        %v9317 = vadd.f32 %v5727, %v9258
        %v9318 = vadd.f32 %v5728, %v9260
        %v9319 = vadd.f32 %v5729, %v9262
        %v9320 = vadd.f32 %v5730, %v9266
        %v9321 = vadd.f32 %v5731, %v9268
        %v9322 = vadd.f32 %v5732, %v9270
        %v9323 = vadd.f32 %v5733, %v9272
        %v9324 = vadd.f32 %v5734, %v9276
        %v9325 = vadd.f32 %v5735, %v9278
        %v9326 = vadd.f32 %v5736, %v9280
        %v9327 = vadd.f32 %v5737, %v9282
        %v9328 = vadd.f32 %v5738, %v9286
        %v9329 = vadd.f32 %v5739, %v9288
        %v9330 = vadd.f32 %v5740, %v9290
        %v9331 = vadd.f32 %v5741, %v9292
        %v9332 = vadd.f32 %v5742, %v9296
        %v9333 = vadd.f32 %v5743, %v9298
        %v9334 = vadd.f32 %v5744, %v9300
        %v9335 = vadd.f32 %v5745, %v9302
        %9336 = vst [vmem:[%s591] sm:$0xff] %v9304
        %9337 = vst [vmem:[%s591 + $0x8] sm:$0xff] %v9305
        %9338 = vst [vmem:[%s591 + $0x10] sm:$0xff] %v9306
        %9339 = vst [vmem:[%s591 + $0x18] sm:$0xff] %v9307
        %9340 = vst [vmem:[%s591 + $0x20] sm:$0xff] %v9308
        %9341 = vst [vmem:[%s591 + $0x28] sm:$0xff] %v9309
        %9342 = vst [vmem:[%s591 + $0x30] sm:$0xff] %v9310
        %9343 = vst [vmem:[%s591 + $0x38] sm:$0xff] %v9311
        %9344 = vst [vmem:[%s591 + $0x40] sm:$0xff] %v9312
        %9345 = vst [vmem:[%s591 + $0x48] sm:$0xff] %v9313
        %9346 = vst [vmem:[%s591 + $0x50] sm:$0xff] %v9314
        %9347 = vst [vmem:[%s591 + $0x58] sm:$0xff] %v9315
        %9348 = vst [vmem:[%s591 + $0x60] sm:$0xff] %v9316
        %9349 = vst [vmem:[%s591 + $0x68] sm:$0xff] %v9317
        %9350 = vst [vmem:[%s591 + $0x70] sm:$0xff] %v9318
        %9351 = vst [vmem:[%s591 + $0x78] sm:$0xff] %v9319
        %9352 = vst [vmem:[%s591 + $0x80] sm:$0xff] %v9320
        %9353 = vst [vmem:[%s591 + $0x88] sm:$0xff] %v9321
        %9354 = vst [vmem:[%s591 + $0x90] sm:$0xff] %v9322
        %9355 = vst [vmem:[%s591 + $0x98] sm:$0xff] %v9323
        %9356 = vst [vmem:[%s591 + $0xa0] sm:$0xff] %v9324
        %9357 = vst [vmem:[%s591 + $0xa8] sm:$0xff] %v9325
        %9358 = vst [vmem:[%s591 + $0xb0] sm:$0xff] %v9326
        %9359 = vst [vmem:[%s591 + $0xb8] sm:$0xff] %v9327
        %9360 = vst [vmem:[%s591 + $0xc0] sm:$0xff] %v9328
        %9361 = vst [vmem:[%s591 + $0xc8] sm:$0xff] %v9329
        %9362 = vst [vmem:[%s591 + $0xd0] sm:$0xff] %v9330
        %9363 = vst [vmem:[%s591 + $0xd8] sm:$0xff] %v9331
        %9364 = vst [vmem:[%s591 + $0xe0] sm:$0xff] %v9332
        %9365 = vst [vmem:[%s591 + $0xe8] sm:$0xff] %v9333
        %9366 = vst [vmem:[%s591 + $0xf0] sm:$0xff] %v9334
        %9367 = vst [vmem:[%s591 + $0xf8] sm:$0xff] %v9335
        %s9368 = sand.u32 %s357, 1
        %s9369 = scalar_lea.sflag [#allocation9], %s9368
        %s9370 = sand.u32 %s357, 1
        %s9371 = smul.addr %s9370, 256
        %s9372 = scalar_lea.vmem [#allocation19], %s9371
        // Predicated region
        $region112: #{tpu_custom_call.1} parent=75 // pred_check
          %p9373 = pneg %p367
        $region113: #{tpu_custom_call.1} parent=75 // pred_check_branch
          %9375 = sbr.rel (%p9373) target = $region115
        $region114: #{tpu_custom_call.1} parent=75 // pred_region
          %s9376 = smul.u32 16, %s39
          %s9378 = ssub.s32 4096, 4096
          %9379 = vsyncadd %s9369, %s9378
          %s9380 = smul.addr %s9376, 2
          %s9381 = smul.addr %s38, 64
          %s9382 = sadd.s32 %s9380, %s9381
          %s9383 = smul.addr %s9382, 128
          %s9384 = scalar_lea.hbm %s14, %s9383
          %s9385 = sshll.u32 %s9372, 4
          %s9386 = int_to_ptr.vmem [resolvable:$true] %s9385
          %9391 = dma.vmem_to_hbm [thread:$0]  %s9386, 4096, %s9384, %s9369, 256, 256, 16
        $region115: #{tpu_custom_call.1} parent=75 // pred_fallthru
          _
      $region76: #{tpu_custom_call.1} parent=5 // pred_fallthru
        _
      %p9392 = scmp.le.s32.totalorder 2, %s29
      // Predicated region
      $region116: #{tpu_custom_call.1} parent=5 // pred_check
        %p9393 = pneg %p9392
      $region117: #{tpu_custom_call.1} parent=5 // pred_check_branch
        %9395 = sbr.rel (%p9393) target = $region119
      $region118: #{tpu_custom_call.1} parent=5 // pred_region
        %s9396 = ssub.s32 %s29, 2
        // Predicated region
        $region120: #{tpu_custom_call.1} parent=118 // pred_check
          %p9397 = pneg %p373
        $region121: #{tpu_custom_call.1} parent=118 // pred_check_branch
          %9399 = sbr.rel (%p9397) target = $region123
        $region122: #{tpu_custom_call.1} parent=118 // pred_region
          %s9400 = sand.u32 %s358, 1
          %s9401 = scalar_lea.sflag [#allocation9], %s9400
          %s9402 = sand.u32 %s358, 1
          %s9403 = smul.addr %s9402, 256
          %s9404 = scalar_lea.vmem [#allocation19], %s9403
          %9405 = dma.done %s9401, 4096
        $region123: #{tpu_custom_call.1} parent=118 // pred_fallthru
          _
      $region119: #{tpu_custom_call.1} parent=5 // pred_fallthru
        _
    $region6: #{tpu_custom_call.1} parent=1 // loop_footer
      %s33 = sadd.s32 1, %s29
    $region7: #{tpu_custom_call.1} parent=1 // loop_footer_branch
      %28 = sbr.rel target = $region3
    $region8: #{tpu_custom_call.1} parent=1 // loop_exit
      _
    %9406 = vsyncpa [#allocation8], 1
    %s9407 = scalar_lea.sflag [#allocation8], 1
    %9408 = vsyncpa %s9407, 1
    %9409 = vsyncpa [#allocation11], 1
    %9410 = vsyncpa [#allocation14], 1
    %9411 = vsyncpa [#allocation17], 1
    %9412 = vsyncpa [#allocation9], 1
    %s9413 = scalar_lea.sflag [#allocation9], 1
    %9414 = vsyncpa %s9413, 1

</llo_original>
